<compile_context>
chip_gen: v5e
topology: v5e:2x2
jax: 0.10.0
libtpu: 0.0.40
codegen_flags: <defaults>
</compile_context>

<pallas_src>
import jax
import jax.numpy as jnp
from jax.experimental import pallas as pl
from jax.experimental.pallas import tpu as pltpu

_BN_EPS = 1e-5


# ----------------------------------------------------------------------------
# In-kernel helpers
# ----------------------------------------------------------------------------
def _conv3x3_from_padded(pad_ref, w_ref):
    """3x3 'valid' conv on a zero-padded (H+2, W+2, Cin) VMEM buffer.

    Single im2col matmul: (H*W, 9*Cin) @ (9*Cin, Cout), f32 accumulation.
    """
    hp, wp, cin = pad_ref.shape
    ho, wo = hp - 2, wp - 2
    parts = []
    for kh in range(3):
        for kw in range(3):
            parts.append(
                pad_ref[kh:kh + ho, kw:kw + wo, :].reshape(ho * wo, cin))
    cols = jnp.concatenate(parts, axis=-1)                 # (ho*wo, 9*cin)
    return jnp.dot(cols, w_ref[...], preferred_element_type=jnp.float32)


def _channel_stats(acc):
    """Per-channel [sum, sum_of_squares] partial stats of a (M, C) tile."""
    s = jnp.sum(acc, axis=0, keepdims=True)
    ss = jnp.sum(acc * acc, axis=0, keepdims=True)
    return jnp.concatenate([s, ss], axis=0)[None]          # (1, 2, C)


# ----------------------------------------------------------------------------
# Kernels
# ----------------------------------------------------------------------------
def _up_conv1_kernel(x1_ref, x2_ref, wt_ref, bt_ref, w1a_ref, w1b_ref, b1_ref,
                     h1_ref, st_ref, pad1_ref, pad2_ref):
    """Fused upsample (ConvT 2x2 s2) + concat-free conv1(3x3) + BN1 stats."""
    _, h, w, cin = x1_ref.shape
    _, hu, wu, cout = h1_ref.shape
    cup = pad1_ref.shape[-1]

    # --- ConvTranspose2d(2x2, stride 2): one matmul over all 4 taps ---------
    xf = x1_ref[0].reshape(h * w, cin)
    y = jnp.dot(xf, wt_ref[...], preferred_element_type=jnp.float32)
    y = y + bt_ref[...]                                    # (h*w, 4*cup)
    # columns ordered (kh, kw, c); pixel shuffle entirely in VMEM
    y = y.reshape(h, w, 4 * cup)
    b00 = y[:, :, 0 * cup:1 * cup]
    b01 = y[:, :, 1 * cup:2 * cup]
    b10 = y[:, :, 2 * cup:3 * cup]
    b11 = y[:, :, 3 * cup:4 * cup]
    r0 = jnp.stack([b00, b01], axis=2).reshape(h, wu, cup)   # output rows 2i
    r1 = jnp.stack([b10, b11], axis=2).reshape(h, wu, cup)   # output rows 2i+1
    up = jnp.stack([r0, r1], axis=1).reshape(hu, wu, cup)

    # --- zero-padded conv inputs built in VMEM (no HBM pad / concat) --------
    pad1_ref[...] = jnp.zeros_like(pad1_ref)
    pad2_ref[...] = jnp.zeros_like(pad2_ref)
    pad1_ref[1:hu + 1, 1:wu + 1, :] = up
    pad2_ref[1:hu + 1, 1:wu + 1, :] = x2_ref[0]

    # --- conv1: two channel groups accumulated into one result --------------
    acc = (_conv3x3_from_padded(pad1_ref, w1a_ref)
           + _conv3x3_from_padded(pad2_ref, w1b_ref)
           + b1_ref[...])                                   # (hu*wu, cout)

    h1_ref[...] = acc.reshape(1, hu, wu, cout)
    st_ref[...] = _channel_stats(acc)


def _bn_relu_conv2_kernel(h1_ref, sc_ref, sh_ref, w2_ref, b2_ref,
                          h2_ref, st_ref, pad_ref):
    """Fused BN1(batch affine) + ReLU on the input tile + conv2(3x3) + stats."""
    _, hu, wu, c = h1_ref.shape
    cout = h2_ref.shape[-1]

    sc = sc_ref[...].reshape(1, 1, c)
    sh = sh_ref[...].reshape(1, 1, c)
    a = jnp.maximum(h1_ref[0] * sc + sh, 0.0)               # BN1 + ReLU fused

    pad_ref[...] = jnp.zeros_like(pad_ref)
    pad_ref[1:hu + 1, 1:wu + 1, :] = a

    acc = _conv3x3_from_padded(pad_ref, w2_ref) + b2_ref[...]
    h2_ref[...] = acc.reshape(1, hu, wu, cout)
    st_ref[...] = _channel_stats(acc)


def _bn_relu_kernel(x_ref, sc_ref, sh_ref, o_ref):
    """Final BN2 + ReLU as a lane-dense (last dim = W*C) elementwise pass."""
    o_ref[...] = jnp.maximum(x_ref[...] * sc_ref[...] + sh_ref[...], 0.0)


# ----------------------------------------------------------------------------
# Wrapper
# ----------------------------------------------------------------------------
def _bn_scale_shift(stats, gamma, beta, count):
    s = jnp.sum(stats, axis=0)                              # (2, C)
    mean = s[0] / count
    var = jnp.maximum(s[1] / count - mean * mean, 0.0)      # biased (train mode)
    scale = gamma * jax.lax.rsqrt(var + _BN_EPS)
    shift = beta - mean * scale
    return scale, shift


def upsample_forward(x1_nchw, x2_nchw, p):
    # NCHW (PyTorch convention) -> NHWC (channels on TPU lanes)
    x1 = jnp.transpose(x1_nchw, (0, 2, 3, 1))
    x2 = jnp.transpose(x2_nchw, (0, 2, 3, 1))
    n, h, w, cin = x1.shape
    cup = p["up_w"].shape[1]
    cout = p["conv1_w"].shape[0]
    hu, wu = 2 * h, 2 * w

    # ---- parameter re-layouts (tiny, traced once under jit) ----------------
    wt = jnp.transpose(p["up_w"], (0, 2, 3, 1)).reshape(cin, 4 * cup)
    bt = jnp.tile(p["up_b"], 4).reshape(1, 4 * cup)
    w1 = p["conv1_w"]                                       # (Cout, 2*cup, 3, 3)
    w1a = jnp.transpose(w1[:, :cup], (2, 3, 1, 0)).reshape(9 * cup, cout)
    w1b = jnp.transpose(w1[:, cup:], (2, 3, 1, 0)).reshape(9 * cup, cout)
    b1 = p["conv1_b"].reshape(1, cout)
    w2 = jnp.transpose(p["conv2_w"], (2, 3, 1, 0)).reshape(9 * cout, cout)
    b2 = p["conv2_b"].reshape(1, cout)

    cparams = pltpu.CompilerParams(
        dimension_semantics=("parallel",),
        vmem_limit_bytes=64 * 1024 * 1024,
    )

    # ---- kernel 1: upsample + concat-free conv1 + partial BN1 stats --------
    h1, st1 = pl.pallas_call(
        _up_conv1_kernel,
        out_shape=(jax.ShapeDtypeStruct((n, hu, wu, cout), jnp.float32),
                   jax.ShapeDtypeStruct((n, 2, cout), jnp.float32)),
        grid=(n,),
        in_specs=[
            pl.BlockSpec((1, h, w, cin), lambda i: (i, 0, 0, 0)),
            pl.BlockSpec((1, hu, wu, cup), lambda i: (i, 0, 0, 0)),
            pl.BlockSpec((cin, 4 * cup), lambda i: (0, 0)),
            pl.BlockSpec((1, 4 * cup), lambda i: (0, 0)),
            pl.BlockSpec((9 * cup, cout), lambda i: (0, 0)),
            pl.BlockSpec((9 * cup, cout), lambda i: (0, 0)),
            pl.BlockSpec((1, cout), lambda i: (0, 0)),
        ],
        out_specs=(pl.BlockSpec((1, hu, wu, cout), lambda i: (i, 0, 0, 0)),
                   pl.BlockSpec((1, 2, cout), lambda i: (i, 0, 0))),
        scratch_shapes=[pltpu.VMEM((hu + 2, wu + 2, cup), jnp.float32),
                        pltpu.VMEM((hu + 2, wu + 2, cup), jnp.float32)],
        compiler_params=cparams,
    )(x1, x2, wt, bt, w1a, w1b, b1)

    count = jnp.float32(n * hu * wu)
    scale1, shift1 = _bn_scale_shift(st1, p["bn1_g"], p["bn1_b"], count)

    # ---- kernel 2: BN1+ReLU fused into conv2 + partial BN2 stats -----------
    h2, st2 = pl.pallas_call(
        _bn_relu_conv2_kernel,
        out_shape=(jax.ShapeDtypeStruct((n, hu, wu, cout), jnp.float32),
                   jax.ShapeDtypeStruct((n, 2, cout), jnp.float32)),
        grid=(n,),
        in_specs=[
            pl.BlockSpec((1, hu, wu, cout), lambda i: (i, 0, 0, 0)),
            pl.BlockSpec((1, cout), lambda i: (0, 0)),
            pl.BlockSpec((1, cout), lambda i: (0, 0)),
            pl.BlockSpec((9 * cout, cout), lambda i: (0, 0)),
            pl.BlockSpec((1, cout), lambda i: (0, 0)),
        ],
        out_specs=(pl.BlockSpec((1, hu, wu, cout), lambda i: (i, 0, 0, 0)),
                   pl.BlockSpec((1, 2, cout), lambda i: (i, 0, 0))),
        scratch_shapes=[pltpu.VMEM((hu + 2, wu + 2, cout), jnp.float32)],
        compiler_params=cparams,
    )(h1, scale1.reshape(1, cout), shift1.reshape(1, cout), w2, b2)

    scale2, shift2 = _bn_scale_shift(st2, p["bn2_g"], p["bn2_b"], count)

    # ---- kernel 3: final BN2 + ReLU (lane-dense, row-tiled) -----------------
    rows = n * hu
    lanes = wu * cout
    xf = h2.reshape(rows, lanes)
    sc_row = jnp.tile(scale2, wu).reshape(1, lanes)
    sh_row = jnp.tile(shift2, wu).reshape(1, lanes)
    tr = rows if rows <= 256 else 256
    out = pl.pallas_call(
        _bn_relu_kernel,
        out_shape=jax.ShapeDtypeStruct((rows, lanes), jnp.float32),
        grid=(pl.cdiv(rows, tr),),
        in_specs=[pl.BlockSpec((tr, lanes), lambda i: (i, 0)),
                  pl.BlockSpec((1, lanes), lambda i: (0, 0)),
                  pl.BlockSpec((1, lanes), lambda i: (0, 0))],
        out_specs=pl.BlockSpec((tr, lanes), lambda i: (i, 0)),
        compiler_params=pltpu.CompilerParams(
            dimension_semantics=("parallel",)),
    )(xf, sc_row, sh_row)

    out = out.reshape(n, hu, wu, cout)
    return jnp.transpose(out, (0, 3, 1, 2))                 # NHWC -> NCHW


# ----------------------------------------------------------------------------
# Parameters
# ----------------------------------------------------------------------------
def init_params(key, ch_in, ch_out):
    ks = jax.random.split(key, 6)
    cup = ch_in // 2
    return {
        # ConvTranspose2d(ch_in, ch_in//2, 2, 2): weight (Cin, Cup, 2, 2)
        "up_w": 0.1 * jax.random.normal(ks[0], (ch_in, cup, 2, 2), jnp.float32),
        "up_b": 0.1 * jax.random.normal(ks[1], (cup,), jnp.float32),
        # Conv2d(ch_in, ch_out, 3): weight (Cout, Cin, 3, 3)
        "conv1_w": 0.1 * jax.random.normal(ks[2], (ch_out, ch_in, 3, 3), jnp.float32),
        "conv1_b": 0.1 * jax.random.normal(ks[3], (ch_out,), jnp.float32),
        "bn1_g": jnp.ones((ch_out,), jnp.float32),
        "bn1_b": jnp.zeros((ch_out,), jnp.float32),
        "conv2_w": 0.1 * jax.random.normal(ks[4], (ch_out, ch_out, 3, 3), jnp.float32),
        "conv2_b": 0.1 * jax.random.normal(ks[5], (ch_out,), jnp.float32),
        "bn2_g": jnp.ones((ch_out,), jnp.float32),
        "bn2_b": jnp.zeros((ch_out,), jnp.float32),
    }


if __name__ == "__main__":
    ch_in, ch_out = 8, 8
    N, H, W = 2, 8, 8                                  # x1 spatial; x2 is 2x larger
    key = jax.random.PRNGKey(0)
    k1, k2, kp = jax.random.split(key, 3)

    x1 = jax.random.normal(k1, (N, ch_in, H, W), jnp.float32)            # NCHW
    x2 = jax.random.normal(k2, (N, ch_in // 2, 2 * H, 2 * W), jnp.float32)
    params = init_params(kp, ch_in, ch_out)

    out = jax.jit(upsample_forward)(x1, x2, params)
    out = jax.block_until_ready(out)
    assert out.shape == (N, ch_out, 2 * H, 2 * W)
    print("KERNEL_OK")
</pallas_src>

<mosaic_0001>
module attributes {stable_mosaic.version = 11 : i64} {
  func.func @_bn_relu_conv2_kernel(%arg0: i32, %arg1: memref<1x16x16x8xf32, #tpu.memory_space<vmem>>, %arg2: memref<1x8xf32, #tpu.memory_space<vmem>>, %arg3: memref<1x8xf32, #tpu.memory_space<vmem>>, %arg4: memref<72x8xf32, #tpu.memory_space<vmem>>, %arg5: memref<1x8xf32, #tpu.memory_space<vmem>>, %arg6: memref<1x16x16x8xf32, #tpu.memory_space<vmem>>, %arg7: memref<1x2x8xf32, #tpu.memory_space<vmem>>, %arg8: memref<18x18x8xf32, #tpu.memory_space<vmem>>) attributes {dimension_semantics = [#tpu.dimension_semantics<parallel>], iteration_bounds = array<i64: 2>, scalar_prefetch = 0 : i64, scratch_operands = 1 : i64, tpu.core_type = #tpu.core_type<tc>, window_params = [{transform_indices = @transform_0, window_bounds = array<i64: 1, 16, 16, 8>}, {pipeline_mode = #tpu.pipeline_mode<synchronous>, transform_indices = @transform_1, window_bounds = array<i64: 1, 8>}, {pipeline_mode = #tpu.pipeline_mode<synchronous>, transform_indices = @transform_2, window_bounds = array<i64: 1, 8>}, {pipeline_mode = #tpu.pipeline_mode<synchronous>, transform_indices = @transform_3, window_bounds = array<i64: 72, 8>}, {pipeline_mode = #tpu.pipeline_mode<synchronous>, transform_indices = @transform_4, window_bounds = array<i64: 1, 8>}, {transform_indices = @transform_5, window_bounds = array<i64: 1, 16, 16, 8>}, {transform_indices = @transform_6, window_bounds = array<i64: 1, 2, 8>}]} {
    %c0 = arith.constant 0 : index
    %c0_0 = arith.constant 0 : index
    %0 = vector.load %arg2[%c0, %c0_0] : memref<1x8xf32, #tpu.memory_space<vmem>>, vector<1x8xf32>
    %1 = vector.shape_cast %0 : vector<1x8xf32> to vector<1x1x8xf32>
    %c0_1 = arith.constant 0 : index
    %c0_2 = arith.constant 0 : index
    %2 = vector.load %arg3[%c0_1, %c0_2] : memref<1x8xf32, #tpu.memory_space<vmem>>, vector<1x8xf32>
    %3 = vector.shape_cast %2 : vector<1x8xf32> to vector<1x1x8xf32>
    %c0_3 = arith.constant 0 : index
    %c0_4 = arith.constant 0 : index
    %c0_5 = arith.constant 0 : index
    %c0_6 = arith.constant 0 : index
    %4 = vector.load %arg1[%c0_3, %c0_4, %c0_5, %c0_6] : memref<1x16x16x8xf32, #tpu.memory_space<vmem>>, vector<1x16x16x8xf32>
    %5 = vector.shape_cast %4 : vector<1x16x16x8xf32> to vector<16x16x8xf32>
    %6 = vector.broadcast %1 : vector<1x1x8xf32> to vector<16x16x8xf32>
    %7 = arith.mulf %5, %6 : vector<16x16x8xf32>
    %8 = vector.broadcast %3 : vector<1x1x8xf32> to vector<16x16x8xf32>
    %9 = arith.addf %7, %8 : vector<16x16x8xf32>
    %cst = arith.constant 0.000000e+00 : f32
    %10 = vector.broadcast %cst : f32 to vector<16x16x8xf32>
    %11 = arith.maximumf %9, %10 : vector<16x16x8xf32>
    %cst_7 = arith.constant 0.000000e+00 : f32
    %12 = vector.broadcast %cst_7 : f32 to vector<18x18x8xf32>
    %c0_8 = arith.constant 0 : index
    %c0_9 = arith.constant 0 : index
    %c0_10 = arith.constant 0 : index
    %13 = vector.load %arg8[%c0_8, %c0_9, %c0_10] : memref<18x18x8xf32, #tpu.memory_space<vmem>>, vector<18x18x8xf32>
    tpu.vector_store %arg8[%c0_8, %c0_9, %c0_10], %12 {strides = array<i32>} : memref<18x18x8xf32, #tpu.memory_space<vmem>>, vector<18x18x8xf32>,
    %c1 = arith.constant 1 : index
    %c1_11 = arith.constant 1 : index
    %c0_12 = arith.constant 0 : index
    %14 = vector.load %arg8[%c1, %c1_11, %c0_12] : memref<18x18x8xf32, #tpu.memory_space<vmem>>, vector<16x16x8xf32>
    tpu.vector_store %arg8[%c1, %c1_11, %c0_12], %11 {strides = array<i32>} : memref<18x18x8xf32, #tpu.memory_space<vmem>>, vector<16x16x8xf32>,
    %c0_13 = arith.constant 0 : index
    %c0_14 = arith.constant 0 : index
    %c0_15 = arith.constant 0 : index
    %15 = vector.load %arg8[%c0_13, %c0_14, %c0_15] : memref<18x18x8xf32, #tpu.memory_space<vmem>>, vector<16x16x8xf32>
    %16 = vector.shape_cast %15 : vector<16x16x8xf32> to vector<256x8xf32>
    %c0_16 = arith.constant 0 : index
    %c1_17 = arith.constant 1 : index
    %c0_18 = arith.constant 0 : index
    %17 = vector.load %arg8[%c0_16, %c1_17, %c0_18] : memref<18x18x8xf32, #tpu.memory_space<vmem>>, vector<16x16x8xf32>
    %18 = vector.shape_cast %17 : vector<16x16x8xf32> to vector<256x8xf32>
    %c0_19 = arith.constant 0 : index
    %c2 = arith.constant 2 : index
    %c0_20 = arith.constant 0 : index
    %19 = vector.load %arg8[%c0_19, %c2, %c0_20] : memref<18x18x8xf32, #tpu.memory_space<vmem>>, vector<16x16x8xf32>
    %20 = vector.shape_cast %19 : vector<16x16x8xf32> to vector<256x8xf32>
    %c1_21 = arith.constant 1 : index
    %c0_22 = arith.constant 0 : index
    %c0_23 = arith.constant 0 : index
    %21 = vector.load %arg8[%c1_21, %c0_22, %c0_23] : memref<18x18x8xf32, #tpu.memory_space<vmem>>, vector<16x16x8xf32>
    %22 = vector.shape_cast %21 : vector<16x16x8xf32> to vector<256x8xf32>
    %c1_24 = arith.constant 1 : index
    %c1_25 = arith.constant 1 : index
    %c0_26 = arith.constant 0 : index
    %23 = vector.load %arg8[%c1_24, %c1_25, %c0_26] : memref<18x18x8xf32, #tpu.memory_space<vmem>>, vector<16x16x8xf32>
    %24 = vector.shape_cast %23 : vector<16x16x8xf32> to vector<256x8xf32>
    %c1_27 = arith.constant 1 : index
    %c2_28 = arith.constant 2 : index
    %c0_29 = arith.constant 0 : index
    %25 = vector.load %arg8[%c1_27, %c2_28, %c0_29] : memref<18x18x8xf32, #tpu.memory_space<vmem>>, vector<16x16x8xf32>
    %26 = vector.shape_cast %25 : vector<16x16x8xf32> to vector<256x8xf32>
    %c2_30 = arith.constant 2 : index
    %c0_31 = arith.constant 0 : index
    %c0_32 = arith.constant 0 : index
    %27 = vector.load %arg8[%c2_30, %c0_31, %c0_32] : memref<18x18x8xf32, #tpu.memory_space<vmem>>, vector<16x16x8xf32>
    %28 = vector.shape_cast %27 : vector<16x16x8xf32> to vector<256x8xf32>
    %c2_33 = arith.constant 2 : index
    %c1_34 = arith.constant 1 : index
    %c0_35 = arith.constant 0 : index
    %29 = vector.load %arg8[%c2_33, %c1_34, %c0_35] : memref<18x18x8xf32, #tpu.memory_space<vmem>>, vector<16x16x8xf32>
    %30 = vector.shape_cast %29 : vector<16x16x8xf32> to vector<256x8xf32>
    %c2_36 = arith.constant 2 : index
    %c2_37 = arith.constant 2 : index
    %c0_38 = arith.constant 0 : index
    %31 = vector.load %arg8[%c2_36, %c2_37, %c0_38] : memref<18x18x8xf32, #tpu.memory_space<vmem>>, vector<16x16x8xf32>
    %32 = vector.shape_cast %31 : vector<16x16x8xf32> to vector<256x8xf32>
    %33 = tpu.concatenate %16, %18, %20, %22, %24, %26, %28, %30, %32 in 1 : vector<256x8xf32>, vector<256x8xf32>, vector<256x8xf32>, vector<256x8xf32>, vector<256x8xf32>, vector<256x8xf32>, vector<256x8xf32>, vector<256x8xf32>, vector<256x8xf32> -> vector<256x72xf32>
    %c0_39 = arith.constant 0 : index
    %c0_40 = arith.constant 0 : index
    %34 = vector.load %arg4[%c0_39, %c0_40] : memref<72x8xf32, #tpu.memory_space<vmem>>, vector<72x8xf32>
    %cst_41 = arith.constant dense<0.000000e+00> : vector<256x8xf32>
    %35 = tpu.matmul %33, %34, %cst_41 {dimension_numbers = #tpu.dot_dimension_numbers<[1], [0], [0], [1], [0, 0, 1, 1], [], []>} : vector<256x72xf32>, vector<72x8xf32>, vector<256x8xf32> -> vector<256x8xf32>
    %c0_42 = arith.constant 0 : index
    %c0_43 = arith.constant 0 : index
    %36 = vector.load %arg5[%c0_42, %c0_43] : memref<1x8xf32, #tpu.memory_space<vmem>>, vector<1x8xf32>
    %37 = vector.broadcast %36 : vector<1x8xf32> to vector<256x8xf32>
    %38 = arith.addf %35, %37 : vector<256x8xf32>
    %39 = vector.shape_cast %38 : vector<256x8xf32> to vector<1x16x16x8xf32>
    %c0_44 = arith.constant 0 : index
    %c0_45 = arith.constant 0 : index
    %c0_46 = arith.constant 0 : index
    %c0_47 = arith.constant 0 : index
    %40 = vector.load %arg6[%c0_44, %c0_45, %c0_46, %c0_47] : memref<1x16x16x8xf32, #tpu.memory_space<vmem>>, vector<1x16x16x8xf32>
    tpu.vector_store %arg6[%c0_44, %c0_45, %c0_46, %c0_47], %39 {strides = array<i32>} : memref<1x16x16x8xf32, #tpu.memory_space<vmem>>, vector<1x16x16x8xf32>,
    %cst_48 = arith.constant dense<0.000000e+00> : vector<8xf32>
    %41 = vector.multi_reduction <add>, %38, %cst_48 [0] : vector<256x8xf32> to vector<8xf32>
    %42 = vector.shape_cast %41 : vector<8xf32> to vector<1x8xf32>
    %43 = arith.mulf %38, %38 : vector<256x8xf32>
    %cst_49 = arith.constant dense<0.000000e+00> : vector<8xf32>
    %44 = vector.multi_reduction <add>, %43, %cst_49 [0] : vector<256x8xf32> to vector<8xf32>
    %45 = vector.shape_cast %44 : vector<8xf32> to vector<1x8xf32>
    %46 = tpu.concatenate %42, %45 in 0 : vector<1x8xf32>, vector<1x8xf32> -> vector<2x8xf32>
    %47 = vector.shape_cast %46 : vector<2x8xf32> to vector<1x2x8xf32>
    %c0_50 = arith.constant 0 : index
    %c0_51 = arith.constant 0 : index
    %c0_52 = arith.constant 0 : index
    %48 = vector.load %arg7[%c0_50, %c0_51, %c0_52] : memref<1x2x8xf32, #tpu.memory_space<vmem>>, vector<1x2x8xf32>
    tpu.vector_store %arg7[%c0_50, %c0_51, %c0_52], %47 {strides = array<i32>} : memref<1x2x8xf32, #tpu.memory_space<vmem>>, vector<1x2x8xf32>,
    return
  }
  func.func @transform_0(%arg0: i32) -> (i32, i32, i32, i32) {
    %c0_i32 = arith.constant 0 : i32
    %c0_i32_0 = arith.constant 0 : i32
    %c0_i32_1 = arith.constant 0 : i32
    %c0_i32_2 = arith.constant 0 : i32
    return %arg0, %c0_i32, %c0_i32_0, %c0_i32_1 : i32, i32, i32, i32
  }
  func.func @transform_1(%arg0: i32) -> (i32, i32) {
    %c0_i32 = arith.constant 0 : i32
    %c0_i32_0 = arith.constant 0 : i32
    %c0_i32_1 = arith.constant 0 : i32
    return %c0_i32, %c0_i32_0 : i32, i32
  }
  func.func @transform_2(%arg0: i32) -> (i32, i32) {
    %c0_i32 = arith.constant 0 : i32
    %c0_i32_0 = arith.constant 0 : i32
    %c0_i32_1 = arith.constant 0 : i32
    return %c0_i32, %c0_i32_0 : i32, i32
  }
  func.func @transform_3(%arg0: i32) -> (i32, i32) {
    %c0_i32 = arith.constant 0 : i32
    %c0_i32_0 = arith.constant 0 : i32
    %c0_i32_1 = arith.constant 0 : i32
    return %c0_i32, %c0_i32_0 : i32, i32
  }
  func.func @transform_4(%arg0: i32) -> (i32, i32) {
    %c0_i32 = arith.constant 0 : i32
    %c0_i32_0 = arith.constant 0 : i32
    %c0_i32_1 = arith.constant 0 : i32
    return %c0_i32, %c0_i32_0 : i32, i32
  }
  func.func @transform_5(%arg0: i32) -> (i32, i32, i32, i32) {
    %c0_i32 = arith.constant 0 : i32
    %c0_i32_0 = arith.constant 0 : i32
    %c0_i32_1 = arith.constant 0 : i32
    %c0_i32_2 = arith.constant 0 : i32
    return %arg0, %c0_i32, %c0_i32_0, %c0_i32_1 : i32, i32, i32, i32
  }
  func.func @transform_6(%arg0: i32) -> (i32, i32, i32) {
    %c0_i32 = arith.constant 0 : i32
    %c0_i32_0 = arith.constant 0 : i32
    %c0_i32_1 = arith.constant 0 : i32
    return %arg0, %c0_i32, %c0_i32_0 : i32, i32, i32
  }
}

module attributes {stable_mosaic.version = 11 : i64} {
  func.func @_up_conv1_kernel(%arg0: i32, %arg1: memref<1x8x8x8xf32, #tpu.memory_space<vmem>>, %arg2: memref<1x16x16x4xf32, #tpu.memory_space<vmem>>, %arg3: memref<8x16xf32, #tpu.memory_space<vmem>>, %arg4: memref<1x16xf32, #tpu.memory_space<vmem>>, %arg5: memref<36x8xf32, #tpu.memory_space<vmem>>, %arg6: memref<36x8xf32, #tpu.memory_space<vmem>>, %arg7: memref<1x8xf32, #tpu.memory_space<vmem>>, %arg8: memref<1x16x16x8xf32, #tpu.memory_space<vmem>>, %arg9: memref<1x2x8xf32, #tpu.memory_space<vmem>>, %arg10: memref<18x18x4xf32, #tpu.memory_space<vmem>>, %arg11: memref<18x18x4xf32, #tpu.memory_space<vmem>>) attributes {dimension_semantics = [#tpu.dimension_semantics<parallel>], iteration_bounds = array<i64: 2>, scalar_prefetch = 0 : i64, scratch_operands = 2 : i64, tpu.core_type = #tpu.core_type<tc>, window_params = [{transform_indices = @transform_0, window_bounds = array<i64: 1, 8, 8, 8>}, {transform_indices = @transform_1, window_bounds = array<i64: 1, 16, 16, 4>}, {pipeline_mode = #tpu.pipeline_mode<synchronous>, transform_indices = @transform_2, window_bounds = array<i64: 8, 16>}, {pipeline_mode = #tpu.pipeline_mode<synchronous>, transform_indices = @transform_3, window_bounds = array<i64: 1, 16>}, {pipeline_mode = #tpu.pipeline_mode<synchronous>, transform_indices = @transform_4, window_bounds = array<i64: 36, 8>}, {pipeline_mode = #tpu.pipeline_mode<synchronous>, transform_indices = @transform_5, window_bounds = array<i64: 36, 8>}, {pipeline_mode = #tpu.pipeline_mode<synchronous>, transform_indices = @transform_6, window_bounds = array<i64: 1, 8>}, {transform_indices = @transform_7, window_bounds = array<i64: 1, 16, 16, 8>}, {transform_indices = @transform_8, window_bounds = array<i64: 1, 2, 8>}]} {
    %c0 = arith.constant 0 : index
    %c0_0 = arith.constant 0 : index
    %c0_1 = arith.constant 0 : index
    %c0_2 = arith.constant 0 : index
    %0 = vector.load %arg1[%c0, %c0_0, %c0_1, %c0_2] : memref<1x8x8x8xf32, #tpu.memory_space<vmem>>, vector<1x8x8x8xf32>
    %1 = vector.shape_cast %0 : vector<1x8x8x8xf32> to vector<8x8x8xf32>
    %2 = vector.shape_cast %1 : vector<8x8x8xf32> to vector<64x8xf32>
    %c0_3 = arith.constant 0 : index
    %c0_4 = arith.constant 0 : index
    %3 = vector.load %arg3[%c0_3, %c0_4] : memref<8x16xf32, #tpu.memory_space<vmem>>, vector<8x16xf32>
    %cst = arith.constant dense<0.000000e+00> : vector<64x16xf32>
    %4 = tpu.matmul %2, %3, %cst {dimension_numbers = #tpu.dot_dimension_numbers<[1], [0], [0], [1], [0, 0, 1, 1], [], []>} : vector<64x8xf32>, vector<8x16xf32>, vector<64x16xf32> -> vector<64x16xf32>
    %c0_5 = arith.constant 0 : index
    %c0_6 = arith.constant 0 : index
    %5 = vector.load %arg4[%c0_5, %c0_6] : memref<1x16xf32, #tpu.memory_space<vmem>>, vector<1x16xf32>
    %6 = vector.broadcast %5 : vector<1x16xf32> to vector<64x16xf32>
    %7 = arith.addf %4, %6 : vector<64x16xf32>
    %8 = vector.shape_cast %7 : vector<64x16xf32> to vector<8x8x16xf32>
    %9 = vector.extract_strided_slice %8 {offsets = [0, 0, 0], sizes = [8, 8, 4], strides = [1, 1, 1]} : vector<8x8x16xf32> to vector<8x8x4xf32>
    %10 = vector.extract_strided_slice %8 {offsets = [0, 0, 4], sizes = [8, 8, 4], strides = [1, 1, 1]} : vector<8x8x16xf32> to vector<8x8x4xf32>
    %11 = vector.extract_strided_slice %8 {offsets = [0, 0, 8], sizes = [8, 8, 4], strides = [1, 1, 1]} : vector<8x8x16xf32> to vector<8x8x4xf32>
    %12 = vector.extract_strided_slice %8 {offsets = [0, 0, 12], sizes = [8, 8, 4], strides = [1, 1, 1]} : vector<8x8x16xf32> to vector<8x8x4xf32>
    %13 = vector.shape_cast %9 : vector<8x8x4xf32> to vector<8x8x1x4xf32>
    %14 = vector.shape_cast %10 : vector<8x8x4xf32> to vector<8x8x1x4xf32>
    %15 = tpu.concatenate %13, %14 in 2 : vector<8x8x1x4xf32>, vector<8x8x1x4xf32> -> vector<8x8x2x4xf32>
    %16 = vector.shape_cast %15 : vector<8x8x2x4xf32> to vector<8x16x4xf32>
    %17 = vector.shape_cast %11 : vector<8x8x4xf32> to vector<8x8x1x4xf32>
    %18 = vector.shape_cast %12 : vector<8x8x4xf32> to vector<8x8x1x4xf32>
    %19 = tpu.concatenate %17, %18 in 2 : vector<8x8x1x4xf32>, vector<8x8x1x4xf32> -> vector<8x8x2x4xf32>
    %20 = vector.shape_cast %19 : vector<8x8x2x4xf32> to vector<8x16x4xf32>
    %21 = vector.shape_cast %16 : vector<8x16x4xf32> to vector<8x1x16x4xf32>
    %22 = vector.shape_cast %20 : vector<8x16x4xf32> to vector<8x1x16x4xf32>
    %23 = tpu.concatenate %21, %22 in 1 : vector<8x1x16x4xf32>, vector<8x1x16x4xf32> -> vector<8x2x16x4xf32>
    %24 = vector.shape_cast %23 : vector<8x2x16x4xf32> to vector<16x16x4xf32>
    %cst_7 = arith.constant 0.000000e+00 : f32
    %25 = vector.broadcast %cst_7 : f32 to vector<18x18x4xf32>
    %c0_8 = arith.constant 0 : index
    %c0_9 = arith.constant 0 : index
    %c0_10 = arith.constant 0 : index
    %26 = vector.load %arg10[%c0_8, %c0_9, %c0_10] : memref<18x18x4xf32, #tpu.memory_space<vmem>>, vector<18x18x4xf32>
    tpu.vector_store %arg10[%c0_8, %c0_9, %c0_10], %25 {strides = array<i32>} : memref<18x18x4xf32, #tpu.memory_space<vmem>>, vector<18x18x4xf32>,
    %cst_11 = arith.constant 0.000000e+00 : f32
    %27 = vector.broadcast %cst_11 : f32 to vector<18x18x4xf32>
    %c0_12 = arith.constant 0 : index
    %c0_13 = arith.constant 0 : index
    %c0_14 = arith.constant 0 : index
    %28 = vector.load %arg11[%c0_12, %c0_13, %c0_14] : memref<18x18x4xf32, #tpu.memory_space<vmem>>, vector<18x18x4xf32>
    tpu.vector_store %arg11[%c0_12, %c0_13, %c0_14], %27 {strides = array<i32>} : memref<18x18x4xf32, #tpu.memory_space<vmem>>, vector<18x18x4xf32>,
    %c1 = arith.constant 1 : index
    %c1_15 = arith.constant 1 : index
    %c0_16 = arith.constant 0 : index
    %29 = vector.load %arg10[%c1, %c1_15, %c0_16] : memref<18x18x4xf32, #tpu.memory_space<vmem>>, vector<16x16x4xf32>
    tpu.vector_store %arg10[%c1, %c1_15, %c0_16], %24 {strides = array<i32>} : memref<18x18x4xf32, #tpu.memory_space<vmem>>, vector<16x16x4xf32>,
    %c0_17 = arith.constant 0 : index
    %c0_18 = arith.constant 0 : index
    %c0_19 = arith.constant 0 : index
    %c0_20 = arith.constant 0 : index
    %30 = vector.load %arg2[%c0_17, %c0_18, %c0_19, %c0_20] : memref<1x16x16x4xf32, #tpu.memory_space<vmem>>, vector<1x16x16x4xf32>
    %31 = vector.shape_cast %30 : vector<1x16x16x4xf32> to vector<16x16x4xf32>
    %c1_21 = arith.constant 1 : index
    %c1_22 = arith.constant 1 : index
    %c0_23 = arith.constant 0 : index
    %32 = vector.load %arg11[%c1_21, %c1_22, %c0_23] : memref<18x18x4xf32, #tpu.memory_space<vmem>>, vector<16x16x4xf32>
    tpu.vector_store %arg11[%c1_21, %c1_22, %c0_23], %31 {strides = array<i32>} : memref<18x18x4xf32, #tpu.memory_space<vmem>>, vector<16x16x4xf32>,
    %c0_24 = arith.constant 0 : index
    %c0_25 = arith.constant 0 : index
    %c0_26 = arith.constant 0 : index
    %33 = vector.load %arg10[%c0_24, %c0_25, %c0_26] : memref<18x18x4xf32, #tpu.memory_space<vmem>>, vector<16x16x4xf32>
    %34 = vector.shape_cast %33 : vector<16x16x4xf32> to vector<256x4xf32>
    %c0_27 = arith.constant 0 : index
    %c1_28 = arith.constant 1 : index
    %c0_29 = arith.constant 0 : index
    %35 = vector.load %arg10[%c0_27, %c1_28, %c0_29] : memref<18x18x4xf32, #tpu.memory_space<vmem>>, vector<16x16x4xf32>
    %36 = vector.shape_cast %35 : vector<16x16x4xf32> to vector<256x4xf32>
    %c0_30 = arith.constant 0 : index
    %c2 = arith.constant 2 : index
    %c0_31 = arith.constant 0 : index
    %37 = vector.load %arg10[%c0_30, %c2, %c0_31] : memref<18x18x4xf32, #tpu.memory_space<vmem>>, vector<16x16x4xf32>
    %38 = vector.shape_cast %37 : vector<16x16x4xf32> to vector<256x4xf32>
    %c1_32 = arith.constant 1 : index
    %c0_33 = arith.constant 0 : index
    %c0_34 = arith.constant 0 : index
    %39 = vector.load %arg10[%c1_32, %c0_33, %c0_34] : memref<18x18x4xf32, #tpu.memory_space<vmem>>, vector<16x16x4xf32>
    %40 = vector.shape_cast %39 : vector<16x16x4xf32> to vector<256x4xf32>
    %c1_35 = arith.constant 1 : index
    %c1_36 = arith.constant 1 : index
    %c0_37 = arith.constant 0 : index
    %41 = vector.load %arg10[%c1_35, %c1_36, %c0_37] : memref<18x18x4xf32, #tpu.memory_space<vmem>>, vector<16x16x4xf32>
    %42 = vector.shape_cast %41 : vector<16x16x4xf32> to vector<256x4xf32>
    %c1_38 = arith.constant 1 : index
    %c2_39 = arith.constant 2 : index
    %c0_40 = arith.constant 0 : index
    %43 = vector.load %arg10[%c1_38, %c2_39, %c0_40] : memref<18x18x4xf32, #tpu.memory_space<vmem>>, vector<16x16x4xf32>
    %44 = vector.shape_cast %43 : vector<16x16x4xf32> to vector<256x4xf32>
    %c2_41 = arith.constant 2 : index
    %c0_42 = arith.constant 0 : index
    %c0_43 = arith.constant 0 : index
    %45 = vector.load %arg10[%c2_41, %c0_42, %c0_43] : memref<18x18x4xf32, #tpu.memory_space<vmem>>, vector<16x16x4xf32>
    %46 = vector.shape_cast %45 : vector<16x16x4xf32> to vector<256x4xf32>
    %c2_44 = arith.constant 2 : index
    %c1_45 = arith.constant 1 : index
    %c0_46 = arith.constant 0 : index
    %47 = vector.load %arg10[%c2_44, %c1_45, %c0_46] : memref<18x18x4xf32, #tpu.memory_space<vmem>>, vector<16x16x4xf32>
    %48 = vector.shape_cast %47 : vector<16x16x4xf32> to vector<256x4xf32>
    %c2_47 = arith.constant 2 : index
    %c2_48 = arith.constant 2 : index
    %c0_49 = arith.constant 0 : index
    %49 = vector.load %arg10[%c2_47, %c2_48, %c0_49] : memref<18x18x4xf32, #tpu.memory_space<vmem>>, vector<16x16x4xf32>
    %50 = vector.shape_cast %49 : vector<16x16x4xf32> to vector<256x4xf32>
    %51 = tpu.concatenate %34, %36, %38, %40, %42, %44, %46, %48, %50 in 1 : vector<256x4xf32>, vector<256x4xf32>, vector<256x4xf32>, vector<256x4xf32>, vector<256x4xf32>, vector<256x4xf32>, vector<256x4xf32>, vector<256x4xf32>, vector<256x4xf32> -> vector<256x36xf32>
    %c0_50 = arith.constant 0 : index
    %c0_51 = arith.constant 0 : index
    %52 = vector.load %arg5[%c0_50, %c0_51] : memref<36x8xf32, #tpu.memory_space<vmem>>, vector<36x8xf32>
    %cst_52 = arith.constant dense<0.000000e+00> : vector<256x8xf32>
    %53 = tpu.matmul %51, %52, %cst_52 {dimension_numbers = #tpu.dot_dimension_numbers<[1], [0], [0], [1], [0, 0, 1, 1], [], []>} : vector<256x36xf32>, vector<36x8xf32>, vector<256x8xf32> -> vector<256x8xf32>
    %c0_53 = arith.constant 0 : index
    %c0_54 = arith.constant 0 : index
    %c0_55 = arith.constant 0 : index
    %54 = vector.load %arg11[%c0_53, %c0_54, %c0_55] : memref<18x18x4xf32, #tpu.memory_space<vmem>>, vector<16x16x4xf32>
    %55 = vector.shape_cast %54 : vector<16x16x4xf32> to vector<256x4xf32>
    %c0_56 = arith.constant 0 : index
    %c1_57 = arith.constant 1 : index
    %c0_58 = arith.constant 0 : index
    %56 = vector.load %arg11[%c0_56, %c1_57, %c0_58] : memref<18x18x4xf32, #tpu.memory_space<vmem>>, vector<16x16x4xf32>
    %57 = vector.shape_cast %56 : vector<16x16x4xf32> to vector<256x4xf32>
    %c0_59 = arith.constant 0 : index
    %c2_60 = arith.constant 2 : index
    %c0_61 = arith.constant 0 : index
    %58 = vector.load %arg11[%c0_59, %c2_60, %c0_61] : memref<18x18x4xf32, #tpu.memory_space<vmem>>, vector<16x16x4xf32>
    %59 = vector.shape_cast %58 : vector<16x16x4xf32> to vector<256x4xf32>
    %c1_62 = arith.constant 1 : index
    %c0_63 = arith.constant 0 : index
    %c0_64 = arith.constant 0 : index
    %60 = vector.load %arg11[%c1_62, %c0_63, %c0_64] : memref<18x18x4xf32, #tpu.memory_space<vmem>>, vector<16x16x4xf32>
    %61 = vector.shape_cast %60 : vector<16x16x4xf32> to vector<256x4xf32>
    %c1_65 = arith.constant 1 : index
    %c1_66 = arith.constant 1 : index
    %c0_67 = arith.constant 0 : index
    %62 = vector.load %arg11[%c1_65, %c1_66, %c0_67] : memref<18x18x4xf32, #tpu.memory_space<vmem>>, vector<16x16x4xf32>
    %63 = vector.shape_cast %62 : vector<16x16x4xf32> to vector<256x4xf32>
    %c1_68 = arith.constant 1 : index
    %c2_69 = arith.constant 2 : index
    %c0_70 = arith.constant 0 : index
    %64 = vector.load %arg11[%c1_68, %c2_69, %c0_70] : memref<18x18x4xf32, #tpu.memory_space<vmem>>, vector<16x16x4xf32>
    %65 = vector.shape_cast %64 : vector<16x16x4xf32> to vector<256x4xf32>
    %c2_71 = arith.constant 2 : index
    %c0_72 = arith.constant 0 : index
    %c0_73 = arith.constant 0 : index
    %66 = vector.load %arg11[%c2_71, %c0_72, %c0_73] : memref<18x18x4xf32, #tpu.memory_space<vmem>>, vector<16x16x4xf32>
    %67 = vector.shape_cast %66 : vector<16x16x4xf32> to vector<256x4xf32>
    %c2_74 = arith.constant 2 : index
    %c1_75 = arith.constant 1 : index
    %c0_76 = arith.constant 0 : index
    %68 = vector.load %arg11[%c2_74, %c1_75, %c0_76] : memref<18x18x4xf32, #tpu.memory_space<vmem>>, vector<16x16x4xf32>
    %69 = vector.shape_cast %68 : vector<16x16x4xf32> to vector<256x4xf32>
    %c2_77 = arith.constant 2 : index
    %c2_78 = arith.constant 2 : index
    %c0_79 = arith.constant 0 : index
    %70 = vector.load %arg11[%c2_77, %c2_78, %c0_79] : memref<18x18x4xf32, #tpu.memory_space<vmem>>, vector<16x16x4xf32>
    %71 = vector.shape_cast %70 : vector<16x16x4xf32> to vector<256x4xf32>
    %72 = tpu.concatenate %55, %57, %59, %61, %63, %65, %67, %69, %71 in 1 : vector<256x4xf32>, vector<256x4xf32>, vector<256x4xf32>, vector<256x4xf32>, vector<256x4xf32>, vector<256x4xf32>, vector<256x4xf32>, vector<256x4xf32>, vector<256x4xf32> -> vector<256x36xf32>
    %c0_80 = arith.constant 0 : index
    %c0_81 = arith.constant 0 : index
    %73 = vector.load %arg6[%c0_80, %c0_81] : memref<36x8xf32, #tpu.memory_space<vmem>>, vector<36x8xf32>
    %cst_82 = arith.constant dense<0.000000e+00> : vector<256x8xf32>
    %74 = tpu.matmul %72, %73, %cst_82 {dimension_numbers = #tpu.dot_dimension_numbers<[1], [0], [0], [1], [0, 0, 1, 1], [], []>} : vector<256x36xf32>, vector<36x8xf32>, vector<256x8xf32> -> vector<256x8xf32>
    %75 = arith.addf %53, %74 : vector<256x8xf32>
    %c0_83 = arith.constant 0 : index
    %c0_84 = arith.constant 0 : index
    %76 = vector.load %arg7[%c0_83, %c0_84] : memref<1x8xf32, #tpu.memory_space<vmem>>, vector<1x8xf32>
    %77 = vector.broadcast %76 : vector<1x8xf32> to vector<256x8xf32>
    %78 = arith.addf %75, %77 : vector<256x8xf32>
    %79 = vector.shape_cast %78 : vector<256x8xf32> to vector<1x16x16x8xf32>
    %c0_85 = arith.constant 0 : index
    %c0_86 = arith.constant 0 : index
    %c0_87 = arith.constant 0 : index
    %c0_88 = arith.constant 0 : index
    %80 = vector.load %arg8[%c0_85, %c0_86, %c0_87, %c0_88] : memref<1x16x16x8xf32, #tpu.memory_space<vmem>>, vector<1x16x16x8xf32>
    tpu.vector_store %arg8[%c0_85, %c0_86, %c0_87, %c0_88], %79 {strides = array<i32>} : memref<1x16x16x8xf32, #tpu.memory_space<vmem>>, vector<1x16x16x8xf32>,
    %cst_89 = arith.constant dense<0.000000e+00> : vector<8xf32>
    %81 = vector.multi_reduction <add>, %78, %cst_89 [0] : vector<256x8xf32> to vector<8xf32>
    %82 = vector.shape_cast %81 : vector<8xf32> to vector<1x8xf32>
    %83 = arith.mulf %78, %78 : vector<256x8xf32>
    %cst_90 = arith.constant dense<0.000000e+00> : vector<8xf32>
    %84 = vector.multi_reduction <add>, %83, %cst_90 [0] : vector<256x8xf32> to vector<8xf32>
    %85 = vector.shape_cast %84 : vector<8xf32> to vector<1x8xf32>
    %86 = tpu.concatenate %82, %85 in 0 : vector<1x8xf32>, vector<1x8xf32> -> vector<2x8xf32>
    %87 = vector.shape_cast %86 : vector<2x8xf32> to vector<1x2x8xf32>
    %c0_91 = arith.constant 0 : index
    %c0_92 = arith.constant 0 : index
    %c0_93 = arith.constant 0 : index
    %88 = vector.load %arg9[%c0_91, %c0_92, %c0_93] : memref<1x2x8xf32, #tpu.memory_space<vmem>>, vector<1x2x8xf32>
    tpu.vector_store %arg9[%c0_91, %c0_92, %c0_93], %87 {strides = array<i32>} : memref<1x2x8xf32, #tpu.memory_space<vmem>>, vector<1x2x8xf32>,
    return
  }
  func.func @transform_0(%arg0: i32) -> (i32, i32, i32, i32) {
    %c0_i32 = arith.constant 0 : i32
    %c0_i32_0 = arith.constant 0 : i32
    %c0_i32_1 = arith.constant 0 : i32
    %c0_i32_2 = arith.constant 0 : i32
    return %arg0, %c0_i32, %c0_i32_0, %c0_i32_1 : i32, i32, i32, i32
  }
  func.func @transform_1(%arg0: i32) -> (i32, i32, i32, i32) {
    %c0_i32 = arith.constant 0 : i32
    %c0_i32_0 = arith.constant 0 : i32
    %c0_i32_1 = arith.constant 0 : i32
    %c0_i32_2 = arith.constant 0 : i32
    return %arg0, %c0_i32, %c0_i32_0, %c0_i32_1 : i32, i32, i32, i32
  }
  func.func @transform_2(%arg0: i32) -> (i32, i32) {
    %c0_i32 = arith.constant 0 : i32
    %c0_i32_0 = arith.constant 0 : i32
    %c0_i32_1 = arith.constant 0 : i32
    return %c0_i32, %c0_i32_0 : i32, i32
  }
  func.func @transform_3(%arg0: i32) -> (i32, i32) {
    %c0_i32 = arith.constant 0 : i32
    %c0_i32_0 = arith.constant 0 : i32
    %c0_i32_1 = arith.constant 0 : i32
    return %c0_i32, %c0_i32_0 : i32, i32
  }
  func.func @transform_4(%arg0: i32) -> (i32, i32) {
    %c0_i32 = arith.constant 0 : i32
    %c0_i32_0 = arith.constant 0 : i32
    %c0_i32_1 = arith.constant 0 : i32
    return %c0_i32, %c0_i32_0 : i32, i32
  }
  func.func @transform_5(%arg0: i32) -> (i32, i32) {
    %c0_i32 = arith.constant 0 : i32
    %c0_i32_0 = arith.constant 0 : i32
    %c0_i32_1 = arith.constant 0 : i32
    return %c0_i32, %c0_i32_0 : i32, i32
  }
  func.func @transform_6(%arg0: i32) -> (i32, i32) {
    %c0_i32 = arith.constant 0 : i32
    %c0_i32_0 = arith.constant 0 : i32
    %c0_i32_1 = arith.constant 0 : i32
    return %c0_i32, %c0_i32_0 : i32, i32
  }
  func.func @transform_7(%arg0: i32) -> (i32, i32, i32, i32) {
    %c0_i32 = arith.constant 0 : i32
    %c0_i32_0 = arith.constant 0 : i32
    %c0_i32_1 = arith.constant 0 : i32
    %c0_i32_2 = arith.constant 0 : i32
    return %arg0, %c0_i32, %c0_i32_0, %c0_i32_1 : i32, i32, i32, i32
  }
  func.func @transform_8(%arg0: i32) -> (i32, i32, i32) {
    %c0_i32 = arith.constant 0 : i32
    %c0_i32_0 = arith.constant 0 : i32
    %c0_i32_1 = arith.constant 0 : i32
    return %arg0, %c0_i32, %c0_i32_0 : i32, i32, i32
  }
}

module attributes {stable_mosaic.version = 11 : i64} {
  func.func @_bn_relu_kernel(%arg0: i32, %arg1: memref<32x128xf32, #tpu.memory_space<vmem>>, %arg2: memref<1x128xf32, #tpu.memory_space<vmem>>, %arg3: memref<1x128xf32, #tpu.memory_space<vmem>>, %arg4: memref<32x128xf32, #tpu.memory_space<vmem>>) attributes {dimension_semantics = [#tpu.dimension_semantics<parallel>], iteration_bounds = array<i64: 1>, scalar_prefetch = 0 : i64, scratch_operands = 0 : i64, tpu.core_type = #tpu.core_type<tc>, window_params = [{transform_indices = @transform_0, window_bounds = array<i64: 32, 128>}, {pipeline_mode = #tpu.pipeline_mode<synchronous>, transform_indices = @transform_1, window_bounds = array<i64: 1, 128>}, {pipeline_mode = #tpu.pipeline_mode<synchronous>, transform_indices = @transform_2, window_bounds = array<i64: 1, 128>}, {transform_indices = @transform_3, window_bounds = array<i64: 32, 128>}]} {
    %c0 = arith.constant 0 : index
    %c0_0 = arith.constant 0 : index
    %0 = vector.load %arg1[%c0, %c0_0] : memref<32x128xf32, #tpu.memory_space<vmem>>, vector<32x128xf32>
    %c0_1 = arith.constant 0 : index
    %c0_2 = arith.constant 0 : index
    %1 = vector.load %arg2[%c0_1, %c0_2] : memref<1x128xf32, #tpu.memory_space<vmem>>, vector<1x128xf32>
    %2 = vector.broadcast %1 : vector<1x128xf32> to vector<32x128xf32>
    %3 = arith.mulf %0, %2 : vector<32x128xf32>
    %c0_3 = arith.constant 0 : index
    %c0_4 = arith.constant 0 : index
    %4 = vector.load %arg3[%c0_3, %c0_4] : memref<1x128xf32, #tpu.memory_space<vmem>>, vector<1x128xf32>
    %5 = vector.broadcast %4 : vector<1x128xf32> to vector<32x128xf32>
    %6 = arith.addf %3, %5 : vector<32x128xf32>
    %cst = arith.constant 0.000000e+00 : f32
    %7 = vector.broadcast %cst : f32 to vector<32x128xf32>
    %8 = arith.maximumf %6, %7 : vector<32x128xf32>
    %c0_5 = arith.constant 0 : index
    %c0_6 = arith.constant 0 : index
    %9 = vector.load %arg4[%c0_5, %c0_6] : memref<32x128xf32, #tpu.memory_space<vmem>>, vector<32x128xf32>
    tpu.vector_store %arg4[%c0_5, %c0_6], %8 {strides = array<i32>} : memref<32x128xf32, #tpu.memory_space<vmem>>, vector<32x128xf32>,
    return
  }
  func.func @transform_0(%arg0: i32) -> (i32, i32) {
    %c0_i32 = arith.constant 0 : i32
    %c0_i32_0 = arith.constant 0 : i32
    return %arg0, %c0_i32 : i32, i32
  }
  func.func @transform_1(%arg0: i32) -> (i32, i32) {
    %c0_i32 = arith.constant 0 : i32
    %c0_i32_0 = arith.constant 0 : i32
    %c0_i32_1 = arith.constant 0 : i32
    return %c0_i32, %c0_i32_0 : i32, i32
  }
  func.func @transform_2(%arg0: i32) -> (i32, i32) {
    %c0_i32 = arith.constant 0 : i32
    %c0_i32_0 = arith.constant 0 : i32
    %c0_i32_1 = arith.constant 0 : i32
    return %c0_i32, %c0_i32_0 : i32, i32
  }
  func.func @transform_3(%arg0: i32) -> (i32, i32) {
    %c0_i32 = arith.constant 0 : i32
    %c0_i32_0 = arith.constant 0 : i32
    return %arg0, %c0_i32 : i32, i32
  }
}

</mosaic_0001>

<llo_original>
// kernel: tile.19
$region0: #{tile.19}
  %s0 = inlined_call_operand.vmem [shape: f32[4,4], index: 0, kind: input, shape index: {}]
  %s1 = inlined_call_operand.vmem [shape: f32[1,16], index: 1, kind: output, shape index: {}]
  $region1: #{tile.19} parent=0
    #allocation0 [shape = 'u8[4096]{0}', space=vmem, size = 0x1000, scoped, tag = 'scoped mem for output reshape']
    #allocation1 [shape = 'u8[4096]{0}', space=vmem, size = 0x1000, scoped, tag = 'scoped mem for input reshape']
    %s3 = ssub.s32 16, 1
    %v4 = vld [vmem:[%s0] sm:%s3]
    %5 = vst [vmem:[#allocation1] sm:%s3] %v4
    %v6 = vld [vmem:[#allocation1] sm:$0x1]
    %vm7 = vcmask 31744
    %8 = vst.msk [vmem:[#allocation0] sm:$0x1] %vm7, %v6
    %s9 = scalar_lea.vmem [#allocation1], 3
    %v10 = vld [vmem:[%s9] sm:$0x1]
    %11 = vrot.lane.b32.xlu0 %v10, 12
    %v12 = vpop.permute.xlu0 %11
    %vm13 = vcmask 130144
    %14 = vst.msk [vmem:[#allocation0] sm:$0x1] %vm13, %v12
    %s15 = scalar_lea.vmem [#allocation1], 2
    %v16 = vld [vmem:[%s15] sm:$0x1]
    %17 = vrot.lane.b32.xlu0 %v16, 8
    %v18 = vpop.permute.xlu0 %17
    %vm19 = vcmask 97344
    %20 = vst.msk [vmem:[#allocation0] sm:$0x1] %vm19, %v18
    %s21 = scalar_lea.vmem [#allocation1], 1
    %v22 = vld [vmem:[%s21] sm:$0x1]
    %23 = vrot.lane.b32.xlu0 %v22, 4
    %v24 = vpop.permute.xlu0 %23
    %vm25 = vcmask 64544
    %26 = vst.msk [vmem:[#allocation0] sm:$0x1] %vm25, %v24
    %s28 = ssub.s32 2, 1
    %v29 = vld [vmem:[#allocation0] sm:%s28]
    %s31 = ssub.s32 2, 1
    %32 = vst [vmem:[%s1] sm:%s31] %v29

// kernel: tile.18
$region0: #{tile.18}
  #allocation0 [shape = 's32[1]{0}', space=sflag, size = 0x4, scoped, tag = 'scoped memory for tile.18']
  %s0 = inlined_call_operand.vmem [shape: f32[4], index: 0, kind: input, shape index: {}]
  %s1 = inlined_call_operand.vmem [shape: f32[4,4], index: 1, kind: output, shape index: {}]
  // Predicated region
  $region2: #{tile.18} parent=0 // pred_check
    _
  $region3: #{tile.18} parent=0 // pred_check_branch
    %3 = sbr.rel (0) target = $region5
  $region4: #{tile.18} parent=0 // pred_region
    _
  $region5: #{tile.18} parent=0 // pred_fallthru
    _
  %v4 = vld [vmem:[%s0] ss:$0 sm:$0xff]
  %5 = vst [vmem:[%s1] sm:$0xf] %v4

// kernel: tile.23
$region0: #{tile.23}
  #allocation0 [shape = 's32[1]{0}', space=sflag, size = 0x4, scoped, tag = 'scoped memory for tile.23']
  %s0 = inlined_call_operand.vmem [shape: f32[8], index: 0, kind: input, shape index: {}]
  %s1 = inlined_call_operand.vmem [shape: f32[16,8], index: 1, kind: output, shape index: {}]
  // Predicated region
  $region2: #{tile.23} parent=0 // pred_check
    _
  $region3: #{tile.23} parent=0 // pred_check_branch
    %3 = sbr.rel (0) target = $region5
  $region4: #{tile.23} parent=0 // pred_region
    _
  $region5: #{tile.23} parent=0 // pred_fallthru
    _
  %v4 = vld [vmem:[%s0] ss:$0 sm:$0xff]
  %5 = vst [vmem:[%s1] sm:$0xff] %v4
  %s6 = scalar_lea.vmem %s1, 8
  %7 = vst [vmem:[%s6] sm:$0xff] %v4

// kernel: tile.24
$region0: #{tile.24}
  %s0 = inlined_call_operand.vmem [shape: f32[16,8], index: 0, kind: input, shape index: {}]
  %s1 = inlined_call_operand.vmem [shape: f32[1,128], index: 1, kind: output, shape index: {}]
  $region1: #{tile.24} parent=0
    #allocation0 [shape = 'u8[4096]{0}', space=vmem, size = 0x1000, scoped, tag = 'scoped mem for output reshape']
    %v2 = vld [vmem:[%s0] sm:$0x1]
    %vm3 = vcmask 64512
    %4 = vst.msk [vmem:[#allocation0] sm:$0x1] %vm3, %v2
    %s5 = scalar_lea.vmem %s0, 15
    %v6 = vld [vmem:[%s5] sm:$0x1]
    %7 = vrot.lane.b32.xlu0 %v6, 120
    %v8 = vpop.permute.xlu0 %7
    %vm9 = vcmask 1048512
    %10 = vst.msk [vmem:[#allocation0] sm:$0x1] %vm9, %v8
    %s11 = scalar_lea.vmem %s0, 14
    %v12 = vld [vmem:[%s11] sm:$0x1]
    %13 = vrot.lane.b32.xlu0 %v12, 112
    %v14 = vpop.permute.xlu0 %13
    %vm15 = vcmask 982912
    %16 = vst.msk [vmem:[#allocation0] sm:$0x1] %vm15, %v14
    %s17 = scalar_lea.vmem %s0, 13
    %v18 = vld [vmem:[%s17] sm:$0x1]
    %19 = vrot.lane.b32.xlu0 %v18, 104
    %v20 = vpop.permute.xlu0 %19
    %vm21 = vcmask 917312
    %22 = vst.msk [vmem:[#allocation0] sm:$0x1] %vm21, %v20
    %s23 = scalar_lea.vmem %s0, 12
    %v24 = vld [vmem:[%s23] sm:$0x1]
    %25 = vrot.lane.b32.xlu0 %v24, 96
    %v26 = vpop.permute.xlu0 %25
    %vm27 = vcmask 851712
    %28 = vst.msk [vmem:[#allocation0] sm:$0x1] %vm27, %v26
    %s29 = scalar_lea.vmem %s0, 11
    %v30 = vld [vmem:[%s29] sm:$0x1]
    %31 = vrot.lane.b32.xlu0 %v30, 88
    %v32 = vpop.permute.xlu0 %31
    %vm33 = vcmask 786112
    %34 = vst.msk [vmem:[#allocation0] sm:$0x1] %vm33, %v32
    %s35 = scalar_lea.vmem %s0, 10
    %v36 = vld [vmem:[%s35] sm:$0x1]
    %37 = vrot.lane.b32.xlu0 %v36, 80
    %v38 = vpop.permute.xlu0 %37
    %vm39 = vcmask 720512
    %40 = vst.msk [vmem:[#allocation0] sm:$0x1] %vm39, %v38
    %s41 = scalar_lea.vmem %s0, 9
    %v42 = vld [vmem:[%s41] sm:$0x1]
    %43 = vrot.lane.b32.xlu0 %v42, 72
    %v44 = vpop.permute.xlu0 %43
    %vm45 = vcmask 654912
    %46 = vst.msk [vmem:[#allocation0] sm:$0x1] %vm45, %v44
    %s47 = scalar_lea.vmem %s0, 8
    %v48 = vld [vmem:[%s47] sm:$0x1]
    %49 = vrot.lane.b32.xlu0 %v48, 64
    %v50 = vpop.permute.xlu0 %49
    %vm51 = vcmask 589312
    %52 = vst.msk [vmem:[#allocation0] sm:$0x1] %vm51, %v50
    %s53 = scalar_lea.vmem %s0, 7
    %v54 = vld [vmem:[%s53] sm:$0x1]
    %55 = vrot.lane.b32.xlu0 %v54, 56
    %v56 = vpop.permute.xlu0 %55
    %vm57 = vcmask 523712
    %58 = vst.msk [vmem:[#allocation0] sm:$0x1] %vm57, %v56
    %s59 = scalar_lea.vmem %s0, 6
    %v60 = vld [vmem:[%s59] sm:$0x1]
    %61 = vrot.lane.b32.xlu0 %v60, 48
    %v62 = vpop.permute.xlu0 %61
    %vm63 = vcmask 458112
    %64 = vst.msk [vmem:[#allocation0] sm:$0x1] %vm63, %v62
    %s65 = scalar_lea.vmem %s0, 5
    %v66 = vld [vmem:[%s65] sm:$0x1]
    %67 = vrot.lane.b32.xlu0 %v66, 40
    %v68 = vpop.permute.xlu0 %67
    %vm69 = vcmask 392512
    %70 = vst.msk [vmem:[#allocation0] sm:$0x1] %vm69, %v68
    %s71 = scalar_lea.vmem %s0, 4
    %v72 = vld [vmem:[%s71] sm:$0x1]
    %73 = vrot.lane.b32.xlu0 %v72, 32
    %v74 = vpop.permute.xlu0 %73
    %vm75 = vcmask 326912
    %76 = vst.msk [vmem:[#allocation0] sm:$0x1] %vm75, %v74
    %s77 = scalar_lea.vmem %s0, 3
    %v78 = vld [vmem:[%s77] sm:$0x1]
    %79 = vrot.lane.b32.xlu0 %v78, 24
    %v80 = vpop.permute.xlu0 %79
    %vm81 = vcmask 261312
    %82 = vst.msk [vmem:[#allocation0] sm:$0x1] %vm81, %v80
    %s83 = scalar_lea.vmem %s0, 2
    %v84 = vld [vmem:[%s83] sm:$0x1]
    %85 = vrot.lane.b32.xlu0 %v84, 16
    %v86 = vpop.permute.xlu0 %85
    %vm87 = vcmask 195712
    %88 = vst.msk [vmem:[#allocation0] sm:$0x1] %vm87, %v86
    %s89 = scalar_lea.vmem %s0, 1
    %v90 = vld [vmem:[%s89] sm:$0x1]
    %91 = vrot.lane.b32.xlu0 %v90, 8
    %v92 = vpop.permute.xlu0 %91
    %vm93 = vcmask 130112
    %94 = vst.msk [vmem:[#allocation0] sm:$0x1] %vm93, %v92
    %s96 = ssub.s32 2, 1
    %v97 = vld [vmem:[#allocation0] sm:%s96]
    %s99 = ssub.s32 2, 1
    %100 = vst [vmem:[%s1] sm:%s99] %v97

// kernel: upsample_forward.5
$region0: #{upsample_forward.5}
  #allocation0 [shape = 'u32[]', space=smem, size = 0x4, offset = 0x4, fixed_abs, tag = 'smem constant byte address 0x4 - core index']
  #allocation1 [shape = 'u32[72,128]{1,0:T(1,128)}', space=vmem, size = 0x9000, scoped, tag = 'internal scratch']
  %s0 = inlined_call_operand.vmem [shape: f32[32,128], index: 0, kind: input, shape index: {}]
  %s1 = inlined_call_operand.vmem [shape: f32[1,128], index: 1, kind: input, shape index: {}]
  %s2 = inlined_call_operand.vmem [shape: f32[1,128], index: 2, kind: input, shape index: {}]
  %s3 = inlined_call_operand.vmem [shape: f32[32,128], index: 3, kind: output, shape index: {}]
  %s4 = sld [smem:[#allocation0]]
  $region22: #{upsample_forward.5} parent=0
    _
  %s6 = ssub.s32 1, %s4
  %s7 = scalar_select 0, %s6, %s4
  // Predicated region
  $region2: #{upsample_forward.5} parent=0 // pred_check
    _
  $region3: #{upsample_forward.5} parent=0 // pred_check_branch
    %9 = sbr.rel (0) target = $region5
  $region4: #{upsample_forward.5} parent=0 // pred_region
    _
  $region5: #{upsample_forward.5} parent=0 // pred_fallthru
    _
  // Predicated region
  $region6: #{upsample_forward.5} parent=0 // pred_check
    _
  $region7: #{upsample_forward.5} parent=0 // pred_check_branch
    %11 = sbr.rel (0) target = $region9
  $region8: #{upsample_forward.5} parent=0 // pred_region
    _
  $region9: #{upsample_forward.5} parent=0 // pred_fallthru
    _
  // Predicated region
  $region10: #{upsample_forward.5} parent=0 // pred_check
    _
  $region11: #{upsample_forward.5} parent=0 // pred_check_branch
    %13 = sbr.rel (0) target = $region13
  $region12: #{upsample_forward.5} parent=0 // pred_region
    _
  $region13: #{upsample_forward.5} parent=0 // pred_fallthru
    _
  %v14 = vld [vmem:[%s0] sm:$0xff]
  %v15 = vld [vmem:[%s0 + $0x8] sm:$0xff]
  %v16 = vld [vmem:[%s0 + $0x10] sm:$0xff]
  %v17 = vld [vmem:[%s0 + $0x18] sm:$0xff]
  %v18 = vld [vmem:[%s1] sm:$0x1]
  %v20 = vperm.slane %v18, 0
  %v22 = vmul.f32 %v14, %v20
  %v23 = vmul.f32 %v15, %v20
  %v24 = vmul.f32 %v16, %v20
  %v25 = vmul.f32 %v17, %v20
  %v26 = vld [vmem:[%s2] sm:$0x1]
  %v28 = vperm.slane %v26, 0
  %v30 = vadd.f32 %v22, %v28
  %v31 = vadd.f32 %v23, %v28
  %v32 = vadd.f32 %v24, %v28
  %v33 = vadd.f32 %v25, %v28
  %v34 = vmax.f32 %v30, 0.0
  %v35 = vmax.f32 %v31, 0.0
  %v36 = vmax.f32 %v32, 0.0
  %v37 = vmax.f32 %v33, 0.0
  %38 = vst [vmem:[%s3] sm:$0xff] %v34
  %39 = vst [vmem:[%s3 + $0x8] sm:$0xff] %v35
  %40 = vst [vmem:[%s3 + $0x10] sm:$0xff] %v36
  %41 = vst [vmem:[%s3 + $0x18] sm:$0xff] %v37
  // Predicated region
  $region14: #{upsample_forward.5} parent=0 // pred_check
    _
  $region15: #{upsample_forward.5} parent=0 // pred_check_branch
    %43 = sbr.rel (0) target = $region17
  $region16: #{upsample_forward.5} parent=0 // pred_region
    _
  $region17: #{upsample_forward.5} parent=0 // pred_fallthru
    _
  // Predicated region
  $region18: #{upsample_forward.5} parent=0 // pred_check
    _
  $region19: #{upsample_forward.5} parent=0 // pred_check_branch
    %45 = sbr.rel (0) target = $region21
  $region20: #{upsample_forward.5} parent=0 // pred_region
    _
  $region21: #{upsample_forward.5} parent=0 // pred_fallthru
    _

// kernel: upsample_forward.4
$region0: #{upsample_forward.4}
  #allocation0 [shape = 'u32[]', space=smem, size = 0x4, offset = 0x4, fixed_abs, tag = 'smem constant byte address 0x4 - core index']
  #allocation1 [shape = 'u32[72,128]{1,0:T(1,128)}', space=vmem, size = 0x9000, scoped, tag = 'internal scratch']
  #allocation2 [shape = 'f32[18,18,8]{2,1,0:T(8,128)}', space=vmem, size = 0x36000, scoped, tag = 'scratch operand']
  %s0 = inlined_call_operand.vmem [shape: f32[2,16,16,8], index: 0, kind: input, shape index: {}]
  %s1 = inlined_call_operand.vmem [shape: f32[1,8], index: 1, kind: input, shape index: {}]
  %s2 = inlined_call_operand.vmem [shape: f32[1,8], index: 2, kind: input, shape index: {}]
  %s3 = inlined_call_operand.vmem [shape: f32[72,8], index: 3, kind: input, shape index: {}]
  %s4 = inlined_call_operand.vmem [shape: f32[1,8], index: 4, kind: input, shape index: {}]
  %s5 = inlined_call_operand.vmem [shape: f32[2,16,16,8], index: 5, kind: output, shape index: {0}]
  %s6 = inlined_call_operand.vmem [shape: f32[2,2,8], index: 6, kind: output, shape index: {1}]
  %7 = xla_tuple %s5, %s6
  %s8 = sld [smem:[#allocation0]]
  $region61: #{upsample_forward.4} parent=0
    _
  %s10 = ssub.s32 1, %s8
  %s11 = scalar_select 0, %s10, %s8
  loop: start=0, step=1, limit=4
  $region2: #{upsample_forward.4} parent=0 // loop_pre_header
    _
  $region3: #{upsample_forward.4} parent=0 // loop_header
    %s13 = sphi 0, %s17
    %p14 = scmp.ge.s32.totalorder %s13, 4
    %s23 = sphi 0, %s25
    %s26 = sphi 0, %s23
    %s27 = sphi 0, %s26
    %s43 = sphi 0, %s27
    %s47 = sphi 0, %s47
    %s49 = sphi 0, %s47
    %s50 = sphi 0, %s49
    %s64 = sphi 0, %s50
    %s68 = sphi 0, %s68
    %s70 = sphi 0, %s68
    %s71 = sphi 0, %s70
    %s85 = sphi 0, %s71
    %s89 = sphi 0, %s89
    %s91 = sphi 0, %s89
    %s92 = sphi 0, %s91
    %s106 = sphi 0, %s92
    %s110 = sphi 0, %s110
    %s112 = sphi 0, %s110
    %s113 = sphi 0, %s112
    %s127 = sphi 0, %s113
    %s133 = sphi 0, %s135
    %s136 = sphi 0, %s133
    %s137 = sphi 0, %s136
    %s153 = sphi 0, %s137
    %s159 = sphi 0, %s161
    %s162 = sphi 0, %s159
    %s163 = sphi 0, %s162
    %s179 = sphi 0, %s163
  $region4: #{upsample_forward.4} parent=0 // loop_header_branch
    %16 = sbr.rel (%p14) target = $region8
  $region5: #{upsample_forward.4} parent=0 // loop_body
    %s18 = ssub.s32 %s13, 1
    %s19 = ssub.s32 %s13, 2
    %s20 = sadd.s32 %s13, 1
    %s21 = ssub.s32 %s13, %s20
    %p22 = scmp.eq.s32.totalorder %s21, 0
    %s24 = sadd.s32 %s23, 1
    %s25 = scalar_select %p22, %s23, %s24
    %p28 = pneg %p22
    %p29 = scmp.eq.s32.totalorder %s13, 1
    %p30 = por %p28, %p29
    %p31 = scmp.ne.s32.totalorder %s23, %s26
    %p32 = scmp.eq.s32.totalorder %s13, 0
    %p33 = por %p31, %p32
    %p34 = scmp.ne.s32.totalorder %s23, %s26
    %p35 = scmp.eq.s32.totalorder %s18, 1
    %p36 = por %p34, %p35
    %p37 = scmp.ne.s32.totalorder %s26, %s27
    %p38 = scmp.eq.s32.totalorder %s18, 0
    %p39 = por %p37, %p38
    %p40 = scmp.ne.s32.totalorder %s26, %s27
    %p41 = scmp.eq.s32.totalorder %s19, 1
    %p42 = por %p40, %p41
    %p44 = scmp.ne.s32.totalorder %s27, %s43
    %p45 = scmp.eq.s32.totalorder %s19, 0
    %p46 = por %p44, %p45
    %s48 = sadd.s32 %s47, 1
    %p51 = scmp.eq.s32.totalorder %s13, 1
    %p52 = scmp.ne.s32.totalorder %s47, %s49
    %p53 = scmp.eq.s32.totalorder %s13, 0
    %p54 = por %p52, %p53
    %p55 = scmp.ne.s32.totalorder %s47, %s49
    %p56 = scmp.eq.s32.totalorder %s18, 1
    %p57 = por %p55, %p56
    %p58 = scmp.ne.s32.totalorder %s49, %s50
    %p59 = scmp.eq.s32.totalorder %s18, 0
    %p60 = por %p58, %p59
    %p61 = scmp.ne.s32.totalorder %s49, %s50
    %p62 = scmp.eq.s32.totalorder %s19, 1
    %p63 = por %p61, %p62
    %p65 = scmp.ne.s32.totalorder %s50, %s64
    %p66 = scmp.eq.s32.totalorder %s19, 0
    %p67 = por %p65, %p66
    %s69 = sadd.s32 %s68, 1
    %p72 = scmp.eq.s32.totalorder %s13, 1
    %p73 = scmp.ne.s32.totalorder %s68, %s70
    %p74 = scmp.eq.s32.totalorder %s13, 0
    %p75 = por %p73, %p74
    %p76 = scmp.ne.s32.totalorder %s68, %s70
    %p77 = scmp.eq.s32.totalorder %s18, 1
    %p78 = por %p76, %p77
    %p79 = scmp.ne.s32.totalorder %s70, %s71
    %p80 = scmp.eq.s32.totalorder %s18, 0
    %p81 = por %p79, %p80
    %p82 = scmp.ne.s32.totalorder %s70, %s71
    %p83 = scmp.eq.s32.totalorder %s19, 1
    %p84 = por %p82, %p83
    %p86 = scmp.ne.s32.totalorder %s71, %s85
    %p87 = scmp.eq.s32.totalorder %s19, 0
    %p88 = por %p86, %p87
    %s90 = sadd.s32 %s89, 1
    %p93 = scmp.eq.s32.totalorder %s13, 1
    %p94 = scmp.ne.s32.totalorder %s89, %s91
    %p95 = scmp.eq.s32.totalorder %s13, 0
    %p96 = por %p94, %p95
    %p97 = scmp.ne.s32.totalorder %s89, %s91
    %p98 = scmp.eq.s32.totalorder %s18, 1
    %p99 = por %p97, %p98
    %p100 = scmp.ne.s32.totalorder %s91, %s92
    %p101 = scmp.eq.s32.totalorder %s18, 0
    %p102 = por %p100, %p101
    %p103 = scmp.ne.s32.totalorder %s91, %s92
    %p104 = scmp.eq.s32.totalorder %s19, 1
    %p105 = por %p103, %p104
    %p107 = scmp.ne.s32.totalorder %s92, %s106
    %p108 = scmp.eq.s32.totalorder %s19, 0
    %p109 = por %p107, %p108
    %s111 = sadd.s32 %s110, 1
    %p114 = scmp.eq.s32.totalorder %s13, 1
    %p115 = scmp.ne.s32.totalorder %s110, %s112
    %p116 = scmp.eq.s32.totalorder %s13, 0
    %p117 = por %p115, %p116
    %p118 = scmp.ne.s32.totalorder %s110, %s112
    %p119 = scmp.eq.s32.totalorder %s18, 1
    %p120 = por %p118, %p119
    %p121 = scmp.ne.s32.totalorder %s112, %s113
    %p122 = scmp.eq.s32.totalorder %s18, 0
    %p123 = por %p121, %p122
    %p124 = scmp.ne.s32.totalorder %s112, %s113
    %p125 = scmp.eq.s32.totalorder %s19, 1
    %p126 = por %p124, %p125
    %p128 = scmp.ne.s32.totalorder %s113, %s127
    %p129 = scmp.eq.s32.totalorder %s19, 0
    %p130 = por %p128, %p129
    %s131 = ssub.s32 %s13, %s20
    %p132 = scmp.eq.s32.totalorder %s131, 0
    %s134 = sadd.s32 %s133, 1
    %s135 = scalar_select %p132, %s133, %s134
    %p138 = pneg %p132
    %p139 = scmp.eq.s32.totalorder %s13, 1
    %p140 = por %p138, %p139
    %p141 = scmp.ne.s32.totalorder %s133, %s136
    %p142 = scmp.eq.s32.totalorder %s13, 0
    %p143 = por %p141, %p142
    %p144 = scmp.ne.s32.totalorder %s133, %s136
    %p145 = scmp.eq.s32.totalorder %s18, 1
    %p146 = por %p144, %p145
    %p147 = scmp.ne.s32.totalorder %s136, %s137
    %p148 = scmp.eq.s32.totalorder %s18, 0
    %p149 = por %p147, %p148
    %p150 = scmp.ne.s32.totalorder %s136, %s137
    %p151 = scmp.eq.s32.totalorder %s19, 1
    %p152 = por %p150, %p151
    %p154 = scmp.ne.s32.totalorder %s137, %s153
    %p155 = scmp.eq.s32.totalorder %s19, 0
    %p156 = por %p154, %p155
    %s157 = ssub.s32 %s13, %s20
    %p158 = scmp.eq.s32.totalorder %s157, 0
    %s160 = sadd.s32 %s159, 1
    %s161 = scalar_select %p158, %s159, %s160
    %p164 = pneg %p158
    %p165 = scmp.eq.s32.totalorder %s13, 1
    %p166 = por %p164, %p165
    %p167 = scmp.ne.s32.totalorder %s159, %s162
    %p168 = scmp.eq.s32.totalorder %s13, 0
    %p169 = por %p167, %p168
    %p170 = scmp.ne.s32.totalorder %s159, %s162
    %p171 = scmp.eq.s32.totalorder %s18, 1
    %p172 = por %p170, %p171
    %p173 = scmp.ne.s32.totalorder %s162, %s163
    %p174 = scmp.eq.s32.totalorder %s18, 0
    %p175 = por %p173, %p174
    %p176 = scmp.ne.s32.totalorder %s162, %s163
    %p177 = scmp.eq.s32.totalorder %s19, 1
    %p178 = por %p176, %p177
    %p180 = scmp.ne.s32.totalorder %s163, %s179
    %p181 = scmp.eq.s32.totalorder %s19, 0
    %p182 = por %p180, %p181
    %p183 = scmp.le.s32.totalorder 1, %s13
    %p184 = scmp.lt.s32.totalorder %s13, 3
    %p185 = pnand %p183, %p184
    %p186 = pneg %p185
    // Predicated region
    $region9: #{upsample_forward.4} parent=5 // pred_check
      _
    $region10: #{upsample_forward.4} parent=5 // pred_check_branch
      %188 = sbr.rel (%p185) target = $region12
    $region11: #{upsample_forward.4} parent=5 // pred_region
      %s189 = ssub.s32 %s13, 1
      // Predicated region
      $region13: #{upsample_forward.4} parent=11 // pred_check
        %p190 = pneg %p60
      $region14: #{upsample_forward.4} parent=11 // pred_check_branch
        %192 = sbr.rel (%p190) target = $region16
      $region15: #{upsample_forward.4} parent=11 // pred_region
        _
      $region16: #{upsample_forward.4} parent=11 // pred_fallthru
        _
      // Predicated region
      $region17: #{upsample_forward.4} parent=11 // pred_check
        %p193 = pneg %p81
      $region18: #{upsample_forward.4} parent=11 // pred_check_branch
        %195 = sbr.rel (%p193) target = $region20
      $region19: #{upsample_forward.4} parent=11 // pred_region
        _
      $region20: #{upsample_forward.4} parent=11 // pred_fallthru
        _
      // Predicated region
      $region21: #{upsample_forward.4} parent=11 // pred_check
        %p196 = pneg %p102
      $region22: #{upsample_forward.4} parent=11 // pred_check_branch
        %198 = sbr.rel (%p196) target = $region24
      $region23: #{upsample_forward.4} parent=11 // pred_region
        _
      $region24: #{upsample_forward.4} parent=11 // pred_fallthru
        _
      // Predicated region
      $region25: #{upsample_forward.4} parent=11 // pred_check
        %p199 = pneg %p123
      $region26: #{upsample_forward.4} parent=11 // pred_check_branch
        %201 = sbr.rel (%p199) target = $region28
      $region27: #{upsample_forward.4} parent=11 // pred_region
        _
      $region28: #{upsample_forward.4} parent=11 // pred_fallthru
        _
    $region12: #{upsample_forward.4} parent=5 // pred_fallthru
      _
    %p202 = scmp.lt.s32.totalorder %s13, 2
    // Predicated region
    $region29: #{upsample_forward.4} parent=5 // pred_check
      %p203 = pneg %p202
    $region30: #{upsample_forward.4} parent=5 // pred_check_branch
      %205 = sbr.rel (%p203) target = $region32
    $region31: #{upsample_forward.4} parent=5 // pred_region
      // Predicated region
      $region33: #{upsample_forward.4} parent=31 // pred_check
        %p206 = pneg %p33
      $region34: #{upsample_forward.4} parent=31 // pred_check_branch
        %208 = sbr.rel (%p206) target = $region36
      $region35: #{upsample_forward.4} parent=31 // pred_region
        %p209 = scmp.lt.s32.totalorder %s13, 1
        %s210 = scalar_select %p209, %s13, 1
        %s211 = smul.addr %s210, 32
        %s212 = smul.addr %s211, 8
        %s213 = scalar_lea.vmem %s0, %s212
      $region36: #{upsample_forward.4} parent=31 // pred_fallthru
        _
    $region32: #{upsample_forward.4} parent=5 // pred_fallthru
      _
    %p214 = scmp.le.s32.totalorder 1, %s13
    %p215 = scmp.lt.s32.totalorder %s13, 3
    %p216 = pnand %p214, %p215
    %p217 = pneg %p216
    // Predicated region
    $region37: #{upsample_forward.4} parent=5 // pred_check
      _
    $region38: #{upsample_forward.4} parent=5 // pred_check_branch
      %219 = sbr.rel (%p216) target = $region40
    $region39: #{upsample_forward.4} parent=5 // pred_region
      %s220 = ssub.s32 %s13, 1
      %p221 = scmp.lt.s32.totalorder %s18, 1
      %s222 = scalar_select %p221, %s18, 1
      %s223 = smul.addr %s222, 32
      %s224 = smul.addr %s223, 8
      %s225 = scalar_lea.vmem %s0, %s224
      %p226 = pneg %p39
      %p227 = pneg %p36
      %p228 = pneg %p60
      %p229 = pneg %p57
      %p230 = pneg %p81
      %p231 = pneg %p78
      %p232 = pneg %p102
      %p233 = pneg %p99
      %p234 = pneg %p123
      %p235 = pneg %p120
      %p236 = pneg %p149
      %p237 = pneg %p146
      %p238 = scmp.lt.s32.totalorder %s18, 1
      %s239 = scalar_select %p238, %s18, 1
      %s240 = smul.addr %s239, 32
      %s241 = smul.addr %s240, 8
      %s242 = scalar_lea.vmem %s5, %s241
      %p243 = pneg %p175
      %p244 = pneg %p172
      %p245 = scmp.lt.s32.totalorder %s18, 1
      %s246 = scalar_select %p245, %s18, 1
      %s247 = smul.addr %s246, 2
      %s248 = scalar_lea.vmem %s6, %s247
      %p249 = scmp.lt.s32.totalorder %s18, 1
      %s250 = scalar_select %p249, %s18, 1
      %s251 = smul.addr %s250, 32
      %s252 = smul.addr %s251, 8
      %s253 = scalar_lea.vmem %s0, %s252
      %p254 = scmp.lt.s32.totalorder %s18, 1
      %s255 = scalar_select %p254, %s18, 1
      %s256 = smul.addr %s255, 32
      %s257 = smul.addr %s256, 8
      %s258 = scalar_lea.vmem %s5, %s257
      %p259 = scmp.lt.s32.totalorder %s18, 1
      %s260 = scalar_select %p259, %s18, 1
      %s261 = smul.addr %s260, 2
      %s262 = scalar_lea.vmem %s6, %s261
      %v263 = vld [vmem:[%s1] sm:$0x1]
      %v264 = vld [vmem:[%s2] sm:$0x1]
      %v265 = vld [vmem:[%s253] sm:$0xff]
      %v266 = vld [vmem:[%s253 + $0x8] sm:$0xff]
      %v267 = vld [vmem:[%s253 + $0x10] sm:$0xff]
      %v268 = vld [vmem:[%s253 + $0x18] sm:$0xff]
      %v269 = vld [vmem:[%s253 + $0x20] sm:$0xff]
      %v270 = vld [vmem:[%s253 + $0x28] sm:$0xff]
      %v271 = vld [vmem:[%s253 + $0x30] sm:$0xff]
      %v272 = vld [vmem:[%s253 + $0x38] sm:$0xff]
      %v273 = vld [vmem:[%s253 + $0x40] sm:$0xff]
      %v274 = vld [vmem:[%s253 + $0x48] sm:$0xff]
      %v275 = vld [vmem:[%s253 + $0x50] sm:$0xff]
      %v276 = vld [vmem:[%s253 + $0x58] sm:$0xff]
      %v277 = vld [vmem:[%s253 + $0x60] sm:$0xff]
      %v278 = vld [vmem:[%s253 + $0x68] sm:$0xff]
      %v279 = vld [vmem:[%s253 + $0x70] sm:$0xff]
      %v280 = vld [vmem:[%s253 + $0x78] sm:$0xff]
      %v281 = vld [vmem:[%s253 + $0x80] sm:$0xff]
      %v282 = vld [vmem:[%s253 + $0x88] sm:$0xff]
      %v283 = vld [vmem:[%s253 + $0x90] sm:$0xff]
      %v284 = vld [vmem:[%s253 + $0x98] sm:$0xff]
      %v285 = vld [vmem:[%s253 + $0xa0] sm:$0xff]
      %v286 = vld [vmem:[%s253 + $0xa8] sm:$0xff]
      %v287 = vld [vmem:[%s253 + $0xb0] sm:$0xff]
      %v288 = vld [vmem:[%s253 + $0xb8] sm:$0xff]
      %v289 = vld [vmem:[%s253 + $0xc0] sm:$0xff]
      %v290 = vld [vmem:[%s253 + $0xc8] sm:$0xff]
      %v291 = vld [vmem:[%s253 + $0xd0] sm:$0xff]
      %v292 = vld [vmem:[%s253 + $0xd8] sm:$0xff]
      %v293 = vld [vmem:[%s253 + $0xe0] sm:$0xff]
      %v294 = vld [vmem:[%s253 + $0xe8] sm:$0xff]
      %v295 = vld [vmem:[%s253 + $0xf0] sm:$0xff]
      %v296 = vld [vmem:[%s253 + $0xf8] sm:$0xff]
      %v298 = vperm.slane %v263, 0
      %v300 = vmul.f32 %v265, %v298
      %v301 = vmul.f32 %v266, %v298
      %v302 = vmul.f32 %v267, %v298
      %v303 = vmul.f32 %v268, %v298
      %v304 = vmul.f32 %v269, %v298
      %v305 = vmul.f32 %v270, %v298
      %v306 = vmul.f32 %v271, %v298
      %v307 = vmul.f32 %v272, %v298
      %v308 = vmul.f32 %v273, %v298
      %v309 = vmul.f32 %v274, %v298
      %v310 = vmul.f32 %v275, %v298
      %v311 = vmul.f32 %v276, %v298
      %v312 = vmul.f32 %v277, %v298
      %v313 = vmul.f32 %v278, %v298
      %v314 = vmul.f32 %v279, %v298
      %v315 = vmul.f32 %v280, %v298
      %v316 = vmul.f32 %v281, %v298
      %v317 = vmul.f32 %v282, %v298
      %v318 = vmul.f32 %v283, %v298
      %v319 = vmul.f32 %v284, %v298
      %v320 = vmul.f32 %v285, %v298
      %v321 = vmul.f32 %v286, %v298
      %v322 = vmul.f32 %v287, %v298
      %v323 = vmul.f32 %v288, %v298
      %v324 = vmul.f32 %v289, %v298
      %v325 = vmul.f32 %v290, %v298
      %v326 = vmul.f32 %v291, %v298
      %v327 = vmul.f32 %v292, %v298
      %v328 = vmul.f32 %v293, %v298
      %v329 = vmul.f32 %v294, %v298
      %v330 = vmul.f32 %v295, %v298
      %v331 = vmul.f32 %v296, %v298
      %v333 = vperm.slane %v264, 0
      %v335 = vadd.f32 %v300, %v333
      %v336 = vadd.f32 %v301, %v333
      %v337 = vadd.f32 %v302, %v333
      %v338 = vadd.f32 %v303, %v333
      %v339 = vadd.f32 %v304, %v333
      %v340 = vadd.f32 %v305, %v333
      %v341 = vadd.f32 %v306, %v333
      %v342 = vadd.f32 %v307, %v333
      %v343 = vadd.f32 %v308, %v333
      %v344 = vadd.f32 %v309, %v333
      %v345 = vadd.f32 %v310, %v333
      %v346 = vadd.f32 %v311, %v333
      %v347 = vadd.f32 %v312, %v333
      %v348 = vadd.f32 %v313, %v333
      %v349 = vadd.f32 %v314, %v333
      %v350 = vadd.f32 %v315, %v333
      %v351 = vadd.f32 %v316, %v333
      %v352 = vadd.f32 %v317, %v333
      %v353 = vadd.f32 %v318, %v333
      %v354 = vadd.f32 %v319, %v333
      %v355 = vadd.f32 %v320, %v333
      %v356 = vadd.f32 %v321, %v333
      %v357 = vadd.f32 %v322, %v333
      %v358 = vadd.f32 %v323, %v333
      %v359 = vadd.f32 %v324, %v333
      %v360 = vadd.f32 %v325, %v333
      %v361 = vadd.f32 %v326, %v333
      %v362 = vadd.f32 %v327, %v333
      %v363 = vadd.f32 %v328, %v333
      %v364 = vadd.f32 %v329, %v333
      %v365 = vadd.f32 %v330, %v333
      %v366 = vadd.f32 %v331, %v333
      %v367 = vmax.f32 %v335, 0.0
      %v368 = vmax.f32 %v336, 0.0
      %v369 = vmax.f32 %v337, 0.0
      %v370 = vmax.f32 %v338, 0.0
      %v371 = vmax.f32 %v339, 0.0
      %v372 = vmax.f32 %v340, 0.0
      %v373 = vmax.f32 %v341, 0.0
      %v374 = vmax.f32 %v342, 0.0
      %v375 = vmax.f32 %v343, 0.0
      %v376 = vmax.f32 %v344, 0.0
      %v377 = vmax.f32 %v345, 0.0
      %v378 = vmax.f32 %v346, 0.0
      %v379 = vmax.f32 %v347, 0.0
      %v380 = vmax.f32 %v348, 0.0
      %v381 = vmax.f32 %v349, 0.0
      %v382 = vmax.f32 %v350, 0.0
      %v383 = vmax.f32 %v351, 0.0
      %v384 = vmax.f32 %v352, 0.0
      %v385 = vmax.f32 %v353, 0.0
      %v386 = vmax.f32 %v354, 0.0
      %v387 = vmax.f32 %v355, 0.0
      %v388 = vmax.f32 %v356, 0.0
      %v389 = vmax.f32 %v357, 0.0
      %v390 = vmax.f32 %v358, 0.0
      %v391 = vmax.f32 %v359, 0.0
      %v392 = vmax.f32 %v360, 0.0
      %v393 = vmax.f32 %v361, 0.0
      %v394 = vmax.f32 %v362, 0.0
      %v395 = vmax.f32 %v363, 0.0
      %v396 = vmax.f32 %v364, 0.0
      %v397 = vmax.f32 %v365, 0.0
      %v398 = vmax.f32 %v366, 0.0
      %vm399 = vcmask 64512
      %400 = vst.msk [vmem:[#allocation2] sm:$0xff] %vm399, 0.0
      %401 = vst.msk [vmem:[#allocation2 + $0x8] sm:$0xff] %vm399, 0.0
      %vm402 = vcmask 58368
      %403 = vst.msk [vmem:[#allocation2 + $0x10] sm:$0x3] %vm402, 0.0
      %404 = vst.msk [vmem:[#allocation2 + $0x18] sm:$0xff] %vm399, 0.0
      %405 = vst.msk [vmem:[#allocation2 + $0x20] sm:$0xff] %vm399, 0.0
      %406 = vst.msk [vmem:[#allocation2 + $0x28] sm:$0x3] %vm402, 0.0
      %407 = vst.msk [vmem:[#allocation2 + $0x30] sm:$0xff] %vm399, 0.0
      %408 = vst.msk [vmem:[#allocation2 + $0x38] sm:$0xff] %vm399, 0.0
      %409 = vst.msk [vmem:[#allocation2 + $0x40] sm:$0x3] %vm402, 0.0
      %410 = vst.msk [vmem:[#allocation2 + $0x48] sm:$0xff] %vm399, 0.0
      %411 = vst.msk [vmem:[#allocation2 + $0x50] sm:$0xff] %vm399, 0.0
      %412 = vst.msk [vmem:[#allocation2 + $0x58] sm:$0x3] %vm402, 0.0
      %413 = vst.msk [vmem:[#allocation2 + $0x60] sm:$0xff] %vm399, 0.0
      %414 = vst.msk [vmem:[#allocation2 + $0x68] sm:$0xff] %vm399, 0.0
      %415 = vst.msk [vmem:[#allocation2 + $0x70] sm:$0x3] %vm402, 0.0
      %416 = vst.msk [vmem:[#allocation2 + $0x78] sm:$0xff] %vm399, 0.0
      %417 = vst.msk [vmem:[#allocation2 + $0x80] sm:$0xff] %vm399, 0.0
      %418 = vst.msk [vmem:[#allocation2 + $0x88] sm:$0x3] %vm402, 0.0
      %419 = vst.msk [vmem:[#allocation2 + $0x90] sm:$0xff] %vm399, 0.0
      %420 = vst.msk [vmem:[#allocation2 + $0x98] sm:$0xff] %vm399, 0.0
      %421 = vst.msk [vmem:[#allocation2 + $0xa0] sm:$0x3] %vm402, 0.0
      %422 = vst.msk [vmem:[#allocation2 + $0xa8] sm:$0xff] %vm399, 0.0
      %423 = vst.msk [vmem:[#allocation2 + $0xb0] sm:$0xff] %vm399, 0.0
      %424 = vst.msk [vmem:[#allocation2 + $0xb8] sm:$0x3] %vm402, 0.0
      %425 = vst.msk [vmem:[#allocation2 + $0xc0] sm:$0xff] %vm399, 0.0
      %426 = vst.msk [vmem:[#allocation2 + $0xc8] sm:$0xff] %vm399, 0.0
      %427 = vst.msk [vmem:[#allocation2 + $0xd0] sm:$0x3] %vm402, 0.0
      %428 = vst.msk [vmem:[#allocation2 + $0xd8] sm:$0xff] %vm399, 0.0
      %429 = vst.msk [vmem:[#allocation2 + $0xe0] sm:$0xff] %vm399, 0.0
      %430 = vst.msk [vmem:[#allocation2 + $0xe8] sm:$0x3] %vm402, 0.0
      %431 = vst.msk [vmem:[#allocation2 + $0xf0] sm:$0xff] %vm399, 0.0
      %432 = vst.msk [vmem:[#allocation2 + $0xf8] sm:$0xff] %vm399, 0.0
      %433 = vst.msk [vmem:[#allocation2 + $0x100] sm:$0x3] %vm402, 0.0
      %434 = vst.msk [vmem:[#allocation2 + $0x108] sm:$0xff] %vm399, 0.0
      %435 = vst.msk [vmem:[#allocation2 + $0x110] sm:$0xff] %vm399, 0.0
      %436 = vst.msk [vmem:[#allocation2 + $0x118] sm:$0x3] %vm402, 0.0
      %437 = vst.msk [vmem:[#allocation2 + $0x120] sm:$0xff] %vm399, 0.0
      %438 = vst.msk [vmem:[#allocation2 + $0x128] sm:$0xff] %vm399, 0.0
      %439 = vst.msk [vmem:[#allocation2 + $0x130] sm:$0x3] %vm402, 0.0
      %440 = vst.msk [vmem:[#allocation2 + $0x138] sm:$0xff] %vm399, 0.0
      %441 = vst.msk [vmem:[#allocation2 + $0x140] sm:$0xff] %vm399, 0.0
      %442 = vst.msk [vmem:[#allocation2 + $0x148] sm:$0x3] %vm402, 0.0
      %443 = vst.msk [vmem:[#allocation2 + $0x150] sm:$0xff] %vm399, 0.0
      %444 = vst.msk [vmem:[#allocation2 + $0x158] sm:$0xff] %vm399, 0.0
      %445 = vst.msk [vmem:[#allocation2 + $0x160] sm:$0x3] %vm402, 0.0
      %446 = vst.msk [vmem:[#allocation2 + $0x168] sm:$0xff] %vm399, 0.0
      %447 = vst.msk [vmem:[#allocation2 + $0x170] sm:$0xff] %vm399, 0.0
      %448 = vst.msk [vmem:[#allocation2 + $0x178] sm:$0x3] %vm402, 0.0
      %449 = vst.msk [vmem:[#allocation2 + $0x180] sm:$0xff] %vm399, 0.0
      %450 = vst.msk [vmem:[#allocation2 + $0x188] sm:$0xff] %vm399, 0.0
      %451 = vst.msk [vmem:[#allocation2 + $0x190] sm:$0x3] %vm402, 0.0
      %452 = vst.msk [vmem:[#allocation2 + $0x198] sm:$0xff] %vm399, 0.0
      %453 = vst.msk [vmem:[#allocation2 + $0x1a0] sm:$0xff] %vm399, 0.0
      %454 = vst.msk [vmem:[#allocation2 + $0x1a8] sm:$0x3] %vm402, 0.0
      %s455 = scalar_lea.vmem [#allocation2], 24
      %456 = vst.msk [vmem:[%s455 + $0x1] sm:$0xff] %vm399, %v367
      %457 = vst.msk [vmem:[%s455 + $0x9] sm:$0xff] %vm399, %v368
      %458 = vst.msk [vmem:[%s455 + $0x19] sm:$0xff] %vm399, %v369
      %459 = vst.msk [vmem:[%s455 + $0x21] sm:$0xff] %vm399, %v370
      %460 = vst.msk [vmem:[%s455 + $0x31] sm:$0xff] %vm399, %v371
      %461 = vst.msk [vmem:[%s455 + $0x39] sm:$0xff] %vm399, %v372
      %462 = vst.msk [vmem:[%s455 + $0x49] sm:$0xff] %vm399, %v373
      %463 = vst.msk [vmem:[%s455 + $0x51] sm:$0xff] %vm399, %v374
      %464 = vst.msk [vmem:[%s455 + $0x61] sm:$0xff] %vm399, %v375
      %465 = vst.msk [vmem:[%s455 + $0x69] sm:$0xff] %vm399, %v376
      %466 = vst.msk [vmem:[%s455 + $0x79] sm:$0xff] %vm399, %v377
      %467 = vst.msk [vmem:[%s455 + $0x81] sm:$0xff] %vm399, %v378
      %468 = vst.msk [vmem:[%s455 + $0x91] sm:$0xff] %vm399, %v379
      %469 = vst.msk [vmem:[%s455 + $0x99] sm:$0xff] %vm399, %v380
      %470 = vst.msk [vmem:[%s455 + $0xa9] sm:$0xff] %vm399, %v381
      %471 = vst.msk [vmem:[%s455 + $0xb1] sm:$0xff] %vm399, %v382
      %472 = vst.msk [vmem:[%s455 + $0xc1] sm:$0xff] %vm399, %v383
      %473 = vst.msk [vmem:[%s455 + $0xc9] sm:$0xff] %vm399, %v384
      %474 = vst.msk [vmem:[%s455 + $0xd9] sm:$0xff] %vm399, %v385
      %475 = vst.msk [vmem:[%s455 + $0xe1] sm:$0xff] %vm399, %v386
      %476 = vst.msk [vmem:[%s455 + $0xf1] sm:$0xff] %vm399, %v387
      %477 = vst.msk [vmem:[%s455 + $0xf9] sm:$0xff] %vm399, %v388
      %478 = vst.msk [vmem:[%s455 + $0x109] sm:$0xff] %vm399, %v389
      %479 = vst.msk [vmem:[%s455 + $0x111] sm:$0xff] %vm399, %v390
      %480 = vst.msk [vmem:[%s455 + $0x121] sm:$0xff] %vm399, %v391
      %481 = vst.msk [vmem:[%s455 + $0x129] sm:$0xff] %vm399, %v392
      %482 = vst.msk [vmem:[%s455 + $0x139] sm:$0xff] %vm399, %v393
      %483 = vst.msk [vmem:[%s455 + $0x141] sm:$0xff] %vm399, %v394
      %484 = vst.msk [vmem:[%s455 + $0x151] sm:$0xff] %vm399, %v395
      %485 = vst.msk [vmem:[%s455 + $0x159] sm:$0xff] %vm399, %v396
      %486 = vst.msk [vmem:[%s455 + $0x169] sm:$0xff] %vm399, %v397
      %487 = vst.msk [vmem:[%s455 + $0x171] sm:$0xff] %vm399, %v398
      %v488 = vld [vmem:[#allocation2] sm:$0xff]
      %v489 = vld [vmem:[#allocation2 + $0x8] sm:$0xff]
      %v490 = vld [vmem:[#allocation2 + $0x18] sm:$0xff]
      %v491 = vld [vmem:[#allocation2 + $0x20] sm:$0xff]
      %v492 = vld [vmem:[#allocation2 + $0x30] sm:$0xff]
      %v493 = vld [vmem:[#allocation2 + $0x38] sm:$0xff]
      %v494 = vld [vmem:[#allocation2 + $0x48] sm:$0xff]
      %v495 = vld [vmem:[#allocation2 + $0x50] sm:$0xff]
      %v496 = vld [vmem:[#allocation2 + $0x60] sm:$0xff]
      %v497 = vld [vmem:[#allocation2 + $0x68] sm:$0xff]
      %v498 = vld [vmem:[#allocation2 + $0x78] sm:$0xff]
      %v499 = vld [vmem:[#allocation2 + $0x80] sm:$0xff]
      %v500 = vld [vmem:[#allocation2 + $0x90] sm:$0xff]
      %v501 = vld [vmem:[#allocation2 + $0x98] sm:$0xff]
      %v502 = vld [vmem:[#allocation2 + $0xa8] sm:$0xff]
      %v503 = vld [vmem:[#allocation2 + $0xb0] sm:$0xff]
      %v504 = vld [vmem:[#allocation2 + $0xc0] sm:$0xff]
      %v505 = vld [vmem:[#allocation2 + $0xc8] sm:$0xff]
      %v506 = vld [vmem:[#allocation2 + $0xd8] sm:$0xff]
      %v507 = vld [vmem:[#allocation2 + $0xe0] sm:$0xff]
      %v508 = vld [vmem:[#allocation2 + $0xf0] sm:$0xff]
      %v509 = vld [vmem:[#allocation2 + $0xf8] sm:$0xff]
      %v510 = vld [vmem:[#allocation2 + $0x108] sm:$0xff]
      %v511 = vld [vmem:[#allocation2 + $0x110] sm:$0xff]
      %v512 = vld [vmem:[#allocation2 + $0x120] sm:$0xff]
      %v513 = vld [vmem:[#allocation2 + $0x128] sm:$0xff]
      %v514 = vld [vmem:[#allocation2 + $0x138] sm:$0xff]
      %v515 = vld [vmem:[#allocation2 + $0x140] sm:$0xff]
      %v516 = vld [vmem:[#allocation2 + $0x150] sm:$0xff]
      %v517 = vld [vmem:[#allocation2 + $0x158] sm:$0xff]
      %v518 = vld [vmem:[#allocation2 + $0x168] sm:$0xff]
      %v519 = vld [vmem:[#allocation2 + $0x170] sm:$0xff]
      %v520 = vld [vmem:[#allocation2 + $0x1] sm:$0xff]
      %v521 = vld [vmem:[#allocation2 + $0x9] sm:$0xff]
      %v522 = vld [vmem:[#allocation2 + $0x19] sm:$0xff]
      %v523 = vld [vmem:[#allocation2 + $0x21] sm:$0xff]
      %v524 = vld [vmem:[#allocation2 + $0x31] sm:$0xff]
      %v525 = vld [vmem:[#allocation2 + $0x39] sm:$0xff]
      %v526 = vld [vmem:[#allocation2 + $0x49] sm:$0xff]
      %v527 = vld [vmem:[#allocation2 + $0x51] sm:$0xff]
      %v528 = vld [vmem:[#allocation2 + $0x61] sm:$0xff]
      %v529 = vld [vmem:[#allocation2 + $0x69] sm:$0xff]
      %v530 = vld [vmem:[#allocation2 + $0x79] sm:$0xff]
      %v531 = vld [vmem:[#allocation2 + $0x81] sm:$0xff]
      %v532 = vld [vmem:[#allocation2 + $0x91] sm:$0xff]
      %v533 = vld [vmem:[#allocation2 + $0x99] sm:$0xff]
      %v534 = vld [vmem:[#allocation2 + $0xa9] sm:$0xff]
      %v535 = vld [vmem:[#allocation2 + $0xb1] sm:$0xff]
      %v536 = vld [vmem:[#allocation2 + $0xc1] sm:$0xff]
      %v537 = vld [vmem:[#allocation2 + $0xc9] sm:$0xff]
      %v538 = vld [vmem:[#allocation2 + $0xd9] sm:$0xff]
      %v539 = vld [vmem:[#allocation2 + $0xe1] sm:$0xff]
      %v540 = vld [vmem:[#allocation2 + $0xf1] sm:$0xff]
      %v541 = vld [vmem:[#allocation2 + $0xf9] sm:$0xff]
      %v542 = vld [vmem:[#allocation2 + $0x109] sm:$0xff]
      %v543 = vld [vmem:[#allocation2 + $0x111] sm:$0xff]
      %v544 = vld [vmem:[#allocation2 + $0x121] sm:$0xff]
      %v545 = vld [vmem:[#allocation2 + $0x129] sm:$0xff]
      %v546 = vld [vmem:[#allocation2 + $0x139] sm:$0xff]
      %v547 = vld [vmem:[#allocation2 + $0x141] sm:$0xff]
      %v548 = vld [vmem:[#allocation2 + $0x151] sm:$0xff]
      %v549 = vld [vmem:[#allocation2 + $0x159] sm:$0xff]
      %v550 = vld [vmem:[#allocation2 + $0x169] sm:$0xff]
      %v551 = vld [vmem:[#allocation2 + $0x171] sm:$0xff]
      %v552 = vld [vmem:[#allocation2 + $0x2] sm:$0xff]
      %v553 = vld [vmem:[#allocation2 + $0xa] sm:$0xff]
      %v554 = vld [vmem:[#allocation2 + $0x1a] sm:$0xff]
      %v555 = vld [vmem:[#allocation2 + $0x22] sm:$0xff]
      %v556 = vld [vmem:[#allocation2 + $0x32] sm:$0xff]
      %v557 = vld [vmem:[#allocation2 + $0x3a] sm:$0xff]
      %v558 = vld [vmem:[#allocation2 + $0x4a] sm:$0xff]
      %v559 = vld [vmem:[#allocation2 + $0x52] sm:$0xff]
      %v560 = vld [vmem:[#allocation2 + $0x62] sm:$0xff]
      %v561 = vld [vmem:[#allocation2 + $0x6a] sm:$0xff]
      %v562 = vld [vmem:[#allocation2 + $0x7a] sm:$0xff]
      %v563 = vld [vmem:[#allocation2 + $0x82] sm:$0xff]
      %v564 = vld [vmem:[#allocation2 + $0x92] sm:$0xff]
      %v565 = vld [vmem:[#allocation2 + $0x9a] sm:$0xff]
      %v566 = vld [vmem:[#allocation2 + $0xaa] sm:$0xff]
      %v567 = vld [vmem:[#allocation2 + $0xb2] sm:$0xff]
      %v568 = vld [vmem:[#allocation2 + $0xc2] sm:$0xff]
      %v569 = vld [vmem:[#allocation2 + $0xca] sm:$0xff]
      %v570 = vld [vmem:[#allocation2 + $0xda] sm:$0xff]
      %v571 = vld [vmem:[#allocation2 + $0xe2] sm:$0xff]
      %v572 = vld [vmem:[#allocation2 + $0xf2] sm:$0xff]
      %v573 = vld [vmem:[#allocation2 + $0xfa] sm:$0xff]
      %v574 = vld [vmem:[#allocation2 + $0x10a] sm:$0xff]
      %v575 = vld [vmem:[#allocation2 + $0x112] sm:$0xff]
      %v576 = vld [vmem:[#allocation2 + $0x122] sm:$0xff]
      %v577 = vld [vmem:[#allocation2 + $0x12a] sm:$0xff]
      %v578 = vld [vmem:[#allocation2 + $0x13a] sm:$0xff]
      %v579 = vld [vmem:[#allocation2 + $0x142] sm:$0xff]
      %v580 = vld [vmem:[#allocation2 + $0x152] sm:$0xff]
      %v581 = vld [vmem:[#allocation2 + $0x15a] sm:$0xff]
      %v582 = vld [vmem:[#allocation2 + $0x16a] sm:$0xff]
      %v583 = vld [vmem:[#allocation2 + $0x172] sm:$0xff]
      %v584 = vld [vmem:[%s455] sm:$0xff]
      %v585 = vld [vmem:[%s455 + $0x8] sm:$0xff]
      %v586 = vld [vmem:[%s455 + $0x18] sm:$0xff]
      %v587 = vld [vmem:[%s455 + $0x20] sm:$0xff]
      %v588 = vld [vmem:[%s455 + $0x30] sm:$0xff]
      %v589 = vld [vmem:[%s455 + $0x38] sm:$0xff]
      %v590 = vld [vmem:[%s455 + $0x48] sm:$0xff]
      %v591 = vld [vmem:[%s455 + $0x50] sm:$0xff]
      %v592 = vld [vmem:[%s455 + $0x60] sm:$0xff]
      %v593 = vld [vmem:[%s455 + $0x68] sm:$0xff]
      %v594 = vld [vmem:[%s455 + $0x78] sm:$0xff]
      %v595 = vld [vmem:[%s455 + $0x80] sm:$0xff]
      %v596 = vld [vmem:[%s455 + $0x90] sm:$0xff]
      %v597 = vld [vmem:[%s455 + $0x98] sm:$0xff]
      %v598 = vld [vmem:[%s455 + $0xa8] sm:$0xff]
      %v599 = vld [vmem:[%s455 + $0xb0] sm:$0xff]
      %v600 = vld [vmem:[%s455 + $0xc0] sm:$0xff]
      %v601 = vld [vmem:[%s455 + $0xc8] sm:$0xff]
      %v602 = vld [vmem:[%s455 + $0xd8] sm:$0xff]
      %v603 = vld [vmem:[%s455 + $0xe0] sm:$0xff]
      %v604 = vld [vmem:[%s455 + $0xf0] sm:$0xff]
      %v605 = vld [vmem:[%s455 + $0xf8] sm:$0xff]
      %v606 = vld [vmem:[%s455 + $0x108] sm:$0xff]
      %v607 = vld [vmem:[%s455 + $0x110] sm:$0xff]
      %v608 = vld [vmem:[%s455 + $0x120] sm:$0xff]
      %v609 = vld [vmem:[%s455 + $0x128] sm:$0xff]
      %v610 = vld [vmem:[%s455 + $0x138] sm:$0xff]
      %v611 = vld [vmem:[%s455 + $0x140] sm:$0xff]
      %v612 = vld [vmem:[%s455 + $0x150] sm:$0xff]
      %v613 = vld [vmem:[%s455 + $0x158] sm:$0xff]
      %v614 = vld [vmem:[%s455 + $0x168] sm:$0xff]
      %v615 = vld [vmem:[%s455 + $0x170] sm:$0xff]
      %v616 = vld [vmem:[%s455 + $0x1] sm:$0xff]
      %v617 = vld [vmem:[%s455 + $0x9] sm:$0xff]
      %v618 = vld [vmem:[%s455 + $0x19] sm:$0xff]
      %v619 = vld [vmem:[%s455 + $0x21] sm:$0xff]
      %v620 = vld [vmem:[%s455 + $0x31] sm:$0xff]
      %v621 = vld [vmem:[%s455 + $0x39] sm:$0xff]
      %v622 = vld [vmem:[%s455 + $0x49] sm:$0xff]
      %v623 = vld [vmem:[%s455 + $0x51] sm:$0xff]
      %v624 = vld [vmem:[%s455 + $0x61] sm:$0xff]
      %v625 = vld [vmem:[%s455 + $0x69] sm:$0xff]
      %v626 = vld [vmem:[%s455 + $0x79] sm:$0xff]
      %v627 = vld [vmem:[%s455 + $0x81] sm:$0xff]
      %v628 = vld [vmem:[%s455 + $0x91] sm:$0xff]
      %v629 = vld [vmem:[%s455 + $0x99] sm:$0xff]
      %v630 = vld [vmem:[%s455 + $0xa9] sm:$0xff]
      %v631 = vld [vmem:[%s455 + $0xb1] sm:$0xff]
      %v632 = vld [vmem:[%s455 + $0xc1] sm:$0xff]
      %v633 = vld [vmem:[%s455 + $0xc9] sm:$0xff]
      %v634 = vld [vmem:[%s455 + $0xd9] sm:$0xff]
      %v635 = vld [vmem:[%s455 + $0xe1] sm:$0xff]
      %v636 = vld [vmem:[%s455 + $0xf1] sm:$0xff]
      %v637 = vld [vmem:[%s455 + $0xf9] sm:$0xff]
      %v638 = vld [vmem:[%s455 + $0x109] sm:$0xff]
      %v639 = vld [vmem:[%s455 + $0x111] sm:$0xff]
      %v640 = vld [vmem:[%s455 + $0x121] sm:$0xff]
      %v641 = vld [vmem:[%s455 + $0x129] sm:$0xff]
      %v642 = vld [vmem:[%s455 + $0x139] sm:$0xff]
      %v643 = vld [vmem:[%s455 + $0x141] sm:$0xff]
      %v644 = vld [vmem:[%s455 + $0x151] sm:$0xff]
      %v645 = vld [vmem:[%s455 + $0x159] sm:$0xff]
      %v646 = vld [vmem:[%s455 + $0x169] sm:$0xff]
      %v647 = vld [vmem:[%s455 + $0x171] sm:$0xff]
      %v648 = vld [vmem:[%s455 + $0x2] sm:$0xff]
      %v649 = vld [vmem:[%s455 + $0xa] sm:$0xff]
      %v650 = vld [vmem:[%s455 + $0x1a] sm:$0xff]
      %v651 = vld [vmem:[%s455 + $0x22] sm:$0xff]
      %v652 = vld [vmem:[%s455 + $0x32] sm:$0xff]
      %v653 = vld [vmem:[%s455 + $0x3a] sm:$0xff]
      %v654 = vld [vmem:[%s455 + $0x4a] sm:$0xff]
      %v655 = vld [vmem:[%s455 + $0x52] sm:$0xff]
      %v656 = vld [vmem:[%s455 + $0x62] sm:$0xff]
      %v657 = vld [vmem:[%s455 + $0x6a] sm:$0xff]
      %v658 = vld [vmem:[%s455 + $0x7a] sm:$0xff]
      %v659 = vld [vmem:[%s455 + $0x82] sm:$0xff]
      %v660 = vld [vmem:[%s455 + $0x92] sm:$0xff]
      %v661 = vld [vmem:[%s455 + $0x9a] sm:$0xff]
      %v662 = vld [vmem:[%s455 + $0xaa] sm:$0xff]
      %v663 = vld [vmem:[%s455 + $0xb2] sm:$0xff]
      %v664 = vld [vmem:[%s455 + $0xc2] sm:$0xff]
      %v665 = vld [vmem:[%s455 + $0xca] sm:$0xff]
      %v666 = vld [vmem:[%s455 + $0xda] sm:$0xff]
      %v667 = vld [vmem:[%s455 + $0xe2] sm:$0xff]
      %v668 = vld [vmem:[%s455 + $0xf2] sm:$0xff]
      %v669 = vld [vmem:[%s455 + $0xfa] sm:$0xff]
      %v670 = vld [vmem:[%s455 + $0x10a] sm:$0xff]
      %v671 = vld [vmem:[%s455 + $0x112] sm:$0xff]
      %v672 = vld [vmem:[%s455 + $0x122] sm:$0xff]
      %v673 = vld [vmem:[%s455 + $0x12a] sm:$0xff]
      %v674 = vld [vmem:[%s455 + $0x13a] sm:$0xff]
      %v675 = vld [vmem:[%s455 + $0x142] sm:$0xff]
      %v676 = vld [vmem:[%s455 + $0x152] sm:$0xff]
      %v677 = vld [vmem:[%s455 + $0x15a] sm:$0xff]
      %v678 = vld [vmem:[%s455 + $0x16a] sm:$0xff]
      %v679 = vld [vmem:[%s455 + $0x172] sm:$0xff]
      %s680 = scalar_lea.vmem [#allocation2], 48
      %v681 = vld [vmem:[%s680] sm:$0xff]
      %v682 = vld [vmem:[%s680 + $0x8] sm:$0xff]
      %v683 = vld [vmem:[%s680 + $0x18] sm:$0xff]
      %v684 = vld [vmem:[%s680 + $0x20] sm:$0xff]
      %v685 = vld [vmem:[%s680 + $0x30] sm:$0xff]
      %v686 = vld [vmem:[%s680 + $0x38] sm:$0xff]
      %v687 = vld [vmem:[%s680 + $0x48] sm:$0xff]
      %v688 = vld [vmem:[%s680 + $0x50] sm:$0xff]
      %v689 = vld [vmem:[%s680 + $0x60] sm:$0xff]
      %v690 = vld [vmem:[%s680 + $0x68] sm:$0xff]
      %v691 = vld [vmem:[%s680 + $0x78] sm:$0xff]
      %v692 = vld [vmem:[%s680 + $0x80] sm:$0xff]
      %v693 = vld [vmem:[%s680 + $0x90] sm:$0xff]
      %v694 = vld [vmem:[%s680 + $0x98] sm:$0xff]
      %v695 = vld [vmem:[%s680 + $0xa8] sm:$0xff]
      %v696 = vld [vmem:[%s680 + $0xb0] sm:$0xff]
      %v697 = vld [vmem:[%s680 + $0xc0] sm:$0xff]
      %v698 = vld [vmem:[%s680 + $0xc8] sm:$0xff]
      %v699 = vld [vmem:[%s680 + $0xd8] sm:$0xff]
      %v700 = vld [vmem:[%s680 + $0xe0] sm:$0xff]
      %v701 = vld [vmem:[%s680 + $0xf0] sm:$0xff]
      %v702 = vld [vmem:[%s680 + $0xf8] sm:$0xff]
      %v703 = vld [vmem:[%s680 + $0x108] sm:$0xff]
      %v704 = vld [vmem:[%s680 + $0x110] sm:$0xff]
      %v705 = vld [vmem:[%s680 + $0x120] sm:$0xff]
      %v706 = vld [vmem:[%s680 + $0x128] sm:$0xff]
      %v707 = vld [vmem:[%s680 + $0x138] sm:$0xff]
      %v708 = vld [vmem:[%s680 + $0x140] sm:$0xff]
      %v709 = vld [vmem:[%s680 + $0x150] sm:$0xff]
      %v710 = vld [vmem:[%s680 + $0x158] sm:$0xff]
      %v711 = vld [vmem:[%s680 + $0x168] sm:$0xff]
      %v712 = vld [vmem:[%s680 + $0x170] sm:$0xff]
      %v713 = vld [vmem:[%s680 + $0x1] sm:$0xff]
      %v714 = vld [vmem:[%s680 + $0x9] sm:$0xff]
      %v715 = vld [vmem:[%s680 + $0x19] sm:$0xff]
      %v716 = vld [vmem:[%s680 + $0x21] sm:$0xff]
      %v717 = vld [vmem:[%s680 + $0x31] sm:$0xff]
      %v718 = vld [vmem:[%s680 + $0x39] sm:$0xff]
      %v719 = vld [vmem:[%s680 + $0x49] sm:$0xff]
      %v720 = vld [vmem:[%s680 + $0x51] sm:$0xff]
      %v721 = vld [vmem:[%s680 + $0x61] sm:$0xff]
      %v722 = vld [vmem:[%s680 + $0x69] sm:$0xff]
      %v723 = vld [vmem:[%s680 + $0x79] sm:$0xff]
      %v724 = vld [vmem:[%s680 + $0x81] sm:$0xff]
      %v725 = vld [vmem:[%s680 + $0x91] sm:$0xff]
      %v726 = vld [vmem:[%s680 + $0x99] sm:$0xff]
      %v727 = vld [vmem:[%s680 + $0xa9] sm:$0xff]
      %v728 = vld [vmem:[%s680 + $0xb1] sm:$0xff]
      %v729 = vld [vmem:[%s680 + $0xc1] sm:$0xff]
      %v730 = vld [vmem:[%s680 + $0xc9] sm:$0xff]
      %v731 = vld [vmem:[%s680 + $0xd9] sm:$0xff]
      %v732 = vld [vmem:[%s680 + $0xe1] sm:$0xff]
      %v733 = vld [vmem:[%s680 + $0xf1] sm:$0xff]
      %v734 = vld [vmem:[%s680 + $0xf9] sm:$0xff]
      %v735 = vld [vmem:[%s680 + $0x109] sm:$0xff]
      %v736 = vld [vmem:[%s680 + $0x111] sm:$0xff]
      %v737 = vld [vmem:[%s680 + $0x121] sm:$0xff]
      %v738 = vld [vmem:[%s680 + $0x129] sm:$0xff]
      %v739 = vld [vmem:[%s680 + $0x139] sm:$0xff]
      %v740 = vld [vmem:[%s680 + $0x141] sm:$0xff]
      %v741 = vld [vmem:[%s680 + $0x151] sm:$0xff]
      %v742 = vld [vmem:[%s680 + $0x159] sm:$0xff]
      %v743 = vld [vmem:[%s680 + $0x169] sm:$0xff]
      %v744 = vld [vmem:[%s680 + $0x171] sm:$0xff]
      %v745 = vld [vmem:[%s680 + $0x2] sm:$0xff]
      %v746 = vld [vmem:[%s680 + $0xa] sm:$0xff]
      %v747 = vld [vmem:[%s680 + $0x1a] sm:$0xff]
      %v748 = vld [vmem:[%s680 + $0x22] sm:$0xff]
      %v749 = vld [vmem:[%s680 + $0x32] sm:$0xff]
      %v750 = vld [vmem:[%s680 + $0x3a] sm:$0xff]
      %v751 = vld [vmem:[%s680 + $0x4a] sm:$0xff]
      %v752 = vld [vmem:[%s680 + $0x52] sm:$0xff]
      %v753 = vld [vmem:[%s680 + $0x62] sm:$0xff]
      %v754 = vld [vmem:[%s680 + $0x6a] sm:$0xff]
      %v755 = vld [vmem:[%s680 + $0x7a] sm:$0xff]
      %v756 = vld [vmem:[%s680 + $0x82] sm:$0xff]
      %v757 = vld [vmem:[%s680 + $0x92] sm:$0xff]
      %v758 = vld [vmem:[%s680 + $0x9a] sm:$0xff]
      %v759 = vld [vmem:[%s680 + $0xaa] sm:$0xff]
      %v760 = vld [vmem:[%s680 + $0xb2] sm:$0xff]
      %v761 = vld [vmem:[%s680 + $0xc2] sm:$0xff]
      %v762 = vld [vmem:[%s680 + $0xca] sm:$0xff]
      %v763 = vld [vmem:[%s680 + $0xda] sm:$0xff]
      %v764 = vld [vmem:[%s680 + $0xe2] sm:$0xff]
      %v765 = vld [vmem:[%s680 + $0xf2] sm:$0xff]
      %v766 = vld [vmem:[%s680 + $0xfa] sm:$0xff]
      %v767 = vld [vmem:[%s680 + $0x10a] sm:$0xff]
      %v768 = vld [vmem:[%s680 + $0x112] sm:$0xff]
      %v769 = vld [vmem:[%s680 + $0x122] sm:$0xff]
      %v770 = vld [vmem:[%s680 + $0x12a] sm:$0xff]
      %v771 = vld [vmem:[%s680 + $0x13a] sm:$0xff]
      %v772 = vld [vmem:[%s680 + $0x142] sm:$0xff]
      %v773 = vld [vmem:[%s680 + $0x152] sm:$0xff]
      %v774 = vld [vmem:[%s680 + $0x15a] sm:$0xff]
      %v775 = vld [vmem:[%s680 + $0x16a] sm:$0xff]
      %v776 = vld [vmem:[%s680 + $0x172] sm:$0xff]
      %809 = vrot.lane.b32.xlu0 %v520, 8
      %v810 = vpop.permute.xlu0 %809
      %811 = vrot.lane.b32.xlu0 %v521, 8
      %v812 = vpop.permute.xlu0 %811
      %813 = vrot.lane.b32.xlu0 %v522, 8
      %v814 = vpop.permute.xlu0 %813
      %815 = vrot.lane.b32.xlu0 %v523, 8
      %v816 = vpop.permute.xlu0 %815
      %817 = vrot.lane.b32.xlu0 %v524, 8
      %v818 = vpop.permute.xlu0 %817
      %819 = vrot.lane.b32.xlu0 %v525, 8
      %v820 = vpop.permute.xlu0 %819
      %821 = vrot.lane.b32.xlu0 %v526, 8
      %v822 = vpop.permute.xlu0 %821
      %823 = vrot.lane.b32.xlu0 %v527, 8
      %v824 = vpop.permute.xlu0 %823
      %825 = vrot.lane.b32.xlu0 %v528, 8
      %v826 = vpop.permute.xlu0 %825
      %827 = vrot.lane.b32.xlu0 %v529, 8
      %v828 = vpop.permute.xlu0 %827
      %829 = vrot.lane.b32.xlu0 %v530, 8
      %v830 = vpop.permute.xlu0 %829
      %831 = vrot.lane.b32.xlu0 %v531, 8
      %v832 = vpop.permute.xlu0 %831
      %833 = vrot.lane.b32.xlu0 %v532, 8
      %v834 = vpop.permute.xlu0 %833
      %835 = vrot.lane.b32.xlu0 %v533, 8
      %v836 = vpop.permute.xlu0 %835
      %837 = vrot.lane.b32.xlu0 %v534, 8
      %v838 = vpop.permute.xlu0 %837
      %839 = vrot.lane.b32.xlu0 %v535, 8
      %v840 = vpop.permute.xlu0 %839
      %841 = vrot.lane.b32.xlu0 %v536, 8
      %v842 = vpop.permute.xlu0 %841
      %843 = vrot.lane.b32.xlu0 %v537, 8
      %v844 = vpop.permute.xlu0 %843
      %845 = vrot.lane.b32.xlu0 %v538, 8
      %v846 = vpop.permute.xlu0 %845
      %847 = vrot.lane.b32.xlu0 %v539, 8
      %v848 = vpop.permute.xlu0 %847
      %849 = vrot.lane.b32.xlu0 %v540, 8
      %v850 = vpop.permute.xlu0 %849
      %851 = vrot.lane.b32.xlu0 %v541, 8
      %v852 = vpop.permute.xlu0 %851
      %853 = vrot.lane.b32.xlu0 %v542, 8
      %v854 = vpop.permute.xlu0 %853
      %855 = vrot.lane.b32.xlu0 %v543, 8
      %v856 = vpop.permute.xlu0 %855
      %857 = vrot.lane.b32.xlu0 %v544, 8
      %v858 = vpop.permute.xlu0 %857
      %859 = vrot.lane.b32.xlu0 %v545, 8
      %v860 = vpop.permute.xlu0 %859
      %861 = vrot.lane.b32.xlu0 %v546, 8
      %v862 = vpop.permute.xlu0 %861
      %863 = vrot.lane.b32.xlu0 %v547, 8
      %v864 = vpop.permute.xlu0 %863
      %865 = vrot.lane.b32.xlu0 %v548, 8
      %v866 = vpop.permute.xlu0 %865
      %867 = vrot.lane.b32.xlu0 %v549, 8
      %v868 = vpop.permute.xlu0 %867
      %869 = vrot.lane.b32.xlu0 %v550, 8
      %v870 = vpop.permute.xlu0 %869
      %871 = vrot.lane.b32.xlu0 %v551, 8
      %v872 = vpop.permute.xlu0 %871
      %937 = vrot.lane.b32.xlu0 %v552, 16
      %v938 = vpop.permute.xlu0 %937
      %939 = vrot.lane.b32.xlu0 %v553, 16
      %v940 = vpop.permute.xlu0 %939
      %941 = vrot.lane.b32.xlu0 %v554, 16
      %v942 = vpop.permute.xlu0 %941
      %943 = vrot.lane.b32.xlu0 %v555, 16
      %v944 = vpop.permute.xlu0 %943
      %945 = vrot.lane.b32.xlu0 %v556, 16
      %v946 = vpop.permute.xlu0 %945
      %947 = vrot.lane.b32.xlu0 %v557, 16
      %v948 = vpop.permute.xlu0 %947
      %949 = vrot.lane.b32.xlu0 %v558, 16
      %v950 = vpop.permute.xlu0 %949
      %951 = vrot.lane.b32.xlu0 %v559, 16
      %v952 = vpop.permute.xlu0 %951
      %953 = vrot.lane.b32.xlu0 %v560, 16
      %v954 = vpop.permute.xlu0 %953
      %955 = vrot.lane.b32.xlu0 %v561, 16
      %v956 = vpop.permute.xlu0 %955
      %957 = vrot.lane.b32.xlu0 %v562, 16
      %v958 = vpop.permute.xlu0 %957
      %959 = vrot.lane.b32.xlu0 %v563, 16
      %v960 = vpop.permute.xlu0 %959
      %961 = vrot.lane.b32.xlu0 %v564, 16
      %v962 = vpop.permute.xlu0 %961
      %963 = vrot.lane.b32.xlu0 %v565, 16
      %v964 = vpop.permute.xlu0 %963
      %965 = vrot.lane.b32.xlu0 %v566, 16
      %v966 = vpop.permute.xlu0 %965
      %967 = vrot.lane.b32.xlu0 %v567, 16
      %v968 = vpop.permute.xlu0 %967
      %969 = vrot.lane.b32.xlu0 %v568, 16
      %v970 = vpop.permute.xlu0 %969
      %971 = vrot.lane.b32.xlu0 %v569, 16
      %v972 = vpop.permute.xlu0 %971
      %973 = vrot.lane.b32.xlu0 %v570, 16
      %v974 = vpop.permute.xlu0 %973
      %975 = vrot.lane.b32.xlu0 %v571, 16
      %v976 = vpop.permute.xlu0 %975
      %977 = vrot.lane.b32.xlu0 %v572, 16
      %v978 = vpop.permute.xlu0 %977
      %979 = vrot.lane.b32.xlu0 %v573, 16
      %v980 = vpop.permute.xlu0 %979
      %981 = vrot.lane.b32.xlu0 %v574, 16
      %v982 = vpop.permute.xlu0 %981
      %983 = vrot.lane.b32.xlu0 %v575, 16
      %v984 = vpop.permute.xlu0 %983
      %985 = vrot.lane.b32.xlu0 %v576, 16
      %v986 = vpop.permute.xlu0 %985
      %987 = vrot.lane.b32.xlu0 %v577, 16
      %v988 = vpop.permute.xlu0 %987
      %989 = vrot.lane.b32.xlu0 %v578, 16
      %v990 = vpop.permute.xlu0 %989
      %991 = vrot.lane.b32.xlu0 %v579, 16
      %v992 = vpop.permute.xlu0 %991
      %993 = vrot.lane.b32.xlu0 %v580, 16
      %v994 = vpop.permute.xlu0 %993
      %995 = vrot.lane.b32.xlu0 %v581, 16
      %v996 = vpop.permute.xlu0 %995
      %997 = vrot.lane.b32.xlu0 %v582, 16
      %v998 = vpop.permute.xlu0 %997
      %999 = vrot.lane.b32.xlu0 %v583, 16
      %v1000 = vpop.permute.xlu0 %999
      %1065 = vrot.lane.b32.xlu0 %v584, 24
      %v1066 = vpop.permute.xlu0 %1065
      %1067 = vrot.lane.b32.xlu0 %v585, 24
      %v1068 = vpop.permute.xlu0 %1067
      %1069 = vrot.lane.b32.xlu0 %v586, 24
      %v1070 = vpop.permute.xlu0 %1069
      %1071 = vrot.lane.b32.xlu0 %v587, 24
      %v1072 = vpop.permute.xlu0 %1071
      %1073 = vrot.lane.b32.xlu0 %v588, 24
      %v1074 = vpop.permute.xlu0 %1073
      %1075 = vrot.lane.b32.xlu0 %v589, 24
      %v1076 = vpop.permute.xlu0 %1075
      %1077 = vrot.lane.b32.xlu0 %v590, 24
      %v1078 = vpop.permute.xlu0 %1077
      %1079 = vrot.lane.b32.xlu0 %v591, 24
      %v1080 = vpop.permute.xlu0 %1079
      %1081 = vrot.lane.b32.xlu0 %v592, 24
      %v1082 = vpop.permute.xlu0 %1081
      %1083 = vrot.lane.b32.xlu0 %v593, 24
      %v1084 = vpop.permute.xlu0 %1083
      %1085 = vrot.lane.b32.xlu0 %v594, 24
      %v1086 = vpop.permute.xlu0 %1085
      %1087 = vrot.lane.b32.xlu0 %v595, 24
      %v1088 = vpop.permute.xlu0 %1087
      %1089 = vrot.lane.b32.xlu0 %v596, 24
      %v1090 = vpop.permute.xlu0 %1089
      %1091 = vrot.lane.b32.xlu0 %v597, 24
      %v1092 = vpop.permute.xlu0 %1091
      %1093 = vrot.lane.b32.xlu0 %v598, 24
      %v1094 = vpop.permute.xlu0 %1093
      %1095 = vrot.lane.b32.xlu0 %v599, 24
      %v1096 = vpop.permute.xlu0 %1095
      %1097 = vrot.lane.b32.xlu0 %v600, 24
      %v1098 = vpop.permute.xlu0 %1097
      %1099 = vrot.lane.b32.xlu0 %v601, 24
      %v1100 = vpop.permute.xlu0 %1099
      %1101 = vrot.lane.b32.xlu0 %v602, 24
      %v1102 = vpop.permute.xlu0 %1101
      %1103 = vrot.lane.b32.xlu0 %v603, 24
      %v1104 = vpop.permute.xlu0 %1103
      %1105 = vrot.lane.b32.xlu0 %v604, 24
      %v1106 = vpop.permute.xlu0 %1105
      %1107 = vrot.lane.b32.xlu0 %v605, 24
      %v1108 = vpop.permute.xlu0 %1107
      %1109 = vrot.lane.b32.xlu0 %v606, 24
      %v1110 = vpop.permute.xlu0 %1109
      %1111 = vrot.lane.b32.xlu0 %v607, 24
      %v1112 = vpop.permute.xlu0 %1111
      %1113 = vrot.lane.b32.xlu0 %v608, 24
      %v1114 = vpop.permute.xlu0 %1113
      %1115 = vrot.lane.b32.xlu0 %v609, 24
      %v1116 = vpop.permute.xlu0 %1115
      %1117 = vrot.lane.b32.xlu0 %v610, 24
      %v1118 = vpop.permute.xlu0 %1117
      %1119 = vrot.lane.b32.xlu0 %v611, 24
      %v1120 = vpop.permute.xlu0 %1119
      %1121 = vrot.lane.b32.xlu0 %v612, 24
      %v1122 = vpop.permute.xlu0 %1121
      %1123 = vrot.lane.b32.xlu0 %v613, 24
      %v1124 = vpop.permute.xlu0 %1123
      %1125 = vrot.lane.b32.xlu0 %v614, 24
      %v1126 = vpop.permute.xlu0 %1125
      %1127 = vrot.lane.b32.xlu0 %v615, 24
      %v1128 = vpop.permute.xlu0 %1127
      %1193 = vrot.lane.b32.xlu0 %v616, 32
      %v1194 = vpop.permute.xlu0 %1193
      %1195 = vrot.lane.b32.xlu0 %v617, 32
      %v1196 = vpop.permute.xlu0 %1195
      %1197 = vrot.lane.b32.xlu0 %v618, 32
      %v1198 = vpop.permute.xlu0 %1197
      %1199 = vrot.lane.b32.xlu0 %v619, 32
      %v1200 = vpop.permute.xlu0 %1199
      %1201 = vrot.lane.b32.xlu0 %v620, 32
      %v1202 = vpop.permute.xlu0 %1201
      %1203 = vrot.lane.b32.xlu0 %v621, 32
      %v1204 = vpop.permute.xlu0 %1203
      %1205 = vrot.lane.b32.xlu0 %v622, 32
      %v1206 = vpop.permute.xlu0 %1205
      %1207 = vrot.lane.b32.xlu0 %v623, 32
      %v1208 = vpop.permute.xlu0 %1207
      %1209 = vrot.lane.b32.xlu0 %v624, 32
      %v1210 = vpop.permute.xlu0 %1209
      %1211 = vrot.lane.b32.xlu0 %v625, 32
      %v1212 = vpop.permute.xlu0 %1211
      %1213 = vrot.lane.b32.xlu0 %v626, 32
      %v1214 = vpop.permute.xlu0 %1213
      %1215 = vrot.lane.b32.xlu0 %v627, 32
      %v1216 = vpop.permute.xlu0 %1215
      %1217 = vrot.lane.b32.xlu0 %v628, 32
      %v1218 = vpop.permute.xlu0 %1217
      %1219 = vrot.lane.b32.xlu0 %v629, 32
      %v1220 = vpop.permute.xlu0 %1219
      %1221 = vrot.lane.b32.xlu0 %v630, 32
      %v1222 = vpop.permute.xlu0 %1221
      %1223 = vrot.lane.b32.xlu0 %v631, 32
      %v1224 = vpop.permute.xlu0 %1223
      %1225 = vrot.lane.b32.xlu0 %v632, 32
      %v1226 = vpop.permute.xlu0 %1225
      %1227 = vrot.lane.b32.xlu0 %v633, 32
      %v1228 = vpop.permute.xlu0 %1227
      %1229 = vrot.lane.b32.xlu0 %v634, 32
      %v1230 = vpop.permute.xlu0 %1229
      %1231 = vrot.lane.b32.xlu0 %v635, 32
      %v1232 = vpop.permute.xlu0 %1231
      %1233 = vrot.lane.b32.xlu0 %v636, 32
      %v1234 = vpop.permute.xlu0 %1233
      %1235 = vrot.lane.b32.xlu0 %v637, 32
      %v1236 = vpop.permute.xlu0 %1235
      %1237 = vrot.lane.b32.xlu0 %v638, 32
      %v1238 = vpop.permute.xlu0 %1237
      %1239 = vrot.lane.b32.xlu0 %v639, 32
      %v1240 = vpop.permute.xlu0 %1239
      %1241 = vrot.lane.b32.xlu0 %v640, 32
      %v1242 = vpop.permute.xlu0 %1241
      %1243 = vrot.lane.b32.xlu0 %v641, 32
      %v1244 = vpop.permute.xlu0 %1243
      %1245 = vrot.lane.b32.xlu0 %v642, 32
      %v1246 = vpop.permute.xlu0 %1245
      %1247 = vrot.lane.b32.xlu0 %v643, 32
      %v1248 = vpop.permute.xlu0 %1247
      %1249 = vrot.lane.b32.xlu0 %v644, 32
      %v1250 = vpop.permute.xlu0 %1249
      %1251 = vrot.lane.b32.xlu0 %v645, 32
      %v1252 = vpop.permute.xlu0 %1251
      %1253 = vrot.lane.b32.xlu0 %v646, 32
      %v1254 = vpop.permute.xlu0 %1253
      %1255 = vrot.lane.b32.xlu0 %v647, 32
      %v1256 = vpop.permute.xlu0 %1255
      %1321 = vrot.lane.b32.xlu0 %v648, 40
      %v1322 = vpop.permute.xlu0 %1321
      %1323 = vrot.lane.b32.xlu0 %v649, 40
      %v1324 = vpop.permute.xlu0 %1323
      %1325 = vrot.lane.b32.xlu0 %v650, 40
      %v1326 = vpop.permute.xlu0 %1325
      %1327 = vrot.lane.b32.xlu0 %v651, 40
      %v1328 = vpop.permute.xlu0 %1327
      %1329 = vrot.lane.b32.xlu0 %v652, 40
      %v1330 = vpop.permute.xlu0 %1329
      %1331 = vrot.lane.b32.xlu0 %v653, 40
      %v1332 = vpop.permute.xlu0 %1331
      %1333 = vrot.lane.b32.xlu0 %v654, 40
      %v1334 = vpop.permute.xlu0 %1333
      %1335 = vrot.lane.b32.xlu0 %v655, 40
      %v1336 = vpop.permute.xlu0 %1335
      %1337 = vrot.lane.b32.xlu0 %v656, 40
      %v1338 = vpop.permute.xlu0 %1337
      %1339 = vrot.lane.b32.xlu0 %v657, 40
      %v1340 = vpop.permute.xlu0 %1339
      %1341 = vrot.lane.b32.xlu0 %v658, 40
      %v1342 = vpop.permute.xlu0 %1341
      %1343 = vrot.lane.b32.xlu0 %v659, 40
      %v1344 = vpop.permute.xlu0 %1343
      %1345 = vrot.lane.b32.xlu0 %v660, 40
      %v1346 = vpop.permute.xlu0 %1345
      %1347 = vrot.lane.b32.xlu0 %v661, 40
      %v1348 = vpop.permute.xlu0 %1347
      %1349 = vrot.lane.b32.xlu0 %v662, 40
      %v1350 = vpop.permute.xlu0 %1349
      %1351 = vrot.lane.b32.xlu0 %v663, 40
      %v1352 = vpop.permute.xlu0 %1351
      %1353 = vrot.lane.b32.xlu0 %v664, 40
      %v1354 = vpop.permute.xlu0 %1353
      %1355 = vrot.lane.b32.xlu0 %v665, 40
      %v1356 = vpop.permute.xlu0 %1355
      %1357 = vrot.lane.b32.xlu0 %v666, 40
      %v1358 = vpop.permute.xlu0 %1357
      %1359 = vrot.lane.b32.xlu0 %v667, 40
      %v1360 = vpop.permute.xlu0 %1359
      %1361 = vrot.lane.b32.xlu0 %v668, 40
      %v1362 = vpop.permute.xlu0 %1361
      %1363 = vrot.lane.b32.xlu0 %v669, 40
      %v1364 = vpop.permute.xlu0 %1363
      %1365 = vrot.lane.b32.xlu0 %v670, 40
      %v1366 = vpop.permute.xlu0 %1365
      %1367 = vrot.lane.b32.xlu0 %v671, 40
      %v1368 = vpop.permute.xlu0 %1367
      %1369 = vrot.lane.b32.xlu0 %v672, 40
      %v1370 = vpop.permute.xlu0 %1369
      %1371 = vrot.lane.b32.xlu0 %v673, 40
      %v1372 = vpop.permute.xlu0 %1371
      %1373 = vrot.lane.b32.xlu0 %v674, 40
      %v1374 = vpop.permute.xlu0 %1373
      %1375 = vrot.lane.b32.xlu0 %v675, 40
      %v1376 = vpop.permute.xlu0 %1375
      %1377 = vrot.lane.b32.xlu0 %v676, 40
      %v1378 = vpop.permute.xlu0 %1377
      %1379 = vrot.lane.b32.xlu0 %v677, 40
      %v1380 = vpop.permute.xlu0 %1379
      %1381 = vrot.lane.b32.xlu0 %v678, 40
      %v1382 = vpop.permute.xlu0 %1381
      %1383 = vrot.lane.b32.xlu0 %v679, 40
      %v1384 = vpop.permute.xlu0 %1383
      %1449 = vrot.lane.b32.xlu0 %v681, 48
      %v1450 = vpop.permute.xlu0 %1449
      %1451 = vrot.lane.b32.xlu0 %v682, 48
      %v1452 = vpop.permute.xlu0 %1451
      %1453 = vrot.lane.b32.xlu0 %v683, 48
      %v1454 = vpop.permute.xlu0 %1453
      %1455 = vrot.lane.b32.xlu0 %v684, 48
      %v1456 = vpop.permute.xlu0 %1455
      %1457 = vrot.lane.b32.xlu0 %v685, 48
      %v1458 = vpop.permute.xlu0 %1457
      %1459 = vrot.lane.b32.xlu0 %v686, 48
      %v1460 = vpop.permute.xlu0 %1459
      %1461 = vrot.lane.b32.xlu0 %v687, 48
      %v1462 = vpop.permute.xlu0 %1461
      %1463 = vrot.lane.b32.xlu0 %v688, 48
      %v1464 = vpop.permute.xlu0 %1463
      %1465 = vrot.lane.b32.xlu0 %v689, 48
      %v1466 = vpop.permute.xlu0 %1465
      %1467 = vrot.lane.b32.xlu0 %v690, 48
      %v1468 = vpop.permute.xlu0 %1467
      %1469 = vrot.lane.b32.xlu0 %v691, 48
      %v1470 = vpop.permute.xlu0 %1469
      %1471 = vrot.lane.b32.xlu0 %v692, 48
      %v1472 = vpop.permute.xlu0 %1471
      %1473 = vrot.lane.b32.xlu0 %v693, 48
      %v1474 = vpop.permute.xlu0 %1473
      %1475 = vrot.lane.b32.xlu0 %v694, 48
      %v1476 = vpop.permute.xlu0 %1475
      %1477 = vrot.lane.b32.xlu0 %v695, 48
      %v1478 = vpop.permute.xlu0 %1477
      %1479 = vrot.lane.b32.xlu0 %v696, 48
      %v1480 = vpop.permute.xlu0 %1479
      %1481 = vrot.lane.b32.xlu0 %v697, 48
      %v1482 = vpop.permute.xlu0 %1481
      %1483 = vrot.lane.b32.xlu0 %v698, 48
      %v1484 = vpop.permute.xlu0 %1483
      %1485 = vrot.lane.b32.xlu0 %v699, 48
      %v1486 = vpop.permute.xlu0 %1485
      %1487 = vrot.lane.b32.xlu0 %v700, 48
      %v1488 = vpop.permute.xlu0 %1487
      %1489 = vrot.lane.b32.xlu0 %v701, 48
      %v1490 = vpop.permute.xlu0 %1489
      %1491 = vrot.lane.b32.xlu0 %v702, 48
      %v1492 = vpop.permute.xlu0 %1491
      %1493 = vrot.lane.b32.xlu0 %v703, 48
      %v1494 = vpop.permute.xlu0 %1493
      %1495 = vrot.lane.b32.xlu0 %v704, 48
      %v1496 = vpop.permute.xlu0 %1495
      %1497 = vrot.lane.b32.xlu0 %v705, 48
      %v1498 = vpop.permute.xlu0 %1497
      %1499 = vrot.lane.b32.xlu0 %v706, 48
      %v1500 = vpop.permute.xlu0 %1499
      %1501 = vrot.lane.b32.xlu0 %v707, 48
      %v1502 = vpop.permute.xlu0 %1501
      %1503 = vrot.lane.b32.xlu0 %v708, 48
      %v1504 = vpop.permute.xlu0 %1503
      %1505 = vrot.lane.b32.xlu0 %v709, 48
      %v1506 = vpop.permute.xlu0 %1505
      %1507 = vrot.lane.b32.xlu0 %v710, 48
      %v1508 = vpop.permute.xlu0 %1507
      %1509 = vrot.lane.b32.xlu0 %v711, 48
      %v1510 = vpop.permute.xlu0 %1509
      %1511 = vrot.lane.b32.xlu0 %v712, 48
      %v1512 = vpop.permute.xlu0 %1511
      %1577 = vrot.lane.b32.xlu0 %v713, 56
      %v1578 = vpop.permute.xlu0 %1577
      %1579 = vrot.lane.b32.xlu0 %v714, 56
      %v1580 = vpop.permute.xlu0 %1579
      %1581 = vrot.lane.b32.xlu0 %v715, 56
      %v1582 = vpop.permute.xlu0 %1581
      %1583 = vrot.lane.b32.xlu0 %v716, 56
      %v1584 = vpop.permute.xlu0 %1583
      %1585 = vrot.lane.b32.xlu0 %v717, 56
      %v1586 = vpop.permute.xlu0 %1585
      %1587 = vrot.lane.b32.xlu0 %v718, 56
      %v1588 = vpop.permute.xlu0 %1587
      %1589 = vrot.lane.b32.xlu0 %v719, 56
      %v1590 = vpop.permute.xlu0 %1589
      %1591 = vrot.lane.b32.xlu0 %v720, 56
      %v1592 = vpop.permute.xlu0 %1591
      %1593 = vrot.lane.b32.xlu0 %v721, 56
      %v1594 = vpop.permute.xlu0 %1593
      %1595 = vrot.lane.b32.xlu0 %v722, 56
      %v1596 = vpop.permute.xlu0 %1595
      %1597 = vrot.lane.b32.xlu0 %v723, 56
      %v1598 = vpop.permute.xlu0 %1597
      %1599 = vrot.lane.b32.xlu0 %v724, 56
      %v1600 = vpop.permute.xlu0 %1599
      %1601 = vrot.lane.b32.xlu0 %v725, 56
      %v1602 = vpop.permute.xlu0 %1601
      %1603 = vrot.lane.b32.xlu0 %v726, 56
      %v1604 = vpop.permute.xlu0 %1603
      %1605 = vrot.lane.b32.xlu0 %v727, 56
      %v1606 = vpop.permute.xlu0 %1605
      %1607 = vrot.lane.b32.xlu0 %v728, 56
      %v1608 = vpop.permute.xlu0 %1607
      %1609 = vrot.lane.b32.xlu0 %v729, 56
      %v1610 = vpop.permute.xlu0 %1609
      %1611 = vrot.lane.b32.xlu0 %v730, 56
      %v1612 = vpop.permute.xlu0 %1611
      %1613 = vrot.lane.b32.xlu0 %v731, 56
      %v1614 = vpop.permute.xlu0 %1613
      %1615 = vrot.lane.b32.xlu0 %v732, 56
      %v1616 = vpop.permute.xlu0 %1615
      %1617 = vrot.lane.b32.xlu0 %v733, 56
      %v1618 = vpop.permute.xlu0 %1617
      %1619 = vrot.lane.b32.xlu0 %v734, 56
      %v1620 = vpop.permute.xlu0 %1619
      %1621 = vrot.lane.b32.xlu0 %v735, 56
      %v1622 = vpop.permute.xlu0 %1621
      %1623 = vrot.lane.b32.xlu0 %v736, 56
      %v1624 = vpop.permute.xlu0 %1623
      %1625 = vrot.lane.b32.xlu0 %v737, 56
      %v1626 = vpop.permute.xlu0 %1625
      %1627 = vrot.lane.b32.xlu0 %v738, 56
      %v1628 = vpop.permute.xlu0 %1627
      %1629 = vrot.lane.b32.xlu0 %v739, 56
      %v1630 = vpop.permute.xlu0 %1629
      %1631 = vrot.lane.b32.xlu0 %v740, 56
      %v1632 = vpop.permute.xlu0 %1631
      %1633 = vrot.lane.b32.xlu0 %v741, 56
      %v1634 = vpop.permute.xlu0 %1633
      %1635 = vrot.lane.b32.xlu0 %v742, 56
      %v1636 = vpop.permute.xlu0 %1635
      %1637 = vrot.lane.b32.xlu0 %v743, 56
      %v1638 = vpop.permute.xlu0 %1637
      %1639 = vrot.lane.b32.xlu0 %v744, 56
      %v1640 = vpop.permute.xlu0 %1639
      %1705 = vrot.lane.b32.xlu0 %v745, 64
      %v1706 = vpop.permute.xlu0 %1705
      %1707 = vrot.lane.b32.xlu0 %v746, 64
      %v1708 = vpop.permute.xlu0 %1707
      %1709 = vrot.lane.b32.xlu0 %v747, 64
      %v1710 = vpop.permute.xlu0 %1709
      %1711 = vrot.lane.b32.xlu0 %v748, 64
      %v1712 = vpop.permute.xlu0 %1711
      %1713 = vrot.lane.b32.xlu0 %v749, 64
      %v1714 = vpop.permute.xlu0 %1713
      %1715 = vrot.lane.b32.xlu0 %v750, 64
      %v1716 = vpop.permute.xlu0 %1715
      %1717 = vrot.lane.b32.xlu0 %v751, 64
      %v1718 = vpop.permute.xlu0 %1717
      %1719 = vrot.lane.b32.xlu0 %v752, 64
      %v1720 = vpop.permute.xlu0 %1719
      %1721 = vrot.lane.b32.xlu0 %v753, 64
      %v1722 = vpop.permute.xlu0 %1721
      %1723 = vrot.lane.b32.xlu0 %v754, 64
      %v1724 = vpop.permute.xlu0 %1723
      %1725 = vrot.lane.b32.xlu0 %v755, 64
      %v1726 = vpop.permute.xlu0 %1725
      %1727 = vrot.lane.b32.xlu0 %v756, 64
      %v1728 = vpop.permute.xlu0 %1727
      %1729 = vrot.lane.b32.xlu0 %v757, 64
      %v1730 = vpop.permute.xlu0 %1729
      %1731 = vrot.lane.b32.xlu0 %v758, 64
      %v1732 = vpop.permute.xlu0 %1731
      %1733 = vrot.lane.b32.xlu0 %v759, 64
      %v1734 = vpop.permute.xlu0 %1733
      %1735 = vrot.lane.b32.xlu0 %v760, 64
      %v1736 = vpop.permute.xlu0 %1735
      %1737 = vrot.lane.b32.xlu0 %v761, 64
      %v1738 = vpop.permute.xlu0 %1737
      %1739 = vrot.lane.b32.xlu0 %v762, 64
      %v1740 = vpop.permute.xlu0 %1739
      %1741 = vrot.lane.b32.xlu0 %v763, 64
      %v1742 = vpop.permute.xlu0 %1741
      %1743 = vrot.lane.b32.xlu0 %v764, 64
      %v1744 = vpop.permute.xlu0 %1743
      %1745 = vrot.lane.b32.xlu0 %v765, 64
      %v1746 = vpop.permute.xlu0 %1745
      %1747 = vrot.lane.b32.xlu0 %v766, 64
      %v1748 = vpop.permute.xlu0 %1747
      %1749 = vrot.lane.b32.xlu0 %v767, 64
      %v1750 = vpop.permute.xlu0 %1749
      %1751 = vrot.lane.b32.xlu0 %v768, 64
      %v1752 = vpop.permute.xlu0 %1751
      %1753 = vrot.lane.b32.xlu0 %v769, 64
      %v1754 = vpop.permute.xlu0 %1753
      %1755 = vrot.lane.b32.xlu0 %v770, 64
      %v1756 = vpop.permute.xlu0 %1755
      %1757 = vrot.lane.b32.xlu0 %v771, 64
      %v1758 = vpop.permute.xlu0 %1757
      %1759 = vrot.lane.b32.xlu0 %v772, 64
      %v1760 = vpop.permute.xlu0 %1759
      %1761 = vrot.lane.b32.xlu0 %v773, 64
      %v1762 = vpop.permute.xlu0 %1761
      %1763 = vrot.lane.b32.xlu0 %v774, 64
      %v1764 = vpop.permute.xlu0 %1763
      %1765 = vrot.lane.b32.xlu0 %v775, 64
      %v1766 = vpop.permute.xlu0 %1765
      %1767 = vrot.lane.b32.xlu0 %v776, 64
      %v1768 = vpop.permute.xlu0 %1767
      %v1801 = vsel %vm399, %v488, %v810
      %v1802 = vsel %vm399, %v489, %v812
      %v1803 = vsel %vm399, %v490, %v814
      %v1804 = vsel %vm399, %v491, %v816
      %v1805 = vsel %vm399, %v492, %v818
      %v1806 = vsel %vm399, %v493, %v820
      %v1807 = vsel %vm399, %v494, %v822
      %v1808 = vsel %vm399, %v495, %v824
      %v1809 = vsel %vm399, %v496, %v826
      %v1810 = vsel %vm399, %v497, %v828
      %v1811 = vsel %vm399, %v498, %v830
      %v1812 = vsel %vm399, %v499, %v832
      %v1813 = vsel %vm399, %v500, %v834
      %v1814 = vsel %vm399, %v501, %v836
      %v1815 = vsel %vm399, %v502, %v838
      %v1816 = vsel %vm399, %v503, %v840
      %v1817 = vsel %vm399, %v504, %v842
      %v1818 = vsel %vm399, %v505, %v844
      %v1819 = vsel %vm399, %v506, %v846
      %v1820 = vsel %vm399, %v507, %v848
      %v1821 = vsel %vm399, %v508, %v850
      %v1822 = vsel %vm399, %v509, %v852
      %v1823 = vsel %vm399, %v510, %v854
      %v1824 = vsel %vm399, %v511, %v856
      %v1825 = vsel %vm399, %v512, %v858
      %v1826 = vsel %vm399, %v513, %v860
      %v1827 = vsel %vm399, %v514, %v862
      %v1828 = vsel %vm399, %v515, %v864
      %v1829 = vsel %vm399, %v516, %v866
      %v1830 = vsel %vm399, %v517, %v868
      %v1831 = vsel %vm399, %v518, %v870
      %v1832 = vsel %vm399, %v519, %v872
      %vm1833 = vcmask 130048
      %v1834 = vsel %vm1833, %v1801, %v938
      %v1835 = vsel %vm1833, %v1802, %v940
      %v1836 = vsel %vm1833, %v1803, %v942
      %v1837 = vsel %vm1833, %v1804, %v944
      %v1838 = vsel %vm1833, %v1805, %v946
      %v1839 = vsel %vm1833, %v1806, %v948
      %v1840 = vsel %vm1833, %v1807, %v950
      %v1841 = vsel %vm1833, %v1808, %v952
      %v1842 = vsel %vm1833, %v1809, %v954
      %v1843 = vsel %vm1833, %v1810, %v956
      %v1844 = vsel %vm1833, %v1811, %v958
      %v1845 = vsel %vm1833, %v1812, %v960
      %v1846 = vsel %vm1833, %v1813, %v962
      %v1847 = vsel %vm1833, %v1814, %v964
      %v1848 = vsel %vm1833, %v1815, %v966
      %v1849 = vsel %vm1833, %v1816, %v968
      %v1850 = vsel %vm1833, %v1817, %v970
      %v1851 = vsel %vm1833, %v1818, %v972
      %v1852 = vsel %vm1833, %v1819, %v974
      %v1853 = vsel %vm1833, %v1820, %v976
      %v1854 = vsel %vm1833, %v1821, %v978
      %v1855 = vsel %vm1833, %v1822, %v980
      %v1856 = vsel %vm1833, %v1823, %v982
      %v1857 = vsel %vm1833, %v1824, %v984
      %v1858 = vsel %vm1833, %v1825, %v986
      %v1859 = vsel %vm1833, %v1826, %v988
      %v1860 = vsel %vm1833, %v1827, %v990
      %v1861 = vsel %vm1833, %v1828, %v992
      %v1862 = vsel %vm1833, %v1829, %v994
      %v1863 = vsel %vm1833, %v1830, %v996
      %v1864 = vsel %vm1833, %v1831, %v998
      %v1865 = vsel %vm1833, %v1832, %v1000
      %vm1866 = vcmask 195584
      %v1867 = vsel %vm1866, %v1834, %v1066
      %v1868 = vsel %vm1866, %v1835, %v1068
      %v1869 = vsel %vm1866, %v1836, %v1070
      %v1870 = vsel %vm1866, %v1837, %v1072
      %v1871 = vsel %vm1866, %v1838, %v1074
      %v1872 = vsel %vm1866, %v1839, %v1076
      %v1873 = vsel %vm1866, %v1840, %v1078
      %v1874 = vsel %vm1866, %v1841, %v1080
      %v1875 = vsel %vm1866, %v1842, %v1082
      %v1876 = vsel %vm1866, %v1843, %v1084
      %v1877 = vsel %vm1866, %v1844, %v1086
      %v1878 = vsel %vm1866, %v1845, %v1088
      %v1879 = vsel %vm1866, %v1846, %v1090
      %v1880 = vsel %vm1866, %v1847, %v1092
      %v1881 = vsel %vm1866, %v1848, %v1094
      %v1882 = vsel %vm1866, %v1849, %v1096
      %v1883 = vsel %vm1866, %v1850, %v1098
      %v1884 = vsel %vm1866, %v1851, %v1100
      %v1885 = vsel %vm1866, %v1852, %v1102
      %v1886 = vsel %vm1866, %v1853, %v1104
      %v1887 = vsel %vm1866, %v1854, %v1106
      %v1888 = vsel %vm1866, %v1855, %v1108
      %v1889 = vsel %vm1866, %v1856, %v1110
      %v1890 = vsel %vm1866, %v1857, %v1112
      %v1891 = vsel %vm1866, %v1858, %v1114
      %v1892 = vsel %vm1866, %v1859, %v1116
      %v1893 = vsel %vm1866, %v1860, %v1118
      %v1894 = vsel %vm1866, %v1861, %v1120
      %v1895 = vsel %vm1866, %v1862, %v1122
      %v1896 = vsel %vm1866, %v1863, %v1124
      %v1897 = vsel %vm1866, %v1864, %v1126
      %v1898 = vsel %vm1866, %v1865, %v1128
      %vm1899 = vcmask 261120
      %v1900 = vsel %vm1899, %v1867, %v1194
      %v1901 = vsel %vm1899, %v1868, %v1196
      %v1902 = vsel %vm1899, %v1869, %v1198
      %v1903 = vsel %vm1899, %v1870, %v1200
      %v1904 = vsel %vm1899, %v1871, %v1202
      %v1905 = vsel %vm1899, %v1872, %v1204
      %v1906 = vsel %vm1899, %v1873, %v1206
      %v1907 = vsel %vm1899, %v1874, %v1208
      %v1908 = vsel %vm1899, %v1875, %v1210
      %v1909 = vsel %vm1899, %v1876, %v1212
      %v1910 = vsel %vm1899, %v1877, %v1214
      %v1911 = vsel %vm1899, %v1878, %v1216
      %v1912 = vsel %vm1899, %v1879, %v1218
      %v1913 = vsel %vm1899, %v1880, %v1220
      %v1914 = vsel %vm1899, %v1881, %v1222
      %v1915 = vsel %vm1899, %v1882, %v1224
      %v1916 = vsel %vm1899, %v1883, %v1226
      %v1917 = vsel %vm1899, %v1884, %v1228
      %v1918 = vsel %vm1899, %v1885, %v1230
      %v1919 = vsel %vm1899, %v1886, %v1232
      %v1920 = vsel %vm1899, %v1887, %v1234
      %v1921 = vsel %vm1899, %v1888, %v1236
      %v1922 = vsel %vm1899, %v1889, %v1238
      %v1923 = vsel %vm1899, %v1890, %v1240
      %v1924 = vsel %vm1899, %v1891, %v1242
      %v1925 = vsel %vm1899, %v1892, %v1244
      %v1926 = vsel %vm1899, %v1893, %v1246
      %v1927 = vsel %vm1899, %v1894, %v1248
      %v1928 = vsel %vm1899, %v1895, %v1250
      %v1929 = vsel %vm1899, %v1896, %v1252
      %v1930 = vsel %vm1899, %v1897, %v1254
      %v1931 = vsel %vm1899, %v1898, %v1256
      %vm1932 = vcmask 326656
      %v1933 = vsel %vm1932, %v1900, %v1322
      %v1934 = vsel %vm1932, %v1901, %v1324
      %v1935 = vsel %vm1932, %v1902, %v1326
      %v1936 = vsel %vm1932, %v1903, %v1328
      %v1937 = vsel %vm1932, %v1904, %v1330
      %v1938 = vsel %vm1932, %v1905, %v1332
      %v1939 = vsel %vm1932, %v1906, %v1334
      %v1940 = vsel %vm1932, %v1907, %v1336
      %v1941 = vsel %vm1932, %v1908, %v1338
      %v1942 = vsel %vm1932, %v1909, %v1340
      %v1943 = vsel %vm1932, %v1910, %v1342
      %v1944 = vsel %vm1932, %v1911, %v1344
      %v1945 = vsel %vm1932, %v1912, %v1346
      %v1946 = vsel %vm1932, %v1913, %v1348
      %v1947 = vsel %vm1932, %v1914, %v1350
      %v1948 = vsel %vm1932, %v1915, %v1352
      %v1949 = vsel %vm1932, %v1916, %v1354
      %v1950 = vsel %vm1932, %v1917, %v1356
      %v1951 = vsel %vm1932, %v1918, %v1358
      %v1952 = vsel %vm1932, %v1919, %v1360
      %v1953 = vsel %vm1932, %v1920, %v1362
      %v1954 = vsel %vm1932, %v1921, %v1364
      %v1955 = vsel %vm1932, %v1922, %v1366
      %v1956 = vsel %vm1932, %v1923, %v1368
      %v1957 = vsel %vm1932, %v1924, %v1370
      %v1958 = vsel %vm1932, %v1925, %v1372
      %v1959 = vsel %vm1932, %v1926, %v1374
      %v1960 = vsel %vm1932, %v1927, %v1376
      %v1961 = vsel %vm1932, %v1928, %v1378
      %v1962 = vsel %vm1932, %v1929, %v1380
      %v1963 = vsel %vm1932, %v1930, %v1382
      %v1964 = vsel %vm1932, %v1931, %v1384
      %vm1965 = vcmask 392192
      %v1966 = vsel %vm1965, %v1933, %v1450
      %v1967 = vsel %vm1965, %v1934, %v1452
      %v1968 = vsel %vm1965, %v1935, %v1454
      %v1969 = vsel %vm1965, %v1936, %v1456
      %v1970 = vsel %vm1965, %v1937, %v1458
      %v1971 = vsel %vm1965, %v1938, %v1460
      %v1972 = vsel %vm1965, %v1939, %v1462
      %v1973 = vsel %vm1965, %v1940, %v1464
      %v1974 = vsel %vm1965, %v1941, %v1466
      %v1975 = vsel %vm1965, %v1942, %v1468
      %v1976 = vsel %vm1965, %v1943, %v1470
      %v1977 = vsel %vm1965, %v1944, %v1472
      %v1978 = vsel %vm1965, %v1945, %v1474
      %v1979 = vsel %vm1965, %v1946, %v1476
      %v1980 = vsel %vm1965, %v1947, %v1478
      %v1981 = vsel %vm1965, %v1948, %v1480
      %v1982 = vsel %vm1965, %v1949, %v1482
      %v1983 = vsel %vm1965, %v1950, %v1484
      %v1984 = vsel %vm1965, %v1951, %v1486
      %v1985 = vsel %vm1965, %v1952, %v1488
      %v1986 = vsel %vm1965, %v1953, %v1490
      %v1987 = vsel %vm1965, %v1954, %v1492
      %v1988 = vsel %vm1965, %v1955, %v1494
      %v1989 = vsel %vm1965, %v1956, %v1496
      %v1990 = vsel %vm1965, %v1957, %v1498
      %v1991 = vsel %vm1965, %v1958, %v1500
      %v1992 = vsel %vm1965, %v1959, %v1502
      %v1993 = vsel %vm1965, %v1960, %v1504
      %v1994 = vsel %vm1965, %v1961, %v1506
      %v1995 = vsel %vm1965, %v1962, %v1508
      %v1996 = vsel %vm1965, %v1963, %v1510
      %v1997 = vsel %vm1965, %v1964, %v1512
      %vm1998 = vcmask 457728
      %v1999 = vsel %vm1998, %v1966, %v1578
      %v2000 = vsel %vm1998, %v1967, %v1580
      %v2001 = vsel %vm1998, %v1968, %v1582
      %v2002 = vsel %vm1998, %v1969, %v1584
      %v2003 = vsel %vm1998, %v1970, %v1586
      %v2004 = vsel %vm1998, %v1971, %v1588
      %v2005 = vsel %vm1998, %v1972, %v1590
      %v2006 = vsel %vm1998, %v1973, %v1592
      %v2007 = vsel %vm1998, %v1974, %v1594
      %v2008 = vsel %vm1998, %v1975, %v1596
      %v2009 = vsel %vm1998, %v1976, %v1598
      %v2010 = vsel %vm1998, %v1977, %v1600
      %v2011 = vsel %vm1998, %v1978, %v1602
      %v2012 = vsel %vm1998, %v1979, %v1604
      %v2013 = vsel %vm1998, %v1980, %v1606
      %v2014 = vsel %vm1998, %v1981, %v1608
      %v2015 = vsel %vm1998, %v1982, %v1610
      %v2016 = vsel %vm1998, %v1983, %v1612
      %v2017 = vsel %vm1998, %v1984, %v1614
      %v2018 = vsel %vm1998, %v1985, %v1616
      %v2019 = vsel %vm1998, %v1986, %v1618
      %v2020 = vsel %vm1998, %v1987, %v1620
      %v2021 = vsel %vm1998, %v1988, %v1622
      %v2022 = vsel %vm1998, %v1989, %v1624
      %v2023 = vsel %vm1998, %v1990, %v1626
      %v2024 = vsel %vm1998, %v1991, %v1628
      %v2025 = vsel %vm1998, %v1992, %v1630
      %v2026 = vsel %vm1998, %v1993, %v1632
      %v2027 = vsel %vm1998, %v1994, %v1634
      %v2028 = vsel %vm1998, %v1995, %v1636
      %v2029 = vsel %vm1998, %v1996, %v1638
      %v2030 = vsel %vm1998, %v1997, %v1640
      %vm2031 = vcmask 523264
      %v2032 = vsel %vm2031, %v1999, %v1706
      %v2033 = vsel %vm2031, %v2000, %v1708
      %v2034 = vsel %vm2031, %v2001, %v1710
      %v2035 = vsel %vm2031, %v2002, %v1712
      %v2036 = vsel %vm2031, %v2003, %v1714
      %v2037 = vsel %vm2031, %v2004, %v1716
      %v2038 = vsel %vm2031, %v2005, %v1718
      %v2039 = vsel %vm2031, %v2006, %v1720
      %v2040 = vsel %vm2031, %v2007, %v1722
      %v2041 = vsel %vm2031, %v2008, %v1724
      %v2042 = vsel %vm2031, %v2009, %v1726
      %v2043 = vsel %vm2031, %v2010, %v1728
      %v2044 = vsel %vm2031, %v2011, %v1730
      %v2045 = vsel %vm2031, %v2012, %v1732
      %v2046 = vsel %vm2031, %v2013, %v1734
      %v2047 = vsel %vm2031, %v2014, %v1736
      %v2048 = vsel %vm2031, %v2015, %v1738
      %v2049 = vsel %vm2031, %v2016, %v1740
      %v2050 = vsel %vm2031, %v2017, %v1742
      %v2051 = vsel %vm2031, %v2018, %v1744
      %v2052 = vsel %vm2031, %v2019, %v1746
      %v2053 = vsel %vm2031, %v2020, %v1748
      %v2054 = vsel %vm2031, %v2021, %v1750
      %v2055 = vsel %vm2031, %v2022, %v1752
      %v2056 = vsel %vm2031, %v2023, %v1754
      %v2057 = vsel %vm2031, %v2024, %v1756
      %v2058 = vsel %vm2031, %v2025, %v1758
      %v2059 = vsel %vm2031, %v2026, %v1760
      %v2060 = vsel %vm2031, %v2027, %v1762
      %v2061 = vsel %vm2031, %v2028, %v1764
      %v2062 = vsel %vm2031, %v2029, %v1766
      %v2063 = vsel %vm2031, %v2030, %v1768
      %v2064 = vld [vmem:[%s3] sm:$0xff]
      %v2065 = vld [vmem:[%s3 + $0x8] sm:$0xff]
      %v2066 = vld [vmem:[%s3 + $0x10] sm:$0xff]
      %v2067 = vld [vmem:[%s3 + $0x18] sm:$0xff]
      %v2068 = vld [vmem:[%s3 + $0x20] sm:$0xff]
      %v2069 = vld [vmem:[%s3 + $0x28] sm:$0xff]
      %v2070 = vld [vmem:[%s3 + $0x30] sm:$0xff]
      %v2071 = vld [vmem:[%s3 + $0x38] sm:$0xff]
      %v2072 = vld [vmem:[%s3 + $0x40] sm:$0xff]
      %v2073 = vld [vmem:[%s4] sm:$0x1]
      %v2075 = vperm.slane %v2073, 0
      %vm2077 = vcmask 588800
      %v2079 = vsel %vm2077, %v2032, 0
      %v2082 = vsel %vm2077, %v2033, 0
      %v2085 = vsel %vm2077, %v2034, 0
      %v2088 = vsel %vm2077, %v2035, 0
      %v2091 = vsel %vm2077, %v2036, 0
      %v2094 = vsel %vm2077, %v2037, 0
      %v2097 = vsel %vm2077, %v2038, 0
      %v2100 = vsel %vm2077, %v2039, 0
      %v2103 = vsel %vm2077, %v2040, 0
      %v2106 = vsel %vm2077, %v2041, 0
      %v2109 = vsel %vm2077, %v2042, 0
      %v2112 = vsel %vm2077, %v2043, 0
      %v2115 = vsel %vm2077, %v2044, 0
      %v2118 = vsel %vm2077, %v2045, 0
      %v2121 = vsel %vm2077, %v2046, 0
      %v2124 = vsel %vm2077, %v2047, 0
      %v2127 = vsel %vm2077, %v2048, 0
      %v2130 = vsel %vm2077, %v2049, 0
      %v2133 = vsel %vm2077, %v2050, 0
      %v2136 = vsel %vm2077, %v2051, 0
      %v2139 = vsel %vm2077, %v2052, 0
      %v2142 = vsel %vm2077, %v2053, 0
      %v2145 = vsel %vm2077, %v2054, 0
      %v2148 = vsel %vm2077, %v2055, 0
      %v2151 = vsel %vm2077, %v2056, 0
      %v2154 = vsel %vm2077, %v2057, 0
      %v2157 = vsel %vm2077, %v2058, 0
      %v2160 = vsel %vm2077, %v2059, 0
      %v2163 = vsel %vm2077, %v2060, 0
      %v2166 = vsel %vm2077, %v2061, 0
      %v2169 = vsel %vm2077, %v2062, 0
      %v2172 = vsel %vm2077, %v2063, 0
      %2174 = vmatpush.msra.mxu0 0.0
      %2175 = vmatpush.msra.mxu0 0.0
      %2176 = vmatpush.msra.mxu0 0.0
      %2177 = vmatpush.msra.mxu0 0.0
      %2178 = vmatpush.msra.mxu0 0.0
      %2179 = vmatpush.msra.mxu0 0.0
      %2180 = vmatpush.msra.mxu0 0.0
      %2181 = vmatpush.msra.mxu0 %v2072
      %2182 = vmatpush.msra.mxu0 %v2071
      %2183 = vmatpush.msra.mxu0 %v2070
      %2184 = vmatpush.msra.mxu0 %v2069
      %2185 = vmatpush.msra.mxu0 %v2068
      %2186 = vmatpush.msra.mxu0 %v2067
      %2187 = vmatpush.msra.mxu0 %v2066
      %2188 = vmatpush.msra.mxu0 %v2065
      %2189 = vmatpush.msra.mxu0 %v2064
      %2190 = vmatmul.f32.gmra.mxu0 %v2079
      %v2191 = vpop.f32.mrf.mxu0
      %v2192 = vadd.f32 %v2075, %v2191
      %2193 = vmatmul.f32.gmra.mxu0 %v2082
      %v2194 = vpop.f32.mrf.mxu0
      %v2195 = vadd.f32 %v2075, %v2194
      %2196 = vmatmul.f32.gmra.mxu0 %v2085
      %v2197 = vpop.f32.mrf.mxu0
      %v2198 = vadd.f32 %v2075, %v2197
      %2199 = vmatmul.f32.gmra.mxu0 %v2088
      %v2200 = vpop.f32.mrf.mxu0
      %v2201 = vadd.f32 %v2075, %v2200
      %2202 = vmatmul.f32.gmra.mxu0 %v2091
      %v2203 = vpop.f32.mrf.mxu0
      %v2204 = vadd.f32 %v2075, %v2203
      %2205 = vmatmul.f32.gmra.mxu0 %v2094
      %v2206 = vpop.f32.mrf.mxu0
      %v2207 = vadd.f32 %v2075, %v2206
      %2208 = vmatmul.f32.gmra.mxu0 %v2097
      %v2209 = vpop.f32.mrf.mxu0
      %v2210 = vadd.f32 %v2075, %v2209
      %2211 = vmatmul.f32.gmra.mxu0 %v2100
      %v2212 = vpop.f32.mrf.mxu0
      %v2213 = vadd.f32 %v2075, %v2212
      %2214 = vmatmul.f32.gmra.mxu0 %v2103
      %v2215 = vpop.f32.mrf.mxu0
      %v2216 = vadd.f32 %v2075, %v2215
      %2217 = vmatmul.f32.gmra.mxu0 %v2106
      %v2218 = vpop.f32.mrf.mxu0
      %v2219 = vadd.f32 %v2075, %v2218
      %2220 = vmatmul.f32.gmra.mxu0 %v2109
      %v2221 = vpop.f32.mrf.mxu0
      %v2222 = vadd.f32 %v2075, %v2221
      %2223 = vmatmul.f32.gmra.mxu0 %v2112
      %v2224 = vpop.f32.mrf.mxu0
      %v2225 = vadd.f32 %v2075, %v2224
      %2226 = vmatmul.f32.gmra.mxu0 %v2115
      %v2227 = vpop.f32.mrf.mxu0
      %v2228 = vadd.f32 %v2075, %v2227
      %2229 = vmatmul.f32.gmra.mxu0 %v2118
      %v2230 = vpop.f32.mrf.mxu0
      %v2231 = vadd.f32 %v2075, %v2230
      %2232 = vmatmul.f32.gmra.mxu0 %v2121
      %v2233 = vpop.f32.mrf.mxu0
      %v2234 = vadd.f32 %v2075, %v2233
      %2235 = vmatmul.f32.gmra.mxu0 %v2124
      %v2236 = vpop.f32.mrf.mxu0
      %v2237 = vadd.f32 %v2075, %v2236
      %2238 = vmatmul.f32.gmra.mxu0 %v2127
      %v2239 = vpop.f32.mrf.mxu0
      %v2240 = vadd.f32 %v2075, %v2239
      %2241 = vmatmul.f32.gmra.mxu0 %v2130
      %v2242 = vpop.f32.mrf.mxu0
      %v2243 = vadd.f32 %v2075, %v2242
      %2244 = vmatmul.f32.gmra.mxu0 %v2133
      %v2245 = vpop.f32.mrf.mxu0
      %v2246 = vadd.f32 %v2075, %v2245
      %2247 = vmatmul.f32.gmra.mxu0 %v2136
      %v2248 = vpop.f32.mrf.mxu0
      %v2249 = vadd.f32 %v2075, %v2248
      %2250 = vmatmul.f32.gmra.mxu0 %v2139
      %v2251 = vpop.f32.mrf.mxu0
      %v2252 = vadd.f32 %v2075, %v2251
      %2253 = vmatmul.f32.gmra.mxu0 %v2142
      %v2254 = vpop.f32.mrf.mxu0
      %v2255 = vadd.f32 %v2075, %v2254
      %2256 = vmatmul.f32.gmra.mxu0 %v2145
      %v2257 = vpop.f32.mrf.mxu0
      %v2258 = vadd.f32 %v2075, %v2257
      %2259 = vmatmul.f32.gmra.mxu0 %v2148
      %v2260 = vpop.f32.mrf.mxu0
      %v2261 = vadd.f32 %v2075, %v2260
      %2262 = vmatmul.f32.gmra.mxu0 %v2151
      %v2263 = vpop.f32.mrf.mxu0
      %v2264 = vadd.f32 %v2075, %v2263
      %2265 = vmatmul.f32.gmra.mxu0 %v2154
      %v2266 = vpop.f32.mrf.mxu0
      %v2267 = vadd.f32 %v2075, %v2266
      %2268 = vmatmul.f32.gmra.mxu0 %v2157
      %v2269 = vpop.f32.mrf.mxu0
      %v2270 = vadd.f32 %v2075, %v2269
      %2271 = vmatmul.f32.gmra.mxu0 %v2160
      %v2272 = vpop.f32.mrf.mxu0
      %v2273 = vadd.f32 %v2075, %v2272
      %2274 = vmatmul.f32.gmra.mxu0 %v2163
      %v2275 = vpop.f32.mrf.mxu0
      %v2276 = vadd.f32 %v2075, %v2275
      %2277 = vmatmul.f32.gmra.mxu0 %v2166
      %v2278 = vpop.f32.mrf.mxu0
      %v2279 = vadd.f32 %v2075, %v2278
      %2280 = vmatmul.f32.gmra.mxu0 %v2169
      %v2281 = vpop.f32.mrf.mxu0
      %v2282 = vadd.f32 %v2075, %v2281
      %2283 = vmatmul.f32.gmra.mxu0 %v2172
      %v2284 = vpop.f32.mrf.mxu0
      %v2285 = vadd.f32 %v2075, %v2284
      %2286 = vdwg.mxu0
      %2287 = vst.msk [vmem:[%s258] sm:$0xff] %vm399, %v2192
      %2288 = vst.msk [vmem:[%s258 + $0x8] sm:$0xff] %vm399, %v2195
      %2289 = vst.msk [vmem:[%s258 + $0x10] sm:$0xff] %vm399, %v2198
      %2290 = vst.msk [vmem:[%s258 + $0x18] sm:$0xff] %vm399, %v2201
      %2291 = vst.msk [vmem:[%s258 + $0x20] sm:$0xff] %vm399, %v2204
      %2292 = vst.msk [vmem:[%s258 + $0x28] sm:$0xff] %vm399, %v2207
      %2293 = vst.msk [vmem:[%s258 + $0x30] sm:$0xff] %vm399, %v2210
      %2294 = vst.msk [vmem:[%s258 + $0x38] sm:$0xff] %vm399, %v2213
      %2295 = vst.msk [vmem:[%s258 + $0x40] sm:$0xff] %vm399, %v2216
      %2296 = vst.msk [vmem:[%s258 + $0x48] sm:$0xff] %vm399, %v2219
      %2297 = vst.msk [vmem:[%s258 + $0x50] sm:$0xff] %vm399, %v2222
      %2298 = vst.msk [vmem:[%s258 + $0x58] sm:$0xff] %vm399, %v2225
      %2299 = vst.msk [vmem:[%s258 + $0x60] sm:$0xff] %vm399, %v2228
      %2300 = vst.msk [vmem:[%s258 + $0x68] sm:$0xff] %vm399, %v2231
      %2301 = vst.msk [vmem:[%s258 + $0x70] sm:$0xff] %vm399, %v2234
      %2302 = vst.msk [vmem:[%s258 + $0x78] sm:$0xff] %vm399, %v2237
      %2303 = vst.msk [vmem:[%s258 + $0x80] sm:$0xff] %vm399, %v2240
      %2304 = vst.msk [vmem:[%s258 + $0x88] sm:$0xff] %vm399, %v2243
      %2305 = vst.msk [vmem:[%s258 + $0x90] sm:$0xff] %vm399, %v2246
      %2306 = vst.msk [vmem:[%s258 + $0x98] sm:$0xff] %vm399, %v2249
      %2307 = vst.msk [vmem:[%s258 + $0xa0] sm:$0xff] %vm399, %v2252
      %2308 = vst.msk [vmem:[%s258 + $0xa8] sm:$0xff] %vm399, %v2255
      %2309 = vst.msk [vmem:[%s258 + $0xb0] sm:$0xff] %vm399, %v2258
      %2310 = vst.msk [vmem:[%s258 + $0xb8] sm:$0xff] %vm399, %v2261
      %2311 = vst.msk [vmem:[%s258 + $0xc0] sm:$0xff] %vm399, %v2264
      %2312 = vst.msk [vmem:[%s258 + $0xc8] sm:$0xff] %vm399, %v2267
      %2313 = vst.msk [vmem:[%s258 + $0xd0] sm:$0xff] %vm399, %v2270
      %2314 = vst.msk [vmem:[%s258 + $0xd8] sm:$0xff] %vm399, %v2273
      %2315 = vst.msk [vmem:[%s258 + $0xe0] sm:$0xff] %vm399, %v2276
      %2316 = vst.msk [vmem:[%s258 + $0xe8] sm:$0xff] %vm399, %v2279
      %2317 = vst.msk [vmem:[%s258 + $0xf0] sm:$0xff] %vm399, %v2282
      %2318 = vst.msk [vmem:[%s258 + $0xf8] sm:$0xff] %vm399, %v2285
      %v2319 = vsel %vm399, %v2192, 0.0
      %v2320 = vsel %vm399, %v2195, 0.0
      %v2321 = vadd.f32 %v2319, %v2320
      %v2322 = vsel %vm399, %v2198, 0.0
      %v2323 = vadd.f32 %v2321, %v2322
      %v2324 = vsel %vm399, %v2201, 0.0
      %v2325 = vadd.f32 %v2323, %v2324
      %v2326 = vsel %vm399, %v2204, 0.0
      %v2327 = vadd.f32 %v2325, %v2326
      %v2328 = vsel %vm399, %v2207, 0.0
      %v2329 = vadd.f32 %v2327, %v2328
      %v2330 = vsel %vm399, %v2210, 0.0
      %v2331 = vadd.f32 %v2329, %v2330
      %v2332 = vsel %vm399, %v2213, 0.0
      %v2333 = vadd.f32 %v2331, %v2332
      %v2334 = vsel %vm399, %v2216, 0.0
      %v2335 = vadd.f32 %v2333, %v2334
      %v2336 = vsel %vm399, %v2219, 0.0
      %v2337 = vadd.f32 %v2335, %v2336
      %v2338 = vsel %vm399, %v2222, 0.0
      %v2339 = vadd.f32 %v2337, %v2338
      %v2340 = vsel %vm399, %v2225, 0.0
      %v2341 = vadd.f32 %v2339, %v2340
      %v2342 = vsel %vm399, %v2228, 0.0
      %v2343 = vadd.f32 %v2341, %v2342
      %v2344 = vsel %vm399, %v2231, 0.0
      %v2345 = vadd.f32 %v2343, %v2344
      %v2346 = vsel %vm399, %v2234, 0.0
      %v2347 = vadd.f32 %v2345, %v2346
      %v2348 = vsel %vm399, %v2237, 0.0
      %v2349 = vadd.f32 %v2347, %v2348
      %v2350 = vsel %vm399, %v2240, 0.0
      %v2351 = vadd.f32 %v2349, %v2350
      %v2352 = vsel %vm399, %v2243, 0.0
      %v2353 = vadd.f32 %v2351, %v2352
      %v2354 = vsel %vm399, %v2246, 0.0
      %v2355 = vadd.f32 %v2353, %v2354
      %v2356 = vsel %vm399, %v2249, 0.0
      %v2357 = vadd.f32 %v2355, %v2356
      %v2358 = vsel %vm399, %v2252, 0.0
      %v2359 = vadd.f32 %v2357, %v2358
      %v2360 = vsel %vm399, %v2255, 0.0
      %v2361 = vadd.f32 %v2359, %v2360
      %v2362 = vsel %vm399, %v2258, 0.0
      %v2363 = vadd.f32 %v2361, %v2362
      %v2364 = vsel %vm399, %v2261, 0.0
      %v2365 = vadd.f32 %v2363, %v2364
      %v2366 = vsel %vm399, %v2264, 0.0
      %v2367 = vadd.f32 %v2365, %v2366
      %v2368 = vsel %vm399, %v2267, 0.0
      %v2369 = vadd.f32 %v2367, %v2368
      %v2370 = vsel %vm399, %v2270, 0.0
      %v2371 = vadd.f32 %v2369, %v2370
      %v2372 = vsel %vm399, %v2273, 0.0
      %v2373 = vadd.f32 %v2371, %v2372
      %v2374 = vsel %vm399, %v2276, 0.0
      %v2375 = vadd.f32 %v2373, %v2374
      %v2376 = vsel %vm399, %v2279, 0.0
      %v2377 = vadd.f32 %v2375, %v2376
      %v2378 = vsel %vm399, %v2282, 0.0
      %v2379 = vadd.f32 %v2377, %v2378
      %v2380 = vsel %vm399, %v2285, 0.0
      %v2381 = vadd.f32 %v2379, %v2380
      %v2382 = vrot.slane %v2381, 4
      %v2383 = vadd.f32 %v2381, %v2382
      %v2384 = vrot.slane %v2383, 2
      %v2385 = vadd.f32 %v2383, %v2384
      %v2386 = vrot.slane %v2385, 1
      %v2387 = vadd.f32 %v2385, %v2386
      %v2388 = vmul.f32 %v2192, %v2192
      %v2389 = vmul.f32 %v2195, %v2195
      %v2390 = vmul.f32 %v2198, %v2198
      %v2391 = vmul.f32 %v2201, %v2201
      %v2392 = vmul.f32 %v2204, %v2204
      %v2393 = vmul.f32 %v2207, %v2207
      %v2394 = vmul.f32 %v2210, %v2210
      %v2395 = vmul.f32 %v2213, %v2213
      %v2396 = vmul.f32 %v2216, %v2216
      %v2397 = vmul.f32 %v2219, %v2219
      %v2398 = vmul.f32 %v2222, %v2222
      %v2399 = vmul.f32 %v2225, %v2225
      %v2400 = vmul.f32 %v2228, %v2228
      %v2401 = vmul.f32 %v2231, %v2231
      %v2402 = vmul.f32 %v2234, %v2234
      %v2403 = vmul.f32 %v2237, %v2237
      %v2404 = vmul.f32 %v2240, %v2240
      %v2405 = vmul.f32 %v2243, %v2243
      %v2406 = vmul.f32 %v2246, %v2246
      %v2407 = vmul.f32 %v2249, %v2249
      %v2408 = vmul.f32 %v2252, %v2252
      %v2409 = vmul.f32 %v2255, %v2255
      %v2410 = vmul.f32 %v2258, %v2258
      %v2411 = vmul.f32 %v2261, %v2261
      %v2412 = vmul.f32 %v2264, %v2264
      %v2413 = vmul.f32 %v2267, %v2267
      %v2414 = vmul.f32 %v2270, %v2270
      %v2415 = vmul.f32 %v2273, %v2273
      %v2416 = vmul.f32 %v2276, %v2276
      %v2417 = vmul.f32 %v2279, %v2279
      %v2418 = vmul.f32 %v2282, %v2282
      %v2419 = vmul.f32 %v2285, %v2285
      %v2420 = vsel %vm399, %v2388, 0.0
      %v2421 = vsel %vm399, %v2389, 0.0
      %v2422 = vadd.f32 %v2420, %v2421
      %v2423 = vsel %vm399, %v2390, 0.0
      %v2424 = vadd.f32 %v2422, %v2423
      %v2425 = vsel %vm399, %v2391, 0.0
      %v2426 = vadd.f32 %v2424, %v2425
      %v2427 = vsel %vm399, %v2392, 0.0
      %v2428 = vadd.f32 %v2426, %v2427
      %v2429 = vsel %vm399, %v2393, 0.0
      %v2430 = vadd.f32 %v2428, %v2429
      %v2431 = vsel %vm399, %v2394, 0.0
      %v2432 = vadd.f32 %v2430, %v2431
      %v2433 = vsel %vm399, %v2395, 0.0
      %v2434 = vadd.f32 %v2432, %v2433
      %v2435 = vsel %vm399, %v2396, 0.0
      %v2436 = vadd.f32 %v2434, %v2435
      %v2437 = vsel %vm399, %v2397, 0.0
      %v2438 = vadd.f32 %v2436, %v2437
      %v2439 = vsel %vm399, %v2398, 0.0
      %v2440 = vadd.f32 %v2438, %v2439
      %v2441 = vsel %vm399, %v2399, 0.0
      %v2442 = vadd.f32 %v2440, %v2441
      %v2443 = vsel %vm399, %v2400, 0.0
      %v2444 = vadd.f32 %v2442, %v2443
      %v2445 = vsel %vm399, %v2401, 0.0
      %v2446 = vadd.f32 %v2444, %v2445
      %v2447 = vsel %vm399, %v2402, 0.0
      %v2448 = vadd.f32 %v2446, %v2447
      %v2449 = vsel %vm399, %v2403, 0.0
      %v2450 = vadd.f32 %v2448, %v2449
      %v2451 = vsel %vm399, %v2404, 0.0
      %v2452 = vadd.f32 %v2450, %v2451
      %v2453 = vsel %vm399, %v2405, 0.0
      %v2454 = vadd.f32 %v2452, %v2453
      %v2455 = vsel %vm399, %v2406, 0.0
      %v2456 = vadd.f32 %v2454, %v2455
      %v2457 = vsel %vm399, %v2407, 0.0
      %v2458 = vadd.f32 %v2456, %v2457
      %v2459 = vsel %vm399, %v2408, 0.0
      %v2460 = vadd.f32 %v2458, %v2459
      %v2461 = vsel %vm399, %v2409, 0.0
      %v2462 = vadd.f32 %v2460, %v2461
      %v2463 = vsel %vm399, %v2410, 0.0
      %v2464 = vadd.f32 %v2462, %v2463
      %v2465 = vsel %vm399, %v2411, 0.0
      %v2466 = vadd.f32 %v2464, %v2465
      %v2467 = vsel %vm399, %v2412, 0.0
      %v2468 = vadd.f32 %v2466, %v2467
      %v2469 = vsel %vm399, %v2413, 0.0
      %v2470 = vadd.f32 %v2468, %v2469
      %v2471 = vsel %vm399, %v2414, 0.0
      %v2472 = vadd.f32 %v2470, %v2471
      %v2473 = vsel %vm399, %v2415, 0.0
      %v2474 = vadd.f32 %v2472, %v2473
      %v2475 = vsel %vm399, %v2416, 0.0
      %v2476 = vadd.f32 %v2474, %v2475
      %v2477 = vsel %vm399, %v2417, 0.0
      %v2478 = vadd.f32 %v2476, %v2477
      %v2479 = vsel %vm399, %v2418, 0.0
      %v2480 = vadd.f32 %v2478, %v2479
      %v2481 = vsel %vm399, %v2419, 0.0
      %v2482 = vadd.f32 %v2480, %v2481
      %v2483 = vrot.slane %v2482, 4
      %v2484 = vadd.f32 %v2482, %v2483
      %v2485 = vrot.slane %v2484, 2
      %v2486 = vadd.f32 %v2484, %v2485
      %v2487 = vrot.slane %v2486, 1
      %v2488 = vadd.f32 %v2486, %v2487
      %vm2489 = vcmask 1040384
      %v2490 = vsel %vm2489, %v2387, %v2488
      %2491 = vst.msk [vmem:[%s262] sm:$0x3] %vm402, %v2490
      %p2492 = scmp.lt.s32.totalorder %s18, 1
      %s2493 = scalar_select %p2492, %s18, 1
      %s2494 = smul.addr %s2493, 32
      %s2495 = smul.addr %s2494, 8
      %s2496 = scalar_lea.vmem %s5, %s2495
      %p2497 = scmp.lt.s32.totalorder %s18, 1
      %s2498 = scalar_select %p2497, %s18, 1
      %s2499 = smul.addr %s2498, 2
      %s2500 = scalar_lea.vmem %s6, %s2499
      // Predicated region
      $region41: #{upsample_forward.4} parent=39 // pred_check
        %p2501 = pneg %p146
      $region42: #{upsample_forward.4} parent=39 // pred_check_branch
        %2503 = sbr.rel (%p2501) target = $region44
      $region43: #{upsample_forward.4} parent=39 // pred_region
        _
      $region44: #{upsample_forward.4} parent=39 // pred_fallthru
        _
      // Predicated region
      $region45: #{upsample_forward.4} parent=39 // pred_check
        %p2504 = pneg %p172
      $region46: #{upsample_forward.4} parent=39 // pred_check_branch
        %2506 = sbr.rel (%p2504) target = $region48
      $region47: #{upsample_forward.4} parent=39 // pred_region
        _
      $region48: #{upsample_forward.4} parent=39 // pred_fallthru
        _
    $region40: #{upsample_forward.4} parent=5 // pred_fallthru
      _
    %p2507 = scmp.le.s32.totalorder 2, %s13
    // Predicated region
    $region49: #{upsample_forward.4} parent=5 // pred_check
      %p2508 = pneg %p2507
    $region50: #{upsample_forward.4} parent=5 // pred_check_branch
      %2510 = sbr.rel (%p2508) target = $region52
    $region51: #{upsample_forward.4} parent=5 // pred_region
      %s2511 = ssub.s32 %s13, 2
      // Predicated region
      $region53: #{upsample_forward.4} parent=51 // pred_check
        %p2512 = pneg %p152
      $region54: #{upsample_forward.4} parent=51 // pred_check_branch
        %2514 = sbr.rel (%p2512) target = $region56
      $region55: #{upsample_forward.4} parent=51 // pred_region
        %p2515 = scmp.lt.s32.totalorder %s19, 1
        %s2516 = scalar_select %p2515, %s19, 1
        %s2517 = smul.addr %s2516, 32
        %s2518 = smul.addr %s2517, 8
        %s2519 = scalar_lea.vmem %s5, %s2518
      $region56: #{upsample_forward.4} parent=51 // pred_fallthru
        _
      // Predicated region
      $region57: #{upsample_forward.4} parent=51 // pred_check
        %p2520 = pneg %p178
      $region58: #{upsample_forward.4} parent=51 // pred_check_branch
        %2522 = sbr.rel (%p2520) target = $region60
      $region59: #{upsample_forward.4} parent=51 // pred_region
        %p2523 = scmp.lt.s32.totalorder %s19, 1
        %s2524 = scalar_select %p2523, %s19, 1
        %s2525 = smul.addr %s2524, 2
        %s2526 = scalar_lea.vmem %s6, %s2525
      $region60: #{upsample_forward.4} parent=51 // pred_fallthru
        _
    $region52: #{upsample_forward.4} parent=5 // pred_fallthru
      _
  $region6: #{upsample_forward.4} parent=0 // loop_footer
    %s17 = sadd.s32 1, %s13
  $region7: #{upsample_forward.4} parent=0 // loop_footer_branch
    %12 = sbr.rel target = $region3
  $region8: #{upsample_forward.4} parent=0 // loop_exit
    _

// kernel: upsample_forward.3
$region0: #{upsample_forward.3}
  #allocation0 [shape = 'u32[]', space=smem, size = 0x4, offset = 0x4, fixed_abs, tag = 'smem constant byte address 0x4 - core index']
  #allocation1 [shape = 'u32[72,128]{1,0:T(1,128)}', space=vmem, size = 0x9000, scoped, tag = 'internal scratch']
  #allocation2 [shape = 'f32[18,18,4]{2,1,0:T(8,128)}', space=vmem, size = 0x36000, scoped, tag = 'scratch operand']
  #allocation3 [shape = 'f32[18,18,4]{2,1,0:T(8,128)}', space=vmem, size = 0x36000, scoped, tag = 'scratch operand']
  %s0 = inlined_call_operand.vmem [shape: f32[2,8,8,8], index: 0, kind: input, shape index: {}]
  %s1 = inlined_call_operand.vmem [shape: f32[2,16,16,4], index: 1, kind: input, shape index: {}]
  %s2 = inlined_call_operand.vmem [shape: f32[8,16], index: 2, kind: input, shape index: {}]
  %s3 = inlined_call_operand.vmem [shape: f32[1,16], index: 3, kind: input, shape index: {}]
  %s4 = inlined_call_operand.vmem [shape: f32[36,8], index: 4, kind: input, shape index: {}]
  %s5 = inlined_call_operand.vmem [shape: f32[36,8], index: 5, kind: input, shape index: {}]
  %s6 = inlined_call_operand.vmem [shape: f32[1,8], index: 6, kind: input, shape index: {}]
  %s7 = inlined_call_operand.vmem [shape: f32[2,16,16,8], index: 7, kind: output, shape index: {0}]
  %s8 = inlined_call_operand.vmem [shape: f32[2,2,8], index: 8, kind: output, shape index: {1}]
  %9 = xla_tuple %s7, %s8
  %s10 = sld [smem:[#allocation0]]
  $region69: #{upsample_forward.3} parent=0
    _
  %s12 = ssub.s32 1, %s10
  %s13 = scalar_select 0, %s12, %s10
  loop: start=0, step=1, limit=4
  $region2: #{upsample_forward.3} parent=0 // loop_pre_header
    _
  $region3: #{upsample_forward.3} parent=0 // loop_header
    %s15 = sphi 0, %s19
    %p16 = scmp.ge.s32.totalorder %s15, 4
    %s25 = sphi 0, %s27
    %s28 = sphi 0, %s25
    %s29 = sphi 0, %s28
    %s45 = sphi 0, %s29
    %s51 = sphi 0, %s53
    %s54 = sphi 0, %s51
    %s55 = sphi 0, %s54
    %s71 = sphi 0, %s55
    %s75 = sphi 0, %s75
    %s77 = sphi 0, %s75
    %s78 = sphi 0, %s77
    %s92 = sphi 0, %s78
    %s96 = sphi 0, %s96
    %s98 = sphi 0, %s96
    %s99 = sphi 0, %s98
    %s113 = sphi 0, %s99
    %s117 = sphi 0, %s117
    %s119 = sphi 0, %s117
    %s120 = sphi 0, %s119
    %s134 = sphi 0, %s120
    %s138 = sphi 0, %s138
    %s140 = sphi 0, %s138
    %s141 = sphi 0, %s140
    %s155 = sphi 0, %s141
    %s159 = sphi 0, %s159
    %s161 = sphi 0, %s159
    %s162 = sphi 0, %s161
    %s176 = sphi 0, %s162
    %s182 = sphi 0, %s184
    %s185 = sphi 0, %s182
    %s186 = sphi 0, %s185
    %s202 = sphi 0, %s186
    %s208 = sphi 0, %s210
    %s211 = sphi 0, %s208
    %s212 = sphi 0, %s211
    %s228 = sphi 0, %s212
  $region4: #{upsample_forward.3} parent=0 // loop_header_branch
    %18 = sbr.rel (%p16) target = $region8
  $region5: #{upsample_forward.3} parent=0 // loop_body
    %s20 = ssub.s32 %s15, 1
    %s21 = ssub.s32 %s15, 2
    %s22 = sadd.s32 %s15, 1
    %s23 = ssub.s32 %s15, %s22
    %p24 = scmp.eq.s32.totalorder %s23, 0
    %s26 = sadd.s32 %s25, 1
    %s27 = scalar_select %p24, %s25, %s26
    %p30 = pneg %p24
    %p31 = scmp.eq.s32.totalorder %s15, 1
    %p32 = por %p30, %p31
    %p33 = scmp.ne.s32.totalorder %s25, %s28
    %p34 = scmp.eq.s32.totalorder %s15, 0
    %p35 = por %p33, %p34
    %p36 = scmp.ne.s32.totalorder %s25, %s28
    %p37 = scmp.eq.s32.totalorder %s20, 1
    %p38 = por %p36, %p37
    %p39 = scmp.ne.s32.totalorder %s28, %s29
    %p40 = scmp.eq.s32.totalorder %s20, 0
    %p41 = por %p39, %p40
    %p42 = scmp.ne.s32.totalorder %s28, %s29
    %p43 = scmp.eq.s32.totalorder %s21, 1
    %p44 = por %p42, %p43
    %p46 = scmp.ne.s32.totalorder %s29, %s45
    %p47 = scmp.eq.s32.totalorder %s21, 0
    %p48 = por %p46, %p47
    %s49 = ssub.s32 %s15, %s22
    %p50 = scmp.eq.s32.totalorder %s49, 0
    %s52 = sadd.s32 %s51, 1
    %s53 = scalar_select %p50, %s51, %s52
    %p56 = pneg %p50
    %p57 = scmp.eq.s32.totalorder %s15, 1
    %p58 = por %p56, %p57
    %p59 = scmp.ne.s32.totalorder %s51, %s54
    %p60 = scmp.eq.s32.totalorder %s15, 0
    %p61 = por %p59, %p60
    %p62 = scmp.ne.s32.totalorder %s51, %s54
    %p63 = scmp.eq.s32.totalorder %s20, 1
    %p64 = por %p62, %p63
    %p65 = scmp.ne.s32.totalorder %s54, %s55
    %p66 = scmp.eq.s32.totalorder %s20, 0
    %p67 = por %p65, %p66
    %p68 = scmp.ne.s32.totalorder %s54, %s55
    %p69 = scmp.eq.s32.totalorder %s21, 1
    %p70 = por %p68, %p69
    %p72 = scmp.ne.s32.totalorder %s55, %s71
    %p73 = scmp.eq.s32.totalorder %s21, 0
    %p74 = por %p72, %p73
    %s76 = sadd.s32 %s75, 1
    %p79 = scmp.eq.s32.totalorder %s15, 1
    %p80 = scmp.ne.s32.totalorder %s75, %s77
    %p81 = scmp.eq.s32.totalorder %s15, 0
    %p82 = por %p80, %p81
    %p83 = scmp.ne.s32.totalorder %s75, %s77
    %p84 = scmp.eq.s32.totalorder %s20, 1
    %p85 = por %p83, %p84
    %p86 = scmp.ne.s32.totalorder %s77, %s78
    %p87 = scmp.eq.s32.totalorder %s20, 0
    %p88 = por %p86, %p87
    %p89 = scmp.ne.s32.totalorder %s77, %s78
    %p90 = scmp.eq.s32.totalorder %s21, 1
    %p91 = por %p89, %p90
    %p93 = scmp.ne.s32.totalorder %s78, %s92
    %p94 = scmp.eq.s32.totalorder %s21, 0
    %p95 = por %p93, %p94
    %s97 = sadd.s32 %s96, 1
    %p100 = scmp.eq.s32.totalorder %s15, 1
    %p101 = scmp.ne.s32.totalorder %s96, %s98
    %p102 = scmp.eq.s32.totalorder %s15, 0
    %p103 = por %p101, %p102
    %p104 = scmp.ne.s32.totalorder %s96, %s98
    %p105 = scmp.eq.s32.totalorder %s20, 1
    %p106 = por %p104, %p105
    %p107 = scmp.ne.s32.totalorder %s98, %s99
    %p108 = scmp.eq.s32.totalorder %s20, 0
    %p109 = por %p107, %p108
    %p110 = scmp.ne.s32.totalorder %s98, %s99
    %p111 = scmp.eq.s32.totalorder %s21, 1
    %p112 = por %p110, %p111
    %p114 = scmp.ne.s32.totalorder %s99, %s113
    %p115 = scmp.eq.s32.totalorder %s21, 0
    %p116 = por %p114, %p115
    %s118 = sadd.s32 %s117, 1
    %p121 = scmp.eq.s32.totalorder %s15, 1
    %p122 = scmp.ne.s32.totalorder %s117, %s119
    %p123 = scmp.eq.s32.totalorder %s15, 0
    %p124 = por %p122, %p123
    %p125 = scmp.ne.s32.totalorder %s117, %s119
    %p126 = scmp.eq.s32.totalorder %s20, 1
    %p127 = por %p125, %p126
    %p128 = scmp.ne.s32.totalorder %s119, %s120
    %p129 = scmp.eq.s32.totalorder %s20, 0
    %p130 = por %p128, %p129
    %p131 = scmp.ne.s32.totalorder %s119, %s120
    %p132 = scmp.eq.s32.totalorder %s21, 1
    %p133 = por %p131, %p132
    %p135 = scmp.ne.s32.totalorder %s120, %s134
    %p136 = scmp.eq.s32.totalorder %s21, 0
    %p137 = por %p135, %p136
    %s139 = sadd.s32 %s138, 1
    %p142 = scmp.eq.s32.totalorder %s15, 1
    %p143 = scmp.ne.s32.totalorder %s138, %s140
    %p144 = scmp.eq.s32.totalorder %s15, 0
    %p145 = por %p143, %p144
    %p146 = scmp.ne.s32.totalorder %s138, %s140
    %p147 = scmp.eq.s32.totalorder %s20, 1
    %p148 = por %p146, %p147
    %p149 = scmp.ne.s32.totalorder %s140, %s141
    %p150 = scmp.eq.s32.totalorder %s20, 0
    %p151 = por %p149, %p150
    %p152 = scmp.ne.s32.totalorder %s140, %s141
    %p153 = scmp.eq.s32.totalorder %s21, 1
    %p154 = por %p152, %p153
    %p156 = scmp.ne.s32.totalorder %s141, %s155
    %p157 = scmp.eq.s32.totalorder %s21, 0
    %p158 = por %p156, %p157
    %s160 = sadd.s32 %s159, 1
    %p163 = scmp.eq.s32.totalorder %s15, 1
    %p164 = scmp.ne.s32.totalorder %s159, %s161
    %p165 = scmp.eq.s32.totalorder %s15, 0
    %p166 = por %p164, %p165
    %p167 = scmp.ne.s32.totalorder %s159, %s161
    %p168 = scmp.eq.s32.totalorder %s20, 1
    %p169 = por %p167, %p168
    %p170 = scmp.ne.s32.totalorder %s161, %s162
    %p171 = scmp.eq.s32.totalorder %s20, 0
    %p172 = por %p170, %p171
    %p173 = scmp.ne.s32.totalorder %s161, %s162
    %p174 = scmp.eq.s32.totalorder %s21, 1
    %p175 = por %p173, %p174
    %p177 = scmp.ne.s32.totalorder %s162, %s176
    %p178 = scmp.eq.s32.totalorder %s21, 0
    %p179 = por %p177, %p178
    %s180 = ssub.s32 %s15, %s22
    %p181 = scmp.eq.s32.totalorder %s180, 0
    %s183 = sadd.s32 %s182, 1
    %s184 = scalar_select %p181, %s182, %s183
    %p187 = pneg %p181
    %p188 = scmp.eq.s32.totalorder %s15, 1
    %p189 = por %p187, %p188
    %p190 = scmp.ne.s32.totalorder %s182, %s185
    %p191 = scmp.eq.s32.totalorder %s15, 0
    %p192 = por %p190, %p191
    %p193 = scmp.ne.s32.totalorder %s182, %s185
    %p194 = scmp.eq.s32.totalorder %s20, 1
    %p195 = por %p193, %p194
    %p196 = scmp.ne.s32.totalorder %s185, %s186
    %p197 = scmp.eq.s32.totalorder %s20, 0
    %p198 = por %p196, %p197
    %p199 = scmp.ne.s32.totalorder %s185, %s186
    %p200 = scmp.eq.s32.totalorder %s21, 1
    %p201 = por %p199, %p200
    %p203 = scmp.ne.s32.totalorder %s186, %s202
    %p204 = scmp.eq.s32.totalorder %s21, 0
    %p205 = por %p203, %p204
    %s206 = ssub.s32 %s15, %s22
    %p207 = scmp.eq.s32.totalorder %s206, 0
    %s209 = sadd.s32 %s208, 1
    %s210 = scalar_select %p207, %s208, %s209
    %p213 = pneg %p207
    %p214 = scmp.eq.s32.totalorder %s15, 1
    %p215 = por %p213, %p214
    %p216 = scmp.ne.s32.totalorder %s208, %s211
    %p217 = scmp.eq.s32.totalorder %s15, 0
    %p218 = por %p216, %p217
    %p219 = scmp.ne.s32.totalorder %s208, %s211
    %p220 = scmp.eq.s32.totalorder %s20, 1
    %p221 = por %p219, %p220
    %p222 = scmp.ne.s32.totalorder %s211, %s212
    %p223 = scmp.eq.s32.totalorder %s20, 0
    %p224 = por %p222, %p223
    %p225 = scmp.ne.s32.totalorder %s211, %s212
    %p226 = scmp.eq.s32.totalorder %s21, 1
    %p227 = por %p225, %p226
    %p229 = scmp.ne.s32.totalorder %s212, %s228
    %p230 = scmp.eq.s32.totalorder %s21, 0
    %p231 = por %p229, %p230
    %p232 = scmp.le.s32.totalorder 1, %s15
    %p233 = scmp.lt.s32.totalorder %s15, 3
    %p234 = pnand %p232, %p233
    %p235 = pneg %p234
    // Predicated region
    $region9: #{upsample_forward.3} parent=5 // pred_check
      _
    $region10: #{upsample_forward.3} parent=5 // pred_check_branch
      %237 = sbr.rel (%p234) target = $region12
    $region11: #{upsample_forward.3} parent=5 // pred_region
      %s238 = ssub.s32 %s15, 1
      // Predicated region
      $region13: #{upsample_forward.3} parent=11 // pred_check
        %p239 = pneg %p88
      $region14: #{upsample_forward.3} parent=11 // pred_check_branch
        %241 = sbr.rel (%p239) target = $region16
      $region15: #{upsample_forward.3} parent=11 // pred_region
        _
      $region16: #{upsample_forward.3} parent=11 // pred_fallthru
        _
      // Predicated region
      $region17: #{upsample_forward.3} parent=11 // pred_check
        %p242 = pneg %p109
      $region18: #{upsample_forward.3} parent=11 // pred_check_branch
        %244 = sbr.rel (%p242) target = $region20
      $region19: #{upsample_forward.3} parent=11 // pred_region
        _
      $region20: #{upsample_forward.3} parent=11 // pred_fallthru
        _
      // Predicated region
      $region21: #{upsample_forward.3} parent=11 // pred_check
        %p245 = pneg %p130
      $region22: #{upsample_forward.3} parent=11 // pred_check_branch
        %247 = sbr.rel (%p245) target = $region24
      $region23: #{upsample_forward.3} parent=11 // pred_region
        _
      $region24: #{upsample_forward.3} parent=11 // pred_fallthru
        _
      // Predicated region
      $region25: #{upsample_forward.3} parent=11 // pred_check
        %p248 = pneg %p151
      $region26: #{upsample_forward.3} parent=11 // pred_check_branch
        %250 = sbr.rel (%p248) target = $region28
      $region27: #{upsample_forward.3} parent=11 // pred_region
        _
      $region28: #{upsample_forward.3} parent=11 // pred_fallthru
        _
      // Predicated region
      $region29: #{upsample_forward.3} parent=11 // pred_check
        %p251 = pneg %p172
      $region30: #{upsample_forward.3} parent=11 // pred_check_branch
        %253 = sbr.rel (%p251) target = $region32
      $region31: #{upsample_forward.3} parent=11 // pred_region
        _
      $region32: #{upsample_forward.3} parent=11 // pred_fallthru
        _
    $region12: #{upsample_forward.3} parent=5 // pred_fallthru
      _
    %p254 = scmp.lt.s32.totalorder %s15, 2
    // Predicated region
    $region33: #{upsample_forward.3} parent=5 // pred_check
      %p255 = pneg %p254
    $region34: #{upsample_forward.3} parent=5 // pred_check_branch
      %257 = sbr.rel (%p255) target = $region36
    $region35: #{upsample_forward.3} parent=5 // pred_region
      // Predicated region
      $region37: #{upsample_forward.3} parent=35 // pred_check
        %p258 = pneg %p35
      $region38: #{upsample_forward.3} parent=35 // pred_check_branch
        %260 = sbr.rel (%p258) target = $region40
      $region39: #{upsample_forward.3} parent=35 // pred_region
        %p261 = scmp.lt.s32.totalorder %s15, 1
        %s262 = scalar_select %p261, %s15, 1
        %s263 = smul.addr %s262, 8
        %s264 = smul.addr %s263, 8
        %s265 = scalar_lea.vmem %s0, %s264
      $region40: #{upsample_forward.3} parent=35 // pred_fallthru
        _
      // Predicated region
      $region41: #{upsample_forward.3} parent=35 // pred_check
        %p266 = pneg %p61
      $region42: #{upsample_forward.3} parent=35 // pred_check_branch
        %268 = sbr.rel (%p266) target = $region44
      $region43: #{upsample_forward.3} parent=35 // pred_region
        %p269 = scmp.lt.s32.totalorder %s15, 1
        %s270 = scalar_select %p269, %s15, 1
        %s271 = smul.addr %s270, 32
        %s272 = smul.addr %s271, 8
        %s273 = scalar_lea.vmem %s1, %s272
      $region44: #{upsample_forward.3} parent=35 // pred_fallthru
        _
    $region36: #{upsample_forward.3} parent=5 // pred_fallthru
      _
    %p274 = scmp.le.s32.totalorder 1, %s15
    %p275 = scmp.lt.s32.totalorder %s15, 3
    %p276 = pnand %p274, %p275
    %p277 = pneg %p276
    // Predicated region
    $region45: #{upsample_forward.3} parent=5 // pred_check
      _
    $region46: #{upsample_forward.3} parent=5 // pred_check_branch
      %279 = sbr.rel (%p276) target = $region48
    $region47: #{upsample_forward.3} parent=5 // pred_region
      %s280 = ssub.s32 %s15, 1
      %p281 = scmp.lt.s32.totalorder %s20, 1
      %s282 = scalar_select %p281, %s20, 1
      %s283 = smul.addr %s282, 8
      %s284 = smul.addr %s283, 8
      %s285 = scalar_lea.vmem %s0, %s284
      %p286 = pneg %p41
      %p287 = pneg %p38
      %p288 = scmp.lt.s32.totalorder %s20, 1
      %s289 = scalar_select %p288, %s20, 1
      %s290 = smul.addr %s289, 32
      %s291 = smul.addr %s290, 8
      %s292 = scalar_lea.vmem %s1, %s291
      %p293 = pneg %p67
      %p294 = pneg %p64
      %p295 = pneg %p88
      %p296 = pneg %p85
      %p297 = pneg %p109
      %p298 = pneg %p106
      %p299 = pneg %p130
      %p300 = pneg %p127
      %p301 = pneg %p151
      %p302 = pneg %p148
      %p303 = pneg %p172
      %p304 = pneg %p169
      %p305 = pneg %p198
      %p306 = pneg %p195
      %p307 = scmp.lt.s32.totalorder %s20, 1
      %s308 = scalar_select %p307, %s20, 1
      %s309 = smul.addr %s308, 32
      %s310 = smul.addr %s309, 8
      %s311 = scalar_lea.vmem %s7, %s310
      %p312 = pneg %p224
      %p313 = pneg %p221
      %p314 = scmp.lt.s32.totalorder %s20, 1
      %s315 = scalar_select %p314, %s20, 1
      %s316 = smul.addr %s315, 2
      %s317 = scalar_lea.vmem %s8, %s316
      %p318 = scmp.lt.s32.totalorder %s20, 1
      %s319 = scalar_select %p318, %s20, 1
      %s320 = smul.addr %s319, 8
      %s321 = smul.addr %s320, 8
      %s322 = scalar_lea.vmem %s0, %s321
      %p323 = scmp.lt.s32.totalorder %s20, 1
      %s324 = scalar_select %p323, %s20, 1
      %s325 = smul.addr %s324, 32
      %s326 = smul.addr %s325, 8
      %s327 = scalar_lea.vmem %s1, %s326
      %p328 = scmp.lt.s32.totalorder %s20, 1
      %s329 = scalar_select %p328, %s20, 1
      %s330 = smul.addr %s329, 32
      %s331 = smul.addr %s330, 8
      %s332 = scalar_lea.vmem %s7, %s331
      %p333 = scmp.lt.s32.totalorder %s20, 1
      %s334 = scalar_select %p333, %s20, 1
      %s335 = smul.addr %s334, 2
      %s336 = scalar_lea.vmem %s8, %s335
      %v337 = vld [vmem:[%s322] sm:$0xff]
      %v338 = vld [vmem:[%s322 + $0x8] sm:$0xff]
      %v339 = vld [vmem:[%s322 + $0x10] sm:$0xff]
      %v340 = vld [vmem:[%s322 + $0x18] sm:$0xff]
      %v341 = vld [vmem:[%s322 + $0x20] sm:$0xff]
      %v342 = vld [vmem:[%s322 + $0x28] sm:$0xff]
      %v343 = vld [vmem:[%s322 + $0x30] sm:$0xff]
      %v344 = vld [vmem:[%s322 + $0x38] sm:$0xff]
      %v345 = vld [vmem:[%s2] sm:$0xff]
      %v346 = vld [vmem:[%s3] sm:$0x1]
      %v348 = vperm.slane %v346, 0
      %vm350 = vcmask 64512
      %v352 = vsel %vm350, %v337, 0
      %v355 = vsel %vm350, %v338, 0
      %v358 = vsel %vm350, %v339, 0
      %v361 = vsel %vm350, %v340, 0
      %v364 = vsel %vm350, %v341, 0
      %v367 = vsel %vm350, %v342, 0
      %v370 = vsel %vm350, %v343, 0
      %v373 = vsel %vm350, %v344, 0
      %375 = vmatpush.msra.mxu0 0.0
      %376 = vmatpush.msra.mxu0 0.0
      %377 = vmatpush.msra.mxu0 0.0
      %378 = vmatpush.msra.mxu0 0.0
      %379 = vmatpush.msra.mxu0 0.0
      %380 = vmatpush.msra.mxu0 0.0
      %381 = vmatpush.msra.mxu0 0.0
      %382 = vmatpush.msra.mxu0 0.0
      %383 = vmatpush.msra.mxu0 0.0
      %384 = vmatpush.msra.mxu0 0.0
      %385 = vmatpush.msra.mxu0 0.0
      %386 = vmatpush.msra.mxu0 0.0
      %387 = vmatpush.msra.mxu0 0.0
      %388 = vmatpush.msra.mxu0 0.0
      %389 = vmatpush.msra.mxu0 0.0
      %390 = vmatpush.msra.mxu0 %v345
      %391 = vmatmul.f32.gmra.mxu0 %v352
      %v392 = vpop.f32.mrf.mxu0
      %v393 = vadd.f32 %v348, %v392
      %394 = vmatmul.f32.gmra.mxu0 %v355
      %v395 = vpop.f32.mrf.mxu0
      %v396 = vadd.f32 %v348, %v395
      %397 = vmatmul.f32.gmra.mxu0 %v358
      %v398 = vpop.f32.mrf.mxu0
      %v399 = vadd.f32 %v348, %v398
      %400 = vmatmul.f32.gmra.mxu0 %v361
      %v401 = vpop.f32.mrf.mxu0
      %v402 = vadd.f32 %v348, %v401
      %403 = vmatmul.f32.gmra.mxu0 %v364
      %v404 = vpop.f32.mrf.mxu0
      %v405 = vadd.f32 %v348, %v404
      %406 = vmatmul.f32.gmra.mxu0 %v367
      %v407 = vpop.f32.mrf.mxu0
      %v408 = vadd.f32 %v348, %v407
      %409 = vmatmul.f32.gmra.mxu0 %v370
      %v410 = vpop.f32.mrf.mxu0
      %v411 = vadd.f32 %v348, %v410
      %412 = vmatmul.f32.gmra.mxu0 %v373
      %v413 = vpop.f32.mrf.mxu0
      %v414 = vadd.f32 %v348, %v413
      %415 = vdwg.mxu0
      %v424 = vrot.slane %v393, 1
      %v425 = vrot.slane %v393, 2
      %v426 = vrot.slane %v393, 3
      %v427 = vrot.slane %v393, 4
      %v428 = vrot.slane %v393, 5
      %v429 = vrot.slane %v393, 6
      %v430 = vrot.slane %v393, 7
      %v431 = vrot.slane %v396, 1
      %v432 = vrot.slane %v396, 2
      %v433 = vrot.slane %v396, 3
      %v434 = vrot.slane %v396, 4
      %v435 = vrot.slane %v396, 5
      %v436 = vrot.slane %v396, 6
      %v437 = vrot.slane %v396, 7
      %v438 = vrot.slane %v399, 1
      %v439 = vrot.slane %v399, 2
      %v440 = vrot.slane %v399, 3
      %v441 = vrot.slane %v399, 4
      %v442 = vrot.slane %v399, 5
      %v443 = vrot.slane %v399, 6
      %v444 = vrot.slane %v399, 7
      %v445 = vrot.slane %v402, 1
      %v446 = vrot.slane %v402, 2
      %v447 = vrot.slane %v402, 3
      %v448 = vrot.slane %v402, 4
      %v449 = vrot.slane %v402, 5
      %v450 = vrot.slane %v402, 6
      %v451 = vrot.slane %v402, 7
      %v452 = vrot.slane %v405, 1
      %v453 = vrot.slane %v405, 2
      %v454 = vrot.slane %v405, 3
      %v455 = vrot.slane %v405, 4
      %v456 = vrot.slane %v405, 5
      %v457 = vrot.slane %v405, 6
      %v458 = vrot.slane %v405, 7
      %v459 = vrot.slane %v408, 1
      %v460 = vrot.slane %v408, 2
      %v461 = vrot.slane %v408, 3
      %v462 = vrot.slane %v408, 4
      %v463 = vrot.slane %v408, 5
      %v464 = vrot.slane %v408, 6
      %v465 = vrot.slane %v408, 7
      %v466 = vrot.slane %v411, 1
      %v467 = vrot.slane %v411, 2
      %v468 = vrot.slane %v411, 3
      %v469 = vrot.slane %v411, 4
      %v470 = vrot.slane %v411, 5
      %v471 = vrot.slane %v411, 6
      %v472 = vrot.slane %v411, 7
      %v473 = vrot.slane %v414, 1
      %v474 = vrot.slane %v414, 2
      %v475 = vrot.slane %v414, 3
      %v476 = vrot.slane %v414, 4
      %v477 = vrot.slane %v414, 5
      %v478 = vrot.slane %v414, 6
      %v479 = vrot.slane %v414, 7
      %v536 = vperm.slane %v393, 0
      %v537 = vperm.slane %v424, 0
      %v538 = vperm.slane %v425, 0
      %v539 = vperm.slane %v426, 0
      %v540 = vperm.slane %v427, 0
      %v541 = vperm.slane %v428, 0
      %v542 = vperm.slane %v429, 0
      %v543 = vperm.slane %v430, 0
      %v544 = vperm.slane %v396, 0
      %v545 = vperm.slane %v431, 0
      %v546 = vperm.slane %v432, 0
      %v547 = vperm.slane %v433, 0
      %v548 = vperm.slane %v434, 0
      %v549 = vperm.slane %v435, 0
      %v550 = vperm.slane %v436, 0
      %v551 = vperm.slane %v437, 0
      %v552 = vperm.slane %v399, 0
      %v553 = vperm.slane %v438, 0
      %v554 = vperm.slane %v439, 0
      %v555 = vperm.slane %v440, 0
      %v556 = vperm.slane %v441, 0
      %v557 = vperm.slane %v442, 0
      %v558 = vperm.slane %v443, 0
      %v559 = vperm.slane %v444, 0
      %v560 = vperm.slane %v402, 0
      %v561 = vperm.slane %v445, 0
      %v562 = vperm.slane %v446, 0
      %v563 = vperm.slane %v447, 0
      %v564 = vperm.slane %v448, 0
      %v565 = vperm.slane %v449, 0
      %v566 = vperm.slane %v450, 0
      %v567 = vperm.slane %v451, 0
      %v568 = vperm.slane %v405, 0
      %v569 = vperm.slane %v452, 0
      %v570 = vperm.slane %v453, 0
      %v571 = vperm.slane %v454, 0
      %v572 = vperm.slane %v455, 0
      %v573 = vperm.slane %v456, 0
      %v574 = vperm.slane %v457, 0
      %v575 = vperm.slane %v458, 0
      %v576 = vperm.slane %v408, 0
      %v577 = vperm.slane %v459, 0
      %v578 = vperm.slane %v460, 0
      %v579 = vperm.slane %v461, 0
      %v580 = vperm.slane %v462, 0
      %v581 = vperm.slane %v463, 0
      %v582 = vperm.slane %v464, 0
      %v583 = vperm.slane %v465, 0
      %v584 = vperm.slane %v411, 0
      %v585 = vperm.slane %v466, 0
      %v586 = vperm.slane %v467, 0
      %v587 = vperm.slane %v468, 0
      %v588 = vperm.slane %v469, 0
      %v589 = vperm.slane %v470, 0
      %v590 = vperm.slane %v471, 0
      %v591 = vperm.slane %v472, 0
      %v592 = vperm.slane %v414, 0
      %v593 = vperm.slane %v473, 0
      %v594 = vperm.slane %v474, 0
      %v595 = vperm.slane %v475, 0
      %v596 = vperm.slane %v476, 0
      %v597 = vperm.slane %v477, 0
      %v598 = vperm.slane %v478, 0
      %v599 = vperm.slane %v479, 0
      %600 = vrot.lane.b32.xlu0 %v536, 124
      %v601 = vpop.permute.xlu0 %600
      %602 = vrot.lane.b32.xlu0 %v537, 124
      %v603 = vpop.permute.xlu0 %602
      %604 = vrot.lane.b32.xlu0 %v538, 124
      %v605 = vpop.permute.xlu0 %604
      %606 = vrot.lane.b32.xlu0 %v539, 124
      %v607 = vpop.permute.xlu0 %606
      %608 = vrot.lane.b32.xlu0 %v540, 124
      %v609 = vpop.permute.xlu0 %608
      %610 = vrot.lane.b32.xlu0 %v541, 124
      %v611 = vpop.permute.xlu0 %610
      %612 = vrot.lane.b32.xlu0 %v542, 124
      %v613 = vpop.permute.xlu0 %612
      %614 = vrot.lane.b32.xlu0 %v543, 124
      %v615 = vpop.permute.xlu0 %614
      %616 = vrot.lane.b32.xlu0 %v544, 124
      %v617 = vpop.permute.xlu0 %616
      %618 = vrot.lane.b32.xlu0 %v545, 124
      %v619 = vpop.permute.xlu0 %618
      %620 = vrot.lane.b32.xlu0 %v546, 124
      %v621 = vpop.permute.xlu0 %620
      %622 = vrot.lane.b32.xlu0 %v547, 124
      %v623 = vpop.permute.xlu0 %622
      %624 = vrot.lane.b32.xlu0 %v548, 124
      %v625 = vpop.permute.xlu0 %624
      %626 = vrot.lane.b32.xlu0 %v549, 124
      %v627 = vpop.permute.xlu0 %626
      %628 = vrot.lane.b32.xlu0 %v550, 124
      %v629 = vpop.permute.xlu0 %628
      %630 = vrot.lane.b32.xlu0 %v551, 124
      %v631 = vpop.permute.xlu0 %630
      %632 = vrot.lane.b32.xlu0 %v552, 124
      %v633 = vpop.permute.xlu0 %632
      %634 = vrot.lane.b32.xlu0 %v553, 124
      %v635 = vpop.permute.xlu0 %634
      %636 = vrot.lane.b32.xlu0 %v554, 124
      %v637 = vpop.permute.xlu0 %636
      %638 = vrot.lane.b32.xlu0 %v555, 124
      %v639 = vpop.permute.xlu0 %638
      %640 = vrot.lane.b32.xlu0 %v556, 124
      %v641 = vpop.permute.xlu0 %640
      %642 = vrot.lane.b32.xlu0 %v557, 124
      %v643 = vpop.permute.xlu0 %642
      %644 = vrot.lane.b32.xlu0 %v558, 124
      %v645 = vpop.permute.xlu0 %644
      %646 = vrot.lane.b32.xlu0 %v559, 124
      %v647 = vpop.permute.xlu0 %646
      %648 = vrot.lane.b32.xlu0 %v560, 124
      %v649 = vpop.permute.xlu0 %648
      %650 = vrot.lane.b32.xlu0 %v561, 124
      %v651 = vpop.permute.xlu0 %650
      %652 = vrot.lane.b32.xlu0 %v562, 124
      %v653 = vpop.permute.xlu0 %652
      %654 = vrot.lane.b32.xlu0 %v563, 124
      %v655 = vpop.permute.xlu0 %654
      %656 = vrot.lane.b32.xlu0 %v564, 124
      %v657 = vpop.permute.xlu0 %656
      %658 = vrot.lane.b32.xlu0 %v565, 124
      %v659 = vpop.permute.xlu0 %658
      %660 = vrot.lane.b32.xlu0 %v566, 124
      %v661 = vpop.permute.xlu0 %660
      %662 = vrot.lane.b32.xlu0 %v567, 124
      %v663 = vpop.permute.xlu0 %662
      %664 = vrot.lane.b32.xlu0 %v568, 124
      %v665 = vpop.permute.xlu0 %664
      %666 = vrot.lane.b32.xlu0 %v569, 124
      %v667 = vpop.permute.xlu0 %666
      %668 = vrot.lane.b32.xlu0 %v570, 124
      %v669 = vpop.permute.xlu0 %668
      %670 = vrot.lane.b32.xlu0 %v571, 124
      %v671 = vpop.permute.xlu0 %670
      %672 = vrot.lane.b32.xlu0 %v572, 124
      %v673 = vpop.permute.xlu0 %672
      %674 = vrot.lane.b32.xlu0 %v573, 124
      %v675 = vpop.permute.xlu0 %674
      %676 = vrot.lane.b32.xlu0 %v574, 124
      %v677 = vpop.permute.xlu0 %676
      %678 = vrot.lane.b32.xlu0 %v575, 124
      %v679 = vpop.permute.xlu0 %678
      %680 = vrot.lane.b32.xlu0 %v576, 124
      %v681 = vpop.permute.xlu0 %680
      %682 = vrot.lane.b32.xlu0 %v577, 124
      %v683 = vpop.permute.xlu0 %682
      %684 = vrot.lane.b32.xlu0 %v578, 124
      %v685 = vpop.permute.xlu0 %684
      %686 = vrot.lane.b32.xlu0 %v579, 124
      %v687 = vpop.permute.xlu0 %686
      %688 = vrot.lane.b32.xlu0 %v580, 124
      %v689 = vpop.permute.xlu0 %688
      %690 = vrot.lane.b32.xlu0 %v581, 124
      %v691 = vpop.permute.xlu0 %690
      %692 = vrot.lane.b32.xlu0 %v582, 124
      %v693 = vpop.permute.xlu0 %692
      %694 = vrot.lane.b32.xlu0 %v583, 124
      %v695 = vpop.permute.xlu0 %694
      %696 = vrot.lane.b32.xlu0 %v584, 124
      %v697 = vpop.permute.xlu0 %696
      %698 = vrot.lane.b32.xlu0 %v585, 124
      %v699 = vpop.permute.xlu0 %698
      %700 = vrot.lane.b32.xlu0 %v586, 124
      %v701 = vpop.permute.xlu0 %700
      %702 = vrot.lane.b32.xlu0 %v587, 124
      %v703 = vpop.permute.xlu0 %702
      %704 = vrot.lane.b32.xlu0 %v588, 124
      %v705 = vpop.permute.xlu0 %704
      %706 = vrot.lane.b32.xlu0 %v589, 124
      %v707 = vpop.permute.xlu0 %706
      %708 = vrot.lane.b32.xlu0 %v590, 124
      %v709 = vpop.permute.xlu0 %708
      %710 = vrot.lane.b32.xlu0 %v591, 124
      %v711 = vpop.permute.xlu0 %710
      %712 = vrot.lane.b32.xlu0 %v592, 124
      %v713 = vpop.permute.xlu0 %712
      %714 = vrot.lane.b32.xlu0 %v593, 124
      %v715 = vpop.permute.xlu0 %714
      %716 = vrot.lane.b32.xlu0 %v594, 124
      %v717 = vpop.permute.xlu0 %716
      %718 = vrot.lane.b32.xlu0 %v595, 124
      %v719 = vpop.permute.xlu0 %718
      %720 = vrot.lane.b32.xlu0 %v596, 124
      %v721 = vpop.permute.xlu0 %720
      %722 = vrot.lane.b32.xlu0 %v597, 124
      %v723 = vpop.permute.xlu0 %722
      %724 = vrot.lane.b32.xlu0 %v598, 124
      %v725 = vpop.permute.xlu0 %724
      %726 = vrot.lane.b32.xlu0 %v599, 124
      %v727 = vpop.permute.xlu0 %726
      %vm792 = vcmask 1040384
      %v793 = vsel %vm792, %v393, %v601
      %v794 = vsel %vm792, %v424, %v603
      %v795 = vsel %vm792, %v425, %v605
      %v796 = vsel %vm792, %v426, %v607
      %v797 = vsel %vm792, %v427, %v609
      %v798 = vsel %vm792, %v428, %v611
      %v799 = vsel %vm792, %v429, %v613
      %v800 = vsel %vm792, %v430, %v615
      %v801 = vsel %vm792, %v396, %v617
      %v802 = vsel %vm792, %v431, %v619
      %v803 = vsel %vm792, %v432, %v621
      %v804 = vsel %vm792, %v433, %v623
      %v805 = vsel %vm792, %v434, %v625
      %v806 = vsel %vm792, %v435, %v627
      %v807 = vsel %vm792, %v436, %v629
      %v808 = vsel %vm792, %v437, %v631
      %v809 = vsel %vm792, %v399, %v633
      %v810 = vsel %vm792, %v438, %v635
      %v811 = vsel %vm792, %v439, %v637
      %v812 = vsel %vm792, %v440, %v639
      %v813 = vsel %vm792, %v441, %v641
      %v814 = vsel %vm792, %v442, %v643
      %v815 = vsel %vm792, %v443, %v645
      %v816 = vsel %vm792, %v444, %v647
      %v817 = vsel %vm792, %v402, %v649
      %v818 = vsel %vm792, %v445, %v651
      %v819 = vsel %vm792, %v446, %v653
      %v820 = vsel %vm792, %v447, %v655
      %v821 = vsel %vm792, %v448, %v657
      %v822 = vsel %vm792, %v449, %v659
      %v823 = vsel %vm792, %v450, %v661
      %v824 = vsel %vm792, %v451, %v663
      %v825 = vsel %vm792, %v405, %v665
      %v826 = vsel %vm792, %v452, %v667
      %v827 = vsel %vm792, %v453, %v669
      %v828 = vsel %vm792, %v454, %v671
      %v829 = vsel %vm792, %v455, %v673
      %v830 = vsel %vm792, %v456, %v675
      %v831 = vsel %vm792, %v457, %v677
      %v832 = vsel %vm792, %v458, %v679
      %v833 = vsel %vm792, %v408, %v681
      %v834 = vsel %vm792, %v459, %v683
      %v835 = vsel %vm792, %v460, %v685
      %v836 = vsel %vm792, %v461, %v687
      %v837 = vsel %vm792, %v462, %v689
      %v838 = vsel %vm792, %v463, %v691
      %v839 = vsel %vm792, %v464, %v693
      %v840 = vsel %vm792, %v465, %v695
      %v841 = vsel %vm792, %v411, %v697
      %v842 = vsel %vm792, %v466, %v699
      %v843 = vsel %vm792, %v467, %v701
      %v844 = vsel %vm792, %v468, %v703
      %v845 = vsel %vm792, %v469, %v705
      %v846 = vsel %vm792, %v470, %v707
      %v847 = vsel %vm792, %v471, %v709
      %v848 = vsel %vm792, %v472, %v711
      %v849 = vsel %vm792, %v414, %v713
      %v850 = vsel %vm792, %v473, %v715
      %v851 = vsel %vm792, %v474, %v717
      %v852 = vsel %vm792, %v475, %v719
      %v853 = vsel %vm792, %v476, %v721
      %v854 = vsel %vm792, %v477, %v723
      %v855 = vsel %vm792, %v478, %v725
      %v856 = vsel %vm792, %v479, %v727
      %921 = vrot.lane.b32.xlu0 %v793, 120
      %v922 = vpop.permute.xlu0 %921
      %923 = vrot.lane.b32.xlu0 %v794, 120
      %v924 = vpop.permute.xlu0 %923
      %925 = vrot.lane.b32.xlu0 %v795, 120
      %v926 = vpop.permute.xlu0 %925
      %927 = vrot.lane.b32.xlu0 %v796, 120
      %v928 = vpop.permute.xlu0 %927
      %929 = vrot.lane.b32.xlu0 %v797, 120
      %v930 = vpop.permute.xlu0 %929
      %931 = vrot.lane.b32.xlu0 %v798, 120
      %v932 = vpop.permute.xlu0 %931
      %933 = vrot.lane.b32.xlu0 %v799, 120
      %v934 = vpop.permute.xlu0 %933
      %935 = vrot.lane.b32.xlu0 %v800, 120
      %v936 = vpop.permute.xlu0 %935
      %937 = vrot.lane.b32.xlu0 %v801, 120
      %v938 = vpop.permute.xlu0 %937
      %939 = vrot.lane.b32.xlu0 %v802, 120
      %v940 = vpop.permute.xlu0 %939
      %941 = vrot.lane.b32.xlu0 %v803, 120
      %v942 = vpop.permute.xlu0 %941
      %943 = vrot.lane.b32.xlu0 %v804, 120
      %v944 = vpop.permute.xlu0 %943
      %945 = vrot.lane.b32.xlu0 %v805, 120
      %v946 = vpop.permute.xlu0 %945
      %947 = vrot.lane.b32.xlu0 %v806, 120
      %v948 = vpop.permute.xlu0 %947
      %949 = vrot.lane.b32.xlu0 %v807, 120
      %v950 = vpop.permute.xlu0 %949
      %951 = vrot.lane.b32.xlu0 %v808, 120
      %v952 = vpop.permute.xlu0 %951
      %953 = vrot.lane.b32.xlu0 %v809, 120
      %v954 = vpop.permute.xlu0 %953
      %955 = vrot.lane.b32.xlu0 %v810, 120
      %v956 = vpop.permute.xlu0 %955
      %957 = vrot.lane.b32.xlu0 %v811, 120
      %v958 = vpop.permute.xlu0 %957
      %959 = vrot.lane.b32.xlu0 %v812, 120
      %v960 = vpop.permute.xlu0 %959
      %961 = vrot.lane.b32.xlu0 %v813, 120
      %v962 = vpop.permute.xlu0 %961
      %963 = vrot.lane.b32.xlu0 %v814, 120
      %v964 = vpop.permute.xlu0 %963
      %965 = vrot.lane.b32.xlu0 %v815, 120
      %v966 = vpop.permute.xlu0 %965
      %967 = vrot.lane.b32.xlu0 %v816, 120
      %v968 = vpop.permute.xlu0 %967
      %969 = vrot.lane.b32.xlu0 %v817, 120
      %v970 = vpop.permute.xlu0 %969
      %971 = vrot.lane.b32.xlu0 %v818, 120
      %v972 = vpop.permute.xlu0 %971
      %973 = vrot.lane.b32.xlu0 %v819, 120
      %v974 = vpop.permute.xlu0 %973
      %975 = vrot.lane.b32.xlu0 %v820, 120
      %v976 = vpop.permute.xlu0 %975
      %977 = vrot.lane.b32.xlu0 %v821, 120
      %v978 = vpop.permute.xlu0 %977
      %979 = vrot.lane.b32.xlu0 %v822, 120
      %v980 = vpop.permute.xlu0 %979
      %981 = vrot.lane.b32.xlu0 %v823, 120
      %v982 = vpop.permute.xlu0 %981
      %983 = vrot.lane.b32.xlu0 %v824, 120
      %v984 = vpop.permute.xlu0 %983
      %985 = vrot.lane.b32.xlu0 %v825, 120
      %v986 = vpop.permute.xlu0 %985
      %987 = vrot.lane.b32.xlu0 %v826, 120
      %v988 = vpop.permute.xlu0 %987
      %989 = vrot.lane.b32.xlu0 %v827, 120
      %v990 = vpop.permute.xlu0 %989
      %991 = vrot.lane.b32.xlu0 %v828, 120
      %v992 = vpop.permute.xlu0 %991
      %993 = vrot.lane.b32.xlu0 %v829, 120
      %v994 = vpop.permute.xlu0 %993
      %995 = vrot.lane.b32.xlu0 %v830, 120
      %v996 = vpop.permute.xlu0 %995
      %997 = vrot.lane.b32.xlu0 %v831, 120
      %v998 = vpop.permute.xlu0 %997
      %999 = vrot.lane.b32.xlu0 %v832, 120
      %v1000 = vpop.permute.xlu0 %999
      %1001 = vrot.lane.b32.xlu0 %v833, 120
      %v1002 = vpop.permute.xlu0 %1001
      %1003 = vrot.lane.b32.xlu0 %v834, 120
      %v1004 = vpop.permute.xlu0 %1003
      %1005 = vrot.lane.b32.xlu0 %v835, 120
      %v1006 = vpop.permute.xlu0 %1005
      %1007 = vrot.lane.b32.xlu0 %v836, 120
      %v1008 = vpop.permute.xlu0 %1007
      %1009 = vrot.lane.b32.xlu0 %v837, 120
      %v1010 = vpop.permute.xlu0 %1009
      %1011 = vrot.lane.b32.xlu0 %v838, 120
      %v1012 = vpop.permute.xlu0 %1011
      %1013 = vrot.lane.b32.xlu0 %v839, 120
      %v1014 = vpop.permute.xlu0 %1013
      %1015 = vrot.lane.b32.xlu0 %v840, 120
      %v1016 = vpop.permute.xlu0 %1015
      %1017 = vrot.lane.b32.xlu0 %v841, 120
      %v1018 = vpop.permute.xlu0 %1017
      %1019 = vrot.lane.b32.xlu0 %v842, 120
      %v1020 = vpop.permute.xlu0 %1019
      %1021 = vrot.lane.b32.xlu0 %v843, 120
      %v1022 = vpop.permute.xlu0 %1021
      %1023 = vrot.lane.b32.xlu0 %v844, 120
      %v1024 = vpop.permute.xlu0 %1023
      %1025 = vrot.lane.b32.xlu0 %v845, 120
      %v1026 = vpop.permute.xlu0 %1025
      %1027 = vrot.lane.b32.xlu0 %v846, 120
      %v1028 = vpop.permute.xlu0 %1027
      %1029 = vrot.lane.b32.xlu0 %v847, 120
      %v1030 = vpop.permute.xlu0 %1029
      %1031 = vrot.lane.b32.xlu0 %v848, 120
      %v1032 = vpop.permute.xlu0 %1031
      %1033 = vrot.lane.b32.xlu0 %v849, 120
      %v1034 = vpop.permute.xlu0 %1033
      %1035 = vrot.lane.b32.xlu0 %v850, 120
      %v1036 = vpop.permute.xlu0 %1035
      %1037 = vrot.lane.b32.xlu0 %v851, 120
      %v1038 = vpop.permute.xlu0 %1037
      %1039 = vrot.lane.b32.xlu0 %v852, 120
      %v1040 = vpop.permute.xlu0 %1039
      %1041 = vrot.lane.b32.xlu0 %v853, 120
      %v1042 = vpop.permute.xlu0 %1041
      %1043 = vrot.lane.b32.xlu0 %v854, 120
      %v1044 = vpop.permute.xlu0 %1043
      %1045 = vrot.lane.b32.xlu0 %v855, 120
      %v1046 = vpop.permute.xlu0 %1045
      %1047 = vrot.lane.b32.xlu0 %v856, 120
      %v1048 = vpop.permute.xlu0 %1047
      %vm1049 = vcmask 31744
      %1050 = vst.msk [vmem:[#allocation2] sm:$0xff] %vm1049, 0.0
      %1051 = vst.msk [vmem:[#allocation2 + $0x8] sm:$0xff] %vm1049, 0.0
      %vm1052 = vcmask 25600
      %1053 = vst.msk [vmem:[#allocation2 + $0x10] sm:$0x3] %vm1052, 0.0
      %1054 = vst.msk [vmem:[#allocation2 + $0x18] sm:$0xff] %vm1049, 0.0
      %1055 = vst.msk [vmem:[#allocation2 + $0x20] sm:$0xff] %vm1049, 0.0
      %1056 = vst.msk [vmem:[#allocation2 + $0x28] sm:$0x3] %vm1052, 0.0
      %1057 = vst.msk [vmem:[#allocation2 + $0x30] sm:$0xff] %vm1049, 0.0
      %1058 = vst.msk [vmem:[#allocation2 + $0x38] sm:$0xff] %vm1049, 0.0
      %1059 = vst.msk [vmem:[#allocation2 + $0x40] sm:$0x3] %vm1052, 0.0
      %1060 = vst.msk [vmem:[#allocation2 + $0x48] sm:$0xff] %vm1049, 0.0
      %1061 = vst.msk [vmem:[#allocation2 + $0x50] sm:$0xff] %vm1049, 0.0
      %1062 = vst.msk [vmem:[#allocation2 + $0x58] sm:$0x3] %vm1052, 0.0
      %1063 = vst.msk [vmem:[#allocation2 + $0x60] sm:$0xff] %vm1049, 0.0
      %1064 = vst.msk [vmem:[#allocation2 + $0x68] sm:$0xff] %vm1049, 0.0
      %1065 = vst.msk [vmem:[#allocation2 + $0x70] sm:$0x3] %vm1052, 0.0
      %1066 = vst.msk [vmem:[#allocation2 + $0x78] sm:$0xff] %vm1049, 0.0
      %1067 = vst.msk [vmem:[#allocation2 + $0x80] sm:$0xff] %vm1049, 0.0
      %1068 = vst.msk [vmem:[#allocation2 + $0x88] sm:$0x3] %vm1052, 0.0
      %1069 = vst.msk [vmem:[#allocation2 + $0x90] sm:$0xff] %vm1049, 0.0
      %1070 = vst.msk [vmem:[#allocation2 + $0x98] sm:$0xff] %vm1049, 0.0
      %1071 = vst.msk [vmem:[#allocation2 + $0xa0] sm:$0x3] %vm1052, 0.0
      %1072 = vst.msk [vmem:[#allocation2 + $0xa8] sm:$0xff] %vm1049, 0.0
      %1073 = vst.msk [vmem:[#allocation2 + $0xb0] sm:$0xff] %vm1049, 0.0
      %1074 = vst.msk [vmem:[#allocation2 + $0xb8] sm:$0x3] %vm1052, 0.0
      %1075 = vst.msk [vmem:[#allocation2 + $0xc0] sm:$0xff] %vm1049, 0.0
      %1076 = vst.msk [vmem:[#allocation2 + $0xc8] sm:$0xff] %vm1049, 0.0
      %1077 = vst.msk [vmem:[#allocation2 + $0xd0] sm:$0x3] %vm1052, 0.0
      %1078 = vst.msk [vmem:[#allocation2 + $0xd8] sm:$0xff] %vm1049, 0.0
      %1079 = vst.msk [vmem:[#allocation2 + $0xe0] sm:$0xff] %vm1049, 0.0
      %1080 = vst.msk [vmem:[#allocation2 + $0xe8] sm:$0x3] %vm1052, 0.0
      %1081 = vst.msk [vmem:[#allocation2 + $0xf0] sm:$0xff] %vm1049, 0.0
      %1082 = vst.msk [vmem:[#allocation2 + $0xf8] sm:$0xff] %vm1049, 0.0
      %1083 = vst.msk [vmem:[#allocation2 + $0x100] sm:$0x3] %vm1052, 0.0
      %1084 = vst.msk [vmem:[#allocation2 + $0x108] sm:$0xff] %vm1049, 0.0
      %1085 = vst.msk [vmem:[#allocation2 + $0x110] sm:$0xff] %vm1049, 0.0
      %1086 = vst.msk [vmem:[#allocation2 + $0x118] sm:$0x3] %vm1052, 0.0
      %1087 = vst.msk [vmem:[#allocation2 + $0x120] sm:$0xff] %vm1049, 0.0
      %1088 = vst.msk [vmem:[#allocation2 + $0x128] sm:$0xff] %vm1049, 0.0
      %1089 = vst.msk [vmem:[#allocation2 + $0x130] sm:$0x3] %vm1052, 0.0
      %1090 = vst.msk [vmem:[#allocation2 + $0x138] sm:$0xff] %vm1049, 0.0
      %1091 = vst.msk [vmem:[#allocation2 + $0x140] sm:$0xff] %vm1049, 0.0
      %1092 = vst.msk [vmem:[#allocation2 + $0x148] sm:$0x3] %vm1052, 0.0
      %1093 = vst.msk [vmem:[#allocation2 + $0x150] sm:$0xff] %vm1049, 0.0
      %1094 = vst.msk [vmem:[#allocation2 + $0x158] sm:$0xff] %vm1049, 0.0
      %1095 = vst.msk [vmem:[#allocation2 + $0x160] sm:$0x3] %vm1052, 0.0
      %1096 = vst.msk [vmem:[#allocation2 + $0x168] sm:$0xff] %vm1049, 0.0
      %1097 = vst.msk [vmem:[#allocation2 + $0x170] sm:$0xff] %vm1049, 0.0
      %1098 = vst.msk [vmem:[#allocation2 + $0x178] sm:$0x3] %vm1052, 0.0
      %1099 = vst.msk [vmem:[#allocation2 + $0x180] sm:$0xff] %vm1049, 0.0
      %1100 = vst.msk [vmem:[#allocation2 + $0x188] sm:$0xff] %vm1049, 0.0
      %1101 = vst.msk [vmem:[#allocation2 + $0x190] sm:$0x3] %vm1052, 0.0
      %1102 = vst.msk [vmem:[#allocation2 + $0x198] sm:$0xff] %vm1049, 0.0
      %1103 = vst.msk [vmem:[#allocation2 + $0x1a0] sm:$0xff] %vm1049, 0.0
      %1104 = vst.msk [vmem:[#allocation2 + $0x1a8] sm:$0x3] %vm1052, 0.0
      %1105 = vst.msk [vmem:[#allocation3] sm:$0xff] %vm1049, 0.0
      %1106 = vst.msk [vmem:[#allocation3 + $0x8] sm:$0xff] %vm1049, 0.0
      %1107 = vst.msk [vmem:[#allocation3 + $0x10] sm:$0x3] %vm1052, 0.0
      %1108 = vst.msk [vmem:[#allocation3 + $0x18] sm:$0xff] %vm1049, 0.0
      %1109 = vst.msk [vmem:[#allocation3 + $0x20] sm:$0xff] %vm1049, 0.0
      %1110 = vst.msk [vmem:[#allocation3 + $0x28] sm:$0x3] %vm1052, 0.0
      %1111 = vst.msk [vmem:[#allocation3 + $0x30] sm:$0xff] %vm1049, 0.0
      %1112 = vst.msk [vmem:[#allocation3 + $0x38] sm:$0xff] %vm1049, 0.0
      %1113 = vst.msk [vmem:[#allocation3 + $0x40] sm:$0x3] %vm1052, 0.0
      %1114 = vst.msk [vmem:[#allocation3 + $0x48] sm:$0xff] %vm1049, 0.0
      %1115 = vst.msk [vmem:[#allocation3 + $0x50] sm:$0xff] %vm1049, 0.0
      %1116 = vst.msk [vmem:[#allocation3 + $0x58] sm:$0x3] %vm1052, 0.0
      %1117 = vst.msk [vmem:[#allocation3 + $0x60] sm:$0xff] %vm1049, 0.0
      %1118 = vst.msk [vmem:[#allocation3 + $0x68] sm:$0xff] %vm1049, 0.0
      %1119 = vst.msk [vmem:[#allocation3 + $0x70] sm:$0x3] %vm1052, 0.0
      %1120 = vst.msk [vmem:[#allocation3 + $0x78] sm:$0xff] %vm1049, 0.0
      %1121 = vst.msk [vmem:[#allocation3 + $0x80] sm:$0xff] %vm1049, 0.0
      %1122 = vst.msk [vmem:[#allocation3 + $0x88] sm:$0x3] %vm1052, 0.0
      %1123 = vst.msk [vmem:[#allocation3 + $0x90] sm:$0xff] %vm1049, 0.0
      %1124 = vst.msk [vmem:[#allocation3 + $0x98] sm:$0xff] %vm1049, 0.0
      %1125 = vst.msk [vmem:[#allocation3 + $0xa0] sm:$0x3] %vm1052, 0.0
      %1126 = vst.msk [vmem:[#allocation3 + $0xa8] sm:$0xff] %vm1049, 0.0
      %1127 = vst.msk [vmem:[#allocation3 + $0xb0] sm:$0xff] %vm1049, 0.0
      %1128 = vst.msk [vmem:[#allocation3 + $0xb8] sm:$0x3] %vm1052, 0.0
      %1129 = vst.msk [vmem:[#allocation3 + $0xc0] sm:$0xff] %vm1049, 0.0
      %1130 = vst.msk [vmem:[#allocation3 + $0xc8] sm:$0xff] %vm1049, 0.0
      %1131 = vst.msk [vmem:[#allocation3 + $0xd0] sm:$0x3] %vm1052, 0.0
      %1132 = vst.msk [vmem:[#allocation3 + $0xd8] sm:$0xff] %vm1049, 0.0
      %1133 = vst.msk [vmem:[#allocation3 + $0xe0] sm:$0xff] %vm1049, 0.0
      %1134 = vst.msk [vmem:[#allocation3 + $0xe8] sm:$0x3] %vm1052, 0.0
      %1135 = vst.msk [vmem:[#allocation3 + $0xf0] sm:$0xff] %vm1049, 0.0
      %1136 = vst.msk [vmem:[#allocation3 + $0xf8] sm:$0xff] %vm1049, 0.0
      %1137 = vst.msk [vmem:[#allocation3 + $0x100] sm:$0x3] %vm1052, 0.0
      %1138 = vst.msk [vmem:[#allocation3 + $0x108] sm:$0xff] %vm1049, 0.0
      %1139 = vst.msk [vmem:[#allocation3 + $0x110] sm:$0xff] %vm1049, 0.0
      %1140 = vst.msk [vmem:[#allocation3 + $0x118] sm:$0x3] %vm1052, 0.0
      %1141 = vst.msk [vmem:[#allocation3 + $0x120] sm:$0xff] %vm1049, 0.0
      %1142 = vst.msk [vmem:[#allocation3 + $0x128] sm:$0xff] %vm1049, 0.0
      %1143 = vst.msk [vmem:[#allocation3 + $0x130] sm:$0x3] %vm1052, 0.0
      %1144 = vst.msk [vmem:[#allocation3 + $0x138] sm:$0xff] %vm1049, 0.0
      %1145 = vst.msk [vmem:[#allocation3 + $0x140] sm:$0xff] %vm1049, 0.0
      %1146 = vst.msk [vmem:[#allocation3 + $0x148] sm:$0x3] %vm1052, 0.0
      %1147 = vst.msk [vmem:[#allocation3 + $0x150] sm:$0xff] %vm1049, 0.0
      %1148 = vst.msk [vmem:[#allocation3 + $0x158] sm:$0xff] %vm1049, 0.0
      %1149 = vst.msk [vmem:[#allocation3 + $0x160] sm:$0x3] %vm1052, 0.0
      %1150 = vst.msk [vmem:[#allocation3 + $0x168] sm:$0xff] %vm1049, 0.0
      %1151 = vst.msk [vmem:[#allocation3 + $0x170] sm:$0xff] %vm1049, 0.0
      %1152 = vst.msk [vmem:[#allocation3 + $0x178] sm:$0x3] %vm1052, 0.0
      %1153 = vst.msk [vmem:[#allocation3 + $0x180] sm:$0xff] %vm1049, 0.0
      %1154 = vst.msk [vmem:[#allocation3 + $0x188] sm:$0xff] %vm1049, 0.0
      %1155 = vst.msk [vmem:[#allocation3 + $0x190] sm:$0x3] %vm1052, 0.0
      %1156 = vst.msk [vmem:[#allocation3 + $0x198] sm:$0xff] %vm1049, 0.0
      %1157 = vst.msk [vmem:[#allocation3 + $0x1a0] sm:$0xff] %vm1049, 0.0
      %1158 = vst.msk [vmem:[#allocation3 + $0x1a8] sm:$0x3] %vm1052, 0.0
      %1159 = vst [vmem:[#allocation1] ss:$4 sm:$0xff] %v793
      %s1160 = scalar_lea.vmem [#allocation1], 1
      %1161 = vst [vmem:[%s1160] ss:$4 sm:$0xff] %v794
      %s1162 = scalar_lea.vmem [#allocation1], 2
      %1163 = vst [vmem:[%s1162] ss:$4 sm:$0xff] %v795
      %s1164 = scalar_lea.vmem [#allocation1], 3
      %1165 = vst [vmem:[%s1164] ss:$4 sm:$0xff] %v796
      %s1166 = scalar_lea.vmem [#allocation1], 32
      %1167 = vst [vmem:[%s1166] ss:$4 sm:$0xff] %v797
      %s1168 = scalar_lea.vmem [#allocation1], 33
      %1169 = vst [vmem:[%s1168] ss:$4 sm:$0xff] %v798
      %s1170 = scalar_lea.vmem [#allocation1], 34
      %1171 = vst [vmem:[%s1170] ss:$4 sm:$0xff] %v799
      %s1172 = scalar_lea.vmem [#allocation1], 35
      %1173 = vst [vmem:[%s1172] ss:$4 sm:$0xff] %v800
      %v1174 = vld.sshfl [vmem:[#allocation1] sm:$0xff pattern:$0x73625140]
      %v1175 = vld.sshfl [vmem:[#allocation1 + $0x20] sm:$0xff pattern:$0x73625140]
      %1176 = vst [vmem:[#allocation1] ss:$4 sm:$0xff] %v922
      %1177 = vst [vmem:[%s1160] ss:$4 sm:$0xff] %v924
      %1178 = vst [vmem:[%s1162] ss:$4 sm:$0xff] %v926
      %1179 = vst [vmem:[%s1164] ss:$4 sm:$0xff] %v928
      %1180 = vst [vmem:[%s1166] ss:$4 sm:$0xff] %v930
      %1181 = vst [vmem:[%s1168] ss:$4 sm:$0xff] %v932
      %1182 = vst [vmem:[%s1170] ss:$4 sm:$0xff] %v934
      %1183 = vst [vmem:[%s1172] ss:$4 sm:$0xff] %v936
      %v1184 = vld.sshfl [vmem:[#allocation1] sm:$0xff pattern:$0x73625140]
      %v1185 = vld.sshfl [vmem:[#allocation1 + $0x20] sm:$0xff pattern:$0x73625140]
      %1186 = vst [vmem:[#allocation1] ss:$4 sm:$0xff] %v801
      %1187 = vst [vmem:[%s1160] ss:$4 sm:$0xff] %v802
      %1188 = vst [vmem:[%s1162] ss:$4 sm:$0xff] %v803
      %1189 = vst [vmem:[%s1164] ss:$4 sm:$0xff] %v804
      %1190 = vst [vmem:[%s1166] ss:$4 sm:$0xff] %v805
      %1191 = vst [vmem:[%s1168] ss:$4 sm:$0xff] %v806
      %1192 = vst [vmem:[%s1170] ss:$4 sm:$0xff] %v807
      %1193 = vst [vmem:[%s1172] ss:$4 sm:$0xff] %v808
      %v1194 = vld.sshfl [vmem:[#allocation1] sm:$0xff pattern:$0x73625140]
      %v1195 = vld.sshfl [vmem:[#allocation1 + $0x20] sm:$0xff pattern:$0x73625140]
      %1196 = vst [vmem:[#allocation1] ss:$4 sm:$0xff] %v938
      %1197 = vst [vmem:[%s1160] ss:$4 sm:$0xff] %v940
      %1198 = vst [vmem:[%s1162] ss:$4 sm:$0xff] %v942
      %1199 = vst [vmem:[%s1164] ss:$4 sm:$0xff] %v944
      %1200 = vst [vmem:[%s1166] ss:$4 sm:$0xff] %v946
      %1201 = vst [vmem:[%s1168] ss:$4 sm:$0xff] %v948
      %1202 = vst [vmem:[%s1170] ss:$4 sm:$0xff] %v950
      %1203 = vst [vmem:[%s1172] ss:$4 sm:$0xff] %v952
      %v1204 = vld.sshfl [vmem:[#allocation1] sm:$0xff pattern:$0x73625140]
      %v1205 = vld.sshfl [vmem:[#allocation1 + $0x20] sm:$0xff pattern:$0x73625140]
      %1206 = vst [vmem:[#allocation1] ss:$4 sm:$0xff] %v809
      %1207 = vst [vmem:[%s1160] ss:$4 sm:$0xff] %v810
      %1208 = vst [vmem:[%s1162] ss:$4 sm:$0xff] %v811
      %1209 = vst [vmem:[%s1164] ss:$4 sm:$0xff] %v812
      %1210 = vst [vmem:[%s1166] ss:$4 sm:$0xff] %v813
      %1211 = vst [vmem:[%s1168] ss:$4 sm:$0xff] %v814
      %1212 = vst [vmem:[%s1170] ss:$4 sm:$0xff] %v815
      %1213 = vst [vmem:[%s1172] ss:$4 sm:$0xff] %v816
      %v1214 = vld.sshfl [vmem:[#allocation1] sm:$0xff pattern:$0x73625140]
      %v1215 = vld.sshfl [vmem:[#allocation1 + $0x20] sm:$0xff pattern:$0x73625140]
      %1216 = vst [vmem:[#allocation1] ss:$4 sm:$0xff] %v954
      %1217 = vst [vmem:[%s1160] ss:$4 sm:$0xff] %v956
      %1218 = vst [vmem:[%s1162] ss:$4 sm:$0xff] %v958
      %1219 = vst [vmem:[%s1164] ss:$4 sm:$0xff] %v960
      %1220 = vst [vmem:[%s1166] ss:$4 sm:$0xff] %v962
      %1221 = vst [vmem:[%s1168] ss:$4 sm:$0xff] %v964
      %1222 = vst [vmem:[%s1170] ss:$4 sm:$0xff] %v966
      %1223 = vst [vmem:[%s1172] ss:$4 sm:$0xff] %v968
      %v1224 = vld.sshfl [vmem:[#allocation1] sm:$0xff pattern:$0x73625140]
      %v1225 = vld.sshfl [vmem:[#allocation1 + $0x20] sm:$0xff pattern:$0x73625140]
      %1226 = vst [vmem:[#allocation1] ss:$4 sm:$0xff] %v817
      %1227 = vst [vmem:[%s1160] ss:$4 sm:$0xff] %v818
      %1228 = vst [vmem:[%s1162] ss:$4 sm:$0xff] %v819
      %1229 = vst [vmem:[%s1164] ss:$4 sm:$0xff] %v820
      %1230 = vst [vmem:[%s1166] ss:$4 sm:$0xff] %v821
      %1231 = vst [vmem:[%s1168] ss:$4 sm:$0xff] %v822
      %1232 = vst [vmem:[%s1170] ss:$4 sm:$0xff] %v823
      %1233 = vst [vmem:[%s1172] ss:$4 sm:$0xff] %v824
      %v1234 = vld.sshfl [vmem:[#allocation1] sm:$0xff pattern:$0x73625140]
      %v1235 = vld.sshfl [vmem:[#allocation1 + $0x20] sm:$0xff pattern:$0x73625140]
      %1236 = vst [vmem:[#allocation1] ss:$4 sm:$0xff] %v970
      %1237 = vst [vmem:[%s1160] ss:$4 sm:$0xff] %v972
      %1238 = vst [vmem:[%s1162] ss:$4 sm:$0xff] %v974
      %1239 = vst [vmem:[%s1164] ss:$4 sm:$0xff] %v976
      %1240 = vst [vmem:[%s1166] ss:$4 sm:$0xff] %v978
      %1241 = vst [vmem:[%s1168] ss:$4 sm:$0xff] %v980
      %1242 = vst [vmem:[%s1170] ss:$4 sm:$0xff] %v982
      %1243 = vst [vmem:[%s1172] ss:$4 sm:$0xff] %v984
      %v1244 = vld.sshfl [vmem:[#allocation1] sm:$0xff pattern:$0x73625140]
      %v1245 = vld.sshfl [vmem:[#allocation1 + $0x20] sm:$0xff pattern:$0x73625140]
      %1246 = vst [vmem:[#allocation1] ss:$4 sm:$0xff] %v825
      %1247 = vst [vmem:[%s1160] ss:$4 sm:$0xff] %v826
      %1248 = vst [vmem:[%s1162] ss:$4 sm:$0xff] %v827
      %1249 = vst [vmem:[%s1164] ss:$4 sm:$0xff] %v828
      %1250 = vst [vmem:[%s1166] ss:$4 sm:$0xff] %v829
      %1251 = vst [vmem:[%s1168] ss:$4 sm:$0xff] %v830
      %1252 = vst [vmem:[%s1170] ss:$4 sm:$0xff] %v831
      %1253 = vst [vmem:[%s1172] ss:$4 sm:$0xff] %v832
      %v1254 = vld.sshfl [vmem:[#allocation1] sm:$0xff pattern:$0x73625140]
      %v1255 = vld.sshfl [vmem:[#allocation1 + $0x20] sm:$0xff pattern:$0x73625140]
      %1256 = vst [vmem:[#allocation1] ss:$4 sm:$0xff] %v986
      %1257 = vst [vmem:[%s1160] ss:$4 sm:$0xff] %v988
      %1258 = vst [vmem:[%s1162] ss:$4 sm:$0xff] %v990
      %1259 = vst [vmem:[%s1164] ss:$4 sm:$0xff] %v992
      %1260 = vst [vmem:[%s1166] ss:$4 sm:$0xff] %v994
      %1261 = vst [vmem:[%s1168] ss:$4 sm:$0xff] %v996
      %1262 = vst [vmem:[%s1170] ss:$4 sm:$0xff] %v998
      %1263 = vst [vmem:[%s1172] ss:$4 sm:$0xff] %v1000
      %v1264 = vld.sshfl [vmem:[#allocation1] sm:$0xff pattern:$0x73625140]
      %v1265 = vld.sshfl [vmem:[#allocation1 + $0x20] sm:$0xff pattern:$0x73625140]
      %1266 = vst [vmem:[#allocation1] ss:$4 sm:$0xff] %v833
      %1267 = vst [vmem:[%s1160] ss:$4 sm:$0xff] %v834
      %1268 = vst [vmem:[%s1162] ss:$4 sm:$0xff] %v835
      %1269 = vst [vmem:[%s1164] ss:$4 sm:$0xff] %v836
      %1270 = vst [vmem:[%s1166] ss:$4 sm:$0xff] %v837
      %1271 = vst [vmem:[%s1168] ss:$4 sm:$0xff] %v838
      %1272 = vst [vmem:[%s1170] ss:$4 sm:$0xff] %v839
      %1273 = vst [vmem:[%s1172] ss:$4 sm:$0xff] %v840
      %v1274 = vld.sshfl [vmem:[#allocation1] sm:$0xff pattern:$0x73625140]
      %v1275 = vld.sshfl [vmem:[#allocation1 + $0x20] sm:$0xff pattern:$0x73625140]
      %1276 = vst [vmem:[#allocation1] ss:$4 sm:$0xff] %v1002
      %1277 = vst [vmem:[%s1160] ss:$4 sm:$0xff] %v1004
      %1278 = vst [vmem:[%s1162] ss:$4 sm:$0xff] %v1006
      %1279 = vst [vmem:[%s1164] ss:$4 sm:$0xff] %v1008
      %1280 = vst [vmem:[%s1166] ss:$4 sm:$0xff] %v1010
      %1281 = vst [vmem:[%s1168] ss:$4 sm:$0xff] %v1012
      %1282 = vst [vmem:[%s1170] ss:$4 sm:$0xff] %v1014
      %1283 = vst [vmem:[%s1172] ss:$4 sm:$0xff] %v1016
      %v1284 = vld.sshfl [vmem:[#allocation1] sm:$0xff pattern:$0x73625140]
      %v1285 = vld.sshfl [vmem:[#allocation1 + $0x20] sm:$0xff pattern:$0x73625140]
      %1286 = vst [vmem:[#allocation1] ss:$4 sm:$0xff] %v841
      %1287 = vst [vmem:[%s1160] ss:$4 sm:$0xff] %v842
      %1288 = vst [vmem:[%s1162] ss:$4 sm:$0xff] %v843
      %1289 = vst [vmem:[%s1164] ss:$4 sm:$0xff] %v844
      %1290 = vst [vmem:[%s1166] ss:$4 sm:$0xff] %v845
      %1291 = vst [vmem:[%s1168] ss:$4 sm:$0xff] %v846
      %1292 = vst [vmem:[%s1170] ss:$4 sm:$0xff] %v847
      %1293 = vst [vmem:[%s1172] ss:$4 sm:$0xff] %v848
      %v1294 = vld.sshfl [vmem:[#allocation1] sm:$0xff pattern:$0x73625140]
      %v1295 = vld.sshfl [vmem:[#allocation1 + $0x20] sm:$0xff pattern:$0x73625140]
      %1296 = vst [vmem:[#allocation1] ss:$4 sm:$0xff] %v1018
      %1297 = vst [vmem:[%s1160] ss:$4 sm:$0xff] %v1020
      %1298 = vst [vmem:[%s1162] ss:$4 sm:$0xff] %v1022
      %1299 = vst [vmem:[%s1164] ss:$4 sm:$0xff] %v1024
      %1300 = vst [vmem:[%s1166] ss:$4 sm:$0xff] %v1026
      %1301 = vst [vmem:[%s1168] ss:$4 sm:$0xff] %v1028
      %1302 = vst [vmem:[%s1170] ss:$4 sm:$0xff] %v1030
      %1303 = vst [vmem:[%s1172] ss:$4 sm:$0xff] %v1032
      %v1304 = vld.sshfl [vmem:[#allocation1] sm:$0xff pattern:$0x73625140]
      %v1305 = vld.sshfl [vmem:[#allocation1 + $0x20] sm:$0xff pattern:$0x73625140]
      %1306 = vst [vmem:[#allocation1] ss:$4 sm:$0xff] %v849
      %1307 = vst [vmem:[%s1160] ss:$4 sm:$0xff] %v850
      %1308 = vst [vmem:[%s1162] ss:$4 sm:$0xff] %v851
      %1309 = vst [vmem:[%s1164] ss:$4 sm:$0xff] %v852
      %1310 = vst [vmem:[%s1166] ss:$4 sm:$0xff] %v853
      %1311 = vst [vmem:[%s1168] ss:$4 sm:$0xff] %v854
      %1312 = vst [vmem:[%s1170] ss:$4 sm:$0xff] %v855
      %1313 = vst [vmem:[%s1172] ss:$4 sm:$0xff] %v856
      %v1314 = vld.sshfl [vmem:[#allocation1] sm:$0xff pattern:$0x73625140]
      %v1315 = vld.sshfl [vmem:[#allocation1 + $0x20] sm:$0xff pattern:$0x73625140]
      %1316 = vst [vmem:[#allocation1] ss:$4 sm:$0xff] %v1034
      %1317 = vst [vmem:[%s1160] ss:$4 sm:$0xff] %v1036
      %1318 = vst [vmem:[%s1162] ss:$4 sm:$0xff] %v1038
      %1319 = vst [vmem:[%s1164] ss:$4 sm:$0xff] %v1040
      %1320 = vst [vmem:[%s1166] ss:$4 sm:$0xff] %v1042
      %1321 = vst [vmem:[%s1168] ss:$4 sm:$0xff] %v1044
      %1322 = vst [vmem:[%s1170] ss:$4 sm:$0xff] %v1046
      %1323 = vst [vmem:[%s1172] ss:$4 sm:$0xff] %v1048
      %v1324 = vld.sshfl [vmem:[#allocation1] sm:$0xff pattern:$0x73625140]
      %v1325 = vld.sshfl [vmem:[#allocation1 + $0x20] sm:$0xff pattern:$0x73625140]
      %s1358 = scalar_lea.vmem [#allocation2], 24
      %1359 = vst.msk [vmem:[%s1358 + $0x1] sm:$0xff] %vm1049, %v1174
      %1360 = vst.msk [vmem:[%s1358 + $0x9] sm:$0xff] %vm1049, %v1175
      %1361 = vst.msk [vmem:[%s1358 + $0x19] sm:$0xff] %vm1049, %v1184
      %1362 = vst.msk [vmem:[%s1358 + $0x21] sm:$0xff] %vm1049, %v1185
      %1363 = vst.msk [vmem:[%s1358 + $0x31] sm:$0xff] %vm1049, %v1194
      %1364 = vst.msk [vmem:[%s1358 + $0x39] sm:$0xff] %vm1049, %v1195
      %1365 = vst.msk [vmem:[%s1358 + $0x49] sm:$0xff] %vm1049, %v1204
      %1366 = vst.msk [vmem:[%s1358 + $0x51] sm:$0xff] %vm1049, %v1205
      %1367 = vst.msk [vmem:[%s1358 + $0x61] sm:$0xff] %vm1049, %v1214
      %1368 = vst.msk [vmem:[%s1358 + $0x69] sm:$0xff] %vm1049, %v1215
      %1369 = vst.msk [vmem:[%s1358 + $0x79] sm:$0xff] %vm1049, %v1224
      %1370 = vst.msk [vmem:[%s1358 + $0x81] sm:$0xff] %vm1049, %v1225
      %1371 = vst.msk [vmem:[%s1358 + $0x91] sm:$0xff] %vm1049, %v1234
      %1372 = vst.msk [vmem:[%s1358 + $0x99] sm:$0xff] %vm1049, %v1235
      %1373 = vst.msk [vmem:[%s1358 + $0xa9] sm:$0xff] %vm1049, %v1244
      %1374 = vst.msk [vmem:[%s1358 + $0xb1] sm:$0xff] %vm1049, %v1245
      %1375 = vst.msk [vmem:[%s1358 + $0xc1] sm:$0xff] %vm1049, %v1254
      %1376 = vst.msk [vmem:[%s1358 + $0xc9] sm:$0xff] %vm1049, %v1255
      %1377 = vst.msk [vmem:[%s1358 + $0xd9] sm:$0xff] %vm1049, %v1264
      %1378 = vst.msk [vmem:[%s1358 + $0xe1] sm:$0xff] %vm1049, %v1265
      %1379 = vst.msk [vmem:[%s1358 + $0xf1] sm:$0xff] %vm1049, %v1274
      %1380 = vst.msk [vmem:[%s1358 + $0xf9] sm:$0xff] %vm1049, %v1275
      %1381 = vst.msk [vmem:[%s1358 + $0x109] sm:$0xff] %vm1049, %v1284
      %1382 = vst.msk [vmem:[%s1358 + $0x111] sm:$0xff] %vm1049, %v1285
      %1383 = vst.msk [vmem:[%s1358 + $0x121] sm:$0xff] %vm1049, %v1294
      %1384 = vst.msk [vmem:[%s1358 + $0x129] sm:$0xff] %vm1049, %v1295
      %1385 = vst.msk [vmem:[%s1358 + $0x139] sm:$0xff] %vm1049, %v1304
      %1386 = vst.msk [vmem:[%s1358 + $0x141] sm:$0xff] %vm1049, %v1305
      %1387 = vst.msk [vmem:[%s1358 + $0x151] sm:$0xff] %vm1049, %v1314
      %1388 = vst.msk [vmem:[%s1358 + $0x159] sm:$0xff] %vm1049, %v1315
      %1389 = vst.msk [vmem:[%s1358 + $0x169] sm:$0xff] %vm1049, %v1324
      %1390 = vst.msk [vmem:[%s1358 + $0x171] sm:$0xff] %vm1049, %v1325
      %v1391 = vld [vmem:[%s327] sm:$0xff]
      %v1392 = vld [vmem:[%s327 + $0x8] sm:$0xff]
      %v1393 = vld [vmem:[%s327 + $0x10] sm:$0xff]
      %v1394 = vld [vmem:[%s327 + $0x18] sm:$0xff]
      %v1395 = vld [vmem:[%s327 + $0x20] sm:$0xff]
      %v1396 = vld [vmem:[%s327 + $0x28] sm:$0xff]
      %v1397 = vld [vmem:[%s327 + $0x30] sm:$0xff]
      %v1398 = vld [vmem:[%s327 + $0x38] sm:$0xff]
      %v1399 = vld [vmem:[%s327 + $0x40] sm:$0xff]
      %v1400 = vld [vmem:[%s327 + $0x48] sm:$0xff]
      %v1401 = vld [vmem:[%s327 + $0x50] sm:$0xff]
      %v1402 = vld [vmem:[%s327 + $0x58] sm:$0xff]
      %v1403 = vld [vmem:[%s327 + $0x60] sm:$0xff]
      %v1404 = vld [vmem:[%s327 + $0x68] sm:$0xff]
      %v1405 = vld [vmem:[%s327 + $0x70] sm:$0xff]
      %v1406 = vld [vmem:[%s327 + $0x78] sm:$0xff]
      %v1407 = vld [vmem:[%s327 + $0x80] sm:$0xff]
      %v1408 = vld [vmem:[%s327 + $0x88] sm:$0xff]
      %v1409 = vld [vmem:[%s327 + $0x90] sm:$0xff]
      %v1410 = vld [vmem:[%s327 + $0x98] sm:$0xff]
      %v1411 = vld [vmem:[%s327 + $0xa0] sm:$0xff]
      %v1412 = vld [vmem:[%s327 + $0xa8] sm:$0xff]
      %v1413 = vld [vmem:[%s327 + $0xb0] sm:$0xff]
      %v1414 = vld [vmem:[%s327 + $0xb8] sm:$0xff]
      %v1415 = vld [vmem:[%s327 + $0xc0] sm:$0xff]
      %v1416 = vld [vmem:[%s327 + $0xc8] sm:$0xff]
      %v1417 = vld [vmem:[%s327 + $0xd0] sm:$0xff]
      %v1418 = vld [vmem:[%s327 + $0xd8] sm:$0xff]
      %v1419 = vld [vmem:[%s327 + $0xe0] sm:$0xff]
      %v1420 = vld [vmem:[%s327 + $0xe8] sm:$0xff]
      %v1421 = vld [vmem:[%s327 + $0xf0] sm:$0xff]
      %v1422 = vld [vmem:[%s327 + $0xf8] sm:$0xff]
      %s1423 = scalar_lea.vmem [#allocation3], 24
      %1424 = vst.msk [vmem:[%s1423 + $0x1] sm:$0xff] %vm1049, %v1391
      %1425 = vst.msk [vmem:[%s1423 + $0x9] sm:$0xff] %vm1049, %v1392
      %1426 = vst.msk [vmem:[%s1423 + $0x19] sm:$0xff] %vm1049, %v1393
      %1427 = vst.msk [vmem:[%s1423 + $0x21] sm:$0xff] %vm1049, %v1394
      %1428 = vst.msk [vmem:[%s1423 + $0x31] sm:$0xff] %vm1049, %v1395
      %1429 = vst.msk [vmem:[%s1423 + $0x39] sm:$0xff] %vm1049, %v1396
      %1430 = vst.msk [vmem:[%s1423 + $0x49] sm:$0xff] %vm1049, %v1397
      %1431 = vst.msk [vmem:[%s1423 + $0x51] sm:$0xff] %vm1049, %v1398
      %1432 = vst.msk [vmem:[%s1423 + $0x61] sm:$0xff] %vm1049, %v1399
      %1433 = vst.msk [vmem:[%s1423 + $0x69] sm:$0xff] %vm1049, %v1400
      %1434 = vst.msk [vmem:[%s1423 + $0x79] sm:$0xff] %vm1049, %v1401
      %1435 = vst.msk [vmem:[%s1423 + $0x81] sm:$0xff] %vm1049, %v1402
      %1436 = vst.msk [vmem:[%s1423 + $0x91] sm:$0xff] %vm1049, %v1403
      %1437 = vst.msk [vmem:[%s1423 + $0x99] sm:$0xff] %vm1049, %v1404
      %1438 = vst.msk [vmem:[%s1423 + $0xa9] sm:$0xff] %vm1049, %v1405
      %1439 = vst.msk [vmem:[%s1423 + $0xb1] sm:$0xff] %vm1049, %v1406
      %1440 = vst.msk [vmem:[%s1423 + $0xc1] sm:$0xff] %vm1049, %v1407
      %1441 = vst.msk [vmem:[%s1423 + $0xc9] sm:$0xff] %vm1049, %v1408
      %1442 = vst.msk [vmem:[%s1423 + $0xd9] sm:$0xff] %vm1049, %v1409
      %1443 = vst.msk [vmem:[%s1423 + $0xe1] sm:$0xff] %vm1049, %v1410
      %1444 = vst.msk [vmem:[%s1423 + $0xf1] sm:$0xff] %vm1049, %v1411
      %1445 = vst.msk [vmem:[%s1423 + $0xf9] sm:$0xff] %vm1049, %v1412
      %1446 = vst.msk [vmem:[%s1423 + $0x109] sm:$0xff] %vm1049, %v1413
      %1447 = vst.msk [vmem:[%s1423 + $0x111] sm:$0xff] %vm1049, %v1414
      %1448 = vst.msk [vmem:[%s1423 + $0x121] sm:$0xff] %vm1049, %v1415
      %1449 = vst.msk [vmem:[%s1423 + $0x129] sm:$0xff] %vm1049, %v1416
      %1450 = vst.msk [vmem:[%s1423 + $0x139] sm:$0xff] %vm1049, %v1417
      %1451 = vst.msk [vmem:[%s1423 + $0x141] sm:$0xff] %vm1049, %v1418
      %1452 = vst.msk [vmem:[%s1423 + $0x151] sm:$0xff] %vm1049, %v1419
      %1453 = vst.msk [vmem:[%s1423 + $0x159] sm:$0xff] %vm1049, %v1420
      %1454 = vst.msk [vmem:[%s1423 + $0x169] sm:$0xff] %vm1049, %v1421
      %1455 = vst.msk [vmem:[%s1423 + $0x171] sm:$0xff] %vm1049, %v1422
      %v1456 = vld [vmem:[#allocation2] sm:$0xff]
      %v1457 = vld [vmem:[#allocation2 + $0x8] sm:$0xff]
      %v1458 = vld [vmem:[#allocation2 + $0x18] sm:$0xff]
      %v1459 = vld [vmem:[#allocation2 + $0x20] sm:$0xff]
      %v1460 = vld [vmem:[#allocation2 + $0x30] sm:$0xff]
      %v1461 = vld [vmem:[#allocation2 + $0x38] sm:$0xff]
      %v1462 = vld [vmem:[#allocation2 + $0x48] sm:$0xff]
      %v1463 = vld [vmem:[#allocation2 + $0x50] sm:$0xff]
      %v1464 = vld [vmem:[#allocation2 + $0x60] sm:$0xff]
      %v1465 = vld [vmem:[#allocation2 + $0x68] sm:$0xff]
      %v1466 = vld [vmem:[#allocation2 + $0x78] sm:$0xff]
      %v1467 = vld [vmem:[#allocation2 + $0x80] sm:$0xff]
      %v1468 = vld [vmem:[#allocation2 + $0x90] sm:$0xff]
      %v1469 = vld [vmem:[#allocation2 + $0x98] sm:$0xff]
      %v1470 = vld [vmem:[#allocation2 + $0xa8] sm:$0xff]
      %v1471 = vld [vmem:[#allocation2 + $0xb0] sm:$0xff]
      %v1472 = vld [vmem:[#allocation2 + $0xc0] sm:$0xff]
      %v1473 = vld [vmem:[#allocation2 + $0xc8] sm:$0xff]
      %v1474 = vld [vmem:[#allocation2 + $0xd8] sm:$0xff]
      %v1475 = vld [vmem:[#allocation2 + $0xe0] sm:$0xff]
      %v1476 = vld [vmem:[#allocation2 + $0xf0] sm:$0xff]
      %v1477 = vld [vmem:[#allocation2 + $0xf8] sm:$0xff]
      %v1478 = vld [vmem:[#allocation2 + $0x108] sm:$0xff]
      %v1479 = vld [vmem:[#allocation2 + $0x110] sm:$0xff]
      %v1480 = vld [vmem:[#allocation2 + $0x120] sm:$0xff]
      %v1481 = vld [vmem:[#allocation2 + $0x128] sm:$0xff]
      %v1482 = vld [vmem:[#allocation2 + $0x138] sm:$0xff]
      %v1483 = vld [vmem:[#allocation2 + $0x140] sm:$0xff]
      %v1484 = vld [vmem:[#allocation2 + $0x150] sm:$0xff]
      %v1485 = vld [vmem:[#allocation2 + $0x158] sm:$0xff]
      %v1486 = vld [vmem:[#allocation2 + $0x168] sm:$0xff]
      %v1487 = vld [vmem:[#allocation2 + $0x170] sm:$0xff]
      %v1488 = vld [vmem:[#allocation2 + $0x1] sm:$0xff]
      %v1489 = vld [vmem:[#allocation2 + $0x9] sm:$0xff]
      %v1490 = vld [vmem:[#allocation2 + $0x19] sm:$0xff]
      %v1491 = vld [vmem:[#allocation2 + $0x21] sm:$0xff]
      %v1492 = vld [vmem:[#allocation2 + $0x31] sm:$0xff]
      %v1493 = vld [vmem:[#allocation2 + $0x39] sm:$0xff]
      %v1494 = vld [vmem:[#allocation2 + $0x49] sm:$0xff]
      %v1495 = vld [vmem:[#allocation2 + $0x51] sm:$0xff]
      %v1496 = vld [vmem:[#allocation2 + $0x61] sm:$0xff]
      %v1497 = vld [vmem:[#allocation2 + $0x69] sm:$0xff]
      %v1498 = vld [vmem:[#allocation2 + $0x79] sm:$0xff]
      %v1499 = vld [vmem:[#allocation2 + $0x81] sm:$0xff]
      %v1500 = vld [vmem:[#allocation2 + $0x91] sm:$0xff]
      %v1501 = vld [vmem:[#allocation2 + $0x99] sm:$0xff]
      %v1502 = vld [vmem:[#allocation2 + $0xa9] sm:$0xff]
      %v1503 = vld [vmem:[#allocation2 + $0xb1] sm:$0xff]
      %v1504 = vld [vmem:[#allocation2 + $0xc1] sm:$0xff]
      %v1505 = vld [vmem:[#allocation2 + $0xc9] sm:$0xff]
      %v1506 = vld [vmem:[#allocation2 + $0xd9] sm:$0xff]
      %v1507 = vld [vmem:[#allocation2 + $0xe1] sm:$0xff]
      %v1508 = vld [vmem:[#allocation2 + $0xf1] sm:$0xff]
      %v1509 = vld [vmem:[#allocation2 + $0xf9] sm:$0xff]
      %v1510 = vld [vmem:[#allocation2 + $0x109] sm:$0xff]
      %v1511 = vld [vmem:[#allocation2 + $0x111] sm:$0xff]
      %v1512 = vld [vmem:[#allocation2 + $0x121] sm:$0xff]
      %v1513 = vld [vmem:[#allocation2 + $0x129] sm:$0xff]
      %v1514 = vld [vmem:[#allocation2 + $0x139] sm:$0xff]
      %v1515 = vld [vmem:[#allocation2 + $0x141] sm:$0xff]
      %v1516 = vld [vmem:[#allocation2 + $0x151] sm:$0xff]
      %v1517 = vld [vmem:[#allocation2 + $0x159] sm:$0xff]
      %v1518 = vld [vmem:[#allocation2 + $0x169] sm:$0xff]
      %v1519 = vld [vmem:[#allocation2 + $0x171] sm:$0xff]
      %v1520 = vld [vmem:[#allocation2 + $0x2] sm:$0xff]
      %v1521 = vld [vmem:[#allocation2 + $0xa] sm:$0xff]
      %v1522 = vld [vmem:[#allocation2 + $0x1a] sm:$0xff]
      %v1523 = vld [vmem:[#allocation2 + $0x22] sm:$0xff]
      %v1524 = vld [vmem:[#allocation2 + $0x32] sm:$0xff]
      %v1525 = vld [vmem:[#allocation2 + $0x3a] sm:$0xff]
      %v1526 = vld [vmem:[#allocation2 + $0x4a] sm:$0xff]
      %v1527 = vld [vmem:[#allocation2 + $0x52] sm:$0xff]
      %v1528 = vld [vmem:[#allocation2 + $0x62] sm:$0xff]
      %v1529 = vld [vmem:[#allocation2 + $0x6a] sm:$0xff]
      %v1530 = vld [vmem:[#allocation2 + $0x7a] sm:$0xff]
      %v1531 = vld [vmem:[#allocation2 + $0x82] sm:$0xff]
      %v1532 = vld [vmem:[#allocation2 + $0x92] sm:$0xff]
      %v1533 = vld [vmem:[#allocation2 + $0x9a] sm:$0xff]
      %v1534 = vld [vmem:[#allocation2 + $0xaa] sm:$0xff]
      %v1535 = vld [vmem:[#allocation2 + $0xb2] sm:$0xff]
      %v1536 = vld [vmem:[#allocation2 + $0xc2] sm:$0xff]
      %v1537 = vld [vmem:[#allocation2 + $0xca] sm:$0xff]
      %v1538 = vld [vmem:[#allocation2 + $0xda] sm:$0xff]
      %v1539 = vld [vmem:[#allocation2 + $0xe2] sm:$0xff]
      %v1540 = vld [vmem:[#allocation2 + $0xf2] sm:$0xff]
      %v1541 = vld [vmem:[#allocation2 + $0xfa] sm:$0xff]
      %v1542 = vld [vmem:[#allocation2 + $0x10a] sm:$0xff]
      %v1543 = vld [vmem:[#allocation2 + $0x112] sm:$0xff]
      %v1544 = vld [vmem:[#allocation2 + $0x122] sm:$0xff]
      %v1545 = vld [vmem:[#allocation2 + $0x12a] sm:$0xff]
      %v1546 = vld [vmem:[#allocation2 + $0x13a] sm:$0xff]
      %v1547 = vld [vmem:[#allocation2 + $0x142] sm:$0xff]
      %v1548 = vld [vmem:[#allocation2 + $0x152] sm:$0xff]
      %v1549 = vld [vmem:[#allocation2 + $0x15a] sm:$0xff]
      %v1550 = vld [vmem:[#allocation2 + $0x16a] sm:$0xff]
      %v1551 = vld [vmem:[#allocation2 + $0x172] sm:$0xff]
      %v1552 = vld [vmem:[%s1358] sm:$0xff]
      %v1553 = vld [vmem:[%s1358 + $0x8] sm:$0xff]
      %v1554 = vld [vmem:[%s1358 + $0x18] sm:$0xff]
      %v1555 = vld [vmem:[%s1358 + $0x20] sm:$0xff]
      %v1556 = vld [vmem:[%s1358 + $0x30] sm:$0xff]
      %v1557 = vld [vmem:[%s1358 + $0x38] sm:$0xff]
      %v1558 = vld [vmem:[%s1358 + $0x48] sm:$0xff]
      %v1559 = vld [vmem:[%s1358 + $0x50] sm:$0xff]
      %v1560 = vld [vmem:[%s1358 + $0x60] sm:$0xff]
      %v1561 = vld [vmem:[%s1358 + $0x68] sm:$0xff]
      %v1562 = vld [vmem:[%s1358 + $0x78] sm:$0xff]
      %v1563 = vld [vmem:[%s1358 + $0x80] sm:$0xff]
      %v1564 = vld [vmem:[%s1358 + $0x90] sm:$0xff]
      %v1565 = vld [vmem:[%s1358 + $0x98] sm:$0xff]
      %v1566 = vld [vmem:[%s1358 + $0xa8] sm:$0xff]
      %v1567 = vld [vmem:[%s1358 + $0xb0] sm:$0xff]
      %v1568 = vld [vmem:[%s1358 + $0xc0] sm:$0xff]
      %v1569 = vld [vmem:[%s1358 + $0xc8] sm:$0xff]
      %v1570 = vld [vmem:[%s1358 + $0xd8] sm:$0xff]
      %v1571 = vld [vmem:[%s1358 + $0xe0] sm:$0xff]
      %v1572 = vld [vmem:[%s1358 + $0xf0] sm:$0xff]
      %v1573 = vld [vmem:[%s1358 + $0xf8] sm:$0xff]
      %v1574 = vld [vmem:[%s1358 + $0x108] sm:$0xff]
      %v1575 = vld [vmem:[%s1358 + $0x110] sm:$0xff]
      %v1576 = vld [vmem:[%s1358 + $0x120] sm:$0xff]
      %v1577 = vld [vmem:[%s1358 + $0x128] sm:$0xff]
      %v1578 = vld [vmem:[%s1358 + $0x138] sm:$0xff]
      %v1579 = vld [vmem:[%s1358 + $0x140] sm:$0xff]
      %v1580 = vld [vmem:[%s1358 + $0x150] sm:$0xff]
      %v1581 = vld [vmem:[%s1358 + $0x158] sm:$0xff]
      %v1582 = vld [vmem:[%s1358 + $0x168] sm:$0xff]
      %v1583 = vld [vmem:[%s1358 + $0x170] sm:$0xff]
      %v1584 = vld [vmem:[%s1358 + $0x1] sm:$0xff]
      %v1585 = vld [vmem:[%s1358 + $0x9] sm:$0xff]
      %v1586 = vld [vmem:[%s1358 + $0x19] sm:$0xff]
      %v1587 = vld [vmem:[%s1358 + $0x21] sm:$0xff]
      %v1588 = vld [vmem:[%s1358 + $0x31] sm:$0xff]
      %v1589 = vld [vmem:[%s1358 + $0x39] sm:$0xff]
      %v1590 = vld [vmem:[%s1358 + $0x49] sm:$0xff]
      %v1591 = vld [vmem:[%s1358 + $0x51] sm:$0xff]
      %v1592 = vld [vmem:[%s1358 + $0x61] sm:$0xff]
      %v1593 = vld [vmem:[%s1358 + $0x69] sm:$0xff]
      %v1594 = vld [vmem:[%s1358 + $0x79] sm:$0xff]
      %v1595 = vld [vmem:[%s1358 + $0x81] sm:$0xff]
      %v1596 = vld [vmem:[%s1358 + $0x91] sm:$0xff]
      %v1597 = vld [vmem:[%s1358 + $0x99] sm:$0xff]
      %v1598 = vld [vmem:[%s1358 + $0xa9] sm:$0xff]
      %v1599 = vld [vmem:[%s1358 + $0xb1] sm:$0xff]
      %v1600 = vld [vmem:[%s1358 + $0xc1] sm:$0xff]
      %v1601 = vld [vmem:[%s1358 + $0xc9] sm:$0xff]
      %v1602 = vld [vmem:[%s1358 + $0xd9] sm:$0xff]
      %v1603 = vld [vmem:[%s1358 + $0xe1] sm:$0xff]
      %v1604 = vld [vmem:[%s1358 + $0xf1] sm:$0xff]
      %v1605 = vld [vmem:[%s1358 + $0xf9] sm:$0xff]
      %v1606 = vld [vmem:[%s1358 + $0x109] sm:$0xff]
      %v1607 = vld [vmem:[%s1358 + $0x111] sm:$0xff]
      %v1608 = vld [vmem:[%s1358 + $0x121] sm:$0xff]
      %v1609 = vld [vmem:[%s1358 + $0x129] sm:$0xff]
      %v1610 = vld [vmem:[%s1358 + $0x139] sm:$0xff]
      %v1611 = vld [vmem:[%s1358 + $0x141] sm:$0xff]
      %v1612 = vld [vmem:[%s1358 + $0x151] sm:$0xff]
      %v1613 = vld [vmem:[%s1358 + $0x159] sm:$0xff]
      %v1614 = vld [vmem:[%s1358 + $0x169] sm:$0xff]
      %v1615 = vld [vmem:[%s1358 + $0x171] sm:$0xff]
      %v1616 = vld [vmem:[%s1358 + $0x2] sm:$0xff]
      %v1617 = vld [vmem:[%s1358 + $0xa] sm:$0xff]
      %v1618 = vld [vmem:[%s1358 + $0x1a] sm:$0xff]
      %v1619 = vld [vmem:[%s1358 + $0x22] sm:$0xff]
      %v1620 = vld [vmem:[%s1358 + $0x32] sm:$0xff]
      %v1621 = vld [vmem:[%s1358 + $0x3a] sm:$0xff]
      %v1622 = vld [vmem:[%s1358 + $0x4a] sm:$0xff]
      %v1623 = vld [vmem:[%s1358 + $0x52] sm:$0xff]
      %v1624 = vld [vmem:[%s1358 + $0x62] sm:$0xff]
      %v1625 = vld [vmem:[%s1358 + $0x6a] sm:$0xff]
      %v1626 = vld [vmem:[%s1358 + $0x7a] sm:$0xff]
      %v1627 = vld [vmem:[%s1358 + $0x82] sm:$0xff]
      %v1628 = vld [vmem:[%s1358 + $0x92] sm:$0xff]
      %v1629 = vld [vmem:[%s1358 + $0x9a] sm:$0xff]
      %v1630 = vld [vmem:[%s1358 + $0xaa] sm:$0xff]
      %v1631 = vld [vmem:[%s1358 + $0xb2] sm:$0xff]
      %v1632 = vld [vmem:[%s1358 + $0xc2] sm:$0xff]
      %v1633 = vld [vmem:[%s1358 + $0xca] sm:$0xff]
      %v1634 = vld [vmem:[%s1358 + $0xda] sm:$0xff]
      %v1635 = vld [vmem:[%s1358 + $0xe2] sm:$0xff]
      %v1636 = vld [vmem:[%s1358 + $0xf2] sm:$0xff]
      %v1637 = vld [vmem:[%s1358 + $0xfa] sm:$0xff]
      %v1638 = vld [vmem:[%s1358 + $0x10a] sm:$0xff]
      %v1639 = vld [vmem:[%s1358 + $0x112] sm:$0xff]
      %v1640 = vld [vmem:[%s1358 + $0x122] sm:$0xff]
      %v1641 = vld [vmem:[%s1358 + $0x12a] sm:$0xff]
      %v1642 = vld [vmem:[%s1358 + $0x13a] sm:$0xff]
      %v1643 = vld [vmem:[%s1358 + $0x142] sm:$0xff]
      %v1644 = vld [vmem:[%s1358 + $0x152] sm:$0xff]
      %v1645 = vld [vmem:[%s1358 + $0x15a] sm:$0xff]
      %v1646 = vld [vmem:[%s1358 + $0x16a] sm:$0xff]
      %v1647 = vld [vmem:[%s1358 + $0x172] sm:$0xff]
      %s1648 = scalar_lea.vmem [#allocation2], 48
      %v1649 = vld [vmem:[%s1648] sm:$0xff]
      %v1650 = vld [vmem:[%s1648 + $0x8] sm:$0xff]
      %v1651 = vld [vmem:[%s1648 + $0x18] sm:$0xff]
      %v1652 = vld [vmem:[%s1648 + $0x20] sm:$0xff]
      %v1653 = vld [vmem:[%s1648 + $0x30] sm:$0xff]
      %v1654 = vld [vmem:[%s1648 + $0x38] sm:$0xff]
      %v1655 = vld [vmem:[%s1648 + $0x48] sm:$0xff]
      %v1656 = vld [vmem:[%s1648 + $0x50] sm:$0xff]
      %v1657 = vld [vmem:[%s1648 + $0x60] sm:$0xff]
      %v1658 = vld [vmem:[%s1648 + $0x68] sm:$0xff]
      %v1659 = vld [vmem:[%s1648 + $0x78] sm:$0xff]
      %v1660 = vld [vmem:[%s1648 + $0x80] sm:$0xff]
      %v1661 = vld [vmem:[%s1648 + $0x90] sm:$0xff]
      %v1662 = vld [vmem:[%s1648 + $0x98] sm:$0xff]
      %v1663 = vld [vmem:[%s1648 + $0xa8] sm:$0xff]
      %v1664 = vld [vmem:[%s1648 + $0xb0] sm:$0xff]
      %v1665 = vld [vmem:[%s1648 + $0xc0] sm:$0xff]
      %v1666 = vld [vmem:[%s1648 + $0xc8] sm:$0xff]
      %v1667 = vld [vmem:[%s1648 + $0xd8] sm:$0xff]
      %v1668 = vld [vmem:[%s1648 + $0xe0] sm:$0xff]
      %v1669 = vld [vmem:[%s1648 + $0xf0] sm:$0xff]
      %v1670 = vld [vmem:[%s1648 + $0xf8] sm:$0xff]
      %v1671 = vld [vmem:[%s1648 + $0x108] sm:$0xff]
      %v1672 = vld [vmem:[%s1648 + $0x110] sm:$0xff]
      %v1673 = vld [vmem:[%s1648 + $0x120] sm:$0xff]
      %v1674 = vld [vmem:[%s1648 + $0x128] sm:$0xff]
      %v1675 = vld [vmem:[%s1648 + $0x138] sm:$0xff]
      %v1676 = vld [vmem:[%s1648 + $0x140] sm:$0xff]
      %v1677 = vld [vmem:[%s1648 + $0x150] sm:$0xff]
      %v1678 = vld [vmem:[%s1648 + $0x158] sm:$0xff]
      %v1679 = vld [vmem:[%s1648 + $0x168] sm:$0xff]
      %v1680 = vld [vmem:[%s1648 + $0x170] sm:$0xff]
      %v1681 = vld [vmem:[%s1648 + $0x1] sm:$0xff]
      %v1682 = vld [vmem:[%s1648 + $0x9] sm:$0xff]
      %v1683 = vld [vmem:[%s1648 + $0x19] sm:$0xff]
      %v1684 = vld [vmem:[%s1648 + $0x21] sm:$0xff]
      %v1685 = vld [vmem:[%s1648 + $0x31] sm:$0xff]
      %v1686 = vld [vmem:[%s1648 + $0x39] sm:$0xff]
      %v1687 = vld [vmem:[%s1648 + $0x49] sm:$0xff]
      %v1688 = vld [vmem:[%s1648 + $0x51] sm:$0xff]
      %v1689 = vld [vmem:[%s1648 + $0x61] sm:$0xff]
      %v1690 = vld [vmem:[%s1648 + $0x69] sm:$0xff]
      %v1691 = vld [vmem:[%s1648 + $0x79] sm:$0xff]
      %v1692 = vld [vmem:[%s1648 + $0x81] sm:$0xff]
      %v1693 = vld [vmem:[%s1648 + $0x91] sm:$0xff]
      %v1694 = vld [vmem:[%s1648 + $0x99] sm:$0xff]
      %v1695 = vld [vmem:[%s1648 + $0xa9] sm:$0xff]
      %v1696 = vld [vmem:[%s1648 + $0xb1] sm:$0xff]
      %v1697 = vld [vmem:[%s1648 + $0xc1] sm:$0xff]
      %v1698 = vld [vmem:[%s1648 + $0xc9] sm:$0xff]
      %v1699 = vld [vmem:[%s1648 + $0xd9] sm:$0xff]
      %v1700 = vld [vmem:[%s1648 + $0xe1] sm:$0xff]
      %v1701 = vld [vmem:[%s1648 + $0xf1] sm:$0xff]
      %v1702 = vld [vmem:[%s1648 + $0xf9] sm:$0xff]
      %v1703 = vld [vmem:[%s1648 + $0x109] sm:$0xff]
      %v1704 = vld [vmem:[%s1648 + $0x111] sm:$0xff]
      %v1705 = vld [vmem:[%s1648 + $0x121] sm:$0xff]
      %v1706 = vld [vmem:[%s1648 + $0x129] sm:$0xff]
      %v1707 = vld [vmem:[%s1648 + $0x139] sm:$0xff]
      %v1708 = vld [vmem:[%s1648 + $0x141] sm:$0xff]
      %v1709 = vld [vmem:[%s1648 + $0x151] sm:$0xff]
      %v1710 = vld [vmem:[%s1648 + $0x159] sm:$0xff]
      %v1711 = vld [vmem:[%s1648 + $0x169] sm:$0xff]
      %v1712 = vld [vmem:[%s1648 + $0x171] sm:$0xff]
      %v1713 = vld [vmem:[%s1648 + $0x2] sm:$0xff]
      %v1714 = vld [vmem:[%s1648 + $0xa] sm:$0xff]
      %v1715 = vld [vmem:[%s1648 + $0x1a] sm:$0xff]
      %v1716 = vld [vmem:[%s1648 + $0x22] sm:$0xff]
      %v1717 = vld [vmem:[%s1648 + $0x32] sm:$0xff]
      %v1718 = vld [vmem:[%s1648 + $0x3a] sm:$0xff]
      %v1719 = vld [vmem:[%s1648 + $0x4a] sm:$0xff]
      %v1720 = vld [vmem:[%s1648 + $0x52] sm:$0xff]
      %v1721 = vld [vmem:[%s1648 + $0x62] sm:$0xff]
      %v1722 = vld [vmem:[%s1648 + $0x6a] sm:$0xff]
      %v1723 = vld [vmem:[%s1648 + $0x7a] sm:$0xff]
      %v1724 = vld [vmem:[%s1648 + $0x82] sm:$0xff]
      %v1725 = vld [vmem:[%s1648 + $0x92] sm:$0xff]
      %v1726 = vld [vmem:[%s1648 + $0x9a] sm:$0xff]
      %v1727 = vld [vmem:[%s1648 + $0xaa] sm:$0xff]
      %v1728 = vld [vmem:[%s1648 + $0xb2] sm:$0xff]
      %v1729 = vld [vmem:[%s1648 + $0xc2] sm:$0xff]
      %v1730 = vld [vmem:[%s1648 + $0xca] sm:$0xff]
      %v1731 = vld [vmem:[%s1648 + $0xda] sm:$0xff]
      %v1732 = vld [vmem:[%s1648 + $0xe2] sm:$0xff]
      %v1733 = vld [vmem:[%s1648 + $0xf2] sm:$0xff]
      %v1734 = vld [vmem:[%s1648 + $0xfa] sm:$0xff]
      %v1735 = vld [vmem:[%s1648 + $0x10a] sm:$0xff]
      %v1736 = vld [vmem:[%s1648 + $0x112] sm:$0xff]
      %v1737 = vld [vmem:[%s1648 + $0x122] sm:$0xff]
      %v1738 = vld [vmem:[%s1648 + $0x12a] sm:$0xff]
      %v1739 = vld [vmem:[%s1648 + $0x13a] sm:$0xff]
      %v1740 = vld [vmem:[%s1648 + $0x142] sm:$0xff]
      %v1741 = vld [vmem:[%s1648 + $0x152] sm:$0xff]
      %v1742 = vld [vmem:[%s1648 + $0x15a] sm:$0xff]
      %v1743 = vld [vmem:[%s1648 + $0x16a] sm:$0xff]
      %v1744 = vld [vmem:[%s1648 + $0x172] sm:$0xff]
      %1777 = vrot.lane.b32.xlu0 %v1488, 4
      %v1778 = vpop.permute.xlu0 %1777
      %1779 = vrot.lane.b32.xlu0 %v1489, 4
      %v1780 = vpop.permute.xlu0 %1779
      %1781 = vrot.lane.b32.xlu0 %v1490, 4
      %v1782 = vpop.permute.xlu0 %1781
      %1783 = vrot.lane.b32.xlu0 %v1491, 4
      %v1784 = vpop.permute.xlu0 %1783
      %1785 = vrot.lane.b32.xlu0 %v1492, 4
      %v1786 = vpop.permute.xlu0 %1785
      %1787 = vrot.lane.b32.xlu0 %v1493, 4
      %v1788 = vpop.permute.xlu0 %1787
      %1789 = vrot.lane.b32.xlu0 %v1494, 4
      %v1790 = vpop.permute.xlu0 %1789
      %1791 = vrot.lane.b32.xlu0 %v1495, 4
      %v1792 = vpop.permute.xlu0 %1791
      %1793 = vrot.lane.b32.xlu0 %v1496, 4
      %v1794 = vpop.permute.xlu0 %1793
      %1795 = vrot.lane.b32.xlu0 %v1497, 4
      %v1796 = vpop.permute.xlu0 %1795
      %1797 = vrot.lane.b32.xlu0 %v1498, 4
      %v1798 = vpop.permute.xlu0 %1797
      %1799 = vrot.lane.b32.xlu0 %v1499, 4
      %v1800 = vpop.permute.xlu0 %1799
      %1801 = vrot.lane.b32.xlu0 %v1500, 4
      %v1802 = vpop.permute.xlu0 %1801
      %1803 = vrot.lane.b32.xlu0 %v1501, 4
      %v1804 = vpop.permute.xlu0 %1803
      %1805 = vrot.lane.b32.xlu0 %v1502, 4
      %v1806 = vpop.permute.xlu0 %1805
      %1807 = vrot.lane.b32.xlu0 %v1503, 4
      %v1808 = vpop.permute.xlu0 %1807
      %1809 = vrot.lane.b32.xlu0 %v1504, 4
      %v1810 = vpop.permute.xlu0 %1809
      %1811 = vrot.lane.b32.xlu0 %v1505, 4
      %v1812 = vpop.permute.xlu0 %1811
      %1813 = vrot.lane.b32.xlu0 %v1506, 4
      %v1814 = vpop.permute.xlu0 %1813
      %1815 = vrot.lane.b32.xlu0 %v1507, 4
      %v1816 = vpop.permute.xlu0 %1815
      %1817 = vrot.lane.b32.xlu0 %v1508, 4
      %v1818 = vpop.permute.xlu0 %1817
      %1819 = vrot.lane.b32.xlu0 %v1509, 4
      %v1820 = vpop.permute.xlu0 %1819
      %1821 = vrot.lane.b32.xlu0 %v1510, 4
      %v1822 = vpop.permute.xlu0 %1821
      %1823 = vrot.lane.b32.xlu0 %v1511, 4
      %v1824 = vpop.permute.xlu0 %1823
      %1825 = vrot.lane.b32.xlu0 %v1512, 4
      %v1826 = vpop.permute.xlu0 %1825
      %1827 = vrot.lane.b32.xlu0 %v1513, 4
      %v1828 = vpop.permute.xlu0 %1827
      %1829 = vrot.lane.b32.xlu0 %v1514, 4
      %v1830 = vpop.permute.xlu0 %1829
      %1831 = vrot.lane.b32.xlu0 %v1515, 4
      %v1832 = vpop.permute.xlu0 %1831
      %1833 = vrot.lane.b32.xlu0 %v1516, 4
      %v1834 = vpop.permute.xlu0 %1833
      %1835 = vrot.lane.b32.xlu0 %v1517, 4
      %v1836 = vpop.permute.xlu0 %1835
      %1837 = vrot.lane.b32.xlu0 %v1518, 4
      %v1838 = vpop.permute.xlu0 %1837
      %1839 = vrot.lane.b32.xlu0 %v1519, 4
      %v1840 = vpop.permute.xlu0 %1839
      %1905 = vrot.lane.b32.xlu0 %v1520, 8
      %v1906 = vpop.permute.xlu0 %1905
      %1907 = vrot.lane.b32.xlu0 %v1521, 8
      %v1908 = vpop.permute.xlu0 %1907
      %1909 = vrot.lane.b32.xlu0 %v1522, 8
      %v1910 = vpop.permute.xlu0 %1909
      %1911 = vrot.lane.b32.xlu0 %v1523, 8
      %v1912 = vpop.permute.xlu0 %1911
      %1913 = vrot.lane.b32.xlu0 %v1524, 8
      %v1914 = vpop.permute.xlu0 %1913
      %1915 = vrot.lane.b32.xlu0 %v1525, 8
      %v1916 = vpop.permute.xlu0 %1915
      %1917 = vrot.lane.b32.xlu0 %v1526, 8
      %v1918 = vpop.permute.xlu0 %1917
      %1919 = vrot.lane.b32.xlu0 %v1527, 8
      %v1920 = vpop.permute.xlu0 %1919
      %1921 = vrot.lane.b32.xlu0 %v1528, 8
      %v1922 = vpop.permute.xlu0 %1921
      %1923 = vrot.lane.b32.xlu0 %v1529, 8
      %v1924 = vpop.permute.xlu0 %1923
      %1925 = vrot.lane.b32.xlu0 %v1530, 8
      %v1926 = vpop.permute.xlu0 %1925
      %1927 = vrot.lane.b32.xlu0 %v1531, 8
      %v1928 = vpop.permute.xlu0 %1927
      %1929 = vrot.lane.b32.xlu0 %v1532, 8
      %v1930 = vpop.permute.xlu0 %1929
      %1931 = vrot.lane.b32.xlu0 %v1533, 8
      %v1932 = vpop.permute.xlu0 %1931
      %1933 = vrot.lane.b32.xlu0 %v1534, 8
      %v1934 = vpop.permute.xlu0 %1933
      %1935 = vrot.lane.b32.xlu0 %v1535, 8
      %v1936 = vpop.permute.xlu0 %1935
      %1937 = vrot.lane.b32.xlu0 %v1536, 8
      %v1938 = vpop.permute.xlu0 %1937
      %1939 = vrot.lane.b32.xlu0 %v1537, 8
      %v1940 = vpop.permute.xlu0 %1939
      %1941 = vrot.lane.b32.xlu0 %v1538, 8
      %v1942 = vpop.permute.xlu0 %1941
      %1943 = vrot.lane.b32.xlu0 %v1539, 8
      %v1944 = vpop.permute.xlu0 %1943
      %1945 = vrot.lane.b32.xlu0 %v1540, 8
      %v1946 = vpop.permute.xlu0 %1945
      %1947 = vrot.lane.b32.xlu0 %v1541, 8
      %v1948 = vpop.permute.xlu0 %1947
      %1949 = vrot.lane.b32.xlu0 %v1542, 8
      %v1950 = vpop.permute.xlu0 %1949
      %1951 = vrot.lane.b32.xlu0 %v1543, 8
      %v1952 = vpop.permute.xlu0 %1951
      %1953 = vrot.lane.b32.xlu0 %v1544, 8
      %v1954 = vpop.permute.xlu0 %1953
      %1955 = vrot.lane.b32.xlu0 %v1545, 8
      %v1956 = vpop.permute.xlu0 %1955
      %1957 = vrot.lane.b32.xlu0 %v1546, 8
      %v1958 = vpop.permute.xlu0 %1957
      %1959 = vrot.lane.b32.xlu0 %v1547, 8
      %v1960 = vpop.permute.xlu0 %1959
      %1961 = vrot.lane.b32.xlu0 %v1548, 8
      %v1962 = vpop.permute.xlu0 %1961
      %1963 = vrot.lane.b32.xlu0 %v1549, 8
      %v1964 = vpop.permute.xlu0 %1963
      %1965 = vrot.lane.b32.xlu0 %v1550, 8
      %v1966 = vpop.permute.xlu0 %1965
      %1967 = vrot.lane.b32.xlu0 %v1551, 8
      %v1968 = vpop.permute.xlu0 %1967
      %2033 = vrot.lane.b32.xlu0 %v1552, 12
      %v2034 = vpop.permute.xlu0 %2033
      %2035 = vrot.lane.b32.xlu0 %v1553, 12
      %v2036 = vpop.permute.xlu0 %2035
      %2037 = vrot.lane.b32.xlu0 %v1554, 12
      %v2038 = vpop.permute.xlu0 %2037
      %2039 = vrot.lane.b32.xlu0 %v1555, 12
      %v2040 = vpop.permute.xlu0 %2039
      %2041 = vrot.lane.b32.xlu0 %v1556, 12
      %v2042 = vpop.permute.xlu0 %2041
      %2043 = vrot.lane.b32.xlu0 %v1557, 12
      %v2044 = vpop.permute.xlu0 %2043
      %2045 = vrot.lane.b32.xlu0 %v1558, 12
      %v2046 = vpop.permute.xlu0 %2045
      %2047 = vrot.lane.b32.xlu0 %v1559, 12
      %v2048 = vpop.permute.xlu0 %2047
      %2049 = vrot.lane.b32.xlu0 %v1560, 12
      %v2050 = vpop.permute.xlu0 %2049
      %2051 = vrot.lane.b32.xlu0 %v1561, 12
      %v2052 = vpop.permute.xlu0 %2051
      %2053 = vrot.lane.b32.xlu0 %v1562, 12
      %v2054 = vpop.permute.xlu0 %2053
      %2055 = vrot.lane.b32.xlu0 %v1563, 12
      %v2056 = vpop.permute.xlu0 %2055
      %2057 = vrot.lane.b32.xlu0 %v1564, 12
      %v2058 = vpop.permute.xlu0 %2057
      %2059 = vrot.lane.b32.xlu0 %v1565, 12
      %v2060 = vpop.permute.xlu0 %2059
      %2061 = vrot.lane.b32.xlu0 %v1566, 12
      %v2062 = vpop.permute.xlu0 %2061
      %2063 = vrot.lane.b32.xlu0 %v1567, 12
      %v2064 = vpop.permute.xlu0 %2063
      %2065 = vrot.lane.b32.xlu0 %v1568, 12
      %v2066 = vpop.permute.xlu0 %2065
      %2067 = vrot.lane.b32.xlu0 %v1569, 12
      %v2068 = vpop.permute.xlu0 %2067
      %2069 = vrot.lane.b32.xlu0 %v1570, 12
      %v2070 = vpop.permute.xlu0 %2069
      %2071 = vrot.lane.b32.xlu0 %v1571, 12
      %v2072 = vpop.permute.xlu0 %2071
      %2073 = vrot.lane.b32.xlu0 %v1572, 12
      %v2074 = vpop.permute.xlu0 %2073
      %2075 = vrot.lane.b32.xlu0 %v1573, 12
      %v2076 = vpop.permute.xlu0 %2075
      %2077 = vrot.lane.b32.xlu0 %v1574, 12
      %v2078 = vpop.permute.xlu0 %2077
      %2079 = vrot.lane.b32.xlu0 %v1575, 12
      %v2080 = vpop.permute.xlu0 %2079
      %2081 = vrot.lane.b32.xlu0 %v1576, 12
      %v2082 = vpop.permute.xlu0 %2081
      %2083 = vrot.lane.b32.xlu0 %v1577, 12
      %v2084 = vpop.permute.xlu0 %2083
      %2085 = vrot.lane.b32.xlu0 %v1578, 12
      %v2086 = vpop.permute.xlu0 %2085
      %2087 = vrot.lane.b32.xlu0 %v1579, 12
      %v2088 = vpop.permute.xlu0 %2087
      %2089 = vrot.lane.b32.xlu0 %v1580, 12
      %v2090 = vpop.permute.xlu0 %2089
      %2091 = vrot.lane.b32.xlu0 %v1581, 12
      %v2092 = vpop.permute.xlu0 %2091
      %2093 = vrot.lane.b32.xlu0 %v1582, 12
      %v2094 = vpop.permute.xlu0 %2093
      %2095 = vrot.lane.b32.xlu0 %v1583, 12
      %v2096 = vpop.permute.xlu0 %2095
      %2161 = vrot.lane.b32.xlu0 %v1584, 16
      %v2162 = vpop.permute.xlu0 %2161
      %2163 = vrot.lane.b32.xlu0 %v1585, 16
      %v2164 = vpop.permute.xlu0 %2163
      %2165 = vrot.lane.b32.xlu0 %v1586, 16
      %v2166 = vpop.permute.xlu0 %2165
      %2167 = vrot.lane.b32.xlu0 %v1587, 16
      %v2168 = vpop.permute.xlu0 %2167
      %2169 = vrot.lane.b32.xlu0 %v1588, 16
      %v2170 = vpop.permute.xlu0 %2169
      %2171 = vrot.lane.b32.xlu0 %v1589, 16
      %v2172 = vpop.permute.xlu0 %2171
      %2173 = vrot.lane.b32.xlu0 %v1590, 16
      %v2174 = vpop.permute.xlu0 %2173
      %2175 = vrot.lane.b32.xlu0 %v1591, 16
      %v2176 = vpop.permute.xlu0 %2175
      %2177 = vrot.lane.b32.xlu0 %v1592, 16
      %v2178 = vpop.permute.xlu0 %2177
      %2179 = vrot.lane.b32.xlu0 %v1593, 16
      %v2180 = vpop.permute.xlu0 %2179
      %2181 = vrot.lane.b32.xlu0 %v1594, 16
      %v2182 = vpop.permute.xlu0 %2181
      %2183 = vrot.lane.b32.xlu0 %v1595, 16
      %v2184 = vpop.permute.xlu0 %2183
      %2185 = vrot.lane.b32.xlu0 %v1596, 16
      %v2186 = vpop.permute.xlu0 %2185
      %2187 = vrot.lane.b32.xlu0 %v1597, 16
      %v2188 = vpop.permute.xlu0 %2187
      %2189 = vrot.lane.b32.xlu0 %v1598, 16
      %v2190 = vpop.permute.xlu0 %2189
      %2191 = vrot.lane.b32.xlu0 %v1599, 16
      %v2192 = vpop.permute.xlu0 %2191
      %2193 = vrot.lane.b32.xlu0 %v1600, 16
      %v2194 = vpop.permute.xlu0 %2193
      %2195 = vrot.lane.b32.xlu0 %v1601, 16
      %v2196 = vpop.permute.xlu0 %2195
      %2197 = vrot.lane.b32.xlu0 %v1602, 16
      %v2198 = vpop.permute.xlu0 %2197
      %2199 = vrot.lane.b32.xlu0 %v1603, 16
      %v2200 = vpop.permute.xlu0 %2199
      %2201 = vrot.lane.b32.xlu0 %v1604, 16
      %v2202 = vpop.permute.xlu0 %2201
      %2203 = vrot.lane.b32.xlu0 %v1605, 16
      %v2204 = vpop.permute.xlu0 %2203
      %2205 = vrot.lane.b32.xlu0 %v1606, 16
      %v2206 = vpop.permute.xlu0 %2205
      %2207 = vrot.lane.b32.xlu0 %v1607, 16
      %v2208 = vpop.permute.xlu0 %2207
      %2209 = vrot.lane.b32.xlu0 %v1608, 16
      %v2210 = vpop.permute.xlu0 %2209
      %2211 = vrot.lane.b32.xlu0 %v1609, 16
      %v2212 = vpop.permute.xlu0 %2211
      %2213 = vrot.lane.b32.xlu0 %v1610, 16
      %v2214 = vpop.permute.xlu0 %2213
      %2215 = vrot.lane.b32.xlu0 %v1611, 16
      %v2216 = vpop.permute.xlu0 %2215
      %2217 = vrot.lane.b32.xlu0 %v1612, 16
      %v2218 = vpop.permute.xlu0 %2217
      %2219 = vrot.lane.b32.xlu0 %v1613, 16
      %v2220 = vpop.permute.xlu0 %2219
      %2221 = vrot.lane.b32.xlu0 %v1614, 16
      %v2222 = vpop.permute.xlu0 %2221
      %2223 = vrot.lane.b32.xlu0 %v1615, 16
      %v2224 = vpop.permute.xlu0 %2223
      %2289 = vrot.lane.b32.xlu0 %v1616, 20
      %v2290 = vpop.permute.xlu0 %2289
      %2291 = vrot.lane.b32.xlu0 %v1617, 20
      %v2292 = vpop.permute.xlu0 %2291
      %2293 = vrot.lane.b32.xlu0 %v1618, 20
      %v2294 = vpop.permute.xlu0 %2293
      %2295 = vrot.lane.b32.xlu0 %v1619, 20
      %v2296 = vpop.permute.xlu0 %2295
      %2297 = vrot.lane.b32.xlu0 %v1620, 20
      %v2298 = vpop.permute.xlu0 %2297
      %2299 = vrot.lane.b32.xlu0 %v1621, 20
      %v2300 = vpop.permute.xlu0 %2299
      %2301 = vrot.lane.b32.xlu0 %v1622, 20
      %v2302 = vpop.permute.xlu0 %2301
      %2303 = vrot.lane.b32.xlu0 %v1623, 20
      %v2304 = vpop.permute.xlu0 %2303
      %2305 = vrot.lane.b32.xlu0 %v1624, 20
      %v2306 = vpop.permute.xlu0 %2305
      %2307 = vrot.lane.b32.xlu0 %v1625, 20
      %v2308 = vpop.permute.xlu0 %2307
      %2309 = vrot.lane.b32.xlu0 %v1626, 20
      %v2310 = vpop.permute.xlu0 %2309
      %2311 = vrot.lane.b32.xlu0 %v1627, 20
      %v2312 = vpop.permute.xlu0 %2311
      %2313 = vrot.lane.b32.xlu0 %v1628, 20
      %v2314 = vpop.permute.xlu0 %2313
      %2315 = vrot.lane.b32.xlu0 %v1629, 20
      %v2316 = vpop.permute.xlu0 %2315
      %2317 = vrot.lane.b32.xlu0 %v1630, 20
      %v2318 = vpop.permute.xlu0 %2317
      %2319 = vrot.lane.b32.xlu0 %v1631, 20
      %v2320 = vpop.permute.xlu0 %2319
      %2321 = vrot.lane.b32.xlu0 %v1632, 20
      %v2322 = vpop.permute.xlu0 %2321
      %2323 = vrot.lane.b32.xlu0 %v1633, 20
      %v2324 = vpop.permute.xlu0 %2323
      %2325 = vrot.lane.b32.xlu0 %v1634, 20
      %v2326 = vpop.permute.xlu0 %2325
      %2327 = vrot.lane.b32.xlu0 %v1635, 20
      %v2328 = vpop.permute.xlu0 %2327
      %2329 = vrot.lane.b32.xlu0 %v1636, 20
      %v2330 = vpop.permute.xlu0 %2329
      %2331 = vrot.lane.b32.xlu0 %v1637, 20
      %v2332 = vpop.permute.xlu0 %2331
      %2333 = vrot.lane.b32.xlu0 %v1638, 20
      %v2334 = vpop.permute.xlu0 %2333
      %2335 = vrot.lane.b32.xlu0 %v1639, 20
      %v2336 = vpop.permute.xlu0 %2335
      %2337 = vrot.lane.b32.xlu0 %v1640, 20
      %v2338 = vpop.permute.xlu0 %2337
      %2339 = vrot.lane.b32.xlu0 %v1641, 20
      %v2340 = vpop.permute.xlu0 %2339
      %2341 = vrot.lane.b32.xlu0 %v1642, 20
      %v2342 = vpop.permute.xlu0 %2341
      %2343 = vrot.lane.b32.xlu0 %v1643, 20
      %v2344 = vpop.permute.xlu0 %2343
      %2345 = vrot.lane.b32.xlu0 %v1644, 20
      %v2346 = vpop.permute.xlu0 %2345
      %2347 = vrot.lane.b32.xlu0 %v1645, 20
      %v2348 = vpop.permute.xlu0 %2347
      %2349 = vrot.lane.b32.xlu0 %v1646, 20
      %v2350 = vpop.permute.xlu0 %2349
      %2351 = vrot.lane.b32.xlu0 %v1647, 20
      %v2352 = vpop.permute.xlu0 %2351
      %2417 = vrot.lane.b32.xlu0 %v1649, 24
      %v2418 = vpop.permute.xlu0 %2417
      %2419 = vrot.lane.b32.xlu0 %v1650, 24
      %v2420 = vpop.permute.xlu0 %2419
      %2421 = vrot.lane.b32.xlu0 %v1651, 24
      %v2422 = vpop.permute.xlu0 %2421
      %2423 = vrot.lane.b32.xlu0 %v1652, 24
      %v2424 = vpop.permute.xlu0 %2423
      %2425 = vrot.lane.b32.xlu0 %v1653, 24
      %v2426 = vpop.permute.xlu0 %2425
      %2427 = vrot.lane.b32.xlu0 %v1654, 24
      %v2428 = vpop.permute.xlu0 %2427
      %2429 = vrot.lane.b32.xlu0 %v1655, 24
      %v2430 = vpop.permute.xlu0 %2429
      %2431 = vrot.lane.b32.xlu0 %v1656, 24
      %v2432 = vpop.permute.xlu0 %2431
      %2433 = vrot.lane.b32.xlu0 %v1657, 24
      %v2434 = vpop.permute.xlu0 %2433
      %2435 = vrot.lane.b32.xlu0 %v1658, 24
      %v2436 = vpop.permute.xlu0 %2435
      %2437 = vrot.lane.b32.xlu0 %v1659, 24
      %v2438 = vpop.permute.xlu0 %2437
      %2439 = vrot.lane.b32.xlu0 %v1660, 24
      %v2440 = vpop.permute.xlu0 %2439
      %2441 = vrot.lane.b32.xlu0 %v1661, 24
      %v2442 = vpop.permute.xlu0 %2441
      %2443 = vrot.lane.b32.xlu0 %v1662, 24
      %v2444 = vpop.permute.xlu0 %2443
      %2445 = vrot.lane.b32.xlu0 %v1663, 24
      %v2446 = vpop.permute.xlu0 %2445
      %2447 = vrot.lane.b32.xlu0 %v1664, 24
      %v2448 = vpop.permute.xlu0 %2447
      %2449 = vrot.lane.b32.xlu0 %v1665, 24
      %v2450 = vpop.permute.xlu0 %2449
      %2451 = vrot.lane.b32.xlu0 %v1666, 24
      %v2452 = vpop.permute.xlu0 %2451
      %2453 = vrot.lane.b32.xlu0 %v1667, 24
      %v2454 = vpop.permute.xlu0 %2453
      %2455 = vrot.lane.b32.xlu0 %v1668, 24
      %v2456 = vpop.permute.xlu0 %2455
      %2457 = vrot.lane.b32.xlu0 %v1669, 24
      %v2458 = vpop.permute.xlu0 %2457
      %2459 = vrot.lane.b32.xlu0 %v1670, 24
      %v2460 = vpop.permute.xlu0 %2459
      %2461 = vrot.lane.b32.xlu0 %v1671, 24
      %v2462 = vpop.permute.xlu0 %2461
      %2463 = vrot.lane.b32.xlu0 %v1672, 24
      %v2464 = vpop.permute.xlu0 %2463
      %2465 = vrot.lane.b32.xlu0 %v1673, 24
      %v2466 = vpop.permute.xlu0 %2465
      %2467 = vrot.lane.b32.xlu0 %v1674, 24
      %v2468 = vpop.permute.xlu0 %2467
      %2469 = vrot.lane.b32.xlu0 %v1675, 24
      %v2470 = vpop.permute.xlu0 %2469
      %2471 = vrot.lane.b32.xlu0 %v1676, 24
      %v2472 = vpop.permute.xlu0 %2471
      %2473 = vrot.lane.b32.xlu0 %v1677, 24
      %v2474 = vpop.permute.xlu0 %2473
      %2475 = vrot.lane.b32.xlu0 %v1678, 24
      %v2476 = vpop.permute.xlu0 %2475
      %2477 = vrot.lane.b32.xlu0 %v1679, 24
      %v2478 = vpop.permute.xlu0 %2477
      %2479 = vrot.lane.b32.xlu0 %v1680, 24
      %v2480 = vpop.permute.xlu0 %2479
      %2545 = vrot.lane.b32.xlu0 %v1681, 28
      %v2546 = vpop.permute.xlu0 %2545
      %2547 = vrot.lane.b32.xlu0 %v1682, 28
      %v2548 = vpop.permute.xlu0 %2547
      %2549 = vrot.lane.b32.xlu0 %v1683, 28
      %v2550 = vpop.permute.xlu0 %2549
      %2551 = vrot.lane.b32.xlu0 %v1684, 28
      %v2552 = vpop.permute.xlu0 %2551
      %2553 = vrot.lane.b32.xlu0 %v1685, 28
      %v2554 = vpop.permute.xlu0 %2553
      %2555 = vrot.lane.b32.xlu0 %v1686, 28
      %v2556 = vpop.permute.xlu0 %2555
      %2557 = vrot.lane.b32.xlu0 %v1687, 28
      %v2558 = vpop.permute.xlu0 %2557
      %2559 = vrot.lane.b32.xlu0 %v1688, 28
      %v2560 = vpop.permute.xlu0 %2559
      %2561 = vrot.lane.b32.xlu0 %v1689, 28
      %v2562 = vpop.permute.xlu0 %2561
      %2563 = vrot.lane.b32.xlu0 %v1690, 28
      %v2564 = vpop.permute.xlu0 %2563
      %2565 = vrot.lane.b32.xlu0 %v1691, 28
      %v2566 = vpop.permute.xlu0 %2565
      %2567 = vrot.lane.b32.xlu0 %v1692, 28
      %v2568 = vpop.permute.xlu0 %2567
      %2569 = vrot.lane.b32.xlu0 %v1693, 28
      %v2570 = vpop.permute.xlu0 %2569
      %2571 = vrot.lane.b32.xlu0 %v1694, 28
      %v2572 = vpop.permute.xlu0 %2571
      %2573 = vrot.lane.b32.xlu0 %v1695, 28
      %v2574 = vpop.permute.xlu0 %2573
      %2575 = vrot.lane.b32.xlu0 %v1696, 28
      %v2576 = vpop.permute.xlu0 %2575
      %2577 = vrot.lane.b32.xlu0 %v1697, 28
      %v2578 = vpop.permute.xlu0 %2577
      %2579 = vrot.lane.b32.xlu0 %v1698, 28
      %v2580 = vpop.permute.xlu0 %2579
      %2581 = vrot.lane.b32.xlu0 %v1699, 28
      %v2582 = vpop.permute.xlu0 %2581
      %2583 = vrot.lane.b32.xlu0 %v1700, 28
      %v2584 = vpop.permute.xlu0 %2583
      %2585 = vrot.lane.b32.xlu0 %v1701, 28
      %v2586 = vpop.permute.xlu0 %2585
      %2587 = vrot.lane.b32.xlu0 %v1702, 28
      %v2588 = vpop.permute.xlu0 %2587
      %2589 = vrot.lane.b32.xlu0 %v1703, 28
      %v2590 = vpop.permute.xlu0 %2589
      %2591 = vrot.lane.b32.xlu0 %v1704, 28
      %v2592 = vpop.permute.xlu0 %2591
      %2593 = vrot.lane.b32.xlu0 %v1705, 28
      %v2594 = vpop.permute.xlu0 %2593
      %2595 = vrot.lane.b32.xlu0 %v1706, 28
      %v2596 = vpop.permute.xlu0 %2595
      %2597 = vrot.lane.b32.xlu0 %v1707, 28
      %v2598 = vpop.permute.xlu0 %2597
      %2599 = vrot.lane.b32.xlu0 %v1708, 28
      %v2600 = vpop.permute.xlu0 %2599
      %2601 = vrot.lane.b32.xlu0 %v1709, 28
      %v2602 = vpop.permute.xlu0 %2601
      %2603 = vrot.lane.b32.xlu0 %v1710, 28
      %v2604 = vpop.permute.xlu0 %2603
      %2605 = vrot.lane.b32.xlu0 %v1711, 28
      %v2606 = vpop.permute.xlu0 %2605
      %2607 = vrot.lane.b32.xlu0 %v1712, 28
      %v2608 = vpop.permute.xlu0 %2607
      %2673 = vrot.lane.b32.xlu0 %v1713, 32
      %v2674 = vpop.permute.xlu0 %2673
      %2675 = vrot.lane.b32.xlu0 %v1714, 32
      %v2676 = vpop.permute.xlu0 %2675
      %2677 = vrot.lane.b32.xlu0 %v1715, 32
      %v2678 = vpop.permute.xlu0 %2677
      %2679 = vrot.lane.b32.xlu0 %v1716, 32
      %v2680 = vpop.permute.xlu0 %2679
      %2681 = vrot.lane.b32.xlu0 %v1717, 32
      %v2682 = vpop.permute.xlu0 %2681
      %2683 = vrot.lane.b32.xlu0 %v1718, 32
      %v2684 = vpop.permute.xlu0 %2683
      %2685 = vrot.lane.b32.xlu0 %v1719, 32
      %v2686 = vpop.permute.xlu0 %2685
      %2687 = vrot.lane.b32.xlu0 %v1720, 32
      %v2688 = vpop.permute.xlu0 %2687
      %2689 = vrot.lane.b32.xlu0 %v1721, 32
      %v2690 = vpop.permute.xlu0 %2689
      %2691 = vrot.lane.b32.xlu0 %v1722, 32
      %v2692 = vpop.permute.xlu0 %2691
      %2693 = vrot.lane.b32.xlu0 %v1723, 32
      %v2694 = vpop.permute.xlu0 %2693
      %2695 = vrot.lane.b32.xlu0 %v1724, 32
      %v2696 = vpop.permute.xlu0 %2695
      %2697 = vrot.lane.b32.xlu0 %v1725, 32
      %v2698 = vpop.permute.xlu0 %2697
      %2699 = vrot.lane.b32.xlu0 %v1726, 32
      %v2700 = vpop.permute.xlu0 %2699
      %2701 = vrot.lane.b32.xlu0 %v1727, 32
      %v2702 = vpop.permute.xlu0 %2701
      %2703 = vrot.lane.b32.xlu0 %v1728, 32
      %v2704 = vpop.permute.xlu0 %2703
      %2705 = vrot.lane.b32.xlu0 %v1729, 32
      %v2706 = vpop.permute.xlu0 %2705
      %2707 = vrot.lane.b32.xlu0 %v1730, 32
      %v2708 = vpop.permute.xlu0 %2707
      %2709 = vrot.lane.b32.xlu0 %v1731, 32
      %v2710 = vpop.permute.xlu0 %2709
      %2711 = vrot.lane.b32.xlu0 %v1732, 32
      %v2712 = vpop.permute.xlu0 %2711
      %2713 = vrot.lane.b32.xlu0 %v1733, 32
      %v2714 = vpop.permute.xlu0 %2713
      %2715 = vrot.lane.b32.xlu0 %v1734, 32
      %v2716 = vpop.permute.xlu0 %2715
      %2717 = vrot.lane.b32.xlu0 %v1735, 32
      %v2718 = vpop.permute.xlu0 %2717
      %2719 = vrot.lane.b32.xlu0 %v1736, 32
      %v2720 = vpop.permute.xlu0 %2719
      %2721 = vrot.lane.b32.xlu0 %v1737, 32
      %v2722 = vpop.permute.xlu0 %2721
      %2723 = vrot.lane.b32.xlu0 %v1738, 32
      %v2724 = vpop.permute.xlu0 %2723
      %2725 = vrot.lane.b32.xlu0 %v1739, 32
      %v2726 = vpop.permute.xlu0 %2725
      %2727 = vrot.lane.b32.xlu0 %v1740, 32
      %v2728 = vpop.permute.xlu0 %2727
      %2729 = vrot.lane.b32.xlu0 %v1741, 32
      %v2730 = vpop.permute.xlu0 %2729
      %2731 = vrot.lane.b32.xlu0 %v1742, 32
      %v2732 = vpop.permute.xlu0 %2731
      %2733 = vrot.lane.b32.xlu0 %v1743, 32
      %v2734 = vpop.permute.xlu0 %2733
      %2735 = vrot.lane.b32.xlu0 %v1744, 32
      %v2736 = vpop.permute.xlu0 %2735
      %v2769 = vsel %vm1049, %v1456, %v1778
      %v2770 = vsel %vm1049, %v1457, %v1780
      %v2771 = vsel %vm1049, %v1458, %v1782
      %v2772 = vsel %vm1049, %v1459, %v1784
      %v2773 = vsel %vm1049, %v1460, %v1786
      %v2774 = vsel %vm1049, %v1461, %v1788
      %v2775 = vsel %vm1049, %v1462, %v1790
      %v2776 = vsel %vm1049, %v1463, %v1792
      %v2777 = vsel %vm1049, %v1464, %v1794
      %v2778 = vsel %vm1049, %v1465, %v1796
      %v2779 = vsel %vm1049, %v1466, %v1798
      %v2780 = vsel %vm1049, %v1467, %v1800
      %v2781 = vsel %vm1049, %v1468, %v1802
      %v2782 = vsel %vm1049, %v1469, %v1804
      %v2783 = vsel %vm1049, %v1470, %v1806
      %v2784 = vsel %vm1049, %v1471, %v1808
      %v2785 = vsel %vm1049, %v1472, %v1810
      %v2786 = vsel %vm1049, %v1473, %v1812
      %v2787 = vsel %vm1049, %v1474, %v1814
      %v2788 = vsel %vm1049, %v1475, %v1816
      %v2789 = vsel %vm1049, %v1476, %v1818
      %v2790 = vsel %vm1049, %v1477, %v1820
      %v2791 = vsel %vm1049, %v1478, %v1822
      %v2792 = vsel %vm1049, %v1479, %v1824
      %v2793 = vsel %vm1049, %v1480, %v1826
      %v2794 = vsel %vm1049, %v1481, %v1828
      %v2795 = vsel %vm1049, %v1482, %v1830
      %v2796 = vsel %vm1049, %v1483, %v1832
      %v2797 = vsel %vm1049, %v1484, %v1834
      %v2798 = vsel %vm1049, %v1485, %v1836
      %v2799 = vsel %vm1049, %v1486, %v1838
      %v2800 = vsel %vm1049, %v1487, %v1840
      %v2801 = vsel %vm350, %v2769, %v1906
      %v2802 = vsel %vm350, %v2770, %v1908
      %v2803 = vsel %vm350, %v2771, %v1910
      %v2804 = vsel %vm350, %v2772, %v1912
      %v2805 = vsel %vm350, %v2773, %v1914
      %v2806 = vsel %vm350, %v2774, %v1916
      %v2807 = vsel %vm350, %v2775, %v1918
      %v2808 = vsel %vm350, %v2776, %v1920
      %v2809 = vsel %vm350, %v2777, %v1922
      %v2810 = vsel %vm350, %v2778, %v1924
      %v2811 = vsel %vm350, %v2779, %v1926
      %v2812 = vsel %vm350, %v2780, %v1928
      %v2813 = vsel %vm350, %v2781, %v1930
      %v2814 = vsel %vm350, %v2782, %v1932
      %v2815 = vsel %vm350, %v2783, %v1934
      %v2816 = vsel %vm350, %v2784, %v1936
      %v2817 = vsel %vm350, %v2785, %v1938
      %v2818 = vsel %vm350, %v2786, %v1940
      %v2819 = vsel %vm350, %v2787, %v1942
      %v2820 = vsel %vm350, %v2788, %v1944
      %v2821 = vsel %vm350, %v2789, %v1946
      %v2822 = vsel %vm350, %v2790, %v1948
      %v2823 = vsel %vm350, %v2791, %v1950
      %v2824 = vsel %vm350, %v2792, %v1952
      %v2825 = vsel %vm350, %v2793, %v1954
      %v2826 = vsel %vm350, %v2794, %v1956
      %v2827 = vsel %vm350, %v2795, %v1958
      %v2828 = vsel %vm350, %v2796, %v1960
      %v2829 = vsel %vm350, %v2797, %v1962
      %v2830 = vsel %vm350, %v2798, %v1964
      %v2831 = vsel %vm350, %v2799, %v1966
      %v2832 = vsel %vm350, %v2800, %v1968
      %vm2833 = vcmask 97280
      %v2834 = vsel %vm2833, %v2801, %v2034
      %v2835 = vsel %vm2833, %v2802, %v2036
      %v2836 = vsel %vm2833, %v2803, %v2038
      %v2837 = vsel %vm2833, %v2804, %v2040
      %v2838 = vsel %vm2833, %v2805, %v2042
      %v2839 = vsel %vm2833, %v2806, %v2044
      %v2840 = vsel %vm2833, %v2807, %v2046
      %v2841 = vsel %vm2833, %v2808, %v2048
      %v2842 = vsel %vm2833, %v2809, %v2050
      %v2843 = vsel %vm2833, %v2810, %v2052
      %v2844 = vsel %vm2833, %v2811, %v2054
      %v2845 = vsel %vm2833, %v2812, %v2056
      %v2846 = vsel %vm2833, %v2813, %v2058
      %v2847 = vsel %vm2833, %v2814, %v2060
      %v2848 = vsel %vm2833, %v2815, %v2062
      %v2849 = vsel %vm2833, %v2816, %v2064
      %v2850 = vsel %vm2833, %v2817, %v2066
      %v2851 = vsel %vm2833, %v2818, %v2068
      %v2852 = vsel %vm2833, %v2819, %v2070
      %v2853 = vsel %vm2833, %v2820, %v2072
      %v2854 = vsel %vm2833, %v2821, %v2074
      %v2855 = vsel %vm2833, %v2822, %v2076
      %v2856 = vsel %vm2833, %v2823, %v2078
      %v2857 = vsel %vm2833, %v2824, %v2080
      %v2858 = vsel %vm2833, %v2825, %v2082
      %v2859 = vsel %vm2833, %v2826, %v2084
      %v2860 = vsel %vm2833, %v2827, %v2086
      %v2861 = vsel %vm2833, %v2828, %v2088
      %v2862 = vsel %vm2833, %v2829, %v2090
      %v2863 = vsel %vm2833, %v2830, %v2092
      %v2864 = vsel %vm2833, %v2831, %v2094
      %v2865 = vsel %vm2833, %v2832, %v2096
      %vm2866 = vcmask 130048
      %v2867 = vsel %vm2866, %v2834, %v2162
      %v2868 = vsel %vm2866, %v2835, %v2164
      %v2869 = vsel %vm2866, %v2836, %v2166
      %v2870 = vsel %vm2866, %v2837, %v2168
      %v2871 = vsel %vm2866, %v2838, %v2170
      %v2872 = vsel %vm2866, %v2839, %v2172
      %v2873 = vsel %vm2866, %v2840, %v2174
      %v2874 = vsel %vm2866, %v2841, %v2176
      %v2875 = vsel %vm2866, %v2842, %v2178
      %v2876 = vsel %vm2866, %v2843, %v2180
      %v2877 = vsel %vm2866, %v2844, %v2182
      %v2878 = vsel %vm2866, %v2845, %v2184
      %v2879 = vsel %vm2866, %v2846, %v2186
      %v2880 = vsel %vm2866, %v2847, %v2188
      %v2881 = vsel %vm2866, %v2848, %v2190
      %v2882 = vsel %vm2866, %v2849, %v2192
      %v2883 = vsel %vm2866, %v2850, %v2194
      %v2884 = vsel %vm2866, %v2851, %v2196
      %v2885 = vsel %vm2866, %v2852, %v2198
      %v2886 = vsel %vm2866, %v2853, %v2200
      %v2887 = vsel %vm2866, %v2854, %v2202
      %v2888 = vsel %vm2866, %v2855, %v2204
      %v2889 = vsel %vm2866, %v2856, %v2206
      %v2890 = vsel %vm2866, %v2857, %v2208
      %v2891 = vsel %vm2866, %v2858, %v2210
      %v2892 = vsel %vm2866, %v2859, %v2212
      %v2893 = vsel %vm2866, %v2860, %v2214
      %v2894 = vsel %vm2866, %v2861, %v2216
      %v2895 = vsel %vm2866, %v2862, %v2218
      %v2896 = vsel %vm2866, %v2863, %v2220
      %v2897 = vsel %vm2866, %v2864, %v2222
      %v2898 = vsel %vm2866, %v2865, %v2224
      %vm2899 = vcmask 162816
      %v2900 = vsel %vm2899, %v2867, %v2290
      %v2901 = vsel %vm2899, %v2868, %v2292
      %v2902 = vsel %vm2899, %v2869, %v2294
      %v2903 = vsel %vm2899, %v2870, %v2296
      %v2904 = vsel %vm2899, %v2871, %v2298
      %v2905 = vsel %vm2899, %v2872, %v2300
      %v2906 = vsel %vm2899, %v2873, %v2302
      %v2907 = vsel %vm2899, %v2874, %v2304
      %v2908 = vsel %vm2899, %v2875, %v2306
      %v2909 = vsel %vm2899, %v2876, %v2308
      %v2910 = vsel %vm2899, %v2877, %v2310
      %v2911 = vsel %vm2899, %v2878, %v2312
      %v2912 = vsel %vm2899, %v2879, %v2314
      %v2913 = vsel %vm2899, %v2880, %v2316
      %v2914 = vsel %vm2899, %v2881, %v2318
      %v2915 = vsel %vm2899, %v2882, %v2320
      %v2916 = vsel %vm2899, %v2883, %v2322
      %v2917 = vsel %vm2899, %v2884, %v2324
      %v2918 = vsel %vm2899, %v2885, %v2326
      %v2919 = vsel %vm2899, %v2886, %v2328
      %v2920 = vsel %vm2899, %v2887, %v2330
      %v2921 = vsel %vm2899, %v2888, %v2332
      %v2922 = vsel %vm2899, %v2889, %v2334
      %v2923 = vsel %vm2899, %v2890, %v2336
      %v2924 = vsel %vm2899, %v2891, %v2338
      %v2925 = vsel %vm2899, %v2892, %v2340
      %v2926 = vsel %vm2899, %v2893, %v2342
      %v2927 = vsel %vm2899, %v2894, %v2344
      %v2928 = vsel %vm2899, %v2895, %v2346
      %v2929 = vsel %vm2899, %v2896, %v2348
      %v2930 = vsel %vm2899, %v2897, %v2350
      %v2931 = vsel %vm2899, %v2898, %v2352
      %vm2932 = vcmask 195584
      %v2933 = vsel %vm2932, %v2900, %v2418
      %v2934 = vsel %vm2932, %v2901, %v2420
      %v2935 = vsel %vm2932, %v2902, %v2422
      %v2936 = vsel %vm2932, %v2903, %v2424
      %v2937 = vsel %vm2932, %v2904, %v2426
      %v2938 = vsel %vm2932, %v2905, %v2428
      %v2939 = vsel %vm2932, %v2906, %v2430
      %v2940 = vsel %vm2932, %v2907, %v2432
      %v2941 = vsel %vm2932, %v2908, %v2434
      %v2942 = vsel %vm2932, %v2909, %v2436
      %v2943 = vsel %vm2932, %v2910, %v2438
      %v2944 = vsel %vm2932, %v2911, %v2440
      %v2945 = vsel %vm2932, %v2912, %v2442
      %v2946 = vsel %vm2932, %v2913, %v2444
      %v2947 = vsel %vm2932, %v2914, %v2446
      %v2948 = vsel %vm2932, %v2915, %v2448
      %v2949 = vsel %vm2932, %v2916, %v2450
      %v2950 = vsel %vm2932, %v2917, %v2452
      %v2951 = vsel %vm2932, %v2918, %v2454
      %v2952 = vsel %vm2932, %v2919, %v2456
      %v2953 = vsel %vm2932, %v2920, %v2458
      %v2954 = vsel %vm2932, %v2921, %v2460
      %v2955 = vsel %vm2932, %v2922, %v2462
      %v2956 = vsel %vm2932, %v2923, %v2464
      %v2957 = vsel %vm2932, %v2924, %v2466
      %v2958 = vsel %vm2932, %v2925, %v2468
      %v2959 = vsel %vm2932, %v2926, %v2470
      %v2960 = vsel %vm2932, %v2927, %v2472
      %v2961 = vsel %vm2932, %v2928, %v2474
      %v2962 = vsel %vm2932, %v2929, %v2476
      %v2963 = vsel %vm2932, %v2930, %v2478
      %v2964 = vsel %vm2932, %v2931, %v2480
      %vm2965 = vcmask 228352
      %v2966 = vsel %vm2965, %v2933, %v2546
      %v2967 = vsel %vm2965, %v2934, %v2548
      %v2968 = vsel %vm2965, %v2935, %v2550
      %v2969 = vsel %vm2965, %v2936, %v2552
      %v2970 = vsel %vm2965, %v2937, %v2554
      %v2971 = vsel %vm2965, %v2938, %v2556
      %v2972 = vsel %vm2965, %v2939, %v2558
      %v2973 = vsel %vm2965, %v2940, %v2560
      %v2974 = vsel %vm2965, %v2941, %v2562
      %v2975 = vsel %vm2965, %v2942, %v2564
      %v2976 = vsel %vm2965, %v2943, %v2566
      %v2977 = vsel %vm2965, %v2944, %v2568
      %v2978 = vsel %vm2965, %v2945, %v2570
      %v2979 = vsel %vm2965, %v2946, %v2572
      %v2980 = vsel %vm2965, %v2947, %v2574
      %v2981 = vsel %vm2965, %v2948, %v2576
      %v2982 = vsel %vm2965, %v2949, %v2578
      %v2983 = vsel %vm2965, %v2950, %v2580
      %v2984 = vsel %vm2965, %v2951, %v2582
      %v2985 = vsel %vm2965, %v2952, %v2584
      %v2986 = vsel %vm2965, %v2953, %v2586
      %v2987 = vsel %vm2965, %v2954, %v2588
      %v2988 = vsel %vm2965, %v2955, %v2590
      %v2989 = vsel %vm2965, %v2956, %v2592
      %v2990 = vsel %vm2965, %v2957, %v2594
      %v2991 = vsel %vm2965, %v2958, %v2596
      %v2992 = vsel %vm2965, %v2959, %v2598
      %v2993 = vsel %vm2965, %v2960, %v2600
      %v2994 = vsel %vm2965, %v2961, %v2602
      %v2995 = vsel %vm2965, %v2962, %v2604
      %v2996 = vsel %vm2965, %v2963, %v2606
      %v2997 = vsel %vm2965, %v2964, %v2608
      %vm2998 = vcmask 261120
      %v2999 = vsel %vm2998, %v2966, %v2674
      %v3000 = vsel %vm2998, %v2967, %v2676
      %v3001 = vsel %vm2998, %v2968, %v2678
      %v3002 = vsel %vm2998, %v2969, %v2680
      %v3003 = vsel %vm2998, %v2970, %v2682
      %v3004 = vsel %vm2998, %v2971, %v2684
      %v3005 = vsel %vm2998, %v2972, %v2686
      %v3006 = vsel %vm2998, %v2973, %v2688
      %v3007 = vsel %vm2998, %v2974, %v2690
      %v3008 = vsel %vm2998, %v2975, %v2692
      %v3009 = vsel %vm2998, %v2976, %v2694
      %v3010 = vsel %vm2998, %v2977, %v2696
      %v3011 = vsel %vm2998, %v2978, %v2698
      %v3012 = vsel %vm2998, %v2979, %v2700
      %v3013 = vsel %vm2998, %v2980, %v2702
      %v3014 = vsel %vm2998, %v2981, %v2704
      %v3015 = vsel %vm2998, %v2982, %v2706
      %v3016 = vsel %vm2998, %v2983, %v2708
      %v3017 = vsel %vm2998, %v2984, %v2710
      %v3018 = vsel %vm2998, %v2985, %v2712
      %v3019 = vsel %vm2998, %v2986, %v2714
      %v3020 = vsel %vm2998, %v2987, %v2716
      %v3021 = vsel %vm2998, %v2988, %v2718
      %v3022 = vsel %vm2998, %v2989, %v2720
      %v3023 = vsel %vm2998, %v2990, %v2722
      %v3024 = vsel %vm2998, %v2991, %v2724
      %v3025 = vsel %vm2998, %v2992, %v2726
      %v3026 = vsel %vm2998, %v2993, %v2728
      %v3027 = vsel %vm2998, %v2994, %v2730
      %v3028 = vsel %vm2998, %v2995, %v2732
      %v3029 = vsel %vm2998, %v2996, %v2734
      %v3030 = vsel %vm2998, %v2997, %v2736
      %v3031 = vld [vmem:[%s4] sm:$0xff]
      %v3032 = vld [vmem:[%s4 + $0x8] sm:$0xff]
      %v3033 = vld [vmem:[%s4 + $0x10] sm:$0xff]
      %v3034 = vld [vmem:[%s4 + $0x18] sm:$0xff]
      %v3035 = vld [vmem:[%s4 + $0x20] sm:$0xf]
      %v3036 = vld [vmem:[#allocation3] sm:$0xff]
      %v3037 = vld [vmem:[#allocation3 + $0x8] sm:$0xff]
      %v3038 = vld [vmem:[#allocation3 + $0x18] sm:$0xff]
      %v3039 = vld [vmem:[#allocation3 + $0x20] sm:$0xff]
      %v3040 = vld [vmem:[#allocation3 + $0x30] sm:$0xff]
      %v3041 = vld [vmem:[#allocation3 + $0x38] sm:$0xff]
      %v3042 = vld [vmem:[#allocation3 + $0x48] sm:$0xff]
      %v3043 = vld [vmem:[#allocation3 + $0x50] sm:$0xff]
      %v3044 = vld [vmem:[#allocation3 + $0x60] sm:$0xff]
      %v3045 = vld [vmem:[#allocation3 + $0x68] sm:$0xff]
      %v3046 = vld [vmem:[#allocation3 + $0x78] sm:$0xff]
      %v3047 = vld [vmem:[#allocation3 + $0x80] sm:$0xff]
      %v3048 = vld [vmem:[#allocation3 + $0x90] sm:$0xff]
      %v3049 = vld [vmem:[#allocation3 + $0x98] sm:$0xff]
      %v3050 = vld [vmem:[#allocation3 + $0xa8] sm:$0xff]
      %v3051 = vld [vmem:[#allocation3 + $0xb0] sm:$0xff]
      %v3052 = vld [vmem:[#allocation3 + $0xc0] sm:$0xff]
      %v3053 = vld [vmem:[#allocation3 + $0xc8] sm:$0xff]
      %v3054 = vld [vmem:[#allocation3 + $0xd8] sm:$0xff]
      %v3055 = vld [vmem:[#allocation3 + $0xe0] sm:$0xff]
      %v3056 = vld [vmem:[#allocation3 + $0xf0] sm:$0xff]
      %v3057 = vld [vmem:[#allocation3 + $0xf8] sm:$0xff]
      %v3058 = vld [vmem:[#allocation3 + $0x108] sm:$0xff]
      %v3059 = vld [vmem:[#allocation3 + $0x110] sm:$0xff]
      %v3060 = vld [vmem:[#allocation3 + $0x120] sm:$0xff]
      %v3061 = vld [vmem:[#allocation3 + $0x128] sm:$0xff]
      %v3062 = vld [vmem:[#allocation3 + $0x138] sm:$0xff]
      %v3063 = vld [vmem:[#allocation3 + $0x140] sm:$0xff]
      %v3064 = vld [vmem:[#allocation3 + $0x150] sm:$0xff]
      %v3065 = vld [vmem:[#allocation3 + $0x158] sm:$0xff]
      %v3066 = vld [vmem:[#allocation3 + $0x168] sm:$0xff]
      %v3067 = vld [vmem:[#allocation3 + $0x170] sm:$0xff]
      %v3068 = vld [vmem:[#allocation3 + $0x1] sm:$0xff]
      %v3069 = vld [vmem:[#allocation3 + $0x9] sm:$0xff]
      %v3070 = vld [vmem:[#allocation3 + $0x19] sm:$0xff]
      %v3071 = vld [vmem:[#allocation3 + $0x21] sm:$0xff]
      %v3072 = vld [vmem:[#allocation3 + $0x31] sm:$0xff]
      %v3073 = vld [vmem:[#allocation3 + $0x39] sm:$0xff]
      %v3074 = vld [vmem:[#allocation3 + $0x49] sm:$0xff]
      %v3075 = vld [vmem:[#allocation3 + $0x51] sm:$0xff]
      %v3076 = vld [vmem:[#allocation3 + $0x61] sm:$0xff]
      %v3077 = vld [vmem:[#allocation3 + $0x69] sm:$0xff]
      %v3078 = vld [vmem:[#allocation3 + $0x79] sm:$0xff]
      %v3079 = vld [vmem:[#allocation3 + $0x81] sm:$0xff]
      %v3080 = vld [vmem:[#allocation3 + $0x91] sm:$0xff]
      %v3081 = vld [vmem:[#allocation3 + $0x99] sm:$0xff]
      %v3082 = vld [vmem:[#allocation3 + $0xa9] sm:$0xff]
      %v3083 = vld [vmem:[#allocation3 + $0xb1] sm:$0xff]
      %v3084 = vld [vmem:[#allocation3 + $0xc1] sm:$0xff]
      %v3085 = vld [vmem:[#allocation3 + $0xc9] sm:$0xff]
      %v3086 = vld [vmem:[#allocation3 + $0xd9] sm:$0xff]
      %v3087 = vld [vmem:[#allocation3 + $0xe1] sm:$0xff]
      %v3088 = vld [vmem:[#allocation3 + $0xf1] sm:$0xff]
      %v3089 = vld [vmem:[#allocation3 + $0xf9] sm:$0xff]
      %v3090 = vld [vmem:[#allocation3 + $0x109] sm:$0xff]
      %v3091 = vld [vmem:[#allocation3 + $0x111] sm:$0xff]
      %v3092 = vld [vmem:[#allocation3 + $0x121] sm:$0xff]
      %v3093 = vld [vmem:[#allocation3 + $0x129] sm:$0xff]
      %v3094 = vld [vmem:[#allocation3 + $0x139] sm:$0xff]
      %v3095 = vld [vmem:[#allocation3 + $0x141] sm:$0xff]
      %v3096 = vld [vmem:[#allocation3 + $0x151] sm:$0xff]
      %v3097 = vld [vmem:[#allocation3 + $0x159] sm:$0xff]
      %v3098 = vld [vmem:[#allocation3 + $0x169] sm:$0xff]
      %v3099 = vld [vmem:[#allocation3 + $0x171] sm:$0xff]
      %v3100 = vld [vmem:[#allocation3 + $0x2] sm:$0xff]
      %v3101 = vld [vmem:[#allocation3 + $0xa] sm:$0xff]
      %v3102 = vld [vmem:[#allocation3 + $0x1a] sm:$0xff]
      %v3103 = vld [vmem:[#allocation3 + $0x22] sm:$0xff]
      %v3104 = vld [vmem:[#allocation3 + $0x32] sm:$0xff]
      %v3105 = vld [vmem:[#allocation3 + $0x3a] sm:$0xff]
      %v3106 = vld [vmem:[#allocation3 + $0x4a] sm:$0xff]
      %v3107 = vld [vmem:[#allocation3 + $0x52] sm:$0xff]
      %v3108 = vld [vmem:[#allocation3 + $0x62] sm:$0xff]
      %v3109 = vld [vmem:[#allocation3 + $0x6a] sm:$0xff]
      %v3110 = vld [vmem:[#allocation3 + $0x7a] sm:$0xff]
      %v3111 = vld [vmem:[#allocation3 + $0x82] sm:$0xff]
      %v3112 = vld [vmem:[#allocation3 + $0x92] sm:$0xff]
      %v3113 = vld [vmem:[#allocation3 + $0x9a] sm:$0xff]
      %v3114 = vld [vmem:[#allocation3 + $0xaa] sm:$0xff]
      %v3115 = vld [vmem:[#allocation3 + $0xb2] sm:$0xff]
      %v3116 = vld [vmem:[#allocation3 + $0xc2] sm:$0xff]
      %v3117 = vld [vmem:[#allocation3 + $0xca] sm:$0xff]
      %v3118 = vld [vmem:[#allocation3 + $0xda] sm:$0xff]
      %v3119 = vld [vmem:[#allocation3 + $0xe2] sm:$0xff]
      %v3120 = vld [vmem:[#allocation3 + $0xf2] sm:$0xff]
      %v3121 = vld [vmem:[#allocation3 + $0xfa] sm:$0xff]
      %v3122 = vld [vmem:[#allocation3 + $0x10a] sm:$0xff]
      %v3123 = vld [vmem:[#allocation3 + $0x112] sm:$0xff]
      %v3124 = vld [vmem:[#allocation3 + $0x122] sm:$0xff]
      %v3125 = vld [vmem:[#allocation3 + $0x12a] sm:$0xff]
      %v3126 = vld [vmem:[#allocation3 + $0x13a] sm:$0xff]
      %v3127 = vld [vmem:[#allocation3 + $0x142] sm:$0xff]
      %v3128 = vld [vmem:[#allocation3 + $0x152] sm:$0xff]
      %v3129 = vld [vmem:[#allocation3 + $0x15a] sm:$0xff]
      %v3130 = vld [vmem:[#allocation3 + $0x16a] sm:$0xff]
      %v3131 = vld [vmem:[#allocation3 + $0x172] sm:$0xff]
      %v3132 = vld [vmem:[%s1423] sm:$0xff]
      %v3133 = vld [vmem:[%s1423 + $0x8] sm:$0xff]
      %v3134 = vld [vmem:[%s1423 + $0x18] sm:$0xff]
      %v3135 = vld [vmem:[%s1423 + $0x20] sm:$0xff]
      %v3136 = vld [vmem:[%s1423 + $0x30] sm:$0xff]
      %v3137 = vld [vmem:[%s1423 + $0x38] sm:$0xff]
      %v3138 = vld [vmem:[%s1423 + $0x48] sm:$0xff]
      %v3139 = vld [vmem:[%s1423 + $0x50] sm:$0xff]
      %v3140 = vld [vmem:[%s1423 + $0x60] sm:$0xff]
      %v3141 = vld [vmem:[%s1423 + $0x68] sm:$0xff]
      %v3142 = vld [vmem:[%s1423 + $0x78] sm:$0xff]
      %v3143 = vld [vmem:[%s1423 + $0x80] sm:$0xff]
      %v3144 = vld [vmem:[%s1423 + $0x90] sm:$0xff]
      %v3145 = vld [vmem:[%s1423 + $0x98] sm:$0xff]
      %v3146 = vld [vmem:[%s1423 + $0xa8] sm:$0xff]
      %v3147 = vld [vmem:[%s1423 + $0xb0] sm:$0xff]
      %v3148 = vld [vmem:[%s1423 + $0xc0] sm:$0xff]
      %v3149 = vld [vmem:[%s1423 + $0xc8] sm:$0xff]
      %v3150 = vld [vmem:[%s1423 + $0xd8] sm:$0xff]
      %v3151 = vld [vmem:[%s1423 + $0xe0] sm:$0xff]
      %v3152 = vld [vmem:[%s1423 + $0xf0] sm:$0xff]
      %v3153 = vld [vmem:[%s1423 + $0xf8] sm:$0xff]
      %v3154 = vld [vmem:[%s1423 + $0x108] sm:$0xff]
      %v3155 = vld [vmem:[%s1423 + $0x110] sm:$0xff]
      %v3156 = vld [vmem:[%s1423 + $0x120] sm:$0xff]
      %v3157 = vld [vmem:[%s1423 + $0x128] sm:$0xff]
      %v3158 = vld [vmem:[%s1423 + $0x138] sm:$0xff]
      %v3159 = vld [vmem:[%s1423 + $0x140] sm:$0xff]
      %v3160 = vld [vmem:[%s1423 + $0x150] sm:$0xff]
      %v3161 = vld [vmem:[%s1423 + $0x158] sm:$0xff]
      %v3162 = vld [vmem:[%s1423 + $0x168] sm:$0xff]
      %v3163 = vld [vmem:[%s1423 + $0x170] sm:$0xff]
      %v3164 = vld [vmem:[%s1423 + $0x1] sm:$0xff]
      %v3165 = vld [vmem:[%s1423 + $0x9] sm:$0xff]
      %v3166 = vld [vmem:[%s1423 + $0x19] sm:$0xff]
      %v3167 = vld [vmem:[%s1423 + $0x21] sm:$0xff]
      %v3168 = vld [vmem:[%s1423 + $0x31] sm:$0xff]
      %v3169 = vld [vmem:[%s1423 + $0x39] sm:$0xff]
      %v3170 = vld [vmem:[%s1423 + $0x49] sm:$0xff]
      %v3171 = vld [vmem:[%s1423 + $0x51] sm:$0xff]
      %v3172 = vld [vmem:[%s1423 + $0x61] sm:$0xff]
      %v3173 = vld [vmem:[%s1423 + $0x69] sm:$0xff]
      %v3174 = vld [vmem:[%s1423 + $0x79] sm:$0xff]
      %v3175 = vld [vmem:[%s1423 + $0x81] sm:$0xff]
      %v3176 = vld [vmem:[%s1423 + $0x91] sm:$0xff]
      %v3177 = vld [vmem:[%s1423 + $0x99] sm:$0xff]
      %v3178 = vld [vmem:[%s1423 + $0xa9] sm:$0xff]
      %v3179 = vld [vmem:[%s1423 + $0xb1] sm:$0xff]
      %v3180 = vld [vmem:[%s1423 + $0xc1] sm:$0xff]
      %v3181 = vld [vmem:[%s1423 + $0xc9] sm:$0xff]
      %v3182 = vld [vmem:[%s1423 + $0xd9] sm:$0xff]
      %v3183 = vld [vmem:[%s1423 + $0xe1] sm:$0xff]
      %v3184 = vld [vmem:[%s1423 + $0xf1] sm:$0xff]
      %v3185 = vld [vmem:[%s1423 + $0xf9] sm:$0xff]
      %v3186 = vld [vmem:[%s1423 + $0x109] sm:$0xff]
      %v3187 = vld [vmem:[%s1423 + $0x111] sm:$0xff]
      %v3188 = vld [vmem:[%s1423 + $0x121] sm:$0xff]
      %v3189 = vld [vmem:[%s1423 + $0x129] sm:$0xff]
      %v3190 = vld [vmem:[%s1423 + $0x139] sm:$0xff]
      %v3191 = vld [vmem:[%s1423 + $0x141] sm:$0xff]
      %v3192 = vld [vmem:[%s1423 + $0x151] sm:$0xff]
      %v3193 = vld [vmem:[%s1423 + $0x159] sm:$0xff]
      %v3194 = vld [vmem:[%s1423 + $0x169] sm:$0xff]
      %v3195 = vld [vmem:[%s1423 + $0x171] sm:$0xff]
      %v3196 = vld [vmem:[%s1423 + $0x2] sm:$0xff]
      %v3197 = vld [vmem:[%s1423 + $0xa] sm:$0xff]
      %v3198 = vld [vmem:[%s1423 + $0x1a] sm:$0xff]
      %v3199 = vld [vmem:[%s1423 + $0x22] sm:$0xff]
      %v3200 = vld [vmem:[%s1423 + $0x32] sm:$0xff]
      %v3201 = vld [vmem:[%s1423 + $0x3a] sm:$0xff]
      %v3202 = vld [vmem:[%s1423 + $0x4a] sm:$0xff]
      %v3203 = vld [vmem:[%s1423 + $0x52] sm:$0xff]
      %v3204 = vld [vmem:[%s1423 + $0x62] sm:$0xff]
      %v3205 = vld [vmem:[%s1423 + $0x6a] sm:$0xff]
      %v3206 = vld [vmem:[%s1423 + $0x7a] sm:$0xff]
      %v3207 = vld [vmem:[%s1423 + $0x82] sm:$0xff]
      %v3208 = vld [vmem:[%s1423 + $0x92] sm:$0xff]
      %v3209 = vld [vmem:[%s1423 + $0x9a] sm:$0xff]
      %v3210 = vld [vmem:[%s1423 + $0xaa] sm:$0xff]
      %v3211 = vld [vmem:[%s1423 + $0xb2] sm:$0xff]
      %v3212 = vld [vmem:[%s1423 + $0xc2] sm:$0xff]
      %v3213 = vld [vmem:[%s1423 + $0xca] sm:$0xff]
      %v3214 = vld [vmem:[%s1423 + $0xda] sm:$0xff]
      %v3215 = vld [vmem:[%s1423 + $0xe2] sm:$0xff]
      %v3216 = vld [vmem:[%s1423 + $0xf2] sm:$0xff]
      %v3217 = vld [vmem:[%s1423 + $0xfa] sm:$0xff]
      %v3218 = vld [vmem:[%s1423 + $0x10a] sm:$0xff]
      %v3219 = vld [vmem:[%s1423 + $0x112] sm:$0xff]
      %v3220 = vld [vmem:[%s1423 + $0x122] sm:$0xff]
      %v3221 = vld [vmem:[%s1423 + $0x12a] sm:$0xff]
      %v3222 = vld [vmem:[%s1423 + $0x13a] sm:$0xff]
      %v3223 = vld [vmem:[%s1423 + $0x142] sm:$0xff]
      %v3224 = vld [vmem:[%s1423 + $0x152] sm:$0xff]
      %v3225 = vld [vmem:[%s1423 + $0x15a] sm:$0xff]
      %v3226 = vld [vmem:[%s1423 + $0x16a] sm:$0xff]
      %v3227 = vld [vmem:[%s1423 + $0x172] sm:$0xff]
      %s3228 = scalar_lea.vmem [#allocation3], 48
      %v3229 = vld [vmem:[%s3228] sm:$0xff]
      %v3230 = vld [vmem:[%s3228 + $0x8] sm:$0xff]
      %v3231 = vld [vmem:[%s3228 + $0x18] sm:$0xff]
      %v3232 = vld [vmem:[%s3228 + $0x20] sm:$0xff]
      %v3233 = vld [vmem:[%s3228 + $0x30] sm:$0xff]
      %v3234 = vld [vmem:[%s3228 + $0x38] sm:$0xff]
      %v3235 = vld [vmem:[%s3228 + $0x48] sm:$0xff]
      %v3236 = vld [vmem:[%s3228 + $0x50] sm:$0xff]
      %v3237 = vld [vmem:[%s3228 + $0x60] sm:$0xff]
      %v3238 = vld [vmem:[%s3228 + $0x68] sm:$0xff]
      %v3239 = vld [vmem:[%s3228 + $0x78] sm:$0xff]
      %v3240 = vld [vmem:[%s3228 + $0x80] sm:$0xff]
      %v3241 = vld [vmem:[%s3228 + $0x90] sm:$0xff]
      %v3242 = vld [vmem:[%s3228 + $0x98] sm:$0xff]
      %v3243 = vld [vmem:[%s3228 + $0xa8] sm:$0xff]
      %v3244 = vld [vmem:[%s3228 + $0xb0] sm:$0xff]
      %v3245 = vld [vmem:[%s3228 + $0xc0] sm:$0xff]
      %v3246 = vld [vmem:[%s3228 + $0xc8] sm:$0xff]
      %v3247 = vld [vmem:[%s3228 + $0xd8] sm:$0xff]
      %v3248 = vld [vmem:[%s3228 + $0xe0] sm:$0xff]
      %v3249 = vld [vmem:[%s3228 + $0xf0] sm:$0xff]
      %v3250 = vld [vmem:[%s3228 + $0xf8] sm:$0xff]
      %v3251 = vld [vmem:[%s3228 + $0x108] sm:$0xff]
      %v3252 = vld [vmem:[%s3228 + $0x110] sm:$0xff]
      %v3253 = vld [vmem:[%s3228 + $0x120] sm:$0xff]
      %v3254 = vld [vmem:[%s3228 + $0x128] sm:$0xff]
      %v3255 = vld [vmem:[%s3228 + $0x138] sm:$0xff]
      %v3256 = vld [vmem:[%s3228 + $0x140] sm:$0xff]
      %v3257 = vld [vmem:[%s3228 + $0x150] sm:$0xff]
      %v3258 = vld [vmem:[%s3228 + $0x158] sm:$0xff]
      %v3259 = vld [vmem:[%s3228 + $0x168] sm:$0xff]
      %v3260 = vld [vmem:[%s3228 + $0x170] sm:$0xff]
      %v3261 = vld [vmem:[%s3228 + $0x1] sm:$0xff]
      %v3262 = vld [vmem:[%s3228 + $0x9] sm:$0xff]
      %v3263 = vld [vmem:[%s3228 + $0x19] sm:$0xff]
      %v3264 = vld [vmem:[%s3228 + $0x21] sm:$0xff]
      %v3265 = vld [vmem:[%s3228 + $0x31] sm:$0xff]
      %v3266 = vld [vmem:[%s3228 + $0x39] sm:$0xff]
      %v3267 = vld [vmem:[%s3228 + $0x49] sm:$0xff]
      %v3268 = vld [vmem:[%s3228 + $0x51] sm:$0xff]
      %v3269 = vld [vmem:[%s3228 + $0x61] sm:$0xff]
      %v3270 = vld [vmem:[%s3228 + $0x69] sm:$0xff]
      %v3271 = vld [vmem:[%s3228 + $0x79] sm:$0xff]
      %v3272 = vld [vmem:[%s3228 + $0x81] sm:$0xff]
      %v3273 = vld [vmem:[%s3228 + $0x91] sm:$0xff]
      %v3274 = vld [vmem:[%s3228 + $0x99] sm:$0xff]
      %v3275 = vld [vmem:[%s3228 + $0xa9] sm:$0xff]
      %v3276 = vld [vmem:[%s3228 + $0xb1] sm:$0xff]
      %v3277 = vld [vmem:[%s3228 + $0xc1] sm:$0xff]
      %v3278 = vld [vmem:[%s3228 + $0xc9] sm:$0xff]
      %v3279 = vld [vmem:[%s3228 + $0xd9] sm:$0xff]
      %v3280 = vld [vmem:[%s3228 + $0xe1] sm:$0xff]
      %v3281 = vld [vmem:[%s3228 + $0xf1] sm:$0xff]
      %v3282 = vld [vmem:[%s3228 + $0xf9] sm:$0xff]
      %v3283 = vld [vmem:[%s3228 + $0x109] sm:$0xff]
      %v3284 = vld [vmem:[%s3228 + $0x111] sm:$0xff]
      %v3285 = vld [vmem:[%s3228 + $0x121] sm:$0xff]
      %v3286 = vld [vmem:[%s3228 + $0x129] sm:$0xff]
      %v3287 = vld [vmem:[%s3228 + $0x139] sm:$0xff]
      %v3288 = vld [vmem:[%s3228 + $0x141] sm:$0xff]
      %v3289 = vld [vmem:[%s3228 + $0x151] sm:$0xff]
      %v3290 = vld [vmem:[%s3228 + $0x159] sm:$0xff]
      %v3291 = vld [vmem:[%s3228 + $0x169] sm:$0xff]
      %v3292 = vld [vmem:[%s3228 + $0x171] sm:$0xff]
      %v3293 = vld [vmem:[%s3228 + $0x2] sm:$0xff]
      %v3294 = vld [vmem:[%s3228 + $0xa] sm:$0xff]
      %v3295 = vld [vmem:[%s3228 + $0x1a] sm:$0xff]
      %v3296 = vld [vmem:[%s3228 + $0x22] sm:$0xff]
      %v3297 = vld [vmem:[%s3228 + $0x32] sm:$0xff]
      %v3298 = vld [vmem:[%s3228 + $0x3a] sm:$0xff]
      %v3299 = vld [vmem:[%s3228 + $0x4a] sm:$0xff]
      %v3300 = vld [vmem:[%s3228 + $0x52] sm:$0xff]
      %v3301 = vld [vmem:[%s3228 + $0x62] sm:$0xff]
      %v3302 = vld [vmem:[%s3228 + $0x6a] sm:$0xff]
      %v3303 = vld [vmem:[%s3228 + $0x7a] sm:$0xff]
      %v3304 = vld [vmem:[%s3228 + $0x82] sm:$0xff]
      %v3305 = vld [vmem:[%s3228 + $0x92] sm:$0xff]
      %v3306 = vld [vmem:[%s3228 + $0x9a] sm:$0xff]
      %v3307 = vld [vmem:[%s3228 + $0xaa] sm:$0xff]
      %v3308 = vld [vmem:[%s3228 + $0xb2] sm:$0xff]
      %v3309 = vld [vmem:[%s3228 + $0xc2] sm:$0xff]
      %v3310 = vld [vmem:[%s3228 + $0xca] sm:$0xff]
      %v3311 = vld [vmem:[%s3228 + $0xda] sm:$0xff]
      %v3312 = vld [vmem:[%s3228 + $0xe2] sm:$0xff]
      %v3313 = vld [vmem:[%s3228 + $0xf2] sm:$0xff]
      %v3314 = vld [vmem:[%s3228 + $0xfa] sm:$0xff]
      %v3315 = vld [vmem:[%s3228 + $0x10a] sm:$0xff]
      %v3316 = vld [vmem:[%s3228 + $0x112] sm:$0xff]
      %v3317 = vld [vmem:[%s3228 + $0x122] sm:$0xff]
      %v3318 = vld [vmem:[%s3228 + $0x12a] sm:$0xff]
      %v3319 = vld [vmem:[%s3228 + $0x13a] sm:$0xff]
      %v3320 = vld [vmem:[%s3228 + $0x142] sm:$0xff]
      %v3321 = vld [vmem:[%s3228 + $0x152] sm:$0xff]
      %v3322 = vld [vmem:[%s3228 + $0x15a] sm:$0xff]
      %v3323 = vld [vmem:[%s3228 + $0x16a] sm:$0xff]
      %v3324 = vld [vmem:[%s3228 + $0x172] sm:$0xff]
      %3357 = vrot.lane.b32.xlu0 %v3068, 4
      %v3358 = vpop.permute.xlu0 %3357
      %3359 = vrot.lane.b32.xlu0 %v3069, 4
      %v3360 = vpop.permute.xlu0 %3359
      %3361 = vrot.lane.b32.xlu0 %v3070, 4
      %v3362 = vpop.permute.xlu0 %3361
      %3363 = vrot.lane.b32.xlu0 %v3071, 4
      %v3364 = vpop.permute.xlu0 %3363
      %3365 = vrot.lane.b32.xlu0 %v3072, 4
      %v3366 = vpop.permute.xlu0 %3365
      %3367 = vrot.lane.b32.xlu0 %v3073, 4
      %v3368 = vpop.permute.xlu0 %3367
      %3369 = vrot.lane.b32.xlu0 %v3074, 4
      %v3370 = vpop.permute.xlu0 %3369
      %3371 = vrot.lane.b32.xlu0 %v3075, 4
      %v3372 = vpop.permute.xlu0 %3371
      %3373 = vrot.lane.b32.xlu0 %v3076, 4
      %v3374 = vpop.permute.xlu0 %3373
      %3375 = vrot.lane.b32.xlu0 %v3077, 4
      %v3376 = vpop.permute.xlu0 %3375
      %3377 = vrot.lane.b32.xlu0 %v3078, 4
      %v3378 = vpop.permute.xlu0 %3377
      %3379 = vrot.lane.b32.xlu0 %v3079, 4
      %v3380 = vpop.permute.xlu0 %3379
      %3381 = vrot.lane.b32.xlu0 %v3080, 4
      %v3382 = vpop.permute.xlu0 %3381
      %3383 = vrot.lane.b32.xlu0 %v3081, 4
      %v3384 = vpop.permute.xlu0 %3383
      %3385 = vrot.lane.b32.xlu0 %v3082, 4
      %v3386 = vpop.permute.xlu0 %3385
      %3387 = vrot.lane.b32.xlu0 %v3083, 4
      %v3388 = vpop.permute.xlu0 %3387
      %3389 = vrot.lane.b32.xlu0 %v3084, 4
      %v3390 = vpop.permute.xlu0 %3389
      %3391 = vrot.lane.b32.xlu0 %v3085, 4
      %v3392 = vpop.permute.xlu0 %3391
      %3393 = vrot.lane.b32.xlu0 %v3086, 4
      %v3394 = vpop.permute.xlu0 %3393
      %3395 = vrot.lane.b32.xlu0 %v3087, 4
      %v3396 = vpop.permute.xlu0 %3395
      %3397 = vrot.lane.b32.xlu0 %v3088, 4
      %v3398 = vpop.permute.xlu0 %3397
      %3399 = vrot.lane.b32.xlu0 %v3089, 4
      %v3400 = vpop.permute.xlu0 %3399
      %3401 = vrot.lane.b32.xlu0 %v3090, 4
      %v3402 = vpop.permute.xlu0 %3401
      %3403 = vrot.lane.b32.xlu0 %v3091, 4
      %v3404 = vpop.permute.xlu0 %3403
      %3405 = vrot.lane.b32.xlu0 %v3092, 4
      %v3406 = vpop.permute.xlu0 %3405
      %3407 = vrot.lane.b32.xlu0 %v3093, 4
      %v3408 = vpop.permute.xlu0 %3407
      %3409 = vrot.lane.b32.xlu0 %v3094, 4
      %v3410 = vpop.permute.xlu0 %3409
      %3411 = vrot.lane.b32.xlu0 %v3095, 4
      %v3412 = vpop.permute.xlu0 %3411
      %3413 = vrot.lane.b32.xlu0 %v3096, 4
      %v3414 = vpop.permute.xlu0 %3413
      %3415 = vrot.lane.b32.xlu0 %v3097, 4
      %v3416 = vpop.permute.xlu0 %3415
      %3417 = vrot.lane.b32.xlu0 %v3098, 4
      %v3418 = vpop.permute.xlu0 %3417
      %3419 = vrot.lane.b32.xlu0 %v3099, 4
      %v3420 = vpop.permute.xlu0 %3419
      %3485 = vrot.lane.b32.xlu0 %v3100, 8
      %v3486 = vpop.permute.xlu0 %3485
      %3487 = vrot.lane.b32.xlu0 %v3101, 8
      %v3488 = vpop.permute.xlu0 %3487
      %3489 = vrot.lane.b32.xlu0 %v3102, 8
      %v3490 = vpop.permute.xlu0 %3489
      %3491 = vrot.lane.b32.xlu0 %v3103, 8
      %v3492 = vpop.permute.xlu0 %3491
      %3493 = vrot.lane.b32.xlu0 %v3104, 8
      %v3494 = vpop.permute.xlu0 %3493
      %3495 = vrot.lane.b32.xlu0 %v3105, 8
      %v3496 = vpop.permute.xlu0 %3495
      %3497 = vrot.lane.b32.xlu0 %v3106, 8
      %v3498 = vpop.permute.xlu0 %3497
      %3499 = vrot.lane.b32.xlu0 %v3107, 8
      %v3500 = vpop.permute.xlu0 %3499
      %3501 = vrot.lane.b32.xlu0 %v3108, 8
      %v3502 = vpop.permute.xlu0 %3501
      %3503 = vrot.lane.b32.xlu0 %v3109, 8
      %v3504 = vpop.permute.xlu0 %3503
      %3505 = vrot.lane.b32.xlu0 %v3110, 8
      %v3506 = vpop.permute.xlu0 %3505
      %3507 = vrot.lane.b32.xlu0 %v3111, 8
      %v3508 = vpop.permute.xlu0 %3507
      %3509 = vrot.lane.b32.xlu0 %v3112, 8
      %v3510 = vpop.permute.xlu0 %3509
      %3511 = vrot.lane.b32.xlu0 %v3113, 8
      %v3512 = vpop.permute.xlu0 %3511
      %3513 = vrot.lane.b32.xlu0 %v3114, 8
      %v3514 = vpop.permute.xlu0 %3513
      %3515 = vrot.lane.b32.xlu0 %v3115, 8
      %v3516 = vpop.permute.xlu0 %3515
      %3517 = vrot.lane.b32.xlu0 %v3116, 8
      %v3518 = vpop.permute.xlu0 %3517
      %3519 = vrot.lane.b32.xlu0 %v3117, 8
      %v3520 = vpop.permute.xlu0 %3519
      %3521 = vrot.lane.b32.xlu0 %v3118, 8
      %v3522 = vpop.permute.xlu0 %3521
      %3523 = vrot.lane.b32.xlu0 %v3119, 8
      %v3524 = vpop.permute.xlu0 %3523
      %3525 = vrot.lane.b32.xlu0 %v3120, 8
      %v3526 = vpop.permute.xlu0 %3525
      %3527 = vrot.lane.b32.xlu0 %v3121, 8
      %v3528 = vpop.permute.xlu0 %3527
      %3529 = vrot.lane.b32.xlu0 %v3122, 8
      %v3530 = vpop.permute.xlu0 %3529
      %3531 = vrot.lane.b32.xlu0 %v3123, 8
      %v3532 = vpop.permute.xlu0 %3531
      %3533 = vrot.lane.b32.xlu0 %v3124, 8
      %v3534 = vpop.permute.xlu0 %3533
      %3535 = vrot.lane.b32.xlu0 %v3125, 8
      %v3536 = vpop.permute.xlu0 %3535
      %3537 = vrot.lane.b32.xlu0 %v3126, 8
      %v3538 = vpop.permute.xlu0 %3537
      %3539 = vrot.lane.b32.xlu0 %v3127, 8
      %v3540 = vpop.permute.xlu0 %3539
      %3541 = vrot.lane.b32.xlu0 %v3128, 8
      %v3542 = vpop.permute.xlu0 %3541
      %3543 = vrot.lane.b32.xlu0 %v3129, 8
      %v3544 = vpop.permute.xlu0 %3543
      %3545 = vrot.lane.b32.xlu0 %v3130, 8
      %v3546 = vpop.permute.xlu0 %3545
      %3547 = vrot.lane.b32.xlu0 %v3131, 8
      %v3548 = vpop.permute.xlu0 %3547
      %3613 = vrot.lane.b32.xlu0 %v3132, 12
      %v3614 = vpop.permute.xlu0 %3613
      %3615 = vrot.lane.b32.xlu0 %v3133, 12
      %v3616 = vpop.permute.xlu0 %3615
      %3617 = vrot.lane.b32.xlu0 %v3134, 12
      %v3618 = vpop.permute.xlu0 %3617
      %3619 = vrot.lane.b32.xlu0 %v3135, 12
      %v3620 = vpop.permute.xlu0 %3619
      %3621 = vrot.lane.b32.xlu0 %v3136, 12
      %v3622 = vpop.permute.xlu0 %3621
      %3623 = vrot.lane.b32.xlu0 %v3137, 12
      %v3624 = vpop.permute.xlu0 %3623
      %3625 = vrot.lane.b32.xlu0 %v3138, 12
      %v3626 = vpop.permute.xlu0 %3625
      %3627 = vrot.lane.b32.xlu0 %v3139, 12
      %v3628 = vpop.permute.xlu0 %3627
      %3629 = vrot.lane.b32.xlu0 %v3140, 12
      %v3630 = vpop.permute.xlu0 %3629
      %3631 = vrot.lane.b32.xlu0 %v3141, 12
      %v3632 = vpop.permute.xlu0 %3631
      %3633 = vrot.lane.b32.xlu0 %v3142, 12
      %v3634 = vpop.permute.xlu0 %3633
      %3635 = vrot.lane.b32.xlu0 %v3143, 12
      %v3636 = vpop.permute.xlu0 %3635
      %3637 = vrot.lane.b32.xlu0 %v3144, 12
      %v3638 = vpop.permute.xlu0 %3637
      %3639 = vrot.lane.b32.xlu0 %v3145, 12
      %v3640 = vpop.permute.xlu0 %3639
      %3641 = vrot.lane.b32.xlu0 %v3146, 12
      %v3642 = vpop.permute.xlu0 %3641
      %3643 = vrot.lane.b32.xlu0 %v3147, 12
      %v3644 = vpop.permute.xlu0 %3643
      %3645 = vrot.lane.b32.xlu0 %v3148, 12
      %v3646 = vpop.permute.xlu0 %3645
      %3647 = vrot.lane.b32.xlu0 %v3149, 12
      %v3648 = vpop.permute.xlu0 %3647
      %3649 = vrot.lane.b32.xlu0 %v3150, 12
      %v3650 = vpop.permute.xlu0 %3649
      %3651 = vrot.lane.b32.xlu0 %v3151, 12
      %v3652 = vpop.permute.xlu0 %3651
      %3653 = vrot.lane.b32.xlu0 %v3152, 12
      %v3654 = vpop.permute.xlu0 %3653
      %3655 = vrot.lane.b32.xlu0 %v3153, 12
      %v3656 = vpop.permute.xlu0 %3655
      %3657 = vrot.lane.b32.xlu0 %v3154, 12
      %v3658 = vpop.permute.xlu0 %3657
      %3659 = vrot.lane.b32.xlu0 %v3155, 12
      %v3660 = vpop.permute.xlu0 %3659
      %3661 = vrot.lane.b32.xlu0 %v3156, 12
      %v3662 = vpop.permute.xlu0 %3661
      %3663 = vrot.lane.b32.xlu0 %v3157, 12
      %v3664 = vpop.permute.xlu0 %3663
      %3665 = vrot.lane.b32.xlu0 %v3158, 12
      %v3666 = vpop.permute.xlu0 %3665
      %3667 = vrot.lane.b32.xlu0 %v3159, 12
      %v3668 = vpop.permute.xlu0 %3667
      %3669 = vrot.lane.b32.xlu0 %v3160, 12
      %v3670 = vpop.permute.xlu0 %3669
      %3671 = vrot.lane.b32.xlu0 %v3161, 12
      %v3672 = vpop.permute.xlu0 %3671
      %3673 = vrot.lane.b32.xlu0 %v3162, 12
      %v3674 = vpop.permute.xlu0 %3673
      %3675 = vrot.lane.b32.xlu0 %v3163, 12
      %v3676 = vpop.permute.xlu0 %3675
      %3741 = vrot.lane.b32.xlu0 %v3164, 16
      %v3742 = vpop.permute.xlu0 %3741
      %3743 = vrot.lane.b32.xlu0 %v3165, 16
      %v3744 = vpop.permute.xlu0 %3743
      %3745 = vrot.lane.b32.xlu0 %v3166, 16
      %v3746 = vpop.permute.xlu0 %3745
      %3747 = vrot.lane.b32.xlu0 %v3167, 16
      %v3748 = vpop.permute.xlu0 %3747
      %3749 = vrot.lane.b32.xlu0 %v3168, 16
      %v3750 = vpop.permute.xlu0 %3749
      %3751 = vrot.lane.b32.xlu0 %v3169, 16
      %v3752 = vpop.permute.xlu0 %3751
      %3753 = vrot.lane.b32.xlu0 %v3170, 16
      %v3754 = vpop.permute.xlu0 %3753
      %3755 = vrot.lane.b32.xlu0 %v3171, 16
      %v3756 = vpop.permute.xlu0 %3755
      %3757 = vrot.lane.b32.xlu0 %v3172, 16
      %v3758 = vpop.permute.xlu0 %3757
      %3759 = vrot.lane.b32.xlu0 %v3173, 16
      %v3760 = vpop.permute.xlu0 %3759
      %3761 = vrot.lane.b32.xlu0 %v3174, 16
      %v3762 = vpop.permute.xlu0 %3761
      %3763 = vrot.lane.b32.xlu0 %v3175, 16
      %v3764 = vpop.permute.xlu0 %3763
      %3765 = vrot.lane.b32.xlu0 %v3176, 16
      %v3766 = vpop.permute.xlu0 %3765
      %3767 = vrot.lane.b32.xlu0 %v3177, 16
      %v3768 = vpop.permute.xlu0 %3767
      %3769 = vrot.lane.b32.xlu0 %v3178, 16
      %v3770 = vpop.permute.xlu0 %3769
      %3771 = vrot.lane.b32.xlu0 %v3179, 16
      %v3772 = vpop.permute.xlu0 %3771
      %3773 = vrot.lane.b32.xlu0 %v3180, 16
      %v3774 = vpop.permute.xlu0 %3773
      %3775 = vrot.lane.b32.xlu0 %v3181, 16
      %v3776 = vpop.permute.xlu0 %3775
      %3777 = vrot.lane.b32.xlu0 %v3182, 16
      %v3778 = vpop.permute.xlu0 %3777
      %3779 = vrot.lane.b32.xlu0 %v3183, 16
      %v3780 = vpop.permute.xlu0 %3779
      %3781 = vrot.lane.b32.xlu0 %v3184, 16
      %v3782 = vpop.permute.xlu0 %3781
      %3783 = vrot.lane.b32.xlu0 %v3185, 16
      %v3784 = vpop.permute.xlu0 %3783
      %3785 = vrot.lane.b32.xlu0 %v3186, 16
      %v3786 = vpop.permute.xlu0 %3785
      %3787 = vrot.lane.b32.xlu0 %v3187, 16
      %v3788 = vpop.permute.xlu0 %3787
      %3789 = vrot.lane.b32.xlu0 %v3188, 16
      %v3790 = vpop.permute.xlu0 %3789
      %3791 = vrot.lane.b32.xlu0 %v3189, 16
      %v3792 = vpop.permute.xlu0 %3791
      %3793 = vrot.lane.b32.xlu0 %v3190, 16
      %v3794 = vpop.permute.xlu0 %3793
      %3795 = vrot.lane.b32.xlu0 %v3191, 16
      %v3796 = vpop.permute.xlu0 %3795
      %3797 = vrot.lane.b32.xlu0 %v3192, 16
      %v3798 = vpop.permute.xlu0 %3797
      %3799 = vrot.lane.b32.xlu0 %v3193, 16
      %v3800 = vpop.permute.xlu0 %3799
      %3801 = vrot.lane.b32.xlu0 %v3194, 16
      %v3802 = vpop.permute.xlu0 %3801
      %3803 = vrot.lane.b32.xlu0 %v3195, 16
      %v3804 = vpop.permute.xlu0 %3803
      %3869 = vrot.lane.b32.xlu0 %v3196, 20
      %v3870 = vpop.permute.xlu0 %3869
      %3871 = vrot.lane.b32.xlu0 %v3197, 20
      %v3872 = vpop.permute.xlu0 %3871
      %3873 = vrot.lane.b32.xlu0 %v3198, 20
      %v3874 = vpop.permute.xlu0 %3873
      %3875 = vrot.lane.b32.xlu0 %v3199, 20
      %v3876 = vpop.permute.xlu0 %3875
      %3877 = vrot.lane.b32.xlu0 %v3200, 20
      %v3878 = vpop.permute.xlu0 %3877
      %3879 = vrot.lane.b32.xlu0 %v3201, 20
      %v3880 = vpop.permute.xlu0 %3879
      %3881 = vrot.lane.b32.xlu0 %v3202, 20
      %v3882 = vpop.permute.xlu0 %3881
      %3883 = vrot.lane.b32.xlu0 %v3203, 20
      %v3884 = vpop.permute.xlu0 %3883
      %3885 = vrot.lane.b32.xlu0 %v3204, 20
      %v3886 = vpop.permute.xlu0 %3885
      %3887 = vrot.lane.b32.xlu0 %v3205, 20
      %v3888 = vpop.permute.xlu0 %3887
      %3889 = vrot.lane.b32.xlu0 %v3206, 20
      %v3890 = vpop.permute.xlu0 %3889
      %3891 = vrot.lane.b32.xlu0 %v3207, 20
      %v3892 = vpop.permute.xlu0 %3891
      %3893 = vrot.lane.b32.xlu0 %v3208, 20
      %v3894 = vpop.permute.xlu0 %3893
      %3895 = vrot.lane.b32.xlu0 %v3209, 20
      %v3896 = vpop.permute.xlu0 %3895
      %3897 = vrot.lane.b32.xlu0 %v3210, 20
      %v3898 = vpop.permute.xlu0 %3897
      %3899 = vrot.lane.b32.xlu0 %v3211, 20
      %v3900 = vpop.permute.xlu0 %3899
      %3901 = vrot.lane.b32.xlu0 %v3212, 20
      %v3902 = vpop.permute.xlu0 %3901
      %3903 = vrot.lane.b32.xlu0 %v3213, 20
      %v3904 = vpop.permute.xlu0 %3903
      %3905 = vrot.lane.b32.xlu0 %v3214, 20
      %v3906 = vpop.permute.xlu0 %3905
      %3907 = vrot.lane.b32.xlu0 %v3215, 20
      %v3908 = vpop.permute.xlu0 %3907
      %3909 = vrot.lane.b32.xlu0 %v3216, 20
      %v3910 = vpop.permute.xlu0 %3909
      %3911 = vrot.lane.b32.xlu0 %v3217, 20
      %v3912 = vpop.permute.xlu0 %3911
      %3913 = vrot.lane.b32.xlu0 %v3218, 20
      %v3914 = vpop.permute.xlu0 %3913
      %3915 = vrot.lane.b32.xlu0 %v3219, 20
      %v3916 = vpop.permute.xlu0 %3915
      %3917 = vrot.lane.b32.xlu0 %v3220, 20
      %v3918 = vpop.permute.xlu0 %3917
      %3919 = vrot.lane.b32.xlu0 %v3221, 20
      %v3920 = vpop.permute.xlu0 %3919
      %3921 = vrot.lane.b32.xlu0 %v3222, 20
      %v3922 = vpop.permute.xlu0 %3921
      %3923 = vrot.lane.b32.xlu0 %v3223, 20
      %v3924 = vpop.permute.xlu0 %3923
      %3925 = vrot.lane.b32.xlu0 %v3224, 20
      %v3926 = vpop.permute.xlu0 %3925
      %3927 = vrot.lane.b32.xlu0 %v3225, 20
      %v3928 = vpop.permute.xlu0 %3927
      %3929 = vrot.lane.b32.xlu0 %v3226, 20
      %v3930 = vpop.permute.xlu0 %3929
      %3931 = vrot.lane.b32.xlu0 %v3227, 20
      %v3932 = vpop.permute.xlu0 %3931
      %3997 = vrot.lane.b32.xlu0 %v3229, 24
      %v3998 = vpop.permute.xlu0 %3997
      %3999 = vrot.lane.b32.xlu0 %v3230, 24
      %v4000 = vpop.permute.xlu0 %3999
      %4001 = vrot.lane.b32.xlu0 %v3231, 24
      %v4002 = vpop.permute.xlu0 %4001
      %4003 = vrot.lane.b32.xlu0 %v3232, 24
      %v4004 = vpop.permute.xlu0 %4003
      %4005 = vrot.lane.b32.xlu0 %v3233, 24
      %v4006 = vpop.permute.xlu0 %4005
      %4007 = vrot.lane.b32.xlu0 %v3234, 24
      %v4008 = vpop.permute.xlu0 %4007
      %4009 = vrot.lane.b32.xlu0 %v3235, 24
      %v4010 = vpop.permute.xlu0 %4009
      %4011 = vrot.lane.b32.xlu0 %v3236, 24
      %v4012 = vpop.permute.xlu0 %4011
      %4013 = vrot.lane.b32.xlu0 %v3237, 24
      %v4014 = vpop.permute.xlu0 %4013
      %4015 = vrot.lane.b32.xlu0 %v3238, 24
      %v4016 = vpop.permute.xlu0 %4015
      %4017 = vrot.lane.b32.xlu0 %v3239, 24
      %v4018 = vpop.permute.xlu0 %4017
      %4019 = vrot.lane.b32.xlu0 %v3240, 24
      %v4020 = vpop.permute.xlu0 %4019
      %4021 = vrot.lane.b32.xlu0 %v3241, 24
      %v4022 = vpop.permute.xlu0 %4021
      %4023 = vrot.lane.b32.xlu0 %v3242, 24
      %v4024 = vpop.permute.xlu0 %4023
      %4025 = vrot.lane.b32.xlu0 %v3243, 24
      %v4026 = vpop.permute.xlu0 %4025
      %4027 = vrot.lane.b32.xlu0 %v3244, 24
      %v4028 = vpop.permute.xlu0 %4027
      %4029 = vrot.lane.b32.xlu0 %v3245, 24
      %v4030 = vpop.permute.xlu0 %4029
      %4031 = vrot.lane.b32.xlu0 %v3246, 24
      %v4032 = vpop.permute.xlu0 %4031
      %4033 = vrot.lane.b32.xlu0 %v3247, 24
      %v4034 = vpop.permute.xlu0 %4033
      %4035 = vrot.lane.b32.xlu0 %v3248, 24
      %v4036 = vpop.permute.xlu0 %4035
      %4037 = vrot.lane.b32.xlu0 %v3249, 24
      %v4038 = vpop.permute.xlu0 %4037
      %4039 = vrot.lane.b32.xlu0 %v3250, 24
      %v4040 = vpop.permute.xlu0 %4039
      %4041 = vrot.lane.b32.xlu0 %v3251, 24
      %v4042 = vpop.permute.xlu0 %4041
      %4043 = vrot.lane.b32.xlu0 %v3252, 24
      %v4044 = vpop.permute.xlu0 %4043
      %4045 = vrot.lane.b32.xlu0 %v3253, 24
      %v4046 = vpop.permute.xlu0 %4045
      %4047 = vrot.lane.b32.xlu0 %v3254, 24
      %v4048 = vpop.permute.xlu0 %4047
      %4049 = vrot.lane.b32.xlu0 %v3255, 24
      %v4050 = vpop.permute.xlu0 %4049
      %4051 = vrot.lane.b32.xlu0 %v3256, 24
      %v4052 = vpop.permute.xlu0 %4051
      %4053 = vrot.lane.b32.xlu0 %v3257, 24
      %v4054 = vpop.permute.xlu0 %4053
      %4055 = vrot.lane.b32.xlu0 %v3258, 24
      %v4056 = vpop.permute.xlu0 %4055
      %4057 = vrot.lane.b32.xlu0 %v3259, 24
      %v4058 = vpop.permute.xlu0 %4057
      %4059 = vrot.lane.b32.xlu0 %v3260, 24
      %v4060 = vpop.permute.xlu0 %4059
      %4125 = vrot.lane.b32.xlu0 %v3261, 28
      %v4126 = vpop.permute.xlu0 %4125
      %4127 = vrot.lane.b32.xlu0 %v3262, 28
      %v4128 = vpop.permute.xlu0 %4127
      %4129 = vrot.lane.b32.xlu0 %v3263, 28
      %v4130 = vpop.permute.xlu0 %4129
      %4131 = vrot.lane.b32.xlu0 %v3264, 28
      %v4132 = vpop.permute.xlu0 %4131
      %4133 = vrot.lane.b32.xlu0 %v3265, 28
      %v4134 = vpop.permute.xlu0 %4133
      %4135 = vrot.lane.b32.xlu0 %v3266, 28
      %v4136 = vpop.permute.xlu0 %4135
      %4137 = vrot.lane.b32.xlu0 %v3267, 28
      %v4138 = vpop.permute.xlu0 %4137
      %4139 = vrot.lane.b32.xlu0 %v3268, 28
      %v4140 = vpop.permute.xlu0 %4139
      %4141 = vrot.lane.b32.xlu0 %v3269, 28
      %v4142 = vpop.permute.xlu0 %4141
      %4143 = vrot.lane.b32.xlu0 %v3270, 28
      %v4144 = vpop.permute.xlu0 %4143
      %4145 = vrot.lane.b32.xlu0 %v3271, 28
      %v4146 = vpop.permute.xlu0 %4145
      %4147 = vrot.lane.b32.xlu0 %v3272, 28
      %v4148 = vpop.permute.xlu0 %4147
      %4149 = vrot.lane.b32.xlu0 %v3273, 28
      %v4150 = vpop.permute.xlu0 %4149
      %4151 = vrot.lane.b32.xlu0 %v3274, 28
      %v4152 = vpop.permute.xlu0 %4151
      %4153 = vrot.lane.b32.xlu0 %v3275, 28
      %v4154 = vpop.permute.xlu0 %4153
      %4155 = vrot.lane.b32.xlu0 %v3276, 28
      %v4156 = vpop.permute.xlu0 %4155
      %4157 = vrot.lane.b32.xlu0 %v3277, 28
      %v4158 = vpop.permute.xlu0 %4157
      %4159 = vrot.lane.b32.xlu0 %v3278, 28
      %v4160 = vpop.permute.xlu0 %4159
      %4161 = vrot.lane.b32.xlu0 %v3279, 28
      %v4162 = vpop.permute.xlu0 %4161
      %4163 = vrot.lane.b32.xlu0 %v3280, 28
      %v4164 = vpop.permute.xlu0 %4163
      %4165 = vrot.lane.b32.xlu0 %v3281, 28
      %v4166 = vpop.permute.xlu0 %4165
      %4167 = vrot.lane.b32.xlu0 %v3282, 28
      %v4168 = vpop.permute.xlu0 %4167
      %4169 = vrot.lane.b32.xlu0 %v3283, 28
      %v4170 = vpop.permute.xlu0 %4169
      %4171 = vrot.lane.b32.xlu0 %v3284, 28
      %v4172 = vpop.permute.xlu0 %4171
      %4173 = vrot.lane.b32.xlu0 %v3285, 28
      %v4174 = vpop.permute.xlu0 %4173
      %4175 = vrot.lane.b32.xlu0 %v3286, 28
      %v4176 = vpop.permute.xlu0 %4175
      %4177 = vrot.lane.b32.xlu0 %v3287, 28
      %v4178 = vpop.permute.xlu0 %4177
      %4179 = vrot.lane.b32.xlu0 %v3288, 28
      %v4180 = vpop.permute.xlu0 %4179
      %4181 = vrot.lane.b32.xlu0 %v3289, 28
      %v4182 = vpop.permute.xlu0 %4181
      %4183 = vrot.lane.b32.xlu0 %v3290, 28
      %v4184 = vpop.permute.xlu0 %4183
      %4185 = vrot.lane.b32.xlu0 %v3291, 28
      %v4186 = vpop.permute.xlu0 %4185
      %4187 = vrot.lane.b32.xlu0 %v3292, 28
      %v4188 = vpop.permute.xlu0 %4187
      %4253 = vrot.lane.b32.xlu0 %v3293, 32
      %v4254 = vpop.permute.xlu0 %4253
      %4255 = vrot.lane.b32.xlu0 %v3294, 32
      %v4256 = vpop.permute.xlu0 %4255
      %4257 = vrot.lane.b32.xlu0 %v3295, 32
      %v4258 = vpop.permute.xlu0 %4257
      %4259 = vrot.lane.b32.xlu0 %v3296, 32
      %v4260 = vpop.permute.xlu0 %4259
      %4261 = vrot.lane.b32.xlu0 %v3297, 32
      %v4262 = vpop.permute.xlu0 %4261
      %4263 = vrot.lane.b32.xlu0 %v3298, 32
      %v4264 = vpop.permute.xlu0 %4263
      %4265 = vrot.lane.b32.xlu0 %v3299, 32
      %v4266 = vpop.permute.xlu0 %4265
      %4267 = vrot.lane.b32.xlu0 %v3300, 32
      %v4268 = vpop.permute.xlu0 %4267
      %4269 = vrot.lane.b32.xlu0 %v3301, 32
      %v4270 = vpop.permute.xlu0 %4269
      %4271 = vrot.lane.b32.xlu0 %v3302, 32
      %v4272 = vpop.permute.xlu0 %4271
      %4273 = vrot.lane.b32.xlu0 %v3303, 32
      %v4274 = vpop.permute.xlu0 %4273
      %4275 = vrot.lane.b32.xlu0 %v3304, 32
      %v4276 = vpop.permute.xlu0 %4275
      %4277 = vrot.lane.b32.xlu0 %v3305, 32
      %v4278 = vpop.permute.xlu0 %4277
      %4279 = vrot.lane.b32.xlu0 %v3306, 32
      %v4280 = vpop.permute.xlu0 %4279
      %4281 = vrot.lane.b32.xlu0 %v3307, 32
      %v4282 = vpop.permute.xlu0 %4281
      %4283 = vrot.lane.b32.xlu0 %v3308, 32
      %v4284 = vpop.permute.xlu0 %4283
      %4285 = vrot.lane.b32.xlu0 %v3309, 32
      %v4286 = vpop.permute.xlu0 %4285
      %4287 = vrot.lane.b32.xlu0 %v3310, 32
      %v4288 = vpop.permute.xlu0 %4287
      %4289 = vrot.lane.b32.xlu0 %v3311, 32
      %v4290 = vpop.permute.xlu0 %4289
      %4291 = vrot.lane.b32.xlu0 %v3312, 32
      %v4292 = vpop.permute.xlu0 %4291
      %4293 = vrot.lane.b32.xlu0 %v3313, 32
      %v4294 = vpop.permute.xlu0 %4293
      %4295 = vrot.lane.b32.xlu0 %v3314, 32
      %v4296 = vpop.permute.xlu0 %4295
      %4297 = vrot.lane.b32.xlu0 %v3315, 32
      %v4298 = vpop.permute.xlu0 %4297
      %4299 = vrot.lane.b32.xlu0 %v3316, 32
      %v4300 = vpop.permute.xlu0 %4299
      %4301 = vrot.lane.b32.xlu0 %v3317, 32
      %v4302 = vpop.permute.xlu0 %4301
      %4303 = vrot.lane.b32.xlu0 %v3318, 32
      %v4304 = vpop.permute.xlu0 %4303
      %4305 = vrot.lane.b32.xlu0 %v3319, 32
      %v4306 = vpop.permute.xlu0 %4305
      %4307 = vrot.lane.b32.xlu0 %v3320, 32
      %v4308 = vpop.permute.xlu0 %4307
      %4309 = vrot.lane.b32.xlu0 %v3321, 32
      %v4310 = vpop.permute.xlu0 %4309
      %4311 = vrot.lane.b32.xlu0 %v3322, 32
      %v4312 = vpop.permute.xlu0 %4311
      %4313 = vrot.lane.b32.xlu0 %v3323, 32
      %v4314 = vpop.permute.xlu0 %4313
      %4315 = vrot.lane.b32.xlu0 %v3324, 32
      %v4316 = vpop.permute.xlu0 %4315
      %v4349 = vsel %vm1049, %v3036, %v3358
      %v4350 = vsel %vm1049, %v3037, %v3360
      %v4351 = vsel %vm1049, %v3038, %v3362
      %v4352 = vsel %vm1049, %v3039, %v3364
      %v4353 = vsel %vm1049, %v3040, %v3366
      %v4354 = vsel %vm1049, %v3041, %v3368
      %v4355 = vsel %vm1049, %v3042, %v3370
      %v4356 = vsel %vm1049, %v3043, %v3372
      %v4357 = vsel %vm1049, %v3044, %v3374
      %v4358 = vsel %vm1049, %v3045, %v3376
      %v4359 = vsel %vm1049, %v3046, %v3378
      %v4360 = vsel %vm1049, %v3047, %v3380
      %v4361 = vsel %vm1049, %v3048, %v3382
      %v4362 = vsel %vm1049, %v3049, %v3384
      %v4363 = vsel %vm1049, %v3050, %v3386
      %v4364 = vsel %vm1049, %v3051, %v3388
      %v4365 = vsel %vm1049, %v3052, %v3390
      %v4366 = vsel %vm1049, %v3053, %v3392
      %v4367 = vsel %vm1049, %v3054, %v3394
      %v4368 = vsel %vm1049, %v3055, %v3396
      %v4369 = vsel %vm1049, %v3056, %v3398
      %v4370 = vsel %vm1049, %v3057, %v3400
      %v4371 = vsel %vm1049, %v3058, %v3402
      %v4372 = vsel %vm1049, %v3059, %v3404
      %v4373 = vsel %vm1049, %v3060, %v3406
      %v4374 = vsel %vm1049, %v3061, %v3408
      %v4375 = vsel %vm1049, %v3062, %v3410
      %v4376 = vsel %vm1049, %v3063, %v3412
      %v4377 = vsel %vm1049, %v3064, %v3414
      %v4378 = vsel %vm1049, %v3065, %v3416
      %v4379 = vsel %vm1049, %v3066, %v3418
      %v4380 = vsel %vm1049, %v3067, %v3420
      %v4381 = vsel %vm350, %v4349, %v3486
      %v4382 = vsel %vm350, %v4350, %v3488
      %v4383 = vsel %vm350, %v4351, %v3490
      %v4384 = vsel %vm350, %v4352, %v3492
      %v4385 = vsel %vm350, %v4353, %v3494
      %v4386 = vsel %vm350, %v4354, %v3496
      %v4387 = vsel %vm350, %v4355, %v3498
      %v4388 = vsel %vm350, %v4356, %v3500
      %v4389 = vsel %vm350, %v4357, %v3502
      %v4390 = vsel %vm350, %v4358, %v3504
      %v4391 = vsel %vm350, %v4359, %v3506
      %v4392 = vsel %vm350, %v4360, %v3508
      %v4393 = vsel %vm350, %v4361, %v3510
      %v4394 = vsel %vm350, %v4362, %v3512
      %v4395 = vsel %vm350, %v4363, %v3514
      %v4396 = vsel %vm350, %v4364, %v3516
      %v4397 = vsel %vm350, %v4365, %v3518
      %v4398 = vsel %vm350, %v4366, %v3520
      %v4399 = vsel %vm350, %v4367, %v3522
      %v4400 = vsel %vm350, %v4368, %v3524
      %v4401 = vsel %vm350, %v4369, %v3526
      %v4402 = vsel %vm350, %v4370, %v3528
      %v4403 = vsel %vm350, %v4371, %v3530
      %v4404 = vsel %vm350, %v4372, %v3532
      %v4405 = vsel %vm350, %v4373, %v3534
      %v4406 = vsel %vm350, %v4374, %v3536
      %v4407 = vsel %vm350, %v4375, %v3538
      %v4408 = vsel %vm350, %v4376, %v3540
      %v4409 = vsel %vm350, %v4377, %v3542
      %v4410 = vsel %vm350, %v4378, %v3544
      %v4411 = vsel %vm350, %v4379, %v3546
      %v4412 = vsel %vm350, %v4380, %v3548
      %v4413 = vsel %vm2833, %v4381, %v3614
      %v4414 = vsel %vm2833, %v4382, %v3616
      %v4415 = vsel %vm2833, %v4383, %v3618
      %v4416 = vsel %vm2833, %v4384, %v3620
      %v4417 = vsel %vm2833, %v4385, %v3622
      %v4418 = vsel %vm2833, %v4386, %v3624
      %v4419 = vsel %vm2833, %v4387, %v3626
      %v4420 = vsel %vm2833, %v4388, %v3628
      %v4421 = vsel %vm2833, %v4389, %v3630
      %v4422 = vsel %vm2833, %v4390, %v3632
      %v4423 = vsel %vm2833, %v4391, %v3634
      %v4424 = vsel %vm2833, %v4392, %v3636
      %v4425 = vsel %vm2833, %v4393, %v3638
      %v4426 = vsel %vm2833, %v4394, %v3640
      %v4427 = vsel %vm2833, %v4395, %v3642
      %v4428 = vsel %vm2833, %v4396, %v3644
      %v4429 = vsel %vm2833, %v4397, %v3646
      %v4430 = vsel %vm2833, %v4398, %v3648
      %v4431 = vsel %vm2833, %v4399, %v3650
      %v4432 = vsel %vm2833, %v4400, %v3652
      %v4433 = vsel %vm2833, %v4401, %v3654
      %v4434 = vsel %vm2833, %v4402, %v3656
      %v4435 = vsel %vm2833, %v4403, %v3658
      %v4436 = vsel %vm2833, %v4404, %v3660
      %v4437 = vsel %vm2833, %v4405, %v3662
      %v4438 = vsel %vm2833, %v4406, %v3664
      %v4439 = vsel %vm2833, %v4407, %v3666
      %v4440 = vsel %vm2833, %v4408, %v3668
      %v4441 = vsel %vm2833, %v4409, %v3670
      %v4442 = vsel %vm2833, %v4410, %v3672
      %v4443 = vsel %vm2833, %v4411, %v3674
      %v4444 = vsel %vm2833, %v4412, %v3676
      %v4445 = vsel %vm2866, %v4413, %v3742
      %v4446 = vsel %vm2866, %v4414, %v3744
      %v4447 = vsel %vm2866, %v4415, %v3746
      %v4448 = vsel %vm2866, %v4416, %v3748
      %v4449 = vsel %vm2866, %v4417, %v3750
      %v4450 = vsel %vm2866, %v4418, %v3752
      %v4451 = vsel %vm2866, %v4419, %v3754
      %v4452 = vsel %vm2866, %v4420, %v3756
      %v4453 = vsel %vm2866, %v4421, %v3758
      %v4454 = vsel %vm2866, %v4422, %v3760
      %v4455 = vsel %vm2866, %v4423, %v3762
      %v4456 = vsel %vm2866, %v4424, %v3764
      %v4457 = vsel %vm2866, %v4425, %v3766
      %v4458 = vsel %vm2866, %v4426, %v3768
      %v4459 = vsel %vm2866, %v4427, %v3770
      %v4460 = vsel %vm2866, %v4428, %v3772
      %v4461 = vsel %vm2866, %v4429, %v3774
      %v4462 = vsel %vm2866, %v4430, %v3776
      %v4463 = vsel %vm2866, %v4431, %v3778
      %v4464 = vsel %vm2866, %v4432, %v3780
      %v4465 = vsel %vm2866, %v4433, %v3782
      %v4466 = vsel %vm2866, %v4434, %v3784
      %v4467 = vsel %vm2866, %v4435, %v3786
      %v4468 = vsel %vm2866, %v4436, %v3788
      %v4469 = vsel %vm2866, %v4437, %v3790
      %v4470 = vsel %vm2866, %v4438, %v3792
      %v4471 = vsel %vm2866, %v4439, %v3794
      %v4472 = vsel %vm2866, %v4440, %v3796
      %v4473 = vsel %vm2866, %v4441, %v3798
      %v4474 = vsel %vm2866, %v4442, %v3800
      %v4475 = vsel %vm2866, %v4443, %v3802
      %v4476 = vsel %vm2866, %v4444, %v3804
      %v4477 = vsel %vm2899, %v4445, %v3870
      %v4478 = vsel %vm2899, %v4446, %v3872
      %v4479 = vsel %vm2899, %v4447, %v3874
      %v4480 = vsel %vm2899, %v4448, %v3876
      %v4481 = vsel %vm2899, %v4449, %v3878
      %v4482 = vsel %vm2899, %v4450, %v3880
      %v4483 = vsel %vm2899, %v4451, %v3882
      %v4484 = vsel %vm2899, %v4452, %v3884
      %v4485 = vsel %vm2899, %v4453, %v3886
      %v4486 = vsel %vm2899, %v4454, %v3888
      %v4487 = vsel %vm2899, %v4455, %v3890
      %v4488 = vsel %vm2899, %v4456, %v3892
      %v4489 = vsel %vm2899, %v4457, %v3894
      %v4490 = vsel %vm2899, %v4458, %v3896
      %v4491 = vsel %vm2899, %v4459, %v3898
      %v4492 = vsel %vm2899, %v4460, %v3900
      %v4493 = vsel %vm2899, %v4461, %v3902
      %v4494 = vsel %vm2899, %v4462, %v3904
      %v4495 = vsel %vm2899, %v4463, %v3906
      %v4496 = vsel %vm2899, %v4464, %v3908
      %v4497 = vsel %vm2899, %v4465, %v3910
      %v4498 = vsel %vm2899, %v4466, %v3912
      %v4499 = vsel %vm2899, %v4467, %v3914
      %v4500 = vsel %vm2899, %v4468, %v3916
      %v4501 = vsel %vm2899, %v4469, %v3918
      %v4502 = vsel %vm2899, %v4470, %v3920
      %v4503 = vsel %vm2899, %v4471, %v3922
      %v4504 = vsel %vm2899, %v4472, %v3924
      %v4505 = vsel %vm2899, %v4473, %v3926
      %v4506 = vsel %vm2899, %v4474, %v3928
      %v4507 = vsel %vm2899, %v4475, %v3930
      %v4508 = vsel %vm2899, %v4476, %v3932
      %v4509 = vsel %vm2932, %v4477, %v3998
      %v4510 = vsel %vm2932, %v4478, %v4000
      %v4511 = vsel %vm2932, %v4479, %v4002
      %v4512 = vsel %vm2932, %v4480, %v4004
      %v4513 = vsel %vm2932, %v4481, %v4006
      %v4514 = vsel %vm2932, %v4482, %v4008
      %v4515 = vsel %vm2932, %v4483, %v4010
      %v4516 = vsel %vm2932, %v4484, %v4012
      %v4517 = vsel %vm2932, %v4485, %v4014
      %v4518 = vsel %vm2932, %v4486, %v4016
      %v4519 = vsel %vm2932, %v4487, %v4018
      %v4520 = vsel %vm2932, %v4488, %v4020
      %v4521 = vsel %vm2932, %v4489, %v4022
      %v4522 = vsel %vm2932, %v4490, %v4024
      %v4523 = vsel %vm2932, %v4491, %v4026
      %v4524 = vsel %vm2932, %v4492, %v4028
      %v4525 = vsel %vm2932, %v4493, %v4030
      %v4526 = vsel %vm2932, %v4494, %v4032
      %v4527 = vsel %vm2932, %v4495, %v4034
      %v4528 = vsel %vm2932, %v4496, %v4036
      %v4529 = vsel %vm2932, %v4497, %v4038
      %v4530 = vsel %vm2932, %v4498, %v4040
      %v4531 = vsel %vm2932, %v4499, %v4042
      %v4532 = vsel %vm2932, %v4500, %v4044
      %v4533 = vsel %vm2932, %v4501, %v4046
      %v4534 = vsel %vm2932, %v4502, %v4048
      %v4535 = vsel %vm2932, %v4503, %v4050
      %v4536 = vsel %vm2932, %v4504, %v4052
      %v4537 = vsel %vm2932, %v4505, %v4054
      %v4538 = vsel %vm2932, %v4506, %v4056
      %v4539 = vsel %vm2932, %v4507, %v4058
      %v4540 = vsel %vm2932, %v4508, %v4060
      %v4541 = vsel %vm2965, %v4509, %v4126
      %v4542 = vsel %vm2965, %v4510, %v4128
      %v4543 = vsel %vm2965, %v4511, %v4130
      %v4544 = vsel %vm2965, %v4512, %v4132
      %v4545 = vsel %vm2965, %v4513, %v4134
      %v4546 = vsel %vm2965, %v4514, %v4136
      %v4547 = vsel %vm2965, %v4515, %v4138
      %v4548 = vsel %vm2965, %v4516, %v4140
      %v4549 = vsel %vm2965, %v4517, %v4142
      %v4550 = vsel %vm2965, %v4518, %v4144
      %v4551 = vsel %vm2965, %v4519, %v4146
      %v4552 = vsel %vm2965, %v4520, %v4148
      %v4553 = vsel %vm2965, %v4521, %v4150
      %v4554 = vsel %vm2965, %v4522, %v4152
      %v4555 = vsel %vm2965, %v4523, %v4154
      %v4556 = vsel %vm2965, %v4524, %v4156
      %v4557 = vsel %vm2965, %v4525, %v4158
      %v4558 = vsel %vm2965, %v4526, %v4160
      %v4559 = vsel %vm2965, %v4527, %v4162
      %v4560 = vsel %vm2965, %v4528, %v4164
      %v4561 = vsel %vm2965, %v4529, %v4166
      %v4562 = vsel %vm2965, %v4530, %v4168
      %v4563 = vsel %vm2965, %v4531, %v4170
      %v4564 = vsel %vm2965, %v4532, %v4172
      %v4565 = vsel %vm2965, %v4533, %v4174
      %v4566 = vsel %vm2965, %v4534, %v4176
      %v4567 = vsel %vm2965, %v4535, %v4178
      %v4568 = vsel %vm2965, %v4536, %v4180
      %v4569 = vsel %vm2965, %v4537, %v4182
      %v4570 = vsel %vm2965, %v4538, %v4184
      %v4571 = vsel %vm2965, %v4539, %v4186
      %v4572 = vsel %vm2965, %v4540, %v4188
      %v4573 = vsel %vm2998, %v4541, %v4254
      %v4574 = vsel %vm2998, %v4542, %v4256
      %v4575 = vsel %vm2998, %v4543, %v4258
      %v4576 = vsel %vm2998, %v4544, %v4260
      %v4577 = vsel %vm2998, %v4545, %v4262
      %v4578 = vsel %vm2998, %v4546, %v4264
      %v4579 = vsel %vm2998, %v4547, %v4266
      %v4580 = vsel %vm2998, %v4548, %v4268
      %v4581 = vsel %vm2998, %v4549, %v4270
      %v4582 = vsel %vm2998, %v4550, %v4272
      %v4583 = vsel %vm2998, %v4551, %v4274
      %v4584 = vsel %vm2998, %v4552, %v4276
      %v4585 = vsel %vm2998, %v4553, %v4278
      %v4586 = vsel %vm2998, %v4554, %v4280
      %v4587 = vsel %vm2998, %v4555, %v4282
      %v4588 = vsel %vm2998, %v4556, %v4284
      %v4589 = vsel %vm2998, %v4557, %v4286
      %v4590 = vsel %vm2998, %v4558, %v4288
      %v4591 = vsel %vm2998, %v4559, %v4290
      %v4592 = vsel %vm2998, %v4560, %v4292
      %v4593 = vsel %vm2998, %v4561, %v4294
      %v4594 = vsel %vm2998, %v4562, %v4296
      %v4595 = vsel %vm2998, %v4563, %v4298
      %v4596 = vsel %vm2998, %v4564, %v4300
      %v4597 = vsel %vm2998, %v4565, %v4302
      %v4598 = vsel %vm2998, %v4566, %v4304
      %v4599 = vsel %vm2998, %v4567, %v4306
      %v4600 = vsel %vm2998, %v4568, %v4308
      %v4601 = vsel %vm2998, %v4569, %v4310
      %v4602 = vsel %vm2998, %v4570, %v4312
      %v4603 = vsel %vm2998, %v4571, %v4314
      %v4604 = vsel %vm2998, %v4572, %v4316
      %v4605 = vld [vmem:[%s5] sm:$0xff]
      %v4606 = vld [vmem:[%s5 + $0x8] sm:$0xff]
      %v4607 = vld [vmem:[%s5 + $0x10] sm:$0xff]
      %v4608 = vld [vmem:[%s5 + $0x18] sm:$0xff]
      %v4609 = vld [vmem:[%s5 + $0x20] sm:$0xf]
      %vm4610 = vcmask 293888
      %v4612 = vsel %vm4610, %v4573, 0
      %v4615 = vsel %vm4610, %v4574, 0
      %v4618 = vsel %vm4610, %v4575, 0
      %v4621 = vsel %vm4610, %v4576, 0
      %v4624 = vsel %vm4610, %v4577, 0
      %v4627 = vsel %vm4610, %v4578, 0
      %v4630 = vsel %vm4610, %v4579, 0
      %v4633 = vsel %vm4610, %v4580, 0
      %v4636 = vsel %vm4610, %v4581, 0
      %v4639 = vsel %vm4610, %v4582, 0
      %v4642 = vsel %vm4610, %v4583, 0
      %v4645 = vsel %vm4610, %v4584, 0
      %v4648 = vsel %vm4610, %v4585, 0
      %v4651 = vsel %vm4610, %v4586, 0
      %v4654 = vsel %vm4610, %v4587, 0
      %v4657 = vsel %vm4610, %v4588, 0
      %v4660 = vsel %vm4610, %v4589, 0
      %v4663 = vsel %vm4610, %v4590, 0
      %v4666 = vsel %vm4610, %v4591, 0
      %v4669 = vsel %vm4610, %v4592, 0
      %v4672 = vsel %vm4610, %v4593, 0
      %v4675 = vsel %vm4610, %v4594, 0
      %v4678 = vsel %vm4610, %v4595, 0
      %v4681 = vsel %vm4610, %v4596, 0
      %v4684 = vsel %vm4610, %v4597, 0
      %v4687 = vsel %vm4610, %v4598, 0
      %v4690 = vsel %vm4610, %v4599, 0
      %v4693 = vsel %vm4610, %v4600, 0
      %v4696 = vsel %vm4610, %v4601, 0
      %v4699 = vsel %vm4610, %v4602, 0
      %v4702 = vsel %vm4610, %v4603, 0
      %v4705 = vsel %vm4610, %v4604, 0
      %vm4707 = vcmask 1043456
      %v4709 = vsel %vm4707, %v4609, 0
      %4711 = vmatpush.msra.mxu0 0.0
      %4712 = vmatpush.msra.mxu0 0.0
      %4713 = vmatpush.msra.mxu0 0.0
      %4714 = vmatpush.msra.mxu0 0.0
      %4715 = vmatpush.msra.mxu0 0.0
      %4716 = vmatpush.msra.mxu0 0.0
      %4717 = vmatpush.msra.mxu0 0.0
      %4718 = vmatpush.msra.mxu0 0.0
      %4719 = vmatpush.msra.mxu0 0.0
      %4720 = vmatpush.msra.mxu0 0.0
      %4721 = vmatpush.msra.mxu0 0.0
      %4722 = vmatpush.msra.mxu0 %v4709
      %4723 = vmatpush.msra.mxu0 %v4608
      %4724 = vmatpush.msra.mxu0 %v4607
      %4725 = vmatpush.msra.mxu0 %v4606
      %4726 = vmatpush.msra.mxu0 %v4605
      %4727 = vmatmul.f32.gmra.mxu0 %v4612
      %v4728 = vpop.f32.mrf.mxu0
      %v4729 = vadd.f32 0.0, %v4728
      %4730 = vmatmul.f32.gmra.mxu0 %v4615
      %v4731 = vpop.f32.mrf.mxu0
      %v4732 = vadd.f32 0.0, %v4731
      %4733 = vmatmul.f32.gmra.mxu0 %v4618
      %v4734 = vpop.f32.mrf.mxu0
      %v4735 = vadd.f32 0.0, %v4734
      %4736 = vmatmul.f32.gmra.mxu0 %v4621
      %v4737 = vpop.f32.mrf.mxu0
      %v4738 = vadd.f32 0.0, %v4737
      %4739 = vmatmul.f32.gmra.mxu0 %v4624
      %v4740 = vpop.f32.mrf.mxu0
      %v4741 = vadd.f32 0.0, %v4740
      %4742 = vmatmul.f32.gmra.mxu0 %v4627
      %v4743 = vpop.f32.mrf.mxu0
      %v4744 = vadd.f32 0.0, %v4743
      %4745 = vmatmul.f32.gmra.mxu0 %v4630
      %v4746 = vpop.f32.mrf.mxu0
      %v4747 = vadd.f32 0.0, %v4746
      %4748 = vmatmul.f32.gmra.mxu0 %v4633
      %v4749 = vpop.f32.mrf.mxu0
      %v4750 = vadd.f32 0.0, %v4749
      %4751 = vmatmul.f32.gmra.mxu0 %v4636
      %v4752 = vpop.f32.mrf.mxu0
      %v4753 = vadd.f32 0.0, %v4752
      %4754 = vmatmul.f32.gmra.mxu0 %v4639
      %v4755 = vpop.f32.mrf.mxu0
      %v4756 = vadd.f32 0.0, %v4755
      %4757 = vmatmul.f32.gmra.mxu0 %v4642
      %v4758 = vpop.f32.mrf.mxu0
      %v4759 = vadd.f32 0.0, %v4758
      %4760 = vmatmul.f32.gmra.mxu0 %v4645
      %v4761 = vpop.f32.mrf.mxu0
      %v4762 = vadd.f32 0.0, %v4761
      %4763 = vmatmul.f32.gmra.mxu0 %v4648
      %v4764 = vpop.f32.mrf.mxu0
      %v4765 = vadd.f32 0.0, %v4764
      %4766 = vmatmul.f32.gmra.mxu0 %v4651
      %v4767 = vpop.f32.mrf.mxu0
      %v4768 = vadd.f32 0.0, %v4767
      %4769 = vmatmul.f32.gmra.mxu0 %v4654
      %v4770 = vpop.f32.mrf.mxu0
      %v4771 = vadd.f32 0.0, %v4770
      %4772 = vmatmul.f32.gmra.mxu0 %v4657
      %v4773 = vpop.f32.mrf.mxu0
      %v4774 = vadd.f32 0.0, %v4773
      %4775 = vmatmul.f32.gmra.mxu0 %v4660
      %v4776 = vpop.f32.mrf.mxu0
      %v4777 = vadd.f32 0.0, %v4776
      %4778 = vmatmul.f32.gmra.mxu0 %v4663
      %v4779 = vpop.f32.mrf.mxu0
      %v4780 = vadd.f32 0.0, %v4779
      %4781 = vmatmul.f32.gmra.mxu0 %v4666
      %v4782 = vpop.f32.mrf.mxu0
      %v4783 = vadd.f32 0.0, %v4782
      %4784 = vmatmul.f32.gmra.mxu0 %v4669
      %v4785 = vpop.f32.mrf.mxu0
      %v4786 = vadd.f32 0.0, %v4785
      %4787 = vmatmul.f32.gmra.mxu0 %v4672
      %v4788 = vpop.f32.mrf.mxu0
      %v4789 = vadd.f32 0.0, %v4788
      %4790 = vmatmul.f32.gmra.mxu0 %v4675
      %v4791 = vpop.f32.mrf.mxu0
      %v4792 = vadd.f32 0.0, %v4791
      %4793 = vmatmul.f32.gmra.mxu0 %v4678
      %v4794 = vpop.f32.mrf.mxu0
      %v4795 = vadd.f32 0.0, %v4794
      %4796 = vmatmul.f32.gmra.mxu0 %v4681
      %v4797 = vpop.f32.mrf.mxu0
      %v4798 = vadd.f32 0.0, %v4797
      %4799 = vmatmul.f32.gmra.mxu0 %v4684
      %v4800 = vpop.f32.mrf.mxu0
      %v4801 = vadd.f32 0.0, %v4800
      %4802 = vmatmul.f32.gmra.mxu0 %v4687
      %v4803 = vpop.f32.mrf.mxu0
      %v4804 = vadd.f32 0.0, %v4803
      %4805 = vmatmul.f32.gmra.mxu0 %v4690
      %v4806 = vpop.f32.mrf.mxu0
      %v4807 = vadd.f32 0.0, %v4806
      %4808 = vmatmul.f32.gmra.mxu0 %v4693
      %v4809 = vpop.f32.mrf.mxu0
      %v4810 = vadd.f32 0.0, %v4809
      %4811 = vmatmul.f32.gmra.mxu0 %v4696
      %v4812 = vpop.f32.mrf.mxu0
      %v4813 = vadd.f32 0.0, %v4812
      %4814 = vmatmul.f32.gmra.mxu0 %v4699
      %v4815 = vpop.f32.mrf.mxu0
      %v4816 = vadd.f32 0.0, %v4815
      %4817 = vmatmul.f32.gmra.mxu0 %v4702
      %v4818 = vpop.f32.mrf.mxu0
      %v4819 = vadd.f32 0.0, %v4818
      %4820 = vmatmul.f32.gmra.mxu0 %v4705
      %v4821 = vpop.f32.mrf.mxu0
      %v4822 = vadd.f32 0.0, %v4821
      %4823 = vdwg.mxu0
      %v4825 = vsel %vm4610, %v2999, 0
      %v4828 = vsel %vm4610, %v3000, 0
      %v4831 = vsel %vm4610, %v3001, 0
      %v4834 = vsel %vm4610, %v3002, 0
      %v4837 = vsel %vm4610, %v3003, 0
      %v4840 = vsel %vm4610, %v3004, 0
      %v4843 = vsel %vm4610, %v3005, 0
      %v4846 = vsel %vm4610, %v3006, 0
      %v4849 = vsel %vm4610, %v3007, 0
      %v4852 = vsel %vm4610, %v3008, 0
      %v4855 = vsel %vm4610, %v3009, 0
      %v4858 = vsel %vm4610, %v3010, 0
      %v4861 = vsel %vm4610, %v3011, 0
      %v4864 = vsel %vm4610, %v3012, 0
      %v4867 = vsel %vm4610, %v3013, 0
      %v4870 = vsel %vm4610, %v3014, 0
      %v4873 = vsel %vm4610, %v3015, 0
      %v4876 = vsel %vm4610, %v3016, 0
      %v4879 = vsel %vm4610, %v3017, 0
      %v4882 = vsel %vm4610, %v3018, 0
      %v4885 = vsel %vm4610, %v3019, 0
      %v4888 = vsel %vm4610, %v3020, 0
      %v4891 = vsel %vm4610, %v3021, 0
      %v4894 = vsel %vm4610, %v3022, 0
      %v4897 = vsel %vm4610, %v3023, 0
      %v4900 = vsel %vm4610, %v3024, 0
      %v4903 = vsel %vm4610, %v3025, 0
      %v4906 = vsel %vm4610, %v3026, 0
      %v4909 = vsel %vm4610, %v3027, 0
      %v4912 = vsel %vm4610, %v3028, 0
      %v4915 = vsel %vm4610, %v3029, 0
      %v4918 = vsel %vm4610, %v3030, 0
      %v4921 = vsel %vm4707, %v3035, 0
      %4923 = vmatpush.msra.mxu0 0.0
      %4924 = vmatpush.msra.mxu0 0.0
      %4925 = vmatpush.msra.mxu0 0.0
      %4926 = vmatpush.msra.mxu0 0.0
      %4927 = vmatpush.msra.mxu0 0.0
      %4928 = vmatpush.msra.mxu0 0.0
      %4929 = vmatpush.msra.mxu0 0.0
      %4930 = vmatpush.msra.mxu0 0.0
      %4931 = vmatpush.msra.mxu0 0.0
      %4932 = vmatpush.msra.mxu0 0.0
      %4933 = vmatpush.msra.mxu0 0.0
      %4934 = vmatpush.msra.mxu0 %v4921
      %4935 = vmatpush.msra.mxu0 %v3034
      %4936 = vmatpush.msra.mxu0 %v3033
      %4937 = vmatpush.msra.mxu0 %v3032
      %4938 = vmatpush.msra.mxu0 %v3031
      %4939 = vmatmul.f32.gmra.mxu0 %v4825
      %v4940 = vpop.f32.mrf.mxu0
      %v4941 = vadd.f32 %v4729, %v4940
      %4942 = vmatmul.f32.gmra.mxu0 %v4828
      %v4943 = vpop.f32.mrf.mxu0
      %v4944 = vadd.f32 %v4732, %v4943
      %4945 = vmatmul.f32.gmra.mxu0 %v4831
      %v4946 = vpop.f32.mrf.mxu0
      %v4947 = vadd.f32 %v4735, %v4946
      %4948 = vmatmul.f32.gmra.mxu0 %v4834
      %v4949 = vpop.f32.mrf.mxu0
      %v4950 = vadd.f32 %v4738, %v4949
      %4951 = vmatmul.f32.gmra.mxu0 %v4837
      %v4952 = vpop.f32.mrf.mxu0
      %v4953 = vadd.f32 %v4741, %v4952
      %4954 = vmatmul.f32.gmra.mxu0 %v4840
      %v4955 = vpop.f32.mrf.mxu0
      %v4956 = vadd.f32 %v4744, %v4955
      %4957 = vmatmul.f32.gmra.mxu0 %v4843
      %v4958 = vpop.f32.mrf.mxu0
      %v4959 = vadd.f32 %v4747, %v4958
      %4960 = vmatmul.f32.gmra.mxu0 %v4846
      %v4961 = vpop.f32.mrf.mxu0
      %v4962 = vadd.f32 %v4750, %v4961
      %4963 = vmatmul.f32.gmra.mxu0 %v4849
      %v4964 = vpop.f32.mrf.mxu0
      %v4965 = vadd.f32 %v4753, %v4964
      %4966 = vmatmul.f32.gmra.mxu0 %v4852
      %v4967 = vpop.f32.mrf.mxu0
      %v4968 = vadd.f32 %v4756, %v4967
      %4969 = vmatmul.f32.gmra.mxu0 %v4855
      %v4970 = vpop.f32.mrf.mxu0
      %v4971 = vadd.f32 %v4759, %v4970
      %4972 = vmatmul.f32.gmra.mxu0 %v4858
      %v4973 = vpop.f32.mrf.mxu0
      %v4974 = vadd.f32 %v4762, %v4973
      %4975 = vmatmul.f32.gmra.mxu0 %v4861
      %v4976 = vpop.f32.mrf.mxu0
      %v4977 = vadd.f32 %v4765, %v4976
      %4978 = vmatmul.f32.gmra.mxu0 %v4864
      %v4979 = vpop.f32.mrf.mxu0
      %v4980 = vadd.f32 %v4768, %v4979
      %4981 = vmatmul.f32.gmra.mxu0 %v4867
      %v4982 = vpop.f32.mrf.mxu0
      %v4983 = vadd.f32 %v4771, %v4982
      %4984 = vmatmul.f32.gmra.mxu0 %v4870
      %v4985 = vpop.f32.mrf.mxu0
      %v4986 = vadd.f32 %v4774, %v4985
      %4987 = vmatmul.f32.gmra.mxu0 %v4873
      %v4988 = vpop.f32.mrf.mxu0
      %v4989 = vadd.f32 %v4777, %v4988
      %4990 = vmatmul.f32.gmra.mxu0 %v4876
      %v4991 = vpop.f32.mrf.mxu0
      %v4992 = vadd.f32 %v4780, %v4991
      %4993 = vmatmul.f32.gmra.mxu0 %v4879
      %v4994 = vpop.f32.mrf.mxu0
      %v4995 = vadd.f32 %v4783, %v4994
      %4996 = vmatmul.f32.gmra.mxu0 %v4882
      %v4997 = vpop.f32.mrf.mxu0
      %v4998 = vadd.f32 %v4786, %v4997
      %4999 = vmatmul.f32.gmra.mxu0 %v4885
      %v5000 = vpop.f32.mrf.mxu0
      %v5001 = vadd.f32 %v4789, %v5000
      %5002 = vmatmul.f32.gmra.mxu0 %v4888
      %v5003 = vpop.f32.mrf.mxu0
      %v5004 = vadd.f32 %v4792, %v5003
      %5005 = vmatmul.f32.gmra.mxu0 %v4891
      %v5006 = vpop.f32.mrf.mxu0
      %v5007 = vadd.f32 %v4795, %v5006
      %5008 = vmatmul.f32.gmra.mxu0 %v4894
      %v5009 = vpop.f32.mrf.mxu0
      %v5010 = vadd.f32 %v4798, %v5009
      %5011 = vmatmul.f32.gmra.mxu0 %v4897
      %v5012 = vpop.f32.mrf.mxu0
      %v5013 = vadd.f32 %v4801, %v5012
      %5014 = vmatmul.f32.gmra.mxu0 %v4900
      %v5015 = vpop.f32.mrf.mxu0
      %v5016 = vadd.f32 %v4804, %v5015
      %5017 = vmatmul.f32.gmra.mxu0 %v4903
      %v5018 = vpop.f32.mrf.mxu0
      %v5019 = vadd.f32 %v4807, %v5018
      %5020 = vmatmul.f32.gmra.mxu0 %v4906
      %v5021 = vpop.f32.mrf.mxu0
      %v5022 = vadd.f32 %v4810, %v5021
      %5023 = vmatmul.f32.gmra.mxu0 %v4909
      %v5024 = vpop.f32.mrf.mxu0
      %v5025 = vadd.f32 %v4813, %v5024
      %5026 = vmatmul.f32.gmra.mxu0 %v4912
      %v5027 = vpop.f32.mrf.mxu0
      %v5028 = vadd.f32 %v4816, %v5027
      %5029 = vmatmul.f32.gmra.mxu0 %v4915
      %v5030 = vpop.f32.mrf.mxu0
      %v5031 = vadd.f32 %v4819, %v5030
      %5032 = vmatmul.f32.gmra.mxu0 %v4918
      %v5033 = vpop.f32.mrf.mxu0
      %v5034 = vadd.f32 %v4822, %v5033
      %5035 = vdwg.mxu0
      %v5036 = vld [vmem:[%s6] sm:$0x1]
      %v5038 = vperm.slane %v5036, 0
      %v5040 = vadd.f32 %v4941, %v5038
      %v5041 = vadd.f32 %v4944, %v5038
      %v5042 = vadd.f32 %v4947, %v5038
      %v5043 = vadd.f32 %v4950, %v5038
      %v5044 = vadd.f32 %v4953, %v5038
      %v5045 = vadd.f32 %v4956, %v5038
      %v5046 = vadd.f32 %v4959, %v5038
      %v5047 = vadd.f32 %v4962, %v5038
      %v5048 = vadd.f32 %v4965, %v5038
      %v5049 = vadd.f32 %v4968, %v5038
      %v5050 = vadd.f32 %v4971, %v5038
      %v5051 = vadd.f32 %v4974, %v5038
      %v5052 = vadd.f32 %v4977, %v5038
      %v5053 = vadd.f32 %v4980, %v5038
      %v5054 = vadd.f32 %v4983, %v5038
      %v5055 = vadd.f32 %v4986, %v5038
      %v5056 = vadd.f32 %v4989, %v5038
      %v5057 = vadd.f32 %v4992, %v5038
      %v5058 = vadd.f32 %v4995, %v5038
      %v5059 = vadd.f32 %v4998, %v5038
      %v5060 = vadd.f32 %v5001, %v5038
      %v5061 = vadd.f32 %v5004, %v5038
      %v5062 = vadd.f32 %v5007, %v5038
      %v5063 = vadd.f32 %v5010, %v5038
      %v5064 = vadd.f32 %v5013, %v5038
      %v5065 = vadd.f32 %v5016, %v5038
      %v5066 = vadd.f32 %v5019, %v5038
      %v5067 = vadd.f32 %v5022, %v5038
      %v5068 = vadd.f32 %v5025, %v5038
      %v5069 = vadd.f32 %v5028, %v5038
      %v5070 = vadd.f32 %v5031, %v5038
      %v5071 = vadd.f32 %v5034, %v5038
      %5072 = vst.msk [vmem:[%s332] sm:$0xff] %vm350, %v5040
      %5073 = vst.msk [vmem:[%s332 + $0x8] sm:$0xff] %vm350, %v5041
      %5074 = vst.msk [vmem:[%s332 + $0x10] sm:$0xff] %vm350, %v5042
      %5075 = vst.msk [vmem:[%s332 + $0x18] sm:$0xff] %vm350, %v5043
      %5076 = vst.msk [vmem:[%s332 + $0x20] sm:$0xff] %vm350, %v5044
      %5077 = vst.msk [vmem:[%s332 + $0x28] sm:$0xff] %vm350, %v5045
      %5078 = vst.msk [vmem:[%s332 + $0x30] sm:$0xff] %vm350, %v5046
      %5079 = vst.msk [vmem:[%s332 + $0x38] sm:$0xff] %vm350, %v5047
      %5080 = vst.msk [vmem:[%s332 + $0x40] sm:$0xff] %vm350, %v5048
      %5081 = vst.msk [vmem:[%s332 + $0x48] sm:$0xff] %vm350, %v5049
      %5082 = vst.msk [vmem:[%s332 + $0x50] sm:$0xff] %vm350, %v5050
      %5083 = vst.msk [vmem:[%s332 + $0x58] sm:$0xff] %vm350, %v5051
      %5084 = vst.msk [vmem:[%s332 + $0x60] sm:$0xff] %vm350, %v5052
      %5085 = vst.msk [vmem:[%s332 + $0x68] sm:$0xff] %vm350, %v5053
      %5086 = vst.msk [vmem:[%s332 + $0x70] sm:$0xff] %vm350, %v5054
      %5087 = vst.msk [vmem:[%s332 + $0x78] sm:$0xff] %vm350, %v5055
      %5088 = vst.msk [vmem:[%s332 + $0x80] sm:$0xff] %vm350, %v5056
      %5089 = vst.msk [vmem:[%s332 + $0x88] sm:$0xff] %vm350, %v5057
      %5090 = vst.msk [vmem:[%s332 + $0x90] sm:$0xff] %vm350, %v5058
      %5091 = vst.msk [vmem:[%s332 + $0x98] sm:$0xff] %vm350, %v5059
      %5092 = vst.msk [vmem:[%s332 + $0xa0] sm:$0xff] %vm350, %v5060
      %5093 = vst.msk [vmem:[%s332 + $0xa8] sm:$0xff] %vm350, %v5061
      %5094 = vst.msk [vmem:[%s332 + $0xb0] sm:$0xff] %vm350, %v5062
      %5095 = vst.msk [vmem:[%s332 + $0xb8] sm:$0xff] %vm350, %v5063
      %5096 = vst.msk [vmem:[%s332 + $0xc0] sm:$0xff] %vm350, %v5064
      %5097 = vst.msk [vmem:[%s332 + $0xc8] sm:$0xff] %vm350, %v5065
      %5098 = vst.msk [vmem:[%s332 + $0xd0] sm:$0xff] %vm350, %v5066
      %5099 = vst.msk [vmem:[%s332 + $0xd8] sm:$0xff] %vm350, %v5067
      %5100 = vst.msk [vmem:[%s332 + $0xe0] sm:$0xff] %vm350, %v5068
      %5101 = vst.msk [vmem:[%s332 + $0xe8] sm:$0xff] %vm350, %v5069
      %5102 = vst.msk [vmem:[%s332 + $0xf0] sm:$0xff] %vm350, %v5070
      %5103 = vst.msk [vmem:[%s332 + $0xf8] sm:$0xff] %vm350, %v5071
      %v5104 = vsel %vm350, %v5040, 0.0
      %v5105 = vsel %vm350, %v5041, 0.0
      %v5106 = vadd.f32 %v5104, %v5105
      %v5107 = vsel %vm350, %v5042, 0.0
      %v5108 = vadd.f32 %v5106, %v5107
      %v5109 = vsel %vm350, %v5043, 0.0
      %v5110 = vadd.f32 %v5108, %v5109
      %v5111 = vsel %vm350, %v5044, 0.0
      %v5112 = vadd.f32 %v5110, %v5111
      %v5113 = vsel %vm350, %v5045, 0.0
      %v5114 = vadd.f32 %v5112, %v5113
      %v5115 = vsel %vm350, %v5046, 0.0
      %v5116 = vadd.f32 %v5114, %v5115
      %v5117 = vsel %vm350, %v5047, 0.0
      %v5118 = vadd.f32 %v5116, %v5117
      %v5119 = vsel %vm350, %v5048, 0.0
      %v5120 = vadd.f32 %v5118, %v5119
      %v5121 = vsel %vm350, %v5049, 0.0
      %v5122 = vadd.f32 %v5120, %v5121
      %v5123 = vsel %vm350, %v5050, 0.0
      %v5124 = vadd.f32 %v5122, %v5123
      %v5125 = vsel %vm350, %v5051, 0.0
      %v5126 = vadd.f32 %v5124, %v5125
      %v5127 = vsel %vm350, %v5052, 0.0
      %v5128 = vadd.f32 %v5126, %v5127
      %v5129 = vsel %vm350, %v5053, 0.0
      %v5130 = vadd.f32 %v5128, %v5129
      %v5131 = vsel %vm350, %v5054, 0.0
      %v5132 = vadd.f32 %v5130, %v5131
      %v5133 = vsel %vm350, %v5055, 0.0
      %v5134 = vadd.f32 %v5132, %v5133
      %v5135 = vsel %vm350, %v5056, 0.0
      %v5136 = vadd.f32 %v5134, %v5135
      %v5137 = vsel %vm350, %v5057, 0.0
      %v5138 = vadd.f32 %v5136, %v5137
      %v5139 = vsel %vm350, %v5058, 0.0
      %v5140 = vadd.f32 %v5138, %v5139
      %v5141 = vsel %vm350, %v5059, 0.0
      %v5142 = vadd.f32 %v5140, %v5141
      %v5143 = vsel %vm350, %v5060, 0.0
      %v5144 = vadd.f32 %v5142, %v5143
      %v5145 = vsel %vm350, %v5061, 0.0
      %v5146 = vadd.f32 %v5144, %v5145
      %v5147 = vsel %vm350, %v5062, 0.0
      %v5148 = vadd.f32 %v5146, %v5147
      %v5149 = vsel %vm350, %v5063, 0.0
      %v5150 = vadd.f32 %v5148, %v5149
      %v5151 = vsel %vm350, %v5064, 0.0
      %v5152 = vadd.f32 %v5150, %v5151
      %v5153 = vsel %vm350, %v5065, 0.0
      %v5154 = vadd.f32 %v5152, %v5153
      %v5155 = vsel %vm350, %v5066, 0.0
      %v5156 = vadd.f32 %v5154, %v5155
      %v5157 = vsel %vm350, %v5067, 0.0
      %v5158 = vadd.f32 %v5156, %v5157
      %v5159 = vsel %vm350, %v5068, 0.0
      %v5160 = vadd.f32 %v5158, %v5159
      %v5161 = vsel %vm350, %v5069, 0.0
      %v5162 = vadd.f32 %v5160, %v5161
      %v5163 = vsel %vm350, %v5070, 0.0
      %v5164 = vadd.f32 %v5162, %v5163
      %v5165 = vsel %vm350, %v5071, 0.0
      %v5166 = vadd.f32 %v5164, %v5165
      %v5167 = vrot.slane %v5166, 4
      %v5168 = vadd.f32 %v5166, %v5167
      %v5169 = vrot.slane %v5168, 2
      %v5170 = vadd.f32 %v5168, %v5169
      %v5171 = vrot.slane %v5170, 1
      %v5172 = vadd.f32 %v5170, %v5171
      %v5173 = vmul.f32 %v5040, %v5040
      %v5174 = vmul.f32 %v5041, %v5041
      %v5175 = vmul.f32 %v5042, %v5042
      %v5176 = vmul.f32 %v5043, %v5043
      %v5177 = vmul.f32 %v5044, %v5044
      %v5178 = vmul.f32 %v5045, %v5045
      %v5179 = vmul.f32 %v5046, %v5046
      %v5180 = vmul.f32 %v5047, %v5047
      %v5181 = vmul.f32 %v5048, %v5048
      %v5182 = vmul.f32 %v5049, %v5049
      %v5183 = vmul.f32 %v5050, %v5050
      %v5184 = vmul.f32 %v5051, %v5051
      %v5185 = vmul.f32 %v5052, %v5052
      %v5186 = vmul.f32 %v5053, %v5053
      %v5187 = vmul.f32 %v5054, %v5054
      %v5188 = vmul.f32 %v5055, %v5055
      %v5189 = vmul.f32 %v5056, %v5056
      %v5190 = vmul.f32 %v5057, %v5057
      %v5191 = vmul.f32 %v5058, %v5058
      %v5192 = vmul.f32 %v5059, %v5059
      %v5193 = vmul.f32 %v5060, %v5060
      %v5194 = vmul.f32 %v5061, %v5061
      %v5195 = vmul.f32 %v5062, %v5062
      %v5196 = vmul.f32 %v5063, %v5063
      %v5197 = vmul.f32 %v5064, %v5064
      %v5198 = vmul.f32 %v5065, %v5065
      %v5199 = vmul.f32 %v5066, %v5066
      %v5200 = vmul.f32 %v5067, %v5067
      %v5201 = vmul.f32 %v5068, %v5068
      %v5202 = vmul.f32 %v5069, %v5069
      %v5203 = vmul.f32 %v5070, %v5070
      %v5204 = vmul.f32 %v5071, %v5071
      %v5205 = vsel %vm350, %v5173, 0.0
      %v5206 = vsel %vm350, %v5174, 0.0
      %v5207 = vadd.f32 %v5205, %v5206
      %v5208 = vsel %vm350, %v5175, 0.0
      %v5209 = vadd.f32 %v5207, %v5208
      %v5210 = vsel %vm350, %v5176, 0.0
      %v5211 = vadd.f32 %v5209, %v5210
      %v5212 = vsel %vm350, %v5177, 0.0
      %v5213 = vadd.f32 %v5211, %v5212
      %v5214 = vsel %vm350, %v5178, 0.0
      %v5215 = vadd.f32 %v5213, %v5214
      %v5216 = vsel %vm350, %v5179, 0.0
      %v5217 = vadd.f32 %v5215, %v5216
      %v5218 = vsel %vm350, %v5180, 0.0
      %v5219 = vadd.f32 %v5217, %v5218
      %v5220 = vsel %vm350, %v5181, 0.0
      %v5221 = vadd.f32 %v5219, %v5220
      %v5222 = vsel %vm350, %v5182, 0.0
      %v5223 = vadd.f32 %v5221, %v5222
      %v5224 = vsel %vm350, %v5183, 0.0
      %v5225 = vadd.f32 %v5223, %v5224
      %v5226 = vsel %vm350, %v5184, 0.0
      %v5227 = vadd.f32 %v5225, %v5226
      %v5228 = vsel %vm350, %v5185, 0.0
      %v5229 = vadd.f32 %v5227, %v5228
      %v5230 = vsel %vm350, %v5186, 0.0
      %v5231 = vadd.f32 %v5229, %v5230
      %v5232 = vsel %vm350, %v5187, 0.0
      %v5233 = vadd.f32 %v5231, %v5232
      %v5234 = vsel %vm350, %v5188, 0.0
      %v5235 = vadd.f32 %v5233, %v5234
      %v5236 = vsel %vm350, %v5189, 0.0
      %v5237 = vadd.f32 %v5235, %v5236
      %v5238 = vsel %vm350, %v5190, 0.0
      %v5239 = vadd.f32 %v5237, %v5238
      %v5240 = vsel %vm350, %v5191, 0.0
      %v5241 = vadd.f32 %v5239, %v5240
      %v5242 = vsel %vm350, %v5192, 0.0
      %v5243 = vadd.f32 %v5241, %v5242
      %v5244 = vsel %vm350, %v5193, 0.0
      %v5245 = vadd.f32 %v5243, %v5244
      %v5246 = vsel %vm350, %v5194, 0.0
      %v5247 = vadd.f32 %v5245, %v5246
      %v5248 = vsel %vm350, %v5195, 0.0
      %v5249 = vadd.f32 %v5247, %v5248
      %v5250 = vsel %vm350, %v5196, 0.0
      %v5251 = vadd.f32 %v5249, %v5250
      %v5252 = vsel %vm350, %v5197, 0.0
      %v5253 = vadd.f32 %v5251, %v5252
      %v5254 = vsel %vm350, %v5198, 0.0
      %v5255 = vadd.f32 %v5253, %v5254
      %v5256 = vsel %vm350, %v5199, 0.0
      %v5257 = vadd.f32 %v5255, %v5256
      %v5258 = vsel %vm350, %v5200, 0.0
      %v5259 = vadd.f32 %v5257, %v5258
      %v5260 = vsel %vm350, %v5201, 0.0
      %v5261 = vadd.f32 %v5259, %v5260
      %v5262 = vsel %vm350, %v5202, 0.0
      %v5263 = vadd.f32 %v5261, %v5262
      %v5264 = vsel %vm350, %v5203, 0.0
      %v5265 = vadd.f32 %v5263, %v5264
      %v5266 = vsel %vm350, %v5204, 0.0
      %v5267 = vadd.f32 %v5265, %v5266
      %v5268 = vrot.slane %v5267, 4
      %v5269 = vadd.f32 %v5267, %v5268
      %v5270 = vrot.slane %v5269, 2
      %v5271 = vadd.f32 %v5269, %v5270
      %v5272 = vrot.slane %v5271, 1
      %v5273 = vadd.f32 %v5271, %v5272
      %v5274 = vsel %vm792, %v5172, %v5273
      %vm5275 = vcmask 58368
      %5276 = vst.msk [vmem:[%s336] sm:$0x3] %vm5275, %v5274
      %p5277 = scmp.lt.s32.totalorder %s20, 1
      %s5278 = scalar_select %p5277, %s20, 1
      %s5279 = smul.addr %s5278, 32
      %s5280 = smul.addr %s5279, 8
      %s5281 = scalar_lea.vmem %s7, %s5280
      %p5282 = scmp.lt.s32.totalorder %s20, 1
      %s5283 = scalar_select %p5282, %s20, 1
      %s5284 = smul.addr %s5283, 2
      %s5285 = scalar_lea.vmem %s8, %s5284
      // Predicated region
      $region49: #{upsample_forward.3} parent=47 // pred_check
        %p5286 = pneg %p195
      $region50: #{upsample_forward.3} parent=47 // pred_check_branch
        %5288 = sbr.rel (%p5286) target = $region52
      $region51: #{upsample_forward.3} parent=47 // pred_region
        _
      $region52: #{upsample_forward.3} parent=47 // pred_fallthru
        _
      // Predicated region
      $region53: #{upsample_forward.3} parent=47 // pred_check
        %p5289 = pneg %p221
      $region54: #{upsample_forward.3} parent=47 // pred_check_branch
        %5291 = sbr.rel (%p5289) target = $region56
      $region55: #{upsample_forward.3} parent=47 // pred_region
        _
      $region56: #{upsample_forward.3} parent=47 // pred_fallthru
        _
    $region48: #{upsample_forward.3} parent=5 // pred_fallthru
      _
    %p5292 = scmp.le.s32.totalorder 2, %s15
    // Predicated region
    $region57: #{upsample_forward.3} parent=5 // pred_check
      %p5293 = pneg %p5292
    $region58: #{upsample_forward.3} parent=5 // pred_check_branch
      %5295 = sbr.rel (%p5293) target = $region60
    $region59: #{upsample_forward.3} parent=5 // pred_region
      %s5296 = ssub.s32 %s15, 2
      // Predicated region
      $region61: #{upsample_forward.3} parent=59 // pred_check
        %p5297 = pneg %p201
      $region62: #{upsample_forward.3} parent=59 // pred_check_branch
        %5299 = sbr.rel (%p5297) target = $region64
      $region63: #{upsample_forward.3} parent=59 // pred_region
        %p5300 = scmp.lt.s32.totalorder %s21, 1
        %s5301 = scalar_select %p5300, %s21, 1
        %s5302 = smul.addr %s5301, 32
        %s5303 = smul.addr %s5302, 8
        %s5304 = scalar_lea.vmem %s7, %s5303
      $region64: #{upsample_forward.3} parent=59 // pred_fallthru
        _
      // Predicated region
      $region65: #{upsample_forward.3} parent=59 // pred_check
        %p5305 = pneg %p227
      $region66: #{upsample_forward.3} parent=59 // pred_check_branch
        %5307 = sbr.rel (%p5305) target = $region68
      $region67: #{upsample_forward.3} parent=59 // pred_region
        %p5308 = scmp.lt.s32.totalorder %s21, 1
        %s5309 = scalar_select %p5308, %s21, 1
        %s5310 = smul.addr %s5309, 2
        %s5311 = scalar_lea.vmem %s8, %s5310
      $region68: #{upsample_forward.3} parent=59 // pred_fallthru
        _
    $region60: #{upsample_forward.3} parent=5 // pred_fallthru
      _
  $region6: #{upsample_forward.3} parent=0 // loop_footer
    %s19 = sadd.s32 1, %s15
  $region7: #{upsample_forward.3} parent=0 // loop_footer_branch
    %14 = sbr.rel target = $region3
  $region8: #{upsample_forward.3} parent=0 // loop_exit
    _

</llo_original>
